<compile_context>
chip_gen: v6e
topology: v6e:2x2x1
jax: 0.10.0
libtpu: 0.0.40
codegen_flags: <defaults>
</compile_context>

<pallas_src>
import numpy as np
import jax
import jax.numpy as jnp
from jax.experimental import pallas as pl
from jax.experimental.pallas import tpu as pltpu


# ----------------------------- Pallas kernels ------------------------------

def _conv_bn_relu_pool_kernel(p_ref, w_ref, scale_ref, shift_ref, o_ref):
    """Fused conv + BN + ReLU + 2x2 max-pool on one row block.

    p_ref : (2, TM, K) bf16 -- two pool-row taps (dy=0,1); each row holds the 3
            input rows (ki=0..2) feeding one pooled output row, concatenated
            along K (banded-im2col rows).
    w_ref : (K, 2*Wout) bf16 -- banded conv weights; output columns ordered
            (j%2, j//2, channel) so the width-direction pool is a max of the
            two contiguous, 128-aligned column halves.
    scale_ref, shift_ref : (1, 2*Wout) f32 -- folded BatchNorm affine.
    o_ref : (TM, Wout) bf16 -- pooled activation, lane-dense.
    """
    w = w_ref[...]
    scale = scale_ref[...]
    shift = shift_ref[...]
    wout = o_ref.shape[-1]
    # One long MXU stream per pool-row tap.  BN affine + ReLU are applied per
    # tap *before* the pooling max (folded BN gamma may be negative).  The two
    # taps stay as two dots (merging them would need an in-kernel
    # (2,TM,K)->(2TM,K) reshape; each dot is already a full-width MXU stream).
    z = None
    for t in range(2):
        y = jnp.dot(p_ref[t], w, preferred_element_type=jnp.float32)
        y = jnp.maximum(y * scale + shift, 0.0)
        z = y if z is None else jnp.maximum(z, y)          # pool over row taps
    # Pool over the width direction: max of the two contiguous column halves.
    o_ref[...] = jnp.maximum(z[:, :wout], z[:, wout:]).astype(o_ref.dtype)


def _fc_chain_kernel(x_ref, w1_ref, b1_ref, w2_ref, b2_ref, w3_ref, b3_ref,
                     o_ref):
    """Fused fc1 -> dropout(identity) -> fc2 -> fc3 on one batch tile."""
    h = jnp.dot(x_ref[...], w1_ref[...], preferred_element_type=jnp.float32)
    h = h + b1_ref[...]
    # Dropout(p=0.25) is the identity in eval mode.
    h = jnp.dot(h.astype(jnp.bfloat16), w2_ref[...],
                preferred_element_type=jnp.float32) + b2_ref[...]
    h = jnp.dot(h.astype(jnp.bfloat16), w3_ref[...],
                preferred_element_type=jnp.float32) + b3_ref[...]
    o_ref[...] = h.astype(o_ref.dtype)


# ------------------------------ tiling helpers ------------------------------

def _round_up(x, m):
    return ((x + m - 1) // m) * m


def _choose_tile(m, target):
    """Row tile (multiple of 16) and padded row count the tile divides."""
    m16 = _round_up(m, 16)
    tm = min(_round_up(target, 16), m16)
    return tm, _round_up(m16, tm)


def _pad_rows(x, rows_to, axis):
    pad = rows_to - x.shape[axis]
    if pad == 0:
        return x
    widths = [(0, 0)] * x.ndim
    widths[axis] = (0, pad)
    return jnp.pad(x, widths)


_COMPILER_PARAMS = pltpu.CompilerParams(
    dimension_semantics=("parallel",),
    vmem_limit_bytes=32 * 1024 * 1024,
)


# ------------------------------ Pallas wrappers -----------------------------

def _conv_stage(patches, bweights, scale, shift, out_cols, *, tile_target):
    """patches: (2, M, K) bf16 row-tap banded rows; bweights: (K, 2*out_cols);
    scale/shift: (1, 2*out_cols) f32.  Returns (M, out_cols) bf16 pooled act."""
    _, m, k = patches.shape
    n2 = bweights.shape[1]
    tm, mp = _choose_tile(m, tile_target)
    patches = _pad_rows(patches, mp, axis=1)
    out = pl.pallas_call(
        _conv_bn_relu_pool_kernel,
        grid=(mp // tm,),
        out_shape=jax.ShapeDtypeStruct((mp, out_cols), jnp.bfloat16),
        in_specs=[
            pl.BlockSpec((2, tm, k), lambda i: (0, i, 0)),
            pl.BlockSpec((k, n2), lambda i: (0, 0)),   # resident across steps
            pl.BlockSpec((1, n2), lambda i: (0, 0)),
            pl.BlockSpec((1, n2), lambda i: (0, 0)),
        ],
        out_specs=pl.BlockSpec((tm, out_cols), lambda i: (i, 0)),
        compiler_params=_COMPILER_PARAMS,
    )(patches, bweights, scale, shift)
    return out[:m]


def fc_chain(x, w1, b1, w2, b2, w3, b3, *, tile_target=256):
    """x: (B, 2304) bf16 -> logits (B, 128) f32 (cols >= 10 are zero pads)."""
    m, k = x.shape
    n1, n2, n3 = w1.shape[1], w2.shape[1], w3.shape[1]
    tm, mp = _choose_tile(m, tile_target)
    xp = _pad_rows(x, mp, axis=0)
    out = pl.pallas_call(
        _fc_chain_kernel,
        grid=(mp // tm,),
        out_shape=jax.ShapeDtypeStruct((mp, n3), jnp.float32),
        in_specs=[
            pl.BlockSpec((tm, k), lambda i: (i, 0)),
            pl.BlockSpec((k, n1), lambda i: (0, 0)),
            pl.BlockSpec((1, n1), lambda i: (0, 0)),
            pl.BlockSpec((n1, n2), lambda i: (0, 0)),
            pl.BlockSpec((1, n2), lambda i: (0, 0)),
            pl.BlockSpec((n2, n3), lambda i: (0, 0)),
            pl.BlockSpec((1, n3), lambda i: (0, 0)),
        ],
        out_specs=pl.BlockSpec((tm, n3), lambda i: (i, 0)),
        compiler_params=_COMPILER_PARAMS,
    )(xp, w1, b1, w2, b2, w3, b3)
    return out[:m]


# --------------------- host-side row-tap prep (XLA glue) --------------------
# Only the H-direction of the im2col is done host-side: each LHS row contains
# the 3 input rows that feed one pooled output row, for each of the 2 pool-row
# taps.  The (kj, channel) part of the im2col lives in the banded weights.

def _layer1_rows(x_nhw):
    """x: (N, 28, 28) f32 -> (2, N*14, 90) bf16."""
    n = x_nhw.shape[0]
    xp = jnp.pad(x_nhw, ((0, 0), (1, 1), (1, 1)))            # (N, 30, 30)
    taps = []
    for dy in range(2):
        segs = [xp[:, dy + ki: dy + ki + 28: 2, :] for ki in range(3)]
        taps.append(jnp.concatenate(segs, axis=-1).reshape(n * 14, 90))
    return jnp.stack(taps, axis=0).astype(jnp.bfloat16)


def _layer2_rows(a1, n):
    """a1: (N*14, 512) bf16 -> (2, N*6, 1536) bf16.
    TODO(synk): the remaining 2.6x H-direction row duplication could also be
    folded into the kernel (shifted in-VMEM reads); kept host-side so the
    kernel needs no in-kernel reshapes / sublane-strided ops."""
    a1r = a1.reshape(n, 14, 512)
    taps = []
    for dy in range(2):
        segs = [a1r[:, dy + ki: dy + ki + 12: 2, :] for ki in range(3)]
        taps.append(jnp.concatenate(segs, axis=-1).reshape(n * 6, 1536))
    return jnp.stack(taps, axis=0)


# ------------------------------- parameters ---------------------------------

def init_torch_params(key):
    """Random parameters in the original PyTorch layouts (for the reference)."""
    f32 = jnp.float32
    ks = jax.random.split(key, 16)

    def rnd(k, shape, scale=0.05):
        return (scale * jax.random.normal(k, shape)).astype(f32)

    return {
        "conv1_w": rnd(ks[0], (32, 1, 3, 3)),
        "conv1_b": rnd(ks[1], (32,)),
        "bn1_g": (1.0 + 0.1 * jax.random.normal(ks[2], (32,))).astype(f32),
        "bn1_b": rnd(ks[3], (32,)),
        "bn1_m": rnd(ks[4], (32,), scale=0.1),
        "bn1_v": (0.5 + jax.random.uniform(ks[5], (32,))).astype(f32),
        "conv2_w": rnd(ks[6], (64, 32, 3, 3)),
        "conv2_b": rnd(ks[7], (64,)),
        "bn2_g": (1.0 + 0.1 * jax.random.normal(ks[8], (64,))).astype(f32),
        "bn2_b": rnd(ks[9], (64,)),
        "bn2_m": rnd(ks[10], (64,), scale=0.1),
        "bn2_v": (0.5 + jax.random.uniform(ks[11], (64,))).astype(f32),
        "fc1_w": rnd(ks[12], (600, 64 * 6 * 6)),
        "fc1_b": jnp.zeros((600,), f32),
        "fc2_w": rnd(ks[13], (120, 600)),
        "fc2_b": rnd(ks[14], (120,), scale=0.01),
        "fc3_w": rnd(ks[15], (10, 120)),
        "fc3_b": jnp.zeros((10,), f32),
    }


def pack_params(tp):
    """Kernel-friendly packing: banded bf16 conv weights, folded BN, permuted
    fc1, fc2/fc3 padded to 128 lanes."""
    bf16, f32 = jnp.bfloat16, jnp.float32
    eps = 1e-5

    def bn_fold(conv_b, g, b, m, v):
        g = np.asarray(g, np.float32)
        v = np.asarray(v, np.float32)
        s = g / np.sqrt(v + eps)
        sh = (np.asarray(conv_b, np.float32) * s + np.asarray(b, np.float32)
              - np.asarray(m, np.float32) * s)
        return s, sh

    def affine_cols(vec, reps, half_width):
        c = vec.shape[0]
        t = np.tile(vec[None, :], (reps, 1)).reshape(reps * c)
        t = np.pad(t, (0, half_width - reps * c))
        return np.concatenate([t, t])[None, :].astype(np.float32)

    p = {}

    # --- layer1 banded weights: rows ki*30+s, cols (j%2)*512 + (j//2)*32 + c.
    w1 = np.asarray(tp["conv1_w"], np.float32)          # (32,1,3,3) OIHW
    wt1 = np.transpose(w1[:, 0], (1, 2, 0))             # (ki,kj,c)
    B1 = np.zeros((3, 30, 28, 32), np.float32)
    for ki in range(3):
        for kj in range(3):
            for j in range(28):
                B1[ki, j + kj, j, :] = wt1[ki, kj]
    B1 = B1.reshape(3, 30, 14, 2, 32).transpose(0, 1, 3, 2, 4)
    B1 = B1.reshape(3, 30, 2, 448)
    B1 = np.pad(B1, ((0, 0), (0, 0), (0, 0), (0, 64))).reshape(90, 1024)
    s1, h1 = bn_fold(tp["conv1_b"], tp["bn1_g"], tp["bn1_b"],
                     tp["bn1_m"], tp["bn1_v"])
    p["B1"] = jnp.asarray(B1, bf16)
    p["scale1"] = jnp.asarray(affine_cols(s1, 14, 512), f32)
    p["shift1"] = jnp.asarray(affine_cols(h1, 14, 512), f32)

    # --- layer2 banded weights: rows ki*512 + jw*32 + c,
    #     cols (j%2)*384 + (j//2)*64 + d.
    w2 = np.asarray(tp["conv2_w"], np.float32)           # (64,32,3,3) OIHW
    wt2 = np.transpose(w2, (2, 3, 1, 0))                 # (ki,kj,c,d)
    B2 = np.zeros((3, 14, 32, 12, 64), np.float32)
    for ki in range(3):
        for kj in range(3):
            for j in range(12):
                B2[ki, j + kj, :, j, :] = wt2[ki, kj]
    B2 = B2.reshape(3, 14, 32, 6, 2, 64).transpose(0, 1, 2, 4, 3, 5)
    B2 = B2.reshape(3, 448, 768)
    B2 = np.pad(B2, ((0, 0), (0, 64), (0, 0))).reshape(1536, 768)
    s2, h2 = bn_fold(tp["conv2_b"], tp["bn2_g"], tp["bn2_b"],
                     tp["bn2_m"], tp["bn2_v"])
    p["B2"] = jnp.asarray(B2, bf16)
    p["scale2"] = jnp.asarray(affine_cols(s2, 6, 384), f32)
    p["shift2"] = jnp.asarray(affine_cols(h2, 6, 384), f32)

    # --- fc1: permute input index (c,h,w) -> (h,w,c) to match the lane-dense
    #     NHWC-style flatten of a2 (no runtime transpose of the activation).
    W1 = np.asarray(tp["fc1_w"], np.float32).reshape(600, 64, 6, 6)
    W1 = np.transpose(W1, (2, 3, 1, 0)).reshape(2304, 600)
    p["fc1_w"] = jnp.asarray(W1, bf16)
    p["fc1_b"] = jnp.asarray(tp["fc1_b"], f32).reshape(1, 600)
    # --- fc2 padded 120 -> 128 output lanes (zero pads).
    W2 = np.pad(np.asarray(tp["fc2_w"], np.float32).T, ((0, 0), (0, 8)))
    p["fc2_w"] = jnp.asarray(W2, bf16)
    p["fc2_b"] = jnp.asarray(
        np.pad(np.asarray(tp["fc2_b"], np.float32), (0, 8)), f32).reshape(1, 128)
    # --- fc3 padded to 128x128 (zero pads); logits sliced to 10 in the wrapper.
    W3 = np.pad(np.asarray(tp["fc3_w"], np.float32).T, ((0, 8), (0, 118)))
    p["fc3_w"] = jnp.asarray(W3, bf16)
    p["fc3_b"] = jnp.asarray(
        np.pad(np.asarray(tp["fc3_b"], np.float32), (0, 118)), f32).reshape(1, 128)
    return p


# --------------------------------- forward ----------------------------------

def fashion_cnn_forward(x_nchw, params):
    """x_nchw: (N, 1, 28, 28) f32 -> logits (N, 10) f32."""
    n = x_nchw.shape[0]
    x = x_nchw.reshape(n, 28, 28).astype(jnp.float32)           # Cin = 1

    # layer1: conv(pad=1)+BN+ReLU+pool -> (N*14, 512), rows (n, h), cols (w, c)
    p1 = _layer1_rows(x)
    a1 = _conv_stage(p1, params["B1"], params["scale1"], params["shift1"],
                     out_cols=512, tile_target=512)

    # layer2: conv+BN+ReLU+pool -> (N*6, 384), rows (n, h), cols (w, c)
    p2 = _layer2_rows(a1, n)
    a2 = _conv_stage(p2, params["B2"], params["scale2"], params["shift2"],
                     out_cols=384, tile_target=256)

    # flatten (free: row-major compatible) -> fused fc1/fc2/fc3
    flat = a2.reshape(n, 6 * 384)
    logits = fc_chain(flat, params["fc1_w"], params["fc1_b"],
                      params["fc2_w"], params["fc2_b"],
                      params["fc3_w"], params["fc3_b"], tile_target=256)
    return logits[:, :10]


# ------------------------- pure-JAX reference (f32) --------------------------

def reference_forward(x_nchw, tp):
    f32 = jnp.float32
    x = x_nchw.astype(f32)

    def conv(x, w, b, pad):
        y = jax.lax.conv_general_dilated(
            x, w, window_strides=(1, 1),
            padding=((pad, pad), (pad, pad)),
            dimension_numbers=("NCHW", "OIHW", "NCHW"))
        return y + b.reshape(1, -1, 1, 1)

    def bn(x, g, b, m, v, eps=1e-5):
        s = (g / jnp.sqrt(v + eps)).reshape(1, -1, 1, 1)
        return (x - m.reshape(1, -1, 1, 1)) * s + b.reshape(1, -1, 1, 1)

    def pool(x):
        n, c, h, w = x.shape
        return jnp.max(x.reshape(n, c, h // 2, 2, w // 2, 2), axis=(3, 5))

    y = pool(jnp.maximum(bn(conv(x, tp["conv1_w"], tp["conv1_b"], 1),
                            tp["bn1_g"], tp["bn1_b"], tp["bn1_m"], tp["bn1_v"]), 0.0))
    y = pool(jnp.maximum(bn(conv(y, tp["conv2_w"], tp["conv2_b"], 0),
                            tp["bn2_g"], tp["bn2_b"], tp["bn2_m"], tp["bn2_v"]), 0.0))
    y = y.reshape(y.shape[0], -1)                      # NCHW flatten (torch order)
    y = y @ tp["fc1_w"].T + tp["fc1_b"]
    y = y @ tp["fc2_w"].T + tp["fc2_b"]
    y = y @ tp["fc3_w"].T + tp["fc3_b"]
    return y


# ----------------------------------- main ------------------------------------

if __name__ == "__main__":
    key = jax.random.PRNGKey(0)
    k_param, k_data = jax.random.split(key)

    tp = init_torch_params(k_param)
    params = pack_params(tp)

    # FashionMNIST-shaped input: batch=2, 1 channel, 28x28 (fc1 needs 64*6*6).
    x = jax.random.normal(k_data, (2, 1, 28, 28), dtype=jnp.float32)

    logits = jax.jit(fashion_cnn_forward)(x, params)
    logits = jax.block_until_ready(logits)
    assert logits.shape == (2, 10), logits.shape

    ref = reference_forward(x, tp)
    max_err = float(jnp.max(jnp.abs(logits.astype(jnp.float32) - ref)))
    assert max_err < 5e-2, f"max abs error vs reference: {max_err}"

    print("KERNEL_OK")
</pallas_src>

<mosaic_0001>
module attributes {stable_mosaic.version = 11 : i64} {
  func.func @_conv_bn_relu_pool_kernel(%arg0: i32, %arg1: memref<2x32x90xbf16, #tpu.memory_space<vmem>>, %arg2: memref<90x1024xbf16, #tpu.memory_space<vmem>>, %arg3: memref<1x1024xf32, #tpu.memory_space<vmem>>, %arg4: memref<1x1024xf32, #tpu.memory_space<vmem>>, %arg5: memref<32x512xbf16, #tpu.memory_space<vmem>>) attributes {dimension_semantics = [#tpu.dimension_semantics<parallel>], iteration_bounds = array<i64: 1>, scalar_prefetch = 0 : i64, scratch_operands = 0 : i64, tpu.core_type = #tpu.core_type<tc>, window_params = [{transform_indices = @transform_0, window_bounds = array<i64: 2, 32, 90>}, {pipeline_mode = #tpu.pipeline_mode<synchronous>, transform_indices = @transform_1, window_bounds = array<i64: 90, 1024>}, {pipeline_mode = #tpu.pipeline_mode<synchronous>, transform_indices = @transform_2, window_bounds = array<i64: 1, 1024>}, {pipeline_mode = #tpu.pipeline_mode<synchronous>, transform_indices = @transform_3, window_bounds = array<i64: 1, 1024>}, {transform_indices = @transform_4, window_bounds = array<i64: 32, 512>}]} {
    %c0 = arith.constant 0 : index
    %c0_0 = arith.constant 0 : index
    %0 = vector.load %arg2[%c0, %c0_0] : memref<90x1024xbf16, #tpu.memory_space<vmem>>, vector<90x1024xbf16>
    %c0_1 = arith.constant 0 : index
    %c0_2 = arith.constant 0 : index
    %1 = vector.load %arg3[%c0_1, %c0_2] : memref<1x1024xf32, #tpu.memory_space<vmem>>, vector<1x1024xf32>
    %c0_3 = arith.constant 0 : index
    %c0_4 = arith.constant 0 : index
    %2 = vector.load %arg4[%c0_3, %c0_4] : memref<1x1024xf32, #tpu.memory_space<vmem>>, vector<1x1024xf32>
    %c0_5 = arith.constant 0 : index
    %c0_6 = arith.constant 0 : index
    %c0_7 = arith.constant 0 : index
    %3 = vector.load %arg1[%c0_5, %c0_6, %c0_7] : memref<2x32x90xbf16, #tpu.memory_space<vmem>>, vector<1x32x90xbf16>
    %4 = vector.shape_cast %3 : vector<1x32x90xbf16> to vector<32x90xbf16>
    %cst = arith.constant dense<0.000000e+00> : vector<32x1024xf32>
    %5 = tpu.matmul %4, %0, %cst {dimension_numbers = #tpu.dot_dimension_numbers<[1], [0], [0], [1], [0, 0, 1, 1], [], []>} : vector<32x90xbf16>, vector<90x1024xbf16>, vector<32x1024xf32> -> vector<32x1024xf32>
    %6 = vector.broadcast %1 : vector<1x1024xf32> to vector<32x1024xf32>
    %7 = arith.mulf %5, %6 : vector<32x1024xf32>
    %8 = vector.broadcast %2 : vector<1x1024xf32> to vector<32x1024xf32>
    %9 = arith.addf %7, %8 : vector<32x1024xf32>
    %cst_8 = arith.constant 0.000000e+00 : f32
    %10 = vector.broadcast %cst_8 : f32 to vector<32x1024xf32>
    %11 = arith.maximumf %9, %10 : vector<32x1024xf32>
    %c1 = arith.constant 1 : index
    %c0_9 = arith.constant 0 : index
    %c0_10 = arith.constant 0 : index
    %12 = vector.load %arg1[%c1, %c0_9, %c0_10] : memref<2x32x90xbf16, #tpu.memory_space<vmem>>, vector<1x32x90xbf16>
    %13 = vector.shape_cast %12 : vector<1x32x90xbf16> to vector<32x90xbf16>
    %cst_11 = arith.constant dense<0.000000e+00> : vector<32x1024xf32>
    %14 = tpu.matmul %13, %0, %cst_11 {dimension_numbers = #tpu.dot_dimension_numbers<[1], [0], [0], [1], [0, 0, 1, 1], [], []>} : vector<32x90xbf16>, vector<90x1024xbf16>, vector<32x1024xf32> -> vector<32x1024xf32>
    %15 = vector.broadcast %1 : vector<1x1024xf32> to vector<32x1024xf32>
    %16 = arith.mulf %14, %15 : vector<32x1024xf32>
    %17 = vector.broadcast %2 : vector<1x1024xf32> to vector<32x1024xf32>
    %18 = arith.addf %16, %17 : vector<32x1024xf32>
    %cst_12 = arith.constant 0.000000e+00 : f32
    %19 = vector.broadcast %cst_12 : f32 to vector<32x1024xf32>
    %20 = arith.maximumf %18, %19 : vector<32x1024xf32>
    %21 = arith.maximumf %11, %20 : vector<32x1024xf32>
    %22 = vector.extract_strided_slice %21 {offsets = [0, 0], sizes = [32, 512], strides = [1, 1]} : vector<32x1024xf32> to vector<32x512xf32>
    %23 = vector.extract_strided_slice %21 {offsets = [0, 512], sizes = [32, 512], strides = [1, 1]} : vector<32x1024xf32> to vector<32x512xf32>
    %24 = arith.maximumf %22, %23 : vector<32x512xf32>
    %25 = arith.truncf %24 : vector<32x512xf32> to vector<32x512xbf16>
    %c0_13 = arith.constant 0 : index
    %c0_14 = arith.constant 0 : index
    %26 = vector.load %arg5[%c0_13, %c0_14] : memref<32x512xbf16, #tpu.memory_space<vmem>>, vector<32x512xbf16>
    tpu.vector_store %arg5[%c0_13, %c0_14], %25 {strides = array<i32>} : memref<32x512xbf16, #tpu.memory_space<vmem>>, vector<32x512xbf16>,
    return
  }
  func.func @transform_0(%arg0: i32) -> (i32, i32, i32) {
    %c0_i32 = arith.constant 0 : i32
    %c0_i32_0 = arith.constant 0 : i32
    %c0_i32_1 = arith.constant 0 : i32
    return %c0_i32, %arg0, %c0_i32_0 : i32, i32, i32
  }
  func.func @transform_1(%arg0: i32) -> (i32, i32) {
    %c0_i32 = arith.constant 0 : i32
    %c0_i32_0 = arith.constant 0 : i32
    %c0_i32_1 = arith.constant 0 : i32
    return %c0_i32, %c0_i32_0 : i32, i32
  }
  func.func @transform_2(%arg0: i32) -> (i32, i32) {
    %c0_i32 = arith.constant 0 : i32
    %c0_i32_0 = arith.constant 0 : i32
    %c0_i32_1 = arith.constant 0 : i32
    return %c0_i32, %c0_i32_0 : i32, i32
  }
  func.func @transform_3(%arg0: i32) -> (i32, i32) {
    %c0_i32 = arith.constant 0 : i32
    %c0_i32_0 = arith.constant 0 : i32
    %c0_i32_1 = arith.constant 0 : i32
    return %c0_i32, %c0_i32_0 : i32, i32
  }
  func.func @transform_4(%arg0: i32) -> (i32, i32) {
    %c0_i32 = arith.constant 0 : i32
    %c0_i32_0 = arith.constant 0 : i32
    return %arg0, %c0_i32 : i32, i32
  }
}

module attributes {stable_mosaic.version = 11 : i64} {
  func.func @_conv_bn_relu_pool_kernel(%arg0: i32, %arg1: memref<2x16x1536xbf16, #tpu.memory_space<vmem>>, %arg2: memref<1536x768xbf16, #tpu.memory_space<vmem>>, %arg3: memref<1x768xf32, #tpu.memory_space<vmem>>, %arg4: memref<1x768xf32, #tpu.memory_space<vmem>>, %arg5: memref<16x384xbf16, #tpu.memory_space<vmem>>) attributes {dimension_semantics = [#tpu.dimension_semantics<parallel>], iteration_bounds = array<i64: 1>, scalar_prefetch = 0 : i64, scratch_operands = 0 : i64, tpu.core_type = #tpu.core_type<tc>, window_params = [{transform_indices = @transform_0, window_bounds = array<i64: 2, 16, 1536>}, {pipeline_mode = #tpu.pipeline_mode<synchronous>, transform_indices = @transform_1, window_bounds = array<i64: 1536, 768>}, {pipeline_mode = #tpu.pipeline_mode<synchronous>, transform_indices = @transform_2, window_bounds = array<i64: 1, 768>}, {pipeline_mode = #tpu.pipeline_mode<synchronous>, transform_indices = @transform_3, window_bounds = array<i64: 1, 768>}, {transform_indices = @transform_4, window_bounds = array<i64: 16, 384>}]} {
    %c0 = arith.constant 0 : index
    %c0_0 = arith.constant 0 : index
    %0 = vector.load %arg2[%c0, %c0_0] : memref<1536x768xbf16, #tpu.memory_space<vmem>>, vector<1536x768xbf16>
    %c0_1 = arith.constant 0 : index
    %c0_2 = arith.constant 0 : index
    %1 = vector.load %arg3[%c0_1, %c0_2] : memref<1x768xf32, #tpu.memory_space<vmem>>, vector<1x768xf32>
    %c0_3 = arith.constant 0 : index
    %c0_4 = arith.constant 0 : index
    %2 = vector.load %arg4[%c0_3, %c0_4] : memref<1x768xf32, #tpu.memory_space<vmem>>, vector<1x768xf32>
    %c0_5 = arith.constant 0 : index
    %c0_6 = arith.constant 0 : index
    %c0_7 = arith.constant 0 : index
    %3 = vector.load %arg1[%c0_5, %c0_6, %c0_7] : memref<2x16x1536xbf16, #tpu.memory_space<vmem>>, vector<1x16x1536xbf16>
    %4 = vector.shape_cast %3 : vector<1x16x1536xbf16> to vector<16x1536xbf16>
    %cst = arith.constant dense<0.000000e+00> : vector<16x768xf32>
    %5 = tpu.matmul %4, %0, %cst {dimension_numbers = #tpu.dot_dimension_numbers<[1], [0], [0], [1], [0, 0, 1, 1], [], []>} : vector<16x1536xbf16>, vector<1536x768xbf16>, vector<16x768xf32> -> vector<16x768xf32>
    %6 = vector.broadcast %1 : vector<1x768xf32> to vector<16x768xf32>
    %7 = arith.mulf %5, %6 : vector<16x768xf32>
    %8 = vector.broadcast %2 : vector<1x768xf32> to vector<16x768xf32>
    %9 = arith.addf %7, %8 : vector<16x768xf32>
    %cst_8 = arith.constant 0.000000e+00 : f32
    %10 = vector.broadcast %cst_8 : f32 to vector<16x768xf32>
    %11 = arith.maximumf %9, %10 : vector<16x768xf32>
    %c1 = arith.constant 1 : index
    %c0_9 = arith.constant 0 : index
    %c0_10 = arith.constant 0 : index
    %12 = vector.load %arg1[%c1, %c0_9, %c0_10] : memref<2x16x1536xbf16, #tpu.memory_space<vmem>>, vector<1x16x1536xbf16>
    %13 = vector.shape_cast %12 : vector<1x16x1536xbf16> to vector<16x1536xbf16>
    %cst_11 = arith.constant dense<0.000000e+00> : vector<16x768xf32>
    %14 = tpu.matmul %13, %0, %cst_11 {dimension_numbers = #tpu.dot_dimension_numbers<[1], [0], [0], [1], [0, 0, 1, 1], [], []>} : vector<16x1536xbf16>, vector<1536x768xbf16>, vector<16x768xf32> -> vector<16x768xf32>
    %15 = vector.broadcast %1 : vector<1x768xf32> to vector<16x768xf32>
    %16 = arith.mulf %14, %15 : vector<16x768xf32>
    %17 = vector.broadcast %2 : vector<1x768xf32> to vector<16x768xf32>
    %18 = arith.addf %16, %17 : vector<16x768xf32>
    %cst_12 = arith.constant 0.000000e+00 : f32
    %19 = vector.broadcast %cst_12 : f32 to vector<16x768xf32>
    %20 = arith.maximumf %18, %19 : vector<16x768xf32>
    %21 = arith.maximumf %11, %20 : vector<16x768xf32>
    %22 = vector.extract_strided_slice %21 {offsets = [0, 0], sizes = [16, 384], strides = [1, 1]} : vector<16x768xf32> to vector<16x384xf32>
    %23 = vector.extract_strided_slice %21 {offsets = [0, 384], sizes = [16, 384], strides = [1, 1]} : vector<16x768xf32> to vector<16x384xf32>
    %24 = arith.maximumf %22, %23 : vector<16x384xf32>
    %25 = arith.truncf %24 : vector<16x384xf32> to vector<16x384xbf16>
    %c0_13 = arith.constant 0 : index
    %c0_14 = arith.constant 0 : index
    %26 = vector.load %arg5[%c0_13, %c0_14] : memref<16x384xbf16, #tpu.memory_space<vmem>>, vector<16x384xbf16>
    tpu.vector_store %arg5[%c0_13, %c0_14], %25 {strides = array<i32>} : memref<16x384xbf16, #tpu.memory_space<vmem>>, vector<16x384xbf16>,
    return
  }
  func.func @transform_0(%arg0: i32) -> (i32, i32, i32) {
    %c0_i32 = arith.constant 0 : i32
    %c0_i32_0 = arith.constant 0 : i32
    %c0_i32_1 = arith.constant 0 : i32
    return %c0_i32, %arg0, %c0_i32_0 : i32, i32, i32
  }
  func.func @transform_1(%arg0: i32) -> (i32, i32) {
    %c0_i32 = arith.constant 0 : i32
    %c0_i32_0 = arith.constant 0 : i32
    %c0_i32_1 = arith.constant 0 : i32
    return %c0_i32, %c0_i32_0 : i32, i32
  }
  func.func @transform_2(%arg0: i32) -> (i32, i32) {
    %c0_i32 = arith.constant 0 : i32
    %c0_i32_0 = arith.constant 0 : i32
    %c0_i32_1 = arith.constant 0 : i32
    return %c0_i32, %c0_i32_0 : i32, i32
  }
  func.func @transform_3(%arg0: i32) -> (i32, i32) {
    %c0_i32 = arith.constant 0 : i32
    %c0_i32_0 = arith.constant 0 : i32
    %c0_i32_1 = arith.constant 0 : i32
    return %c0_i32, %c0_i32_0 : i32, i32
  }
  func.func @transform_4(%arg0: i32) -> (i32, i32) {
    %c0_i32 = arith.constant 0 : i32
    %c0_i32_0 = arith.constant 0 : i32
    return %arg0, %c0_i32 : i32, i32
  }
}

module attributes {stable_mosaic.version = 11 : i64} {
  func.func @_fc_chain_kernel(%arg0: i32, %arg1: memref<16x2304xbf16, #tpu.memory_space<vmem>>, %arg2: memref<2304x600xbf16, #tpu.memory_space<vmem>>, %arg3: memref<1x600xf32, #tpu.memory_space<vmem>>, %arg4: memref<600x128xbf16, #tpu.memory_space<vmem>>, %arg5: memref<1x128xf32, #tpu.memory_space<vmem>>, %arg6: memref<128x128xbf16, #tpu.memory_space<vmem>>, %arg7: memref<1x128xf32, #tpu.memory_space<vmem>>, %arg8: memref<16x128xf32, #tpu.memory_space<vmem>>) attributes {dimension_semantics = [#tpu.dimension_semantics<parallel>], iteration_bounds = array<i64: 1>, scalar_prefetch = 0 : i64, scratch_operands = 0 : i64, tpu.core_type = #tpu.core_type<tc>, window_params = [{transform_indices = @transform_0, window_bounds = array<i64: 16, 2304>}, {pipeline_mode = #tpu.pipeline_mode<synchronous>, transform_indices = @transform_1, window_bounds = array<i64: 2304, 600>}, {pipeline_mode = #tpu.pipeline_mode<synchronous>, transform_indices = @transform_2, window_bounds = array<i64: 1, 600>}, {pipeline_mode = #tpu.pipeline_mode<synchronous>, transform_indices = @transform_3, window_bounds = array<i64: 600, 128>}, {pipeline_mode = #tpu.pipeline_mode<synchronous>, transform_indices = @transform_4, window_bounds = array<i64: 1, 128>}, {pipeline_mode = #tpu.pipeline_mode<synchronous>, transform_indices = @transform_5, window_bounds = array<i64: 128, 128>}, {pipeline_mode = #tpu.pipeline_mode<synchronous>, transform_indices = @transform_6, window_bounds = array<i64: 1, 128>}, {transform_indices = @transform_7, window_bounds = array<i64: 16, 128>}]} {
    %c0 = arith.constant 0 : index
    %c0_0 = arith.constant 0 : index
    %0 = vector.load %arg1[%c0, %c0_0] : memref<16x2304xbf16, #tpu.memory_space<vmem>>, vector<16x2304xbf16>
    %c0_1 = arith.constant 0 : index
    %c0_2 = arith.constant 0 : index
    %1 = vector.load %arg2[%c0_1, %c0_2] : memref<2304x600xbf16, #tpu.memory_space<vmem>>, vector<2304x600xbf16>
    %cst = arith.constant dense<0.000000e+00> : vector<16x600xf32>
    %2 = tpu.matmul %0, %1, %cst {dimension_numbers = #tpu.dot_dimension_numbers<[1], [0], [0], [1], [0, 0, 1, 1], [], []>} : vector<16x2304xbf16>, vector<2304x600xbf16>, vector<16x600xf32> -> vector<16x600xf32>
    %c0_3 = arith.constant 0 : index
    %c0_4 = arith.constant 0 : index
    %3 = vector.load %arg3[%c0_3, %c0_4] : memref<1x600xf32, #tpu.memory_space<vmem>>, vector<1x600xf32>
    %4 = vector.broadcast %3 : vector<1x600xf32> to vector<16x600xf32>
    %5 = arith.addf %2, %4 : vector<16x600xf32>
    %6 = arith.truncf %5 : vector<16x600xf32> to vector<16x600xbf16>
    %c0_5 = arith.constant 0 : index
    %c0_6 = arith.constant 0 : index
    %7 = vector.load %arg4[%c0_5, %c0_6] : memref<600x128xbf16, #tpu.memory_space<vmem>>, vector<600x128xbf16>
    %cst_7 = arith.constant dense<0.000000e+00> : vector<16x128xf32>
    %8 = tpu.matmul %6, %7, %cst_7 {dimension_numbers = #tpu.dot_dimension_numbers<[1], [0], [0], [1], [0, 0, 1, 1], [], []>} : vector<16x600xbf16>, vector<600x128xbf16>, vector<16x128xf32> -> vector<16x128xf32>
    %c0_8 = arith.constant 0 : index
    %c0_9 = arith.constant 0 : index
    %9 = vector.load %arg5[%c0_8, %c0_9] : memref<1x128xf32, #tpu.memory_space<vmem>>, vector<1x128xf32>
    %10 = vector.broadcast %9 : vector<1x128xf32> to vector<16x128xf32>
    %11 = arith.addf %8, %10 : vector<16x128xf32>
    %12 = arith.truncf %11 : vector<16x128xf32> to vector<16x128xbf16>
    %c0_10 = arith.constant 0 : index
    %c0_11 = arith.constant 0 : index
    %13 = vector.load %arg6[%c0_10, %c0_11] : memref<128x128xbf16, #tpu.memory_space<vmem>>, vector<128x128xbf16>
    %cst_12 = arith.constant dense<0.000000e+00> : vector<16x128xf32>
    %14 = tpu.matmul %12, %13, %cst_12 {dimension_numbers = #tpu.dot_dimension_numbers<[1], [0], [0], [1], [0, 0, 1, 1], [], []>} : vector<16x128xbf16>, vector<128x128xbf16>, vector<16x128xf32> -> vector<16x128xf32>
    %c0_13 = arith.constant 0 : index
    %c0_14 = arith.constant 0 : index
    %15 = vector.load %arg7[%c0_13, %c0_14] : memref<1x128xf32, #tpu.memory_space<vmem>>, vector<1x128xf32>
    %16 = vector.broadcast %15 : vector<1x128xf32> to vector<16x128xf32>
    %17 = arith.addf %14, %16 : vector<16x128xf32>
    %c0_15 = arith.constant 0 : index
    %c0_16 = arith.constant 0 : index
    %18 = vector.load %arg8[%c0_15, %c0_16] : memref<16x128xf32, #tpu.memory_space<vmem>>, vector<16x128xf32>
    tpu.vector_store %arg8[%c0_15, %c0_16], %17 {strides = array<i32>} : memref<16x128xf32, #tpu.memory_space<vmem>>, vector<16x128xf32>,
    return
  }
  func.func @transform_0(%arg0: i32) -> (i32, i32) {
    %c0_i32 = arith.constant 0 : i32
    %c0_i32_0 = arith.constant 0 : i32
    return %arg0, %c0_i32 : i32, i32
  }
  func.func @transform_1(%arg0: i32) -> (i32, i32) {
    %c0_i32 = arith.constant 0 : i32
    %c0_i32_0 = arith.constant 0 : i32
    %c0_i32_1 = arith.constant 0 : i32
    return %c0_i32, %c0_i32_0 : i32, i32
  }
  func.func @transform_2(%arg0: i32) -> (i32, i32) {
    %c0_i32 = arith.constant 0 : i32
    %c0_i32_0 = arith.constant 0 : i32
    %c0_i32_1 = arith.constant 0 : i32
    return %c0_i32, %c0_i32_0 : i32, i32
  }
  func.func @transform_3(%arg0: i32) -> (i32, i32) {
    %c0_i32 = arith.constant 0 : i32
    %c0_i32_0 = arith.constant 0 : i32
    %c0_i32_1 = arith.constant 0 : i32
    return %c0_i32, %c0_i32_0 : i32, i32
  }
  func.func @transform_4(%arg0: i32) -> (i32, i32) {
    %c0_i32 = arith.constant 0 : i32
    %c0_i32_0 = arith.constant 0 : i32
    %c0_i32_1 = arith.constant 0 : i32
    return %c0_i32, %c0_i32_0 : i32, i32
  }
  func.func @transform_5(%arg0: i32) -> (i32, i32) {
    %c0_i32 = arith.constant 0 : i32
    %c0_i32_0 = arith.constant 0 : i32
    %c0_i32_1 = arith.constant 0 : i32
    return %c0_i32, %c0_i32_0 : i32, i32
  }
  func.func @transform_6(%arg0: i32) -> (i32, i32) {
    %c0_i32 = arith.constant 0 : i32
    %c0_i32_0 = arith.constant 0 : i32
    %c0_i32_1 = arith.constant 0 : i32
    return %c0_i32, %c0_i32_0 : i32, i32
  }
  func.func @transform_7(%arg0: i32) -> (i32, i32) {
    %c0_i32 = arith.constant 0 : i32
    %c0_i32_0 = arith.constant 0 : i32
    return %arg0, %c0_i32 : i32, i32
  }
}

</mosaic_0001>

<llo_original>
// kernel: fashion_cnn_forward.3
$region0: #{fashion_cnn_forward.3}
  #allocation0 [shape = 'u32[]', space=smem, size = 0x4, offset = 0x4, fixed_abs, tag = 'smem constant byte address 0x4 - core index']
  #allocation1 [shape = 'u32[144,128]{1,0:T(1,128)}', space=vmem, size = 0x12000, scoped, tag = 'internal scratch']
  %s0 = inlined_call_operand.vmem [shape: bf16[2,32,90], index: 0, kind: input, shape index: {}]
  %s1 = inlined_call_operand.hbm [shape: bf16[90,1024], index: 1, kind: input, shape index: {}]
  %s2 = inlined_call_operand.hbm [shape: f32[1,1024], index: 2, kind: input, shape index: {}]
  %s3 = inlined_call_operand.hbm [shape: f32[1,1024], index: 3, kind: input, shape index: {}]
  %s4 = inlined_call_operand.vmem [shape: bf16[32,512], index: 4, kind: output, shape index: {}]
  %s5 = sld [smem:[#allocation0]]
  $region38: #{fashion_cnn_forward.3} parent=0
    _
  %s7 = ssub.s32 1, %s5
  %s8 = scalar_select 0, %s7, %s5
  $region1: #{fashion_cnn_forward.3} parent=0
    #allocation2 [shape = 'u8[196608]{0}', space=vmem, size = 0x30000, scoped, tag = 'input window, operand 1, single buffered']
    #allocation3 [shape = 's32[1]{0}', space=sflag, size = 0x4, scoped, tag = 'scoped memory for fashion_cnn_forward.3']
    #allocation4 [shape = 'u8[4096]{0}', space=vmem, size = 0x1000, scoped, tag = 'input window, operand 2, single buffered']
    #allocation5 [shape = 's32[1]{0}', space=sflag, size = 0x4, scoped, tag = 'scoped memory for fashion_cnn_forward.3']
    #allocation6 [shape = 'u8[4096]{0}', space=vmem, size = 0x1000, scoped, tag = 'input window, operand 3, single buffered']
    %9 = vsyncpa [#allocation3], 0
    %10 = vsyncpa [#allocation5], 0
    // Predicated region
    $region2: #{fashion_cnn_forward.3} parent=1 // pred_check
      _
    $region3: #{fashion_cnn_forward.3} parent=1 // pred_check_branch
      %12 = sbr.rel (0) target = $region5
    $region4: #{fashion_cnn_forward.3} parent=1 // pred_region
      _
    $region5: #{fashion_cnn_forward.3} parent=1 // pred_fallthru
      _
    // Predicated region
    $region6: #{fashion_cnn_forward.3} parent=1 // pred_check
      _
    $region7: #{fashion_cnn_forward.3} parent=1 // pred_check_branch
      %14 = sbr.rel (0) target = $region9
    $region8: #{fashion_cnn_forward.3} parent=1 // pred_region
      %s16 = ssub.s32 6144, 6144
      %17 = vsyncadd [#allocation3], %s16
      %s18 = sshll.u32 [#allocation2], 4
      %s19 = int_to_ptr.vmem [resolvable:$true] %s18
      %24 = dma.hbm_to_vmem [thread:$0]  %s1, 6144, %s19, [#allocation3], 512, 512, 32
    $region9: #{fashion_cnn_forward.3} parent=1 // pred_fallthru
      _
    // Predicated region
    $region10: #{fashion_cnn_forward.3} parent=1 // pred_check
      _
    $region11: #{fashion_cnn_forward.3} parent=1 // pred_check_branch
      %26 = sbr.rel (0) target = $region13
    $region12: #{fashion_cnn_forward.3} parent=1 // pred_region
      %s28 = ssub.s32 128, 128
      %29 = vsyncadd [#allocation5], %s28
      %s31 = sshll.u32 [#allocation4], 4
      %s32 = int_to_ptr.vmem [resolvable:$true] %s31
      %34 = dma.hbm_to_vmem [thread:$0]  %s2, 128, %s32, [#allocation5]
    $region13: #{fashion_cnn_forward.3} parent=1 // pred_fallthru
      _
    // Predicated region
    $region14: #{fashion_cnn_forward.3} parent=1 // pred_check
      _
    $region15: #{fashion_cnn_forward.3} parent=1 // pred_check_branch
      %36 = sbr.rel (0) target = $region17
    $region16: #{fashion_cnn_forward.3} parent=1 // pred_region
      %s38 = ssub.s32 128, 128
      %39 = vsyncadd [#allocation5], %s38
      %s41 = sshll.u32 [#allocation6], 4
      %s42 = int_to_ptr.vmem [resolvable:$true] %s41
      %44 = dma.hbm_to_vmem [thread:$0]  %s3, 128, %s42, [#allocation5]
    $region17: #{fashion_cnn_forward.3} parent=1 // pred_fallthru
      _
    // Predicated region
    $region18: #{fashion_cnn_forward.3} parent=1 // pred_check
      _
    $region19: #{fashion_cnn_forward.3} parent=1 // pred_check_branch
      %46 = sbr.rel (0) target = $region21
    $region20: #{fashion_cnn_forward.3} parent=1 // pred_region
      %47 = dma.done [#allocation3], 6144
    $region21: #{fashion_cnn_forward.3} parent=1 // pred_fallthru
      _
    // Predicated region
    $region22: #{fashion_cnn_forward.3} parent=1 // pred_check
      _
    $region23: #{fashion_cnn_forward.3} parent=1 // pred_check_branch
      %49 = sbr.rel (0) target = $region25
    $region24: #{fashion_cnn_forward.3} parent=1 // pred_region
      %50 = dma.done [#allocation5], 128
    $region25: #{fashion_cnn_forward.3} parent=1 // pred_fallthru
      _
    // Predicated region
    $region26: #{fashion_cnn_forward.3} parent=1 // pred_check
      _
    $region27: #{fashion_cnn_forward.3} parent=1 // pred_check_branch
      %52 = sbr.rel (0) target = $region29
    $region28: #{fashion_cnn_forward.3} parent=1 // pred_region
      %53 = dma.done [#allocation5], 128
    $region29: #{fashion_cnn_forward.3} parent=1 // pred_fallthru
      _
    %v55 = vld [vmem:[#allocation2] sm:$0xff]
    %v56 = vld [vmem:[#allocation2 + $0x8] sm:$0xff]
    %v57 = vld [vmem:[#allocation2 + $0x10] sm:$0xff]
    %v58 = vld [vmem:[#allocation2 + $0x18] sm:$0xff]
    %v59 = vld [vmem:[#allocation2 + $0x20] sm:$0xff]
    %v60 = vld [vmem:[#allocation2 + $0x28] sm:$0xff]
    %v61 = vld [vmem:[#allocation2 + $0x30] sm:$0xff]
    %v62 = vld [vmem:[#allocation2 + $0x38] sm:$0xff]
    %v63 = vld [vmem:[#allocation2 + $0x40] sm:$0xff]
    %v64 = vld [vmem:[#allocation2 + $0x48] sm:$0xff]
    %v65 = vld [vmem:[#allocation2 + $0x50] sm:$0xff]
    %v66 = vld [vmem:[#allocation2 + $0x58] sm:$0xff]
    %v67 = vld [vmem:[#allocation2 + $0x60] sm:$0xff]
    %v68 = vld [vmem:[#allocation2 + $0x68] sm:$0xff]
    %v69 = vld [vmem:[#allocation2 + $0x70] sm:$0xff]
    %v70 = vld [vmem:[#allocation2 + $0x78] sm:$0xff]
    %v71 = vld [vmem:[#allocation2 + $0x80] sm:$0xff]
    %v72 = vld [vmem:[#allocation2 + $0x88] sm:$0xff]
    %v73 = vld [vmem:[#allocation2 + $0x90] sm:$0xff]
    %v74 = vld [vmem:[#allocation2 + $0x98] sm:$0xff]
    %v75 = vld [vmem:[#allocation2 + $0xa0] sm:$0xff]
    %v76 = vld [vmem:[#allocation2 + $0xa8] sm:$0xff]
    %v77 = vld [vmem:[#allocation2 + $0xb0] sm:$0xff]
    %v78 = vld [vmem:[#allocation2 + $0xb8] sm:$0xff]
    %v79 = vld [vmem:[#allocation2 + $0xc0] sm:$0xff]
    %v80 = vld [vmem:[#allocation2 + $0xc8] sm:$0xff]
    %v81 = vld [vmem:[#allocation2 + $0xd0] sm:$0xff]
    %v82 = vld [vmem:[#allocation2 + $0xd8] sm:$0xff]
    %v83 = vld [vmem:[#allocation2 + $0xe0] sm:$0xff]
    %v84 = vld [vmem:[#allocation2 + $0xe8] sm:$0xff]
    %v85 = vld [vmem:[#allocation2 + $0xf0] sm:$0xff]
    %v86 = vld [vmem:[#allocation2 + $0xf8] sm:$0xff]
    %v87 = vld [vmem:[#allocation2 + $0x100] sm:$0xff]
    %v88 = vld [vmem:[#allocation2 + $0x108] sm:$0xff]
    %v89 = vld [vmem:[#allocation2 + $0x110] sm:$0xff]
    %v90 = vld [vmem:[#allocation2 + $0x118] sm:$0xff]
    %v91 = vld [vmem:[#allocation2 + $0x120] sm:$0xff]
    %v92 = vld [vmem:[#allocation2 + $0x128] sm:$0xff]
    %v93 = vld [vmem:[#allocation2 + $0x130] sm:$0xff]
    %v94 = vld [vmem:[#allocation2 + $0x138] sm:$0xff]
    %v95 = vld [vmem:[#allocation2 + $0x140] sm:$0xff]
    %v96 = vld [vmem:[#allocation2 + $0x148] sm:$0xff]
    %v97 = vld [vmem:[#allocation2 + $0x150] sm:$0xff]
    %v98 = vld [vmem:[#allocation2 + $0x158] sm:$0xff]
    %v99 = vld [vmem:[#allocation2 + $0x160] sm:$0x11]
    %v100 = vld [vmem:[#allocation2 + $0x168] sm:$0x11]
    %v101 = vld [vmem:[#allocation2 + $0x170] sm:$0x11]
    %v102 = vld [vmem:[#allocation2 + $0x178] sm:$0x11]
    %v103 = vld [vmem:[#allocation4] sm:$0xff]
    %v104 = vld [vmem:[#allocation6] sm:$0xff]
    %v105 = vld [vmem:[%s0] sm:$0xf]
    %v106 = vld [vmem:[%s0 + $0x4] sm:$0xf]
    %v107 = vld [vmem:[%s0 + $0x8] sm:$0xf]
    %v108 = vld [vmem:[%s0 + $0xc] sm:$0xf]
    %v113 = vunpack.c.l.b16 %v105
    %v114 = vunpack.c.l.b16 %v106
    %v115 = vunpack.c.l.b16 %v107
    %v116 = vunpack.c.l.b16 %v108
    %v117 = vpack.c.b16 %v114, %v113
    %v118 = vpack.c.b16 %v116, %v115
    %v167 = vunpack.c.l.b16 %v55
    %v168 = vunpack.c.h.b16 %v55
    %v169 = vunpack.c.l.b16 %v56
    %v170 = vunpack.c.h.b16 %v56
    %v171 = vunpack.c.l.b16 %v57
    %v172 = vunpack.c.h.b16 %v57
    %v173 = vunpack.c.l.b16 %v58
    %v174 = vunpack.c.h.b16 %v58
    %v175 = vunpack.c.l.b16 %v59
    %v176 = vunpack.c.h.b16 %v59
    %v177 = vunpack.c.l.b16 %v60
    %v178 = vunpack.c.h.b16 %v60
    %v179 = vunpack.c.l.b16 %v61
    %v180 = vunpack.c.h.b16 %v61
    %v181 = vunpack.c.l.b16 %v62
    %v182 = vunpack.c.h.b16 %v62
    %v183 = vunpack.c.l.b16 %v63
    %v184 = vunpack.c.h.b16 %v63
    %v185 = vunpack.c.l.b16 %v64
    %v186 = vunpack.c.h.b16 %v64
    %v187 = vunpack.c.l.b16 %v65
    %v188 = vunpack.c.h.b16 %v65
    %v189 = vunpack.c.l.b16 %v66
    %v190 = vunpack.c.h.b16 %v66
    %v191 = vunpack.c.l.b16 %v67
    %v192 = vunpack.c.h.b16 %v67
    %v193 = vunpack.c.l.b16 %v68
    %v194 = vunpack.c.h.b16 %v68
    %v195 = vunpack.c.l.b16 %v69
    %v196 = vunpack.c.h.b16 %v69
    %v197 = vunpack.c.l.b16 %v70
    %v198 = vunpack.c.h.b16 %v70
    %v199 = vunpack.c.l.b16 %v71
    %v200 = vunpack.c.h.b16 %v71
    %v201 = vunpack.c.l.b16 %v72
    %v202 = vunpack.c.h.b16 %v72
    %v203 = vunpack.c.l.b16 %v73
    %v204 = vunpack.c.h.b16 %v73
    %v205 = vunpack.c.l.b16 %v74
    %v206 = vunpack.c.h.b16 %v74
    %v207 = vunpack.c.l.b16 %v75
    %v208 = vunpack.c.h.b16 %v75
    %v209 = vunpack.c.l.b16 %v76
    %v210 = vunpack.c.h.b16 %v76
    %v211 = vunpack.c.l.b16 %v77
    %v212 = vunpack.c.h.b16 %v77
    %v213 = vunpack.c.l.b16 %v78
    %v214 = vunpack.c.h.b16 %v78
    %v215 = vunpack.c.l.b16 %v79
    %v216 = vunpack.c.h.b16 %v79
    %v217 = vunpack.c.l.b16 %v80
    %v218 = vunpack.c.h.b16 %v80
    %v219 = vunpack.c.l.b16 %v81
    %v220 = vunpack.c.h.b16 %v81
    %v221 = vunpack.c.l.b16 %v82
    %v222 = vunpack.c.h.b16 %v82
    %v223 = vunpack.c.l.b16 %v83
    %v224 = vunpack.c.h.b16 %v83
    %v225 = vunpack.c.l.b16 %v84
    %v226 = vunpack.c.h.b16 %v84
    %v227 = vunpack.c.l.b16 %v85
    %v228 = vunpack.c.h.b16 %v85
    %v229 = vunpack.c.l.b16 %v86
    %v230 = vunpack.c.h.b16 %v86
    %v231 = vunpack.c.l.b16 %v87
    %v232 = vunpack.c.h.b16 %v87
    %v233 = vunpack.c.l.b16 %v88
    %v234 = vunpack.c.h.b16 %v88
    %v235 = vunpack.c.l.b16 %v89
    %v236 = vunpack.c.h.b16 %v89
    %v237 = vunpack.c.l.b16 %v90
    %v238 = vunpack.c.h.b16 %v90
    %v239 = vunpack.c.l.b16 %v91
    %v240 = vunpack.c.h.b16 %v91
    %v241 = vunpack.c.l.b16 %v92
    %v242 = vunpack.c.h.b16 %v92
    %v243 = vunpack.c.l.b16 %v93
    %v244 = vunpack.c.h.b16 %v93
    %v245 = vunpack.c.l.b16 %v94
    %v246 = vunpack.c.h.b16 %v94
    %v247 = vunpack.c.l.b16 %v95
    %v248 = vunpack.c.h.b16 %v95
    %v249 = vunpack.c.l.b16 %v96
    %v250 = vunpack.c.h.b16 %v96
    %v251 = vunpack.c.l.b16 %v97
    %v252 = vunpack.c.h.b16 %v97
    %v253 = vunpack.c.l.b16 %v98
    %v254 = vunpack.c.h.b16 %v98
    %v255 = vunpack.c.l.b16 %v99
    %v256 = vunpack.c.h.b16 %v99
    %v257 = vunpack.c.l.b16 %v100
    %v258 = vunpack.c.h.b16 %v100
    %v259 = vunpack.c.l.b16 %v101
    %v260 = vunpack.c.h.b16 %v101
    %v261 = vunpack.c.l.b16 %v102
    %v262 = vunpack.c.h.b16 %v102
    %v263 = vpack.c.b16 %v175, %v167
    %v264 = vpack.c.b16 %v176, %v168
    %v265 = vpack.c.b16 %v177, %v169
    %v266 = vpack.c.b16 %v178, %v170
    %v267 = vpack.c.b16 %v179, %v171
    %v268 = vpack.c.b16 %v180, %v172
    %v269 = vpack.c.b16 %v181, %v173
    %v270 = vpack.c.b16 %v182, %v174
    %v271 = vpack.c.b16 %v191, %v183
    %v272 = vpack.c.b16 %v192, %v184
    %v273 = vpack.c.b16 %v193, %v185
    %v274 = vpack.c.b16 %v194, %v186
    %v275 = vpack.c.b16 %v195, %v187
    %v276 = vpack.c.b16 %v196, %v188
    %v277 = vpack.c.b16 %v197, %v189
    %v278 = vpack.c.b16 %v198, %v190
    %v279 = vpack.c.b16 %v207, %v199
    %v280 = vpack.c.b16 %v208, %v200
    %v281 = vpack.c.b16 %v209, %v201
    %v282 = vpack.c.b16 %v210, %v202
    %v283 = vpack.c.b16 %v211, %v203
    %v284 = vpack.c.b16 %v212, %v204
    %v285 = vpack.c.b16 %v213, %v205
    %v286 = vpack.c.b16 %v214, %v206
    %v287 = vpack.c.b16 %v223, %v215
    %v288 = vpack.c.b16 %v224, %v216
    %v289 = vpack.c.b16 %v225, %v217
    %v290 = vpack.c.b16 %v226, %v218
    %v291 = vpack.c.b16 %v227, %v219
    %v292 = vpack.c.b16 %v228, %v220
    %v293 = vpack.c.b16 %v229, %v221
    %v294 = vpack.c.b16 %v230, %v222
    %v295 = vpack.c.b16 %v239, %v231
    %v296 = vpack.c.b16 %v240, %v232
    %v297 = vpack.c.b16 %v241, %v233
    %v298 = vpack.c.b16 %v242, %v234
    %v299 = vpack.c.b16 %v243, %v235
    %v300 = vpack.c.b16 %v244, %v236
    %v301 = vpack.c.b16 %v245, %v237
    %v302 = vpack.c.b16 %v246, %v238
    %v303 = vpack.c.b16 %v255, %v247
    %v304 = vpack.c.b16 %v256, %v248
    %v305 = vpack.c.b16 %v257, %v249
    %v306 = vpack.c.b16 %v258, %v250
    %v307 = vpack.c.b16 %v259, %v251
    %v308 = vpack.c.b16 %v260, %v252
    %v309 = vpack.c.b16 %v261, %v253
    %v310 = vpack.c.b16 %v262, %v254
    %vm351 = vcmask 736256
    %v353 = vsel %vm351, %v117, 0
    %v356 = vsel %vm351, %v118, 0
    %vm358 = vcmask 1044480
    %v360 = vsel %vm358, %v303, 0
    %v363 = vsel %vm358, %v304, 0
    %v366 = vsel %vm358, %v305, 0
    %v369 = vsel %vm358, %v306, 0
    %v372 = vsel %vm358, %v307, 0
    %v375 = vsel %vm358, %v308, 0
    %v378 = vsel %vm358, %v309, 0
    %v381 = vsel %vm358, %v310, 0
    %383 = vmatprep.subr.bf16.mxu0 0
    %384 = vmatpush1.bf16.msra.mxu0 0
    %385 = vmatprep.subr.bf16.mxu0 0
    %386 = vmatpush1.bf16.msra.mxu0 0
    %387 = vmatprep.subr.bf16.mxu0 %v363
    %388 = vmatpush1.bf16.msra.mxu0 %v360
    %389 = vmatprep.subr.bf16.mxu0 %v296
    %390 = vmatpush1.bf16.msra.mxu0 %v295
    %391 = vmatprep.subr.bf16.mxu0 %v288
    %392 = vmatpush1.bf16.msra.mxu0 %v287
    %393 = vmatprep.subr.bf16.mxu0 %v280
    %394 = vmatpush1.bf16.msra.mxu0 %v279
    %395 = vmatprep.subr.bf16.mxu0 %v272
    %396 = vmatpush1.bf16.msra.mxu0 %v271
    %397 = vmatprep.subr.bf16.mxu0 %v264
    %398 = vmatpush1.bf16.msra.mxu0 %v263
    %399 = vmatprep.subr.bf16.mxu0 0
    %400 = vmatpush2.bf16.msra.mxu0 0
    %401 = vmatprep.subr.bf16.mxu0 0
    %402 = vmatpush2.bf16.msra.mxu0 0
    %403 = vmatprep.subr.bf16.mxu0 0
    %404 = vmatpush2.bf16.msra.mxu0 0
    %405 = vmatprep.subr.bf16.mxu0 0
    %406 = vmatpush2.bf16.msra.mxu0 0
    %407 = vmatprep.subr.bf16.mxu0 0
    %408 = vmatpush2.bf16.msra.mxu0 0
    %409 = vmatprep.subr.bf16.mxu0 0
    %410 = vmatpush2.bf16.msra.mxu0 0
    %411 = vmatprep.subr.bf16.mxu0 0
    %412 = vmatpush2.bf16.msra.mxu0 0
    %413 = vmatprep.subr.bf16.mxu0 0
    %414 = vmatpush2.bf16.msra.mxu0 0
    %415 = vmatprep.mubr.bf16.mxu0 0
    %416 = vmatmul.mubr.bf16.gmra.mxu0 %v353
    %v417 = vpop.f32.mrf.mxu0
    %v418 = vadd.f32 0.0, %v417
    %v419 = vpop.f32.mrf.mxu0
    %v420 = vadd.f32 0.0, %v419
    %v421 = vpop.f32.mrf.mxu0
    %v422 = vadd.f32 0.0, %v421
    %v423 = vpop.f32.mrf.mxu0
    %v424 = vadd.f32 0.0, %v423
    %425 = vmatprep.mubr.bf16.mxu0 0
    %426 = vmatmul.mubr.bf16.gmra.mxu0 %v356
    %v427 = vpop.f32.mrf.mxu0
    %v428 = vadd.f32 0.0, %v427
    %v429 = vpop.f32.mrf.mxu0
    %v430 = vadd.f32 0.0, %v429
    %v431 = vpop.f32.mrf.mxu0
    %v432 = vadd.f32 0.0, %v431
    %v433 = vpop.f32.mrf.mxu0
    %v434 = vadd.f32 0.0, %v433
    %435 = vdwg.mxu0
    %436 = vmatprep.subr.bf16.mxu0 0
    %437 = vmatpush1.bf16.msra.mxu0 0
    %438 = vmatprep.subr.bf16.mxu0 0
    %439 = vmatpush1.bf16.msra.mxu0 0
    %440 = vmatprep.subr.bf16.mxu0 %v369
    %441 = vmatpush1.bf16.msra.mxu0 %v366
    %442 = vmatprep.subr.bf16.mxu0 %v298
    %443 = vmatpush1.bf16.msra.mxu0 %v297
    %444 = vmatprep.subr.bf16.mxu0 %v290
    %445 = vmatpush1.bf16.msra.mxu0 %v289
    %446 = vmatprep.subr.bf16.mxu0 %v282
    %447 = vmatpush1.bf16.msra.mxu0 %v281
    %448 = vmatprep.subr.bf16.mxu0 %v274
    %449 = vmatpush1.bf16.msra.mxu0 %v273
    %450 = vmatprep.subr.bf16.mxu0 %v266
    %451 = vmatpush1.bf16.msra.mxu0 %v265
    %452 = vmatprep.subr.bf16.mxu0 0
    %453 = vmatpush2.bf16.msra.mxu0 0
    %454 = vmatprep.subr.bf16.mxu0 0
    %455 = vmatpush2.bf16.msra.mxu0 0
    %456 = vmatprep.subr.bf16.mxu0 0
    %457 = vmatpush2.bf16.msra.mxu0 0
    %458 = vmatprep.subr.bf16.mxu0 0
    %459 = vmatpush2.bf16.msra.mxu0 0
    %460 = vmatprep.subr.bf16.mxu0 0
    %461 = vmatpush2.bf16.msra.mxu0 0
    %462 = vmatprep.subr.bf16.mxu0 0
    %463 = vmatpush2.bf16.msra.mxu0 0
    %464 = vmatprep.subr.bf16.mxu0 0
    %465 = vmatpush2.bf16.msra.mxu0 0
    %466 = vmatprep.subr.bf16.mxu0 0
    %467 = vmatpush2.bf16.msra.mxu0 0
    %468 = vmatprep.mubr.bf16.mxu0 0
    %469 = vmatmul.mubr.bf16.gmra.mxu0 %v353
    %v470 = vpop.f32.mrf.mxu0
    %v471 = vadd.f32 0.0, %v470
    %v472 = vpop.f32.mrf.mxu0
    %v473 = vadd.f32 0.0, %v472
    %v474 = vpop.f32.mrf.mxu0
    %v475 = vadd.f32 0.0, %v474
    %v476 = vpop.f32.mrf.mxu0
    %v477 = vadd.f32 0.0, %v476
    %478 = vmatprep.mubr.bf16.mxu0 0
    %479 = vmatmul.mubr.bf16.gmra.mxu0 %v356
    %v480 = vpop.f32.mrf.mxu0
    %v481 = vadd.f32 0.0, %v480
    %v482 = vpop.f32.mrf.mxu0
    %v483 = vadd.f32 0.0, %v482
    %v484 = vpop.f32.mrf.mxu0
    %v485 = vadd.f32 0.0, %v484
    %v486 = vpop.f32.mrf.mxu0
    %v487 = vadd.f32 0.0, %v486
    %488 = vdwg.mxu0
    %489 = vmatprep.subr.bf16.mxu0 0
    %490 = vmatpush1.bf16.msra.mxu0 0
    %491 = vmatprep.subr.bf16.mxu0 0
    %492 = vmatpush1.bf16.msra.mxu0 0
    %493 = vmatprep.subr.bf16.mxu0 %v375
    %494 = vmatpush1.bf16.msra.mxu0 %v372
    %495 = vmatprep.subr.bf16.mxu0 %v300
    %496 = vmatpush1.bf16.msra.mxu0 %v299
    %497 = vmatprep.subr.bf16.mxu0 %v292
    %498 = vmatpush1.bf16.msra.mxu0 %v291
    %499 = vmatprep.subr.bf16.mxu0 %v284
    %500 = vmatpush1.bf16.msra.mxu0 %v283
    %501 = vmatprep.subr.bf16.mxu0 %v276
    %502 = vmatpush1.bf16.msra.mxu0 %v275
    %503 = vmatprep.subr.bf16.mxu0 %v268
    %504 = vmatpush1.bf16.msra.mxu0 %v267
    %505 = vmatprep.subr.bf16.mxu0 0
    %506 = vmatpush2.bf16.msra.mxu0 0
    %507 = vmatprep.subr.bf16.mxu0 0
    %508 = vmatpush2.bf16.msra.mxu0 0
    %509 = vmatprep.subr.bf16.mxu0 0
    %510 = vmatpush2.bf16.msra.mxu0 0
    %511 = vmatprep.subr.bf16.mxu0 0
    %512 = vmatpush2.bf16.msra.mxu0 0
    %513 = vmatprep.subr.bf16.mxu0 0
    %514 = vmatpush2.bf16.msra.mxu0 0
    %515 = vmatprep.subr.bf16.mxu0 0
    %516 = vmatpush2.bf16.msra.mxu0 0
    %517 = vmatprep.subr.bf16.mxu0 0
    %518 = vmatpush2.bf16.msra.mxu0 0
    %519 = vmatprep.subr.bf16.mxu0 0
    %520 = vmatpush2.bf16.msra.mxu0 0
    %521 = vmatprep.mubr.bf16.mxu0 0
    %522 = vmatmul.mubr.bf16.gmra.mxu0 %v353
    %v523 = vpop.f32.mrf.mxu0
    %v524 = vadd.f32 0.0, %v523
    %v525 = vpop.f32.mrf.mxu0
    %v526 = vadd.f32 0.0, %v525
    %v527 = vpop.f32.mrf.mxu0
    %v528 = vadd.f32 0.0, %v527
    %v529 = vpop.f32.mrf.mxu0
    %v530 = vadd.f32 0.0, %v529
    %531 = vmatprep.mubr.bf16.mxu0 0
    %532 = vmatmul.mubr.bf16.gmra.mxu0 %v356
    %v533 = vpop.f32.mrf.mxu0
    %v534 = vadd.f32 0.0, %v533
    %v535 = vpop.f32.mrf.mxu0
    %v536 = vadd.f32 0.0, %v535
    %v537 = vpop.f32.mrf.mxu0
    %v538 = vadd.f32 0.0, %v537
    %v539 = vpop.f32.mrf.mxu0
    %v540 = vadd.f32 0.0, %v539
    %541 = vdwg.mxu0
    %542 = vmatprep.subr.bf16.mxu0 0
    %543 = vmatpush1.bf16.msra.mxu0 0
    %544 = vmatprep.subr.bf16.mxu0 0
    %545 = vmatpush1.bf16.msra.mxu0 0
    %546 = vmatprep.subr.bf16.mxu0 %v381
    %547 = vmatpush1.bf16.msra.mxu0 %v378
    %548 = vmatprep.subr.bf16.mxu0 %v302
    %549 = vmatpush1.bf16.msra.mxu0 %v301
    %550 = vmatprep.subr.bf16.mxu0 %v294
    %551 = vmatpush1.bf16.msra.mxu0 %v293
    %552 = vmatprep.subr.bf16.mxu0 %v286
    %553 = vmatpush1.bf16.msra.mxu0 %v285
    %554 = vmatprep.subr.bf16.mxu0 %v278
    %555 = vmatpush1.bf16.msra.mxu0 %v277
    %556 = vmatprep.subr.bf16.mxu0 %v270
    %557 = vmatpush1.bf16.msra.mxu0 %v269
    %558 = vmatprep.subr.bf16.mxu0 0
    %559 = vmatpush2.bf16.msra.mxu0 0
    %560 = vmatprep.subr.bf16.mxu0 0
    %561 = vmatpush2.bf16.msra.mxu0 0
    %562 = vmatprep.subr.bf16.mxu0 0
    %563 = vmatpush2.bf16.msra.mxu0 0
    %564 = vmatprep.subr.bf16.mxu0 0
    %565 = vmatpush2.bf16.msra.mxu0 0
    %566 = vmatprep.subr.bf16.mxu0 0
    %567 = vmatpush2.bf16.msra.mxu0 0
    %568 = vmatprep.subr.bf16.mxu0 0
    %569 = vmatpush2.bf16.msra.mxu0 0
    %570 = vmatprep.subr.bf16.mxu0 0
    %571 = vmatpush2.bf16.msra.mxu0 0
    %572 = vmatprep.subr.bf16.mxu0 0
    %573 = vmatpush2.bf16.msra.mxu0 0
    %574 = vmatprep.mubr.bf16.mxu0 0
    %575 = vmatmul.mubr.bf16.gmra.mxu0 %v353
    %v576 = vpop.f32.mrf.mxu0
    %v577 = vadd.f32 0.0, %v576
    %v578 = vpop.f32.mrf.mxu0
    %v579 = vadd.f32 0.0, %v578
    %v580 = vpop.f32.mrf.mxu0
    %v581 = vadd.f32 0.0, %v580
    %v582 = vpop.f32.mrf.mxu0
    %v583 = vadd.f32 0.0, %v582
    %584 = vmatprep.mubr.bf16.mxu0 0
    %585 = vmatmul.mubr.bf16.gmra.mxu0 %v356
    %v586 = vpop.f32.mrf.mxu0
    %v587 = vadd.f32 0.0, %v586
    %v588 = vpop.f32.mrf.mxu0
    %v589 = vadd.f32 0.0, %v588
    %v590 = vpop.f32.mrf.mxu0
    %v591 = vadd.f32 0.0, %v590
    %v592 = vpop.f32.mrf.mxu0
    %v593 = vadd.f32 0.0, %v592
    %594 = vdwg.mxu0
    %v596 = vlaneseq
    %v597 = vshrl.u32 %v596, 7
    %v598 = vsub.s32 0, %v597
    %v599 = vrot.slane %v103, %v598
    %v600 = vlaneseq
    %v601 = vshrl.u32 %v600, 7
    %v602 = vsub.s32 1, %v601
    %v603 = vrot.slane %v103, %v602
    %v604 = vlaneseq
    %v605 = vshrl.u32 %v604, 7
    %v606 = vsub.s32 2, %v605
    %v607 = vrot.slane %v103, %v606
    %v608 = vlaneseq
    %v609 = vshrl.u32 %v608, 7
    %v610 = vsub.s32 3, %v609
    %v611 = vrot.slane %v103, %v610
    %v612 = vlaneseq
    %v613 = vshrl.u32 %v612, 7
    %v614 = vsub.s32 4, %v613
    %v615 = vrot.slane %v103, %v614
    %v616 = vlaneseq
    %v617 = vshrl.u32 %v616, 7
    %v618 = vsub.s32 5, %v617
    %v619 = vrot.slane %v103, %v618
    %v620 = vlaneseq
    %v621 = vshrl.u32 %v620, 7
    %v622 = vsub.s32 6, %v621
    %v623 = vrot.slane %v103, %v622
    %v624 = vlaneseq
    %v625 = vshrl.u32 %v624, 7
    %v626 = vsub.s32 7, %v625
    %v627 = vrot.slane %v103, %v626
    %v636 = vmul.f32 %v418, %v599
    %v637 = vmul.f32 %v420, %v603
    %v638 = vmul.f32 %v471, %v607
    %v639 = vmul.f32 %v473, %v611
    %v640 = vmul.f32 %v524, %v615
    %v641 = vmul.f32 %v526, %v619
    %v642 = vmul.f32 %v577, %v623
    %v643 = vmul.f32 %v579, %v627
    %v644 = vmul.f32 %v422, %v599
    %v645 = vmul.f32 %v424, %v603
    %v646 = vmul.f32 %v475, %v607
    %v647 = vmul.f32 %v477, %v611
    %v648 = vmul.f32 %v528, %v615
    %v649 = vmul.f32 %v530, %v619
    %v650 = vmul.f32 %v581, %v623
    %v651 = vmul.f32 %v583, %v627
    %v652 = vmul.f32 %v428, %v599
    %v653 = vmul.f32 %v430, %v603
    %v654 = vmul.f32 %v481, %v607
    %v655 = vmul.f32 %v483, %v611
    %v656 = vmul.f32 %v534, %v615
    %v657 = vmul.f32 %v536, %v619
    %v658 = vmul.f32 %v587, %v623
    %v659 = vmul.f32 %v589, %v627
    %v660 = vmul.f32 %v432, %v599
    %v661 = vmul.f32 %v434, %v603
    %v662 = vmul.f32 %v485, %v607
    %v663 = vmul.f32 %v487, %v611
    %v664 = vmul.f32 %v538, %v615
    %v665 = vmul.f32 %v540, %v619
    %v666 = vmul.f32 %v591, %v623
    %v667 = vmul.f32 %v593, %v627
    %v669 = vlaneseq
    %v670 = vshrl.u32 %v669, 7
    %v671 = vsub.s32 0, %v670
    %v672 = vrot.slane %v104, %v671
    %v673 = vlaneseq
    %v674 = vshrl.u32 %v673, 7
    %v675 = vsub.s32 1, %v674
    %v676 = vrot.slane %v104, %v675
    %v677 = vlaneseq
    %v678 = vshrl.u32 %v677, 7
    %v679 = vsub.s32 2, %v678
    %v680 = vrot.slane %v104, %v679
    %v681 = vlaneseq
    %v682 = vshrl.u32 %v681, 7
    %v683 = vsub.s32 3, %v682
    %v684 = vrot.slane %v104, %v683
    %v685 = vlaneseq
    %v686 = vshrl.u32 %v685, 7
    %v687 = vsub.s32 4, %v686
    %v688 = vrot.slane %v104, %v687
    %v689 = vlaneseq
    %v690 = vshrl.u32 %v689, 7
    %v691 = vsub.s32 5, %v690
    %v692 = vrot.slane %v104, %v691
    %v693 = vlaneseq
    %v694 = vshrl.u32 %v693, 7
    %v695 = vsub.s32 6, %v694
    %v696 = vrot.slane %v104, %v695
    %v697 = vlaneseq
    %v698 = vshrl.u32 %v697, 7
    %v699 = vsub.s32 7, %v698
    %v700 = vrot.slane %v104, %v699
    %v709 = vadd.f32 %v636, %v672
    %v710 = vadd.f32 %v637, %v676
    %v711 = vadd.f32 %v638, %v680
    %v712 = vadd.f32 %v639, %v684
    %v713 = vadd.f32 %v640, %v688
    %v714 = vadd.f32 %v641, %v692
    %v715 = vadd.f32 %v642, %v696
    %v716 = vadd.f32 %v643, %v700
    %v717 = vadd.f32 %v644, %v672
    %v718 = vadd.f32 %v645, %v676
    %v719 = vadd.f32 %v646, %v680
    %v720 = vadd.f32 %v647, %v684
    %v721 = vadd.f32 %v648, %v688
    %v722 = vadd.f32 %v649, %v692
    %v723 = vadd.f32 %v650, %v696
    %v724 = vadd.f32 %v651, %v700
    %v725 = vadd.f32 %v652, %v672
    %v726 = vadd.f32 %v653, %v676
    %v727 = vadd.f32 %v654, %v680
    %v728 = vadd.f32 %v655, %v684
    %v729 = vadd.f32 %v656, %v688
    %v730 = vadd.f32 %v657, %v692
    %v731 = vadd.f32 %v658, %v696
    %v732 = vadd.f32 %v659, %v700
    %v733 = vadd.f32 %v660, %v672
    %v734 = vadd.f32 %v661, %v676
    %v735 = vadd.f32 %v662, %v680
    %v736 = vadd.f32 %v663, %v684
    %v737 = vadd.f32 %v664, %v688
    %v738 = vadd.f32 %v665, %v692
    %v739 = vadd.f32 %v666, %v696
    %v740 = vadd.f32 %v667, %v700
    %v741 = vmax.f32 %v709, 0.0
    %v742 = vmax.f32 %v710, 0.0
    %v743 = vmax.f32 %v711, 0.0
    %v744 = vmax.f32 %v712, 0.0
    %v745 = vmax.f32 %v713, 0.0
    %v746 = vmax.f32 %v714, 0.0
    %v747 = vmax.f32 %v715, 0.0
    %v748 = vmax.f32 %v716, 0.0
    %v749 = vmax.f32 %v717, 0.0
    %v750 = vmax.f32 %v718, 0.0
    %v751 = vmax.f32 %v719, 0.0
    %v752 = vmax.f32 %v720, 0.0
    %v753 = vmax.f32 %v721, 0.0
    %v754 = vmax.f32 %v722, 0.0
    %v755 = vmax.f32 %v723, 0.0
    %v756 = vmax.f32 %v724, 0.0
    %v757 = vmax.f32 %v725, 0.0
    %v758 = vmax.f32 %v726, 0.0
    %v759 = vmax.f32 %v727, 0.0
    %v760 = vmax.f32 %v728, 0.0
    %v761 = vmax.f32 %v729, 0.0
    %v762 = vmax.f32 %v730, 0.0
    %v763 = vmax.f32 %v731, 0.0
    %v764 = vmax.f32 %v732, 0.0
    %v765 = vmax.f32 %v733, 0.0
    %v766 = vmax.f32 %v734, 0.0
    %v767 = vmax.f32 %v735, 0.0
    %v768 = vmax.f32 %v736, 0.0
    %v769 = vmax.f32 %v737, 0.0
    %v770 = vmax.f32 %v738, 0.0
    %v771 = vmax.f32 %v739, 0.0
    %v772 = vmax.f32 %v740, 0.0
    %s773 = scalar_lea.vmem %s0, 16
    %v774 = vld [vmem:[%s773] sm:$0xf]
    %v775 = vld [vmem:[%s773 + $0x4] sm:$0xf]
    %v776 = vld [vmem:[%s773 + $0x8] sm:$0xf]
    %v777 = vld [vmem:[%s773 + $0xc] sm:$0xf]
    %v782 = vunpack.c.l.b16 %v774
    %v783 = vunpack.c.l.b16 %v775
    %v784 = vunpack.c.l.b16 %v776
    %v785 = vunpack.c.l.b16 %v777
    %v786 = vpack.c.b16 %v783, %v782
    %v787 = vpack.c.b16 %v785, %v784
    %v789 = vsel %vm351, %v786, 0
    %v792 = vsel %vm351, %v787, 0
    %794 = vmatprep.subr.bf16.mxu0 0
    %795 = vmatpush1.bf16.msra.mxu0 0
    %796 = vmatprep.subr.bf16.mxu0 0
    %797 = vmatpush1.bf16.msra.mxu0 0
    %798 = vmatprep.subr.bf16.mxu0 %v363
    %799 = vmatpush1.bf16.msra.mxu0 %v360
    %800 = vmatprep.subr.bf16.mxu0 %v296
    %801 = vmatpush1.bf16.msra.mxu0 %v295
    %802 = vmatprep.subr.bf16.mxu0 %v288
    %803 = vmatpush1.bf16.msra.mxu0 %v287
    %804 = vmatprep.subr.bf16.mxu0 %v280
    %805 = vmatpush1.bf16.msra.mxu0 %v279
    %806 = vmatprep.subr.bf16.mxu0 %v272
    %807 = vmatpush1.bf16.msra.mxu0 %v271
    %808 = vmatprep.subr.bf16.mxu0 %v264
    %809 = vmatpush1.bf16.msra.mxu0 %v263
    %810 = vmatprep.subr.bf16.mxu0 0
    %811 = vmatpush2.bf16.msra.mxu0 0
    %812 = vmatprep.subr.bf16.mxu0 0
    %813 = vmatpush2.bf16.msra.mxu0 0
    %814 = vmatprep.subr.bf16.mxu0 0
    %815 = vmatpush2.bf16.msra.mxu0 0
    %816 = vmatprep.subr.bf16.mxu0 0
    %817 = vmatpush2.bf16.msra.mxu0 0
    %818 = vmatprep.subr.bf16.mxu0 0
    %819 = vmatpush2.bf16.msra.mxu0 0
    %820 = vmatprep.subr.bf16.mxu0 0
    %821 = vmatpush2.bf16.msra.mxu0 0
    %822 = vmatprep.subr.bf16.mxu0 0
    %823 = vmatpush2.bf16.msra.mxu0 0
    %824 = vmatprep.subr.bf16.mxu0 0
    %825 = vmatpush2.bf16.msra.mxu0 0
    %826 = vmatprep.mubr.bf16.mxu0 0
    %827 = vmatmul.mubr.bf16.gmra.mxu0 %v789
    %v828 = vpop.f32.mrf.mxu0
    %v829 = vadd.f32 0.0, %v828
    %v830 = vpop.f32.mrf.mxu0
    %v831 = vadd.f32 0.0, %v830
    %v832 = vpop.f32.mrf.mxu0
    %v833 = vadd.f32 0.0, %v832
    %v834 = vpop.f32.mrf.mxu0
    %v835 = vadd.f32 0.0, %v834
    %836 = vmatprep.mubr.bf16.mxu0 0
    %837 = vmatmul.mubr.bf16.gmra.mxu0 %v792
    %v838 = vpop.f32.mrf.mxu0
    %v839 = vadd.f32 0.0, %v838
    %v840 = vpop.f32.mrf.mxu0
    %v841 = vadd.f32 0.0, %v840
    %v842 = vpop.f32.mrf.mxu0
    %v843 = vadd.f32 0.0, %v842
    %v844 = vpop.f32.mrf.mxu0
    %v845 = vadd.f32 0.0, %v844
    %846 = vdwg.mxu0
    %847 = vmatprep.subr.bf16.mxu0 0
    %848 = vmatpush1.bf16.msra.mxu0 0
    %849 = vmatprep.subr.bf16.mxu0 0
    %850 = vmatpush1.bf16.msra.mxu0 0
    %851 = vmatprep.subr.bf16.mxu0 %v369
    %852 = vmatpush1.bf16.msra.mxu0 %v366
    %853 = vmatprep.subr.bf16.mxu0 %v298
    %854 = vmatpush1.bf16.msra.mxu0 %v297
    %855 = vmatprep.subr.bf16.mxu0 %v290
    %856 = vmatpush1.bf16.msra.mxu0 %v289
    %857 = vmatprep.subr.bf16.mxu0 %v282
    %858 = vmatpush1.bf16.msra.mxu0 %v281
    %859 = vmatprep.subr.bf16.mxu0 %v274
    %860 = vmatpush1.bf16.msra.mxu0 %v273
    %861 = vmatprep.subr.bf16.mxu0 %v266
    %862 = vmatpush1.bf16.msra.mxu0 %v265
    %863 = vmatprep.subr.bf16.mxu0 0
    %864 = vmatpush2.bf16.msra.mxu0 0
    %865 = vmatprep.subr.bf16.mxu0 0
    %866 = vmatpush2.bf16.msra.mxu0 0
    %867 = vmatprep.subr.bf16.mxu0 0
    %868 = vmatpush2.bf16.msra.mxu0 0
    %869 = vmatprep.subr.bf16.mxu0 0
    %870 = vmatpush2.bf16.msra.mxu0 0
    %871 = vmatprep.subr.bf16.mxu0 0
    %872 = vmatpush2.bf16.msra.mxu0 0
    %873 = vmatprep.subr.bf16.mxu0 0
    %874 = vmatpush2.bf16.msra.mxu0 0
    %875 = vmatprep.subr.bf16.mxu0 0
    %876 = vmatpush2.bf16.msra.mxu0 0
    %877 = vmatprep.subr.bf16.mxu0 0
    %878 = vmatpush2.bf16.msra.mxu0 0
    %879 = vmatprep.mubr.bf16.mxu0 0
    %880 = vmatmul.mubr.bf16.gmra.mxu0 %v789
    %v881 = vpop.f32.mrf.mxu0
    %v882 = vadd.f32 0.0, %v881
    %v883 = vpop.f32.mrf.mxu0
    %v884 = vadd.f32 0.0, %v883
    %v885 = vpop.f32.mrf.mxu0
    %v886 = vadd.f32 0.0, %v885
    %v887 = vpop.f32.mrf.mxu0
    %v888 = vadd.f32 0.0, %v887
    %889 = vmatprep.mubr.bf16.mxu0 0
    %890 = vmatmul.mubr.bf16.gmra.mxu0 %v792
    %v891 = vpop.f32.mrf.mxu0
    %v892 = vadd.f32 0.0, %v891
    %v893 = vpop.f32.mrf.mxu0
    %v894 = vadd.f32 0.0, %v893
    %v895 = vpop.f32.mrf.mxu0
    %v896 = vadd.f32 0.0, %v895
    %v897 = vpop.f32.mrf.mxu0
    %v898 = vadd.f32 0.0, %v897
    %899 = vdwg.mxu0
    %900 = vmatprep.subr.bf16.mxu0 0
    %901 = vmatpush1.bf16.msra.mxu0 0
    %902 = vmatprep.subr.bf16.mxu0 0
    %903 = vmatpush1.bf16.msra.mxu0 0
    %904 = vmatprep.subr.bf16.mxu0 %v375
    %905 = vmatpush1.bf16.msra.mxu0 %v372
    %906 = vmatprep.subr.bf16.mxu0 %v300
    %907 = vmatpush1.bf16.msra.mxu0 %v299
    %908 = vmatprep.subr.bf16.mxu0 %v292
    %909 = vmatpush1.bf16.msra.mxu0 %v291
    %910 = vmatprep.subr.bf16.mxu0 %v284
    %911 = vmatpush1.bf16.msra.mxu0 %v283
    %912 = vmatprep.subr.bf16.mxu0 %v276
    %913 = vmatpush1.bf16.msra.mxu0 %v275
    %914 = vmatprep.subr.bf16.mxu0 %v268
    %915 = vmatpush1.bf16.msra.mxu0 %v267
    %916 = vmatprep.subr.bf16.mxu0 0
    %917 = vmatpush2.bf16.msra.mxu0 0
    %918 = vmatprep.subr.bf16.mxu0 0
    %919 = vmatpush2.bf16.msra.mxu0 0
    %920 = vmatprep.subr.bf16.mxu0 0
    %921 = vmatpush2.bf16.msra.mxu0 0
    %922 = vmatprep.subr.bf16.mxu0 0
    %923 = vmatpush2.bf16.msra.mxu0 0
    %924 = vmatprep.subr.bf16.mxu0 0
    %925 = vmatpush2.bf16.msra.mxu0 0
    %926 = vmatprep.subr.bf16.mxu0 0
    %927 = vmatpush2.bf16.msra.mxu0 0
    %928 = vmatprep.subr.bf16.mxu0 0
    %929 = vmatpush2.bf16.msra.mxu0 0
    %930 = vmatprep.subr.bf16.mxu0 0
    %931 = vmatpush2.bf16.msra.mxu0 0
    %932 = vmatprep.mubr.bf16.mxu0 0
    %933 = vmatmul.mubr.bf16.gmra.mxu0 %v789
    %v934 = vpop.f32.mrf.mxu0
    %v935 = vadd.f32 0.0, %v934
    %v936 = vpop.f32.mrf.mxu0
    %v937 = vadd.f32 0.0, %v936
    %v938 = vpop.f32.mrf.mxu0
    %v939 = vadd.f32 0.0, %v938
    %v940 = vpop.f32.mrf.mxu0
    %v941 = vadd.f32 0.0, %v940
    %942 = vmatprep.mubr.bf16.mxu0 0
    %943 = vmatmul.mubr.bf16.gmra.mxu0 %v792
    %v944 = vpop.f32.mrf.mxu0
    %v945 = vadd.f32 0.0, %v944
    %v946 = vpop.f32.mrf.mxu0
    %v947 = vadd.f32 0.0, %v946
    %v948 = vpop.f32.mrf.mxu0
    %v949 = vadd.f32 0.0, %v948
    %v950 = vpop.f32.mrf.mxu0
    %v951 = vadd.f32 0.0, %v950
    %952 = vdwg.mxu0
    %953 = vmatprep.subr.bf16.mxu0 0
    %954 = vmatpush1.bf16.msra.mxu0 0
    %955 = vmatprep.subr.bf16.mxu0 0
    %956 = vmatpush1.bf16.msra.mxu0 0
    %957 = vmatprep.subr.bf16.mxu0 %v381
    %958 = vmatpush1.bf16.msra.mxu0 %v378
    %959 = vmatprep.subr.bf16.mxu0 %v302
    %960 = vmatpush1.bf16.msra.mxu0 %v301
    %961 = vmatprep.subr.bf16.mxu0 %v294
    %962 = vmatpush1.bf16.msra.mxu0 %v293
    %963 = vmatprep.subr.bf16.mxu0 %v286
    %964 = vmatpush1.bf16.msra.mxu0 %v285
    %965 = vmatprep.subr.bf16.mxu0 %v278
    %966 = vmatpush1.bf16.msra.mxu0 %v277
    %967 = vmatprep.subr.bf16.mxu0 %v270
    %968 = vmatpush1.bf16.msra.mxu0 %v269
    %969 = vmatprep.subr.bf16.mxu0 0
    %970 = vmatpush2.bf16.msra.mxu0 0
    %971 = vmatprep.subr.bf16.mxu0 0
    %972 = vmatpush2.bf16.msra.mxu0 0
    %973 = vmatprep.subr.bf16.mxu0 0
    %974 = vmatpush2.bf16.msra.mxu0 0
    %975 = vmatprep.subr.bf16.mxu0 0
    %976 = vmatpush2.bf16.msra.mxu0 0
    %977 = vmatprep.subr.bf16.mxu0 0
    %978 = vmatpush2.bf16.msra.mxu0 0
    %979 = vmatprep.subr.bf16.mxu0 0
    %980 = vmatpush2.bf16.msra.mxu0 0
    %981 = vmatprep.subr.bf16.mxu0 0
    %982 = vmatpush2.bf16.msra.mxu0 0
    %983 = vmatprep.subr.bf16.mxu0 0
    %984 = vmatpush2.bf16.msra.mxu0 0
    %985 = vmatprep.mubr.bf16.mxu0 0
    %986 = vmatmul.mubr.bf16.gmra.mxu0 %v789
    %v987 = vpop.f32.mrf.mxu0
    %v988 = vadd.f32 0.0, %v987
    %v989 = vpop.f32.mrf.mxu0
    %v990 = vadd.f32 0.0, %v989
    %v991 = vpop.f32.mrf.mxu0
    %v992 = vadd.f32 0.0, %v991
    %v993 = vpop.f32.mrf.mxu0
    %v994 = vadd.f32 0.0, %v993
    %995 = vmatprep.mubr.bf16.mxu0 0
    %996 = vmatmul.mubr.bf16.gmra.mxu0 %v792
    %v997 = vpop.f32.mrf.mxu0
    %v998 = vadd.f32 0.0, %v997
    %v999 = vpop.f32.mrf.mxu0
    %v1000 = vadd.f32 0.0, %v999
    %v1001 = vpop.f32.mrf.mxu0
    %v1002 = vadd.f32 0.0, %v1001
    %v1003 = vpop.f32.mrf.mxu0
    %v1004 = vadd.f32 0.0, %v1003
    %1005 = vdwg.mxu0
    %v1006 = vmul.f32 %v829, %v599
    %v1007 = vmul.f32 %v831, %v603
    %v1008 = vmul.f32 %v882, %v607
    %v1009 = vmul.f32 %v884, %v611
    %v1010 = vmul.f32 %v935, %v615
    %v1011 = vmul.f32 %v937, %v619
    %v1012 = vmul.f32 %v988, %v623
    %v1013 = vmul.f32 %v990, %v627
    %v1014 = vmul.f32 %v833, %v599
    %v1015 = vmul.f32 %v835, %v603
    %v1016 = vmul.f32 %v886, %v607
    %v1017 = vmul.f32 %v888, %v611
    %v1018 = vmul.f32 %v939, %v615
    %v1019 = vmul.f32 %v941, %v619
    %v1020 = vmul.f32 %v992, %v623
    %v1021 = vmul.f32 %v994, %v627
    %v1022 = vmul.f32 %v839, %v599
    %v1023 = vmul.f32 %v841, %v603
    %v1024 = vmul.f32 %v892, %v607
    %v1025 = vmul.f32 %v894, %v611
    %v1026 = vmul.f32 %v945, %v615
    %v1027 = vmul.f32 %v947, %v619
    %v1028 = vmul.f32 %v998, %v623
    %v1029 = vmul.f32 %v1000, %v627
    %v1030 = vmul.f32 %v843, %v599
    %v1031 = vmul.f32 %v845, %v603
    %v1032 = vmul.f32 %v896, %v607
    %v1033 = vmul.f32 %v898, %v611
    %v1034 = vmul.f32 %v949, %v615
    %v1035 = vmul.f32 %v951, %v619
    %v1036 = vmul.f32 %v1002, %v623
    %v1037 = vmul.f32 %v1004, %v627
    %v1038 = vadd.f32 %v1006, %v672
    %v1039 = vadd.f32 %v1007, %v676
    %v1040 = vadd.f32 %v1008, %v680
    %v1041 = vadd.f32 %v1009, %v684
    %v1042 = vadd.f32 %v1010, %v688
    %v1043 = vadd.f32 %v1011, %v692
    %v1044 = vadd.f32 %v1012, %v696
    %v1045 = vadd.f32 %v1013, %v700
    %v1046 = vadd.f32 %v1014, %v672
    %v1047 = vadd.f32 %v1015, %v676
    %v1048 = vadd.f32 %v1016, %v680
    %v1049 = vadd.f32 %v1017, %v684
    %v1050 = vadd.f32 %v1018, %v688
    %v1051 = vadd.f32 %v1019, %v692
    %v1052 = vadd.f32 %v1020, %v696
    %v1053 = vadd.f32 %v1021, %v700
    %v1054 = vadd.f32 %v1022, %v672
    %v1055 = vadd.f32 %v1023, %v676
    %v1056 = vadd.f32 %v1024, %v680
    %v1057 = vadd.f32 %v1025, %v684
    %v1058 = vadd.f32 %v1026, %v688
    %v1059 = vadd.f32 %v1027, %v692
    %v1060 = vadd.f32 %v1028, %v696
    %v1061 = vadd.f32 %v1029, %v700
    %v1062 = vadd.f32 %v1030, %v672
    %v1063 = vadd.f32 %v1031, %v676
    %v1064 = vadd.f32 %v1032, %v680
    %v1065 = vadd.f32 %v1033, %v684
    %v1066 = vadd.f32 %v1034, %v688
    %v1067 = vadd.f32 %v1035, %v692
    %v1068 = vadd.f32 %v1036, %v696
    %v1069 = vadd.f32 %v1037, %v700
    %v1070 = vmax.f32 %v1038, 0.0
    %v1071 = vmax.f32 %v1039, 0.0
    %v1072 = vmax.f32 %v1040, 0.0
    %v1073 = vmax.f32 %v1041, 0.0
    %v1074 = vmax.f32 %v1042, 0.0
    %v1075 = vmax.f32 %v1043, 0.0
    %v1076 = vmax.f32 %v1044, 0.0
    %v1077 = vmax.f32 %v1045, 0.0
    %v1078 = vmax.f32 %v1046, 0.0
    %v1079 = vmax.f32 %v1047, 0.0
    %v1080 = vmax.f32 %v1048, 0.0
    %v1081 = vmax.f32 %v1049, 0.0
    %v1082 = vmax.f32 %v1050, 0.0
    %v1083 = vmax.f32 %v1051, 0.0
    %v1084 = vmax.f32 %v1052, 0.0
    %v1085 = vmax.f32 %v1053, 0.0
    %v1086 = vmax.f32 %v1054, 0.0
    %v1087 = vmax.f32 %v1055, 0.0
    %v1088 = vmax.f32 %v1056, 0.0
    %v1089 = vmax.f32 %v1057, 0.0
    %v1090 = vmax.f32 %v1058, 0.0
    %v1091 = vmax.f32 %v1059, 0.0
    %v1092 = vmax.f32 %v1060, 0.0
    %v1093 = vmax.f32 %v1061, 0.0
    %v1094 = vmax.f32 %v1062, 0.0
    %v1095 = vmax.f32 %v1063, 0.0
    %v1096 = vmax.f32 %v1064, 0.0
    %v1097 = vmax.f32 %v1065, 0.0
    %v1098 = vmax.f32 %v1066, 0.0
    %v1099 = vmax.f32 %v1067, 0.0
    %v1100 = vmax.f32 %v1068, 0.0
    %v1101 = vmax.f32 %v1069, 0.0
    %v1102 = vmax.f32 %v741, %v1070
    %v1103 = vmax.f32 %v742, %v1071
    %v1104 = vmax.f32 %v743, %v1072
    %v1105 = vmax.f32 %v744, %v1073
    %v1106 = vmax.f32 %v745, %v1074
    %v1107 = vmax.f32 %v746, %v1075
    %v1108 = vmax.f32 %v747, %v1076
    %v1109 = vmax.f32 %v748, %v1077
    %v1110 = vmax.f32 %v749, %v1078
    %v1111 = vmax.f32 %v750, %v1079
    %v1112 = vmax.f32 %v751, %v1080
    %v1113 = vmax.f32 %v752, %v1081
    %v1114 = vmax.f32 %v753, %v1082
    %v1115 = vmax.f32 %v754, %v1083
    %v1116 = vmax.f32 %v755, %v1084
    %v1117 = vmax.f32 %v756, %v1085
    %v1118 = vmax.f32 %v757, %v1086
    %v1119 = vmax.f32 %v758, %v1087
    %v1120 = vmax.f32 %v759, %v1088
    %v1121 = vmax.f32 %v760, %v1089
    %v1122 = vmax.f32 %v761, %v1090
    %v1123 = vmax.f32 %v762, %v1091
    %v1124 = vmax.f32 %v763, %v1092
    %v1125 = vmax.f32 %v764, %v1093
    %v1126 = vmax.f32 %v765, %v1094
    %v1127 = vmax.f32 %v766, %v1095
    %v1128 = vmax.f32 %v767, %v1096
    %v1129 = vmax.f32 %v768, %v1097
    %v1130 = vmax.f32 %v769, %v1098
    %v1131 = vmax.f32 %v770, %v1099
    %v1132 = vmax.f32 %v771, %v1100
    %v1133 = vmax.f32 %v772, %v1101
    %v1134 = vmax.f32 %v1102, %v1106
    %v1135 = vmax.f32 %v1103, %v1107
    %v1136 = vmax.f32 %v1104, %v1108
    %v1137 = vmax.f32 %v1105, %v1109
    %v1138 = vmax.f32 %v1110, %v1114
    %v1139 = vmax.f32 %v1111, %v1115
    %v1140 = vmax.f32 %v1112, %v1116
    %v1141 = vmax.f32 %v1113, %v1117
    %v1142 = vmax.f32 %v1118, %v1122
    %v1143 = vmax.f32 %v1119, %v1123
    %v1144 = vmax.f32 %v1120, %v1124
    %v1145 = vmax.f32 %v1121, %v1125
    %v1146 = vmax.f32 %v1126, %v1130
    %v1147 = vmax.f32 %v1127, %v1131
    %v1148 = vmax.f32 %v1128, %v1132
    %v1149 = vmax.f32 %v1129, %v1133
    %v1150 = vpack.c.bf16 %v1138, %v1134
    %v1151 = vpack.c.bf16 %v1139, %v1135
    %v1152 = vpack.c.bf16 %v1140, %v1136
    %v1153 = vpack.c.bf16 %v1141, %v1137
    %v1154 = vpack.c.bf16 %v1146, %v1142
    %v1155 = vpack.c.bf16 %v1147, %v1143
    %v1156 = vpack.c.bf16 %v1148, %v1144
    %v1157 = vpack.c.bf16 %v1149, %v1145
    %v1166 = vunpack.c.l.b16 %v1150
    %v1167 = vunpack.c.l.b16 %v1151
    %v1168 = vunpack.c.l.b16 %v1152
    %v1169 = vunpack.c.l.b16 %v1153
    %v1170 = vunpack.c.h.b16 %v1150
    %v1171 = vunpack.c.h.b16 %v1151
    %v1172 = vunpack.c.h.b16 %v1152
    %v1173 = vunpack.c.h.b16 %v1153
    %v1174 = vunpack.c.l.b16 %v1154
    %v1175 = vunpack.c.l.b16 %v1155
    %v1176 = vunpack.c.l.b16 %v1156
    %v1177 = vunpack.c.l.b16 %v1157
    %v1178 = vunpack.c.h.b16 %v1154
    %v1179 = vunpack.c.h.b16 %v1155
    %v1180 = vunpack.c.h.b16 %v1156
    %v1181 = vunpack.c.h.b16 %v1157
    %v1182 = vpack.c.b16 %v1167, %v1166
    %v1183 = vpack.c.b16 %v1169, %v1168
    %v1184 = vpack.c.b16 %v1171, %v1170
    %v1185 = vpack.c.b16 %v1173, %v1172
    %v1186 = vpack.c.b16 %v1175, %v1174
    %v1187 = vpack.c.b16 %v1177, %v1176
    %v1188 = vpack.c.b16 %v1179, %v1178
    %v1189 = vpack.c.b16 %v1181, %v1180
    %1198 = vst [vmem:[%s4] sm:$0xff] %v1182
    %1199 = vst [vmem:[%s4 + $0x8] sm:$0xff] %v1183
    %1200 = vst [vmem:[%s4 + $0x10] sm:$0xff] %v1184
    %1201 = vst [vmem:[%s4 + $0x18] sm:$0xff] %v1185
    %1202 = vst [vmem:[%s4 + $0x20] sm:$0xff] %v1186
    %1203 = vst [vmem:[%s4 + $0x28] sm:$0xff] %v1187
    %1204 = vst [vmem:[%s4 + $0x30] sm:$0xff] %v1188
    %1205 = vst [vmem:[%s4 + $0x38] sm:$0xff] %v1189
    // Predicated region
    $region30: #{fashion_cnn_forward.3} parent=1 // pred_check
      _
    $region31: #{fashion_cnn_forward.3} parent=1 // pred_check_branch
      %1207 = sbr.rel (0) target = $region33
    $region32: #{fashion_cnn_forward.3} parent=1 // pred_region
      _
    $region33: #{fashion_cnn_forward.3} parent=1 // pred_fallthru
      _
    // Predicated region
    $region34: #{fashion_cnn_forward.3} parent=1 // pred_check
      _
    $region35: #{fashion_cnn_forward.3} parent=1 // pred_check_branch
      %1209 = sbr.rel (0) target = $region37
    $region36: #{fashion_cnn_forward.3} parent=1 // pred_region
      _
    $region37: #{fashion_cnn_forward.3} parent=1 // pred_fallthru
      _
    %1210 = vsyncpa [#allocation3], 1
    %1211 = vsyncpa [#allocation5], 1

// kernel: fashion_cnn_forward.4
$region0: #{fashion_cnn_forward.4}
  #allocation0 [shape = 'u32[]', space=smem, size = 0x4, offset = 0x4, fixed_abs, tag = 'smem constant byte address 0x4 - core index']
  #allocation1 [shape = 'u32[144,128]{1,0:T(1,128)}', space=vmem, size = 0x12000, scoped, tag = 'internal scratch']
  %s0 = inlined_call_operand.vmem [shape: bf16[2,16,1536], index: 0, kind: input, shape index: {}]
  %s1 = inlined_call_operand.hbm [shape: bf16[1536,768], index: 1, kind: input, shape index: {}]
  %s2 = inlined_call_operand.hbm [shape: f32[1,768], index: 2, kind: input, shape index: {}]
  %s3 = inlined_call_operand.hbm [shape: f32[1,768], index: 3, kind: input, shape index: {}]
  %s4 = inlined_call_operand.vmem [shape: bf16[16,384], index: 4, kind: output, shape index: {}]
  %s5 = sld [smem:[#allocation0]]
  $region38: #{fashion_cnn_forward.4} parent=0
    _
  %s7 = ssub.s32 1, %s5
  %s8 = scalar_select 0, %s7, %s5
  $region1: #{fashion_cnn_forward.4} parent=0
    #allocation2 [shape = 'u8[2359296]{0}', space=vmem, size = 0x240000, scoped, tag = 'input window, operand 1, single buffered']
    #allocation3 [shape = 's32[1]{0}', space=sflag, size = 0x4, scoped, tag = 'scoped memory for fashion_cnn_forward.4']
    #allocation4 [shape = 'u8[3072]{0}', space=vmem, size = 0xc00, scoped, tag = 'input window, operand 2, single buffered']
    #allocation5 [shape = 's32[1]{0}', space=sflag, size = 0x4, scoped, tag = 'scoped memory for fashion_cnn_forward.4']
    #allocation6 [shape = 'u8[3072]{0}', space=vmem, size = 0xc00, scoped, tag = 'input window, operand 3, single buffered']
    %9 = vsyncpa [#allocation3], 0
    %10 = vsyncpa [#allocation5], 0
    // Predicated region
    $region2: #{fashion_cnn_forward.4} parent=1 // pred_check
      _
    $region3: #{fashion_cnn_forward.4} parent=1 // pred_check_branch
      %12 = sbr.rel (0) target = $region5
    $region4: #{fashion_cnn_forward.4} parent=1 // pred_region
      _
    $region5: #{fashion_cnn_forward.4} parent=1 // pred_fallthru
      _
    // Predicated region
    $region6: #{fashion_cnn_forward.4} parent=1 // pred_check
      _
    $region7: #{fashion_cnn_forward.4} parent=1 // pred_check_branch
      %14 = sbr.rel (0) target = $region9
    $region8: #{fashion_cnn_forward.4} parent=1 // pred_region
      %s16 = ssub.s32 73728, 73728
      %17 = vsyncadd [#allocation3], %s16
      %s18 = sshll.u32 [#allocation2], 4
      %s19 = int_to_ptr.vmem [resolvable:$true] %s18
      %24 = dma.hbm_to_vmem [thread:$0]  %s1, 73728, %s19, [#allocation3], 384, 384, 24
    $region9: #{fashion_cnn_forward.4} parent=1 // pred_fallthru
      _
    // Predicated region
    $region10: #{fashion_cnn_forward.4} parent=1 // pred_check
      _
    $region11: #{fashion_cnn_forward.4} parent=1 // pred_check_branch
      %26 = sbr.rel (0) target = $region13
    $region12: #{fashion_cnn_forward.4} parent=1 // pred_region
      %s28 = ssub.s32 96, 96
      %29 = vsyncadd [#allocation5], %s28
      %s31 = sshll.u32 [#allocation4], 4
      %s32 = int_to_ptr.vmem [resolvable:$true] %s31
      %34 = dma.hbm_to_vmem [thread:$0]  %s2, 96, %s32, [#allocation5]
    $region13: #{fashion_cnn_forward.4} parent=1 // pred_fallthru
      _
    // Predicated region
    $region14: #{fashion_cnn_forward.4} parent=1 // pred_check
      _
    $region15: #{fashion_cnn_forward.4} parent=1 // pred_check_branch
      %36 = sbr.rel (0) target = $region17
    $region16: #{fashion_cnn_forward.4} parent=1 // pred_region
      %s38 = ssub.s32 96, 96
      %39 = vsyncadd [#allocation5], %s38
      %s41 = sshll.u32 [#allocation6], 4
      %s42 = int_to_ptr.vmem [resolvable:$true] %s41
      %44 = dma.hbm_to_vmem [thread:$0]  %s3, 96, %s42, [#allocation5]
    $region17: #{fashion_cnn_forward.4} parent=1 // pred_fallthru
      _
    // Predicated region
    $region18: #{fashion_cnn_forward.4} parent=1 // pred_check
      _
    $region19: #{fashion_cnn_forward.4} parent=1 // pred_check_branch
      %46 = sbr.rel (0) target = $region21
    $region20: #{fashion_cnn_forward.4} parent=1 // pred_region
      %47 = dma.done [#allocation3], 73728
    $region21: #{fashion_cnn_forward.4} parent=1 // pred_fallthru
      _
    // Predicated region
    $region22: #{fashion_cnn_forward.4} parent=1 // pred_check
      _
    $region23: #{fashion_cnn_forward.4} parent=1 // pred_check_branch
      %49 = sbr.rel (0) target = $region25
    $region24: #{fashion_cnn_forward.4} parent=1 // pred_region
      %50 = dma.done [#allocation5], 96
    $region25: #{fashion_cnn_forward.4} parent=1 // pred_fallthru
      _
    // Predicated region
    $region26: #{fashion_cnn_forward.4} parent=1 // pred_check
      _
    $region27: #{fashion_cnn_forward.4} parent=1 // pred_check_branch
      %52 = sbr.rel (0) target = $region29
    $region28: #{fashion_cnn_forward.4} parent=1 // pred_region
      %53 = dma.done [#allocation5], 96
    $region29: #{fashion_cnn_forward.4} parent=1 // pred_fallthru
      _
    %v54 = vld [vmem:[#allocation2] sm:$0xff]
    %v55 = vld [vmem:[#allocation2 + $0x8] sm:$0xff]
    %v56 = vld [vmem:[#allocation2 + $0x10] sm:$0xff]
    %v57 = vld [vmem:[#allocation2 + $0x18] sm:$0xff]
    %v58 = vld [vmem:[#allocation2 + $0x20] sm:$0xff]
    %v59 = vld [vmem:[#allocation2 + $0x28] sm:$0xff]
    %v60 = vld [vmem:[#allocation2 + $0x30] sm:$0xff]
    %v61 = vld [vmem:[#allocation2 + $0x38] sm:$0xff]
    %v62 = vld [vmem:[#allocation2 + $0x40] sm:$0xff]
    %v63 = vld [vmem:[#allocation2 + $0x48] sm:$0xff]
    %v64 = vld [vmem:[#allocation2 + $0x50] sm:$0xff]
    %v65 = vld [vmem:[#allocation2 + $0x58] sm:$0xff]
    %v66 = vld [vmem:[#allocation2 + $0x60] sm:$0xff]
    %v67 = vld [vmem:[#allocation2 + $0x68] sm:$0xff]
    %v68 = vld [vmem:[#allocation2 + $0x70] sm:$0xff]
    %v69 = vld [vmem:[#allocation2 + $0x78] sm:$0xff]
    %v70 = vld [vmem:[#allocation2 + $0x80] sm:$0xff]
    %v71 = vld [vmem:[#allocation2 + $0x88] sm:$0xff]
    %v72 = vld [vmem:[#allocation2 + $0x90] sm:$0xff]
    %v73 = vld [vmem:[#allocation2 + $0x98] sm:$0xff]
    %v74 = vld [vmem:[#allocation2 + $0xa0] sm:$0xff]
    %v75 = vld [vmem:[#allocation2 + $0xa8] sm:$0xff]
    %v76 = vld [vmem:[#allocation2 + $0xb0] sm:$0xff]
    %v77 = vld [vmem:[#allocation2 + $0xb8] sm:$0xff]
    %v78 = vld [vmem:[#allocation2 + $0xc0] sm:$0xff]
    %v79 = vld [vmem:[#allocation2 + $0xc8] sm:$0xff]
    %v80 = vld [vmem:[#allocation2 + $0xd0] sm:$0xff]
    %v81 = vld [vmem:[#allocation2 + $0xd8] sm:$0xff]
    %v82 = vld [vmem:[#allocation2 + $0xe0] sm:$0xff]
    %v83 = vld [vmem:[#allocation2 + $0xe8] sm:$0xff]
    %v84 = vld [vmem:[#allocation2 + $0xf0] sm:$0xff]
    %v85 = vld [vmem:[#allocation2 + $0xf8] sm:$0xff]
    %v86 = vld [vmem:[#allocation2 + $0x100] sm:$0xff]
    %v87 = vld [vmem:[#allocation2 + $0x108] sm:$0xff]
    %v88 = vld [vmem:[#allocation2 + $0x110] sm:$0xff]
    %v89 = vld [vmem:[#allocation2 + $0x118] sm:$0xff]
    %v90 = vld [vmem:[#allocation2 + $0x120] sm:$0xff]
    %v91 = vld [vmem:[#allocation2 + $0x128] sm:$0xff]
    %v92 = vld [vmem:[#allocation2 + $0x130] sm:$0xff]
    %v93 = vld [vmem:[#allocation2 + $0x138] sm:$0xff]
    %v94 = vld [vmem:[#allocation2 + $0x140] sm:$0xff]
    %v95 = vld [vmem:[#allocation2 + $0x148] sm:$0xff]
    %v96 = vld [vmem:[#allocation2 + $0x150] sm:$0xff]
    %v97 = vld [vmem:[#allocation2 + $0x158] sm:$0xff]
    %v98 = vld [vmem:[#allocation2 + $0x160] sm:$0xff]
    %v99 = vld [vmem:[#allocation2 + $0x168] sm:$0xff]
    %v100 = vld [vmem:[#allocation2 + $0x170] sm:$0xff]
    %v101 = vld [vmem:[#allocation2 + $0x178] sm:$0xff]
    %v102 = vld [vmem:[#allocation2 + $0x180] sm:$0xff]
    %v103 = vld [vmem:[#allocation2 + $0x188] sm:$0xff]
    %v104 = vld [vmem:[#allocation2 + $0x190] sm:$0xff]
    %v105 = vld [vmem:[#allocation2 + $0x198] sm:$0xff]
    %v106 = vld [vmem:[#allocation2 + $0x1a0] sm:$0xff]
    %v107 = vld [vmem:[#allocation2 + $0x1a8] sm:$0xff]
    %v108 = vld [vmem:[#allocation2 + $0x1b0] sm:$0xff]
    %v109 = vld [vmem:[#allocation2 + $0x1b8] sm:$0xff]
    %v110 = vld [vmem:[#allocation2 + $0x1c0] sm:$0xff]
    %v111 = vld [vmem:[#allocation2 + $0x1c8] sm:$0xff]
    %v112 = vld [vmem:[#allocation2 + $0x1d0] sm:$0xff]
    %v113 = vld [vmem:[#allocation2 + $0x1d8] sm:$0xff]
    %v114 = vld [vmem:[#allocation2 + $0x1e0] sm:$0xff]
    %v115 = vld [vmem:[#allocation2 + $0x1e8] sm:$0xff]
    %v116 = vld [vmem:[#allocation2 + $0x1f0] sm:$0xff]
    %v117 = vld [vmem:[#allocation2 + $0x1f8] sm:$0xff]
    %v118 = vld [vmem:[#allocation2 + $0x200] sm:$0xff]
    %v119 = vld [vmem:[#allocation2 + $0x208] sm:$0xff]
    %v120 = vld [vmem:[#allocation2 + $0x210] sm:$0xff]
    %v121 = vld [vmem:[#allocation2 + $0x218] sm:$0xff]
    %v122 = vld [vmem:[#allocation2 + $0x220] sm:$0xff]
    %v123 = vld [vmem:[#allocation2 + $0x228] sm:$0xff]
    %v124 = vld [vmem:[#allocation2 + $0x230] sm:$0xff]
    %v125 = vld [vmem:[#allocation2 + $0x238] sm:$0xff]
    %v126 = vld [vmem:[#allocation2 + $0x240] sm:$0xff]
    %v127 = vld [vmem:[#allocation2 + $0x248] sm:$0xff]
    %v128 = vld [vmem:[#allocation2 + $0x250] sm:$0xff]
    %v129 = vld [vmem:[#allocation2 + $0x258] sm:$0xff]
    %v130 = vld [vmem:[#allocation2 + $0x260] sm:$0xff]
    %v131 = vld [vmem:[#allocation2 + $0x268] sm:$0xff]
    %v132 = vld [vmem:[#allocation2 + $0x270] sm:$0xff]
    %v133 = vld [vmem:[#allocation2 + $0x278] sm:$0xff]
    %v134 = vld [vmem:[#allocation2 + $0x280] sm:$0xff]
    %v135 = vld [vmem:[#allocation2 + $0x288] sm:$0xff]
    %v136 = vld [vmem:[#allocation2 + $0x290] sm:$0xff]
    %v137 = vld [vmem:[#allocation2 + $0x298] sm:$0xff]
    %v138 = vld [vmem:[#allocation2 + $0x2a0] sm:$0xff]
    %v139 = vld [vmem:[#allocation2 + $0x2a8] sm:$0xff]
    %v140 = vld [vmem:[#allocation2 + $0x2b0] sm:$0xff]
    %v141 = vld [vmem:[#allocation2 + $0x2b8] sm:$0xff]
    %v142 = vld [vmem:[#allocation2 + $0x2c0] sm:$0xff]
    %v143 = vld [vmem:[#allocation2 + $0x2c8] sm:$0xff]
    %v144 = vld [vmem:[#allocation2 + $0x2d0] sm:$0xff]
    %v145 = vld [vmem:[#allocation2 + $0x2d8] sm:$0xff]
    %v146 = vld [vmem:[#allocation2 + $0x2e0] sm:$0xff]
    %v147 = vld [vmem:[#allocation2 + $0x2e8] sm:$0xff]
    %v148 = vld [vmem:[#allocation2 + $0x2f0] sm:$0xff]
    %v149 = vld [vmem:[#allocation2 + $0x2f8] sm:$0xff]
    %v150 = vld [vmem:[#allocation2 + $0x300] sm:$0xff]
    %v151 = vld [vmem:[#allocation2 + $0x308] sm:$0xff]
    %v152 = vld [vmem:[#allocation2 + $0x310] sm:$0xff]
    %v153 = vld [vmem:[#allocation2 + $0x318] sm:$0xff]
    %v154 = vld [vmem:[#allocation2 + $0x320] sm:$0xff]
    %v155 = vld [vmem:[#allocation2 + $0x328] sm:$0xff]
    %v156 = vld [vmem:[#allocation2 + $0x330] sm:$0xff]
    %v157 = vld [vmem:[#allocation2 + $0x338] sm:$0xff]
    %v158 = vld [vmem:[#allocation2 + $0x340] sm:$0xff]
    %v159 = vld [vmem:[#allocation2 + $0x348] sm:$0xff]
    %v160 = vld [vmem:[#allocation2 + $0x350] sm:$0xff]
    %v161 = vld [vmem:[#allocation2 + $0x358] sm:$0xff]
    %v162 = vld [vmem:[#allocation2 + $0x360] sm:$0xff]
    %v163 = vld [vmem:[#allocation2 + $0x368] sm:$0xff]
    %v164 = vld [vmem:[#allocation2 + $0x370] sm:$0xff]
    %v165 = vld [vmem:[#allocation2 + $0x378] sm:$0xff]
    %v166 = vld [vmem:[#allocation2 + $0x380] sm:$0xff]
    %v167 = vld [vmem:[#allocation2 + $0x388] sm:$0xff]
    %v168 = vld [vmem:[#allocation2 + $0x390] sm:$0xff]
    %v169 = vld [vmem:[#allocation2 + $0x398] sm:$0xff]
    %v170 = vld [vmem:[#allocation2 + $0x3a0] sm:$0xff]
    %v171 = vld [vmem:[#allocation2 + $0x3a8] sm:$0xff]
    %v172 = vld [vmem:[#allocation2 + $0x3b0] sm:$0xff]
    %v173 = vld [vmem:[#allocation2 + $0x3b8] sm:$0xff]
    %v174 = vld [vmem:[#allocation2 + $0x3c0] sm:$0xff]
    %v175 = vld [vmem:[#allocation2 + $0x3c8] sm:$0xff]
    %v176 = vld [vmem:[#allocation2 + $0x3d0] sm:$0xff]
    %v177 = vld [vmem:[#allocation2 + $0x3d8] sm:$0xff]
    %v178 = vld [vmem:[#allocation2 + $0x3e0] sm:$0xff]
    %v179 = vld [vmem:[#allocation2 + $0x3e8] sm:$0xff]
    %v180 = vld [vmem:[#allocation2 + $0x3f0] sm:$0xff]
    %v181 = vld [vmem:[#allocation2 + $0x3f8] sm:$0xff]
    %v182 = vld [vmem:[#allocation2 + $0x400] sm:$0xff]
    %v183 = vld [vmem:[#allocation2 + $0x408] sm:$0xff]
    %v184 = vld [vmem:[#allocation2 + $0x410] sm:$0xff]
    %v185 = vld [vmem:[#allocation2 + $0x418] sm:$0xff]
    %v186 = vld [vmem:[#allocation2 + $0x420] sm:$0xff]
    %v187 = vld [vmem:[#allocation2 + $0x428] sm:$0xff]
    %v188 = vld [vmem:[#allocation2 + $0x430] sm:$0xff]
    %v189 = vld [vmem:[#allocation2 + $0x438] sm:$0xff]
    %v190 = vld [vmem:[#allocation2 + $0x440] sm:$0xff]
    %v191 = vld [vmem:[#allocation2 + $0x448] sm:$0xff]
    %v192 = vld [vmem:[#allocation2 + $0x450] sm:$0xff]
    %v193 = vld [vmem:[#allocation2 + $0x458] sm:$0xff]
    %v194 = vld [vmem:[#allocation2 + $0x460] sm:$0xff]
    %v195 = vld [vmem:[#allocation2 + $0x468] sm:$0xff]
    %v196 = vld [vmem:[#allocation2 + $0x470] sm:$0xff]
    %v197 = vld [vmem:[#allocation2 + $0x478] sm:$0xff]
    %v198 = vld [vmem:[#allocation2 + $0x480] sm:$0xff]
    %v199 = vld [vmem:[#allocation2 + $0x488] sm:$0xff]
    %v200 = vld [vmem:[#allocation2 + $0x490] sm:$0xff]
    %v201 = vld [vmem:[#allocation2 + $0x498] sm:$0xff]
    %v202 = vld [vmem:[#allocation2 + $0x4a0] sm:$0xff]
    %v203 = vld [vmem:[#allocation2 + $0x4a8] sm:$0xff]
    %v204 = vld [vmem:[#allocation2 + $0x4b0] sm:$0xff]
    %v205 = vld [vmem:[#allocation2 + $0x4b8] sm:$0xff]
    %v206 = vld [vmem:[#allocation2 + $0x4c0] sm:$0xff]
    %v207 = vld [vmem:[#allocation2 + $0x4c8] sm:$0xff]
    %v208 = vld [vmem:[#allocation2 + $0x4d0] sm:$0xff]
    %v209 = vld [vmem:[#allocation2 + $0x4d8] sm:$0xff]
    %v210 = vld [vmem:[#allocation2 + $0x4e0] sm:$0xff]
    %v211 = vld [vmem:[#allocation2 + $0x4e8] sm:$0xff]
    %v212 = vld [vmem:[#allocation2 + $0x4f0] sm:$0xff]
    %v213 = vld [vmem:[#allocation2 + $0x4f8] sm:$0xff]
    %v214 = vld [vmem:[#allocation2 + $0x500] sm:$0xff]
    %v215 = vld [vmem:[#allocation2 + $0x508] sm:$0xff]
    %v216 = vld [vmem:[#allocation2 + $0x510] sm:$0xff]
    %v217 = vld [vmem:[#allocation2 + $0x518] sm:$0xff]
    %v218 = vld [vmem:[#allocation2 + $0x520] sm:$0xff]
    %v219 = vld [vmem:[#allocation2 + $0x528] sm:$0xff]
    %v220 = vld [vmem:[#allocation2 + $0x530] sm:$0xff]
    %v221 = vld [vmem:[#allocation2 + $0x538] sm:$0xff]
    %v222 = vld [vmem:[#allocation2 + $0x540] sm:$0xff]
    %v223 = vld [vmem:[#allocation2 + $0x548] sm:$0xff]
    %v224 = vld [vmem:[#allocation2 + $0x550] sm:$0xff]
    %v225 = vld [vmem:[#allocation2 + $0x558] sm:$0xff]
    %v226 = vld [vmem:[#allocation2 + $0x560] sm:$0xff]
    %v227 = vld [vmem:[#allocation2 + $0x568] sm:$0xff]
    %v228 = vld [vmem:[#allocation2 + $0x570] sm:$0xff]
    %v229 = vld [vmem:[#allocation2 + $0x578] sm:$0xff]
    %v230 = vld [vmem:[#allocation2 + $0x580] sm:$0xff]
    %v231 = vld [vmem:[#allocation2 + $0x588] sm:$0xff]
    %v232 = vld [vmem:[#allocation2 + $0x590] sm:$0xff]
    %v233 = vld [vmem:[#allocation2 + $0x598] sm:$0xff]
    %v234 = vld [vmem:[#allocation2 + $0x5a0] sm:$0xff]
    %v235 = vld [vmem:[#allocation2 + $0x5a8] sm:$0xff]
    %v236 = vld [vmem:[#allocation2 + $0x5b0] sm:$0xff]
    %v237 = vld [vmem:[#allocation2 + $0x5b8] sm:$0xff]
    %v238 = vld [vmem:[#allocation2 + $0x5c0] sm:$0xff]
    %v239 = vld [vmem:[#allocation2 + $0x5c8] sm:$0xff]
    %v240 = vld [vmem:[#allocation2 + $0x5d0] sm:$0xff]
    %v241 = vld [vmem:[#allocation2 + $0x5d8] sm:$0xff]
    %v242 = vld [vmem:[#allocation2 + $0x5e0] sm:$0xff]
    %v243 = vld [vmem:[#allocation2 + $0x5e8] sm:$0xff]
    %v244 = vld [vmem:[#allocation2 + $0x5f0] sm:$0xff]
    %v245 = vld [vmem:[#allocation2 + $0x5f8] sm:$0xff]
    %v246 = vld [vmem:[#allocation2 + $0x600] sm:$0xff]
    %v247 = vld [vmem:[#allocation2 + $0x608] sm:$0xff]
    %v248 = vld [vmem:[#allocation2 + $0x610] sm:$0xff]
    %v249 = vld [vmem:[#allocation2 + $0x618] sm:$0xff]
    %v250 = vld [vmem:[#allocation2 + $0x620] sm:$0xff]
    %v251 = vld [vmem:[#allocation2 + $0x628] sm:$0xff]
    %v252 = vld [vmem:[#allocation2 + $0x630] sm:$0xff]
    %v253 = vld [vmem:[#allocation2 + $0x638] sm:$0xff]
    %v254 = vld [vmem:[#allocation2 + $0x640] sm:$0xff]
    %v255 = vld [vmem:[#allocation2 + $0x648] sm:$0xff]
    %v256 = vld [vmem:[#allocation2 + $0x650] sm:$0xff]
    %v257 = vld [vmem:[#allocation2 + $0x658] sm:$0xff]
    %v258 = vld [vmem:[#allocation2 + $0x660] sm:$0xff]
    %v259 = vld [vmem:[#allocation2 + $0x668] sm:$0xff]
    %v260 = vld [vmem:[#allocation2 + $0x670] sm:$0xff]
    %v261 = vld [vmem:[#allocation2 + $0x678] sm:$0xff]
    %v262 = vld [vmem:[#allocation2 + $0x680] sm:$0xff]
    %v263 = vld [vmem:[#allocation2 + $0x688] sm:$0xff]
    %v264 = vld [vmem:[#allocation2 + $0x690] sm:$0xff]
    %v265 = vld [vmem:[#allocation2 + $0x698] sm:$0xff]
    %v266 = vld [vmem:[#allocation2 + $0x6a0] sm:$0xff]
    %v267 = vld [vmem:[#allocation2 + $0x6a8] sm:$0xff]
    %v268 = vld [vmem:[#allocation2 + $0x6b0] sm:$0xff]
    %v269 = vld [vmem:[#allocation2 + $0x6b8] sm:$0xff]
    %v270 = vld [vmem:[#allocation2 + $0x6c0] sm:$0xff]
    %v271 = vld [vmem:[#allocation2 + $0x6c8] sm:$0xff]
    %v272 = vld [vmem:[#allocation2 + $0x6d0] sm:$0xff]
    %v273 = vld [vmem:[#allocation2 + $0x6d8] sm:$0xff]
    %v274 = vld [vmem:[#allocation2 + $0x6e0] sm:$0xff]
    %v275 = vld [vmem:[#allocation2 + $0x6e8] sm:$0xff]
    %v276 = vld [vmem:[#allocation2 + $0x6f0] sm:$0xff]
    %v277 = vld [vmem:[#allocation2 + $0x6f8] sm:$0xff]
    %v278 = vld [vmem:[#allocation2 + $0x700] sm:$0xff]
    %v279 = vld [vmem:[#allocation2 + $0x708] sm:$0xff]
    %v280 = vld [vmem:[#allocation2 + $0x710] sm:$0xff]
    %v281 = vld [vmem:[#allocation2 + $0x718] sm:$0xff]
    %v282 = vld [vmem:[#allocation2 + $0x720] sm:$0xff]
    %v283 = vld [vmem:[#allocation2 + $0x728] sm:$0xff]
    %v284 = vld [vmem:[#allocation2 + $0x730] sm:$0xff]
    %v285 = vld [vmem:[#allocation2 + $0x738] sm:$0xff]
    %v286 = vld [vmem:[#allocation2 + $0x740] sm:$0xff]
    %v287 = vld [vmem:[#allocation2 + $0x748] sm:$0xff]
    %v288 = vld [vmem:[#allocation2 + $0x750] sm:$0xff]
    %v289 = vld [vmem:[#allocation2 + $0x758] sm:$0xff]
    %v290 = vld [vmem:[#allocation2 + $0x760] sm:$0xff]
    %v291 = vld [vmem:[#allocation2 + $0x768] sm:$0xff]
    %v292 = vld [vmem:[#allocation2 + $0x770] sm:$0xff]
    %v293 = vld [vmem:[#allocation2 + $0x778] sm:$0xff]
    %v294 = vld [vmem:[#allocation2 + $0x780] sm:$0xff]
    %v295 = vld [vmem:[#allocation2 + $0x788] sm:$0xff]
    %v296 = vld [vmem:[#allocation2 + $0x790] sm:$0xff]
    %v297 = vld [vmem:[#allocation2 + $0x798] sm:$0xff]
    %v298 = vld [vmem:[#allocation2 + $0x7a0] sm:$0xff]
    %v299 = vld [vmem:[#allocation2 + $0x7a8] sm:$0xff]
    %v300 = vld [vmem:[#allocation2 + $0x7b0] sm:$0xff]
    %v301 = vld [vmem:[#allocation2 + $0x7b8] sm:$0xff]
    %v302 = vld [vmem:[#allocation2 + $0x7c0] sm:$0xff]
    %v303 = vld [vmem:[#allocation2 + $0x7c8] sm:$0xff]
    %v304 = vld [vmem:[#allocation2 + $0x7d0] sm:$0xff]
    %v305 = vld [vmem:[#allocation2 + $0x7d8] sm:$0xff]
    %v306 = vld [vmem:[#allocation2 + $0x7e0] sm:$0xff]
    %v307 = vld [vmem:[#allocation2 + $0x7e8] sm:$0xff]
    %v308 = vld [vmem:[#allocation2 + $0x7f0] sm:$0xff]
    %v309 = vld [vmem:[#allocation2 + $0x7f8] sm:$0xff]
    %v310 = vld [vmem:[#allocation2 + $0x800] sm:$0xff]
    %v311 = vld [vmem:[#allocation2 + $0x808] sm:$0xff]
    %v312 = vld [vmem:[#allocation2 + $0x810] sm:$0xff]
    %v313 = vld [vmem:[#allocation2 + $0x818] sm:$0xff]
    %v314 = vld [vmem:[#allocation2 + $0x820] sm:$0xff]
    %v315 = vld [vmem:[#allocation2 + $0x828] sm:$0xff]
    %v316 = vld [vmem:[#allocation2 + $0x830] sm:$0xff]
    %v317 = vld [vmem:[#allocation2 + $0x838] sm:$0xff]
    %v318 = vld [vmem:[#allocation2 + $0x840] sm:$0xff]
    %v319 = vld [vmem:[#allocation2 + $0x848] sm:$0xff]
    %v320 = vld [vmem:[#allocation2 + $0x850] sm:$0xff]
    %v321 = vld [vmem:[#allocation2 + $0x858] sm:$0xff]
    %v322 = vld [vmem:[#allocation2 + $0x860] sm:$0xff]
    %v323 = vld [vmem:[#allocation2 + $0x868] sm:$0xff]
    %v324 = vld [vmem:[#allocation2 + $0x870] sm:$0xff]
    %v325 = vld [vmem:[#allocation2 + $0x878] sm:$0xff]
    %v326 = vld [vmem:[#allocation2 + $0x880] sm:$0xff]
    %v327 = vld [vmem:[#allocation2 + $0x888] sm:$0xff]
    %v328 = vld [vmem:[#allocation2 + $0x890] sm:$0xff]
    %v329 = vld [vmem:[#allocation2 + $0x898] sm:$0xff]
    %v330 = vld [vmem:[#allocation2 + $0x8a0] sm:$0xff]
    %v331 = vld [vmem:[#allocation2 + $0x8a8] sm:$0xff]
    %v332 = vld [vmem:[#allocation2 + $0x8b0] sm:$0xff]
    %v333 = vld [vmem:[#allocation2 + $0x8b8] sm:$0xff]
    %v334 = vld [vmem:[#allocation2 + $0x8c0] sm:$0xff]
    %v335 = vld [vmem:[#allocation2 + $0x8c8] sm:$0xff]
    %v336 = vld [vmem:[#allocation2 + $0x8d0] sm:$0xff]
    %v337 = vld [vmem:[#allocation2 + $0x8d8] sm:$0xff]
    %v338 = vld [vmem:[#allocation2 + $0x8e0] sm:$0xff]
    %v339 = vld [vmem:[#allocation2 + $0x8e8] sm:$0xff]
    %v340 = vld [vmem:[#allocation2 + $0x8f0] sm:$0xff]
    %v341 = vld [vmem:[#allocation2 + $0x8f8] sm:$0xff]
    %v342 = vld [vmem:[#allocation2 + $0x900] sm:$0xff]
    %v343 = vld [vmem:[#allocation2 + $0x908] sm:$0xff]
    %v344 = vld [vmem:[#allocation2 + $0x910] sm:$0xff]
    %v345 = vld [vmem:[#allocation2 + $0x918] sm:$0xff]
    %v346 = vld [vmem:[#allocation2 + $0x920] sm:$0xff]
    %v347 = vld [vmem:[#allocation2 + $0x928] sm:$0xff]
    %v348 = vld [vmem:[#allocation2 + $0x930] sm:$0xff]
    %v349 = vld [vmem:[#allocation2 + $0x938] sm:$0xff]
    %v350 = vld [vmem:[#allocation2 + $0x940] sm:$0xff]
    %v351 = vld [vmem:[#allocation2 + $0x948] sm:$0xff]
    %v352 = vld [vmem:[#allocation2 + $0x950] sm:$0xff]
    %v353 = vld [vmem:[#allocation2 + $0x958] sm:$0xff]
    %v354 = vld [vmem:[#allocation2 + $0x960] sm:$0xff]
    %v355 = vld [vmem:[#allocation2 + $0x968] sm:$0xff]
    %v356 = vld [vmem:[#allocation2 + $0x970] sm:$0xff]
    %v357 = vld [vmem:[#allocation2 + $0x978] sm:$0xff]
    %v358 = vld [vmem:[#allocation2 + $0x980] sm:$0xff]
    %v359 = vld [vmem:[#allocation2 + $0x988] sm:$0xff]
    %v360 = vld [vmem:[#allocation2 + $0x990] sm:$0xff]
    %v361 = vld [vmem:[#allocation2 + $0x998] sm:$0xff]
    %v362 = vld [vmem:[#allocation2 + $0x9a0] sm:$0xff]
    %v363 = vld [vmem:[#allocation2 + $0x9a8] sm:$0xff]
    %v364 = vld [vmem:[#allocation2 + $0x9b0] sm:$0xff]
    %v365 = vld [vmem:[#allocation2 + $0x9b8] sm:$0xff]
    %v366 = vld [vmem:[#allocation2 + $0x9c0] sm:$0xff]
    %v367 = vld [vmem:[#allocation2 + $0x9c8] sm:$0xff]
    %v368 = vld [vmem:[#allocation2 + $0x9d0] sm:$0xff]
    %v369 = vld [vmem:[#allocation2 + $0x9d8] sm:$0xff]
    %v370 = vld [vmem:[#allocation2 + $0x9e0] sm:$0xff]
    %v371 = vld [vmem:[#allocation2 + $0x9e8] sm:$0xff]
    %v372 = vld [vmem:[#allocation2 + $0x9f0] sm:$0xff]
    %v373 = vld [vmem:[#allocation2 + $0x9f8] sm:$0xff]
    %v374 = vld [vmem:[#allocation2 + $0xa00] sm:$0xff]
    %v375 = vld [vmem:[#allocation2 + $0xa08] sm:$0xff]
    %v376 = vld [vmem:[#allocation2 + $0xa10] sm:$0xff]
    %v377 = vld [vmem:[#allocation2 + $0xa18] sm:$0xff]
    %v378 = vld [vmem:[#allocation2 + $0xa20] sm:$0xff]
    %v379 = vld [vmem:[#allocation2 + $0xa28] sm:$0xff]
    %v380 = vld [vmem:[#allocation2 + $0xa30] sm:$0xff]
    %v381 = vld [vmem:[#allocation2 + $0xa38] sm:$0xff]
    %v382 = vld [vmem:[#allocation2 + $0xa40] sm:$0xff]
    %v383 = vld [vmem:[#allocation2 + $0xa48] sm:$0xff]
    %v384 = vld [vmem:[#allocation2 + $0xa50] sm:$0xff]
    %v385 = vld [vmem:[#allocation2 + $0xa58] sm:$0xff]
    %v386 = vld [vmem:[#allocation2 + $0xa60] sm:$0xff]
    %v387 = vld [vmem:[#allocation2 + $0xa68] sm:$0xff]
    %v388 = vld [vmem:[#allocation2 + $0xa70] sm:$0xff]
    %v389 = vld [vmem:[#allocation2 + $0xa78] sm:$0xff]
    %v390 = vld [vmem:[#allocation2 + $0xa80] sm:$0xff]
    %v391 = vld [vmem:[#allocation2 + $0xa88] sm:$0xff]
    %v392 = vld [vmem:[#allocation2 + $0xa90] sm:$0xff]
    %v393 = vld [vmem:[#allocation2 + $0xa98] sm:$0xff]
    %v394 = vld [vmem:[#allocation2 + $0xaa0] sm:$0xff]
    %v395 = vld [vmem:[#allocation2 + $0xaa8] sm:$0xff]
    %v396 = vld [vmem:[#allocation2 + $0xab0] sm:$0xff]
    %v397 = vld [vmem:[#allocation2 + $0xab8] sm:$0xff]
    %v398 = vld [vmem:[#allocation2 + $0xac0] sm:$0xff]
    %v399 = vld [vmem:[#allocation2 + $0xac8] sm:$0xff]
    %v400 = vld [vmem:[#allocation2 + $0xad0] sm:$0xff]
    %v401 = vld [vmem:[#allocation2 + $0xad8] sm:$0xff]
    %v402 = vld [vmem:[#allocation2 + $0xae0] sm:$0xff]
    %v403 = vld [vmem:[#allocation2 + $0xae8] sm:$0xff]
    %v404 = vld [vmem:[#allocation2 + $0xaf0] sm:$0xff]
    %v405 = vld [vmem:[#allocation2 + $0xaf8] sm:$0xff]
    %v406 = vld [vmem:[#allocation2 + $0xb00] sm:$0xff]
    %v407 = vld [vmem:[#allocation2 + $0xb08] sm:$0xff]
    %v408 = vld [vmem:[#allocation2 + $0xb10] sm:$0xff]
    %v409 = vld [vmem:[#allocation2 + $0xb18] sm:$0xff]
    %v410 = vld [vmem:[#allocation2 + $0xb20] sm:$0xff]
    %v411 = vld [vmem:[#allocation2 + $0xb28] sm:$0xff]
    %v412 = vld [vmem:[#allocation2 + $0xb30] sm:$0xff]
    %v413 = vld [vmem:[#allocation2 + $0xb38] sm:$0xff]
    %v414 = vld [vmem:[#allocation2 + $0xb40] sm:$0xff]
    %v415 = vld [vmem:[#allocation2 + $0xb48] sm:$0xff]
    %v416 = vld [vmem:[#allocation2 + $0xb50] sm:$0xff]
    %v417 = vld [vmem:[#allocation2 + $0xb58] sm:$0xff]
    %v418 = vld [vmem:[#allocation2 + $0xb60] sm:$0xff]
    %v419 = vld [vmem:[#allocation2 + $0xb68] sm:$0xff]
    %v420 = vld [vmem:[#allocation2 + $0xb70] sm:$0xff]
    %v421 = vld [vmem:[#allocation2 + $0xb78] sm:$0xff]
    %v422 = vld [vmem:[#allocation2 + $0xb80] sm:$0xff]
    %v423 = vld [vmem:[#allocation2 + $0xb88] sm:$0xff]
    %v424 = vld [vmem:[#allocation2 + $0xb90] sm:$0xff]
    %v425 = vld [vmem:[#allocation2 + $0xb98] sm:$0xff]
    %v426 = vld [vmem:[#allocation2 + $0xba0] sm:$0xff]
    %v427 = vld [vmem:[#allocation2 + $0xba8] sm:$0xff]
    %v428 = vld [vmem:[#allocation2 + $0xbb0] sm:$0xff]
    %v429 = vld [vmem:[#allocation2 + $0xbb8] sm:$0xff]
    %v430 = vld [vmem:[#allocation2 + $0xbc0] sm:$0xff]
    %v431 = vld [vmem:[#allocation2 + $0xbc8] sm:$0xff]
    %v432 = vld [vmem:[#allocation2 + $0xbd0] sm:$0xff]
    %v433 = vld [vmem:[#allocation2 + $0xbd8] sm:$0xff]
    %v434 = vld [vmem:[#allocation2 + $0xbe0] sm:$0xff]
    %v435 = vld [vmem:[#allocation2 + $0xbe8] sm:$0xff]
    %v436 = vld [vmem:[#allocation2 + $0xbf0] sm:$0xff]
    %v437 = vld [vmem:[#allocation2 + $0xbf8] sm:$0xff]
    %v438 = vld [vmem:[#allocation2 + $0xc00] sm:$0xff]
    %v439 = vld [vmem:[#allocation2 + $0xc08] sm:$0xff]
    %v440 = vld [vmem:[#allocation2 + $0xc10] sm:$0xff]
    %v441 = vld [vmem:[#allocation2 + $0xc18] sm:$0xff]
    %v442 = vld [vmem:[#allocation2 + $0xc20] sm:$0xff]
    %v443 = vld [vmem:[#allocation2 + $0xc28] sm:$0xff]
    %v444 = vld [vmem:[#allocation2 + $0xc30] sm:$0xff]
    %v445 = vld [vmem:[#allocation2 + $0xc38] sm:$0xff]
    %v446 = vld [vmem:[#allocation2 + $0xc40] sm:$0xff]
    %v447 = vld [vmem:[#allocation2 + $0xc48] sm:$0xff]
    %v448 = vld [vmem:[#allocation2 + $0xc50] sm:$0xff]
    %v449 = vld [vmem:[#allocation2 + $0xc58] sm:$0xff]
    %v450 = vld [vmem:[#allocation2 + $0xc60] sm:$0xff]
    %v451 = vld [vmem:[#allocation2 + $0xc68] sm:$0xff]
    %v452 = vld [vmem:[#allocation2 + $0xc70] sm:$0xff]
    %v453 = vld [vmem:[#allocation2 + $0xc78] sm:$0xff]
    %v454 = vld [vmem:[#allocation2 + $0xc80] sm:$0xff]
    %v455 = vld [vmem:[#allocation2 + $0xc88] sm:$0xff]
    %v456 = vld [vmem:[#allocation2 + $0xc90] sm:$0xff]
    %v457 = vld [vmem:[#allocation2 + $0xc98] sm:$0xff]
    %v458 = vld [vmem:[#allocation2 + $0xca0] sm:$0xff]
    %v459 = vld [vmem:[#allocation2 + $0xca8] sm:$0xff]
    %v460 = vld [vmem:[#allocation2 + $0xcb0] sm:$0xff]
    %v461 = vld [vmem:[#allocation2 + $0xcb8] sm:$0xff]
    %v462 = vld [vmem:[#allocation2 + $0xcc0] sm:$0xff]
    %v463 = vld [vmem:[#allocation2 + $0xcc8] sm:$0xff]
    %v464 = vld [vmem:[#allocation2 + $0xcd0] sm:$0xff]
    %v465 = vld [vmem:[#allocation2 + $0xcd8] sm:$0xff]
    %v466 = vld [vmem:[#allocation2 + $0xce0] sm:$0xff]
    %v467 = vld [vmem:[#allocation2 + $0xce8] sm:$0xff]
    %v468 = vld [vmem:[#allocation2 + $0xcf0] sm:$0xff]
    %v469 = vld [vmem:[#allocation2 + $0xcf8] sm:$0xff]
    %v470 = vld [vmem:[#allocation2 + $0xd00] sm:$0xff]
    %v471 = vld [vmem:[#allocation2 + $0xd08] sm:$0xff]
    %v472 = vld [vmem:[#allocation2 + $0xd10] sm:$0xff]
    %v473 = vld [vmem:[#allocation2 + $0xd18] sm:$0xff]
    %v474 = vld [vmem:[#allocation2 + $0xd20] sm:$0xff]
    %v475 = vld [vmem:[#allocation2 + $0xd28] sm:$0xff]
    %v476 = vld [vmem:[#allocation2 + $0xd30] sm:$0xff]
    %v477 = vld [vmem:[#allocation2 + $0xd38] sm:$0xff]
    %v478 = vld [vmem:[#allocation2 + $0xd40] sm:$0xff]
    %v479 = vld [vmem:[#allocation2 + $0xd48] sm:$0xff]
    %v480 = vld [vmem:[#allocation2 + $0xd50] sm:$0xff]
    %v481 = vld [vmem:[#allocation2 + $0xd58] sm:$0xff]
    %v482 = vld [vmem:[#allocation2 + $0xd60] sm:$0xff]
    %v483 = vld [vmem:[#allocation2 + $0xd68] sm:$0xff]
    %v484 = vld [vmem:[#allocation2 + $0xd70] sm:$0xff]
    %v485 = vld [vmem:[#allocation2 + $0xd78] sm:$0xff]
    %v486 = vld [vmem:[#allocation2 + $0xd80] sm:$0xff]
    %v487 = vld [vmem:[#allocation2 + $0xd88] sm:$0xff]
    %v488 = vld [vmem:[#allocation2 + $0xd90] sm:$0xff]
    %v489 = vld [vmem:[#allocation2 + $0xd98] sm:$0xff]
    %v490 = vld [vmem:[#allocation2 + $0xda0] sm:$0xff]
    %v491 = vld [vmem:[#allocation2 + $0xda8] sm:$0xff]
    %v492 = vld [vmem:[#allocation2 + $0xdb0] sm:$0xff]
    %v493 = vld [vmem:[#allocation2 + $0xdb8] sm:$0xff]
    %v494 = vld [vmem:[#allocation2 + $0xdc0] sm:$0xff]
    %v495 = vld [vmem:[#allocation2 + $0xdc8] sm:$0xff]
    %v496 = vld [vmem:[#allocation2 + $0xdd0] sm:$0xff]
    %v497 = vld [vmem:[#allocation2 + $0xdd8] sm:$0xff]
    %v498 = vld [vmem:[#allocation2 + $0xde0] sm:$0xff]
    %v499 = vld [vmem:[#allocation2 + $0xde8] sm:$0xff]
    %v500 = vld [vmem:[#allocation2 + $0xdf0] sm:$0xff]
    %v501 = vld [vmem:[#allocation2 + $0xdf8] sm:$0xff]
    %v502 = vld [vmem:[#allocation2 + $0xe00] sm:$0xff]
    %v503 = vld [vmem:[#allocation2 + $0xe08] sm:$0xff]
    %v504 = vld [vmem:[#allocation2 + $0xe10] sm:$0xff]
    %v505 = vld [vmem:[#allocation2 + $0xe18] sm:$0xff]
    %v506 = vld [vmem:[#allocation2 + $0xe20] sm:$0xff]
    %v507 = vld [vmem:[#allocation2 + $0xe28] sm:$0xff]
    %v508 = vld [vmem:[#allocation2 + $0xe30] sm:$0xff]
    %v509 = vld [vmem:[#allocation2 + $0xe38] sm:$0xff]
    %v510 = vld [vmem:[#allocation2 + $0xe40] sm:$0xff]
    %v511 = vld [vmem:[#allocation2 + $0xe48] sm:$0xff]
    %v512 = vld [vmem:[#allocation2 + $0xe50] sm:$0xff]
    %v513 = vld [vmem:[#allocation2 + $0xe58] sm:$0xff]
    %v514 = vld [vmem:[#allocation2 + $0xe60] sm:$0xff]
    %v515 = vld [vmem:[#allocation2 + $0xe68] sm:$0xff]
    %v516 = vld [vmem:[#allocation2 + $0xe70] sm:$0xff]
    %v517 = vld [vmem:[#allocation2 + $0xe78] sm:$0xff]
    %v518 = vld [vmem:[#allocation2 + $0xe80] sm:$0xff]
    %v519 = vld [vmem:[#allocation2 + $0xe88] sm:$0xff]
    %v520 = vld [vmem:[#allocation2 + $0xe90] sm:$0xff]
    %v521 = vld [vmem:[#allocation2 + $0xe98] sm:$0xff]
    %v522 = vld [vmem:[#allocation2 + $0xea0] sm:$0xff]
    %v523 = vld [vmem:[#allocation2 + $0xea8] sm:$0xff]
    %v524 = vld [vmem:[#allocation2 + $0xeb0] sm:$0xff]
    %v525 = vld [vmem:[#allocation2 + $0xeb8] sm:$0xff]
    %v526 = vld [vmem:[#allocation2 + $0xec0] sm:$0xff]
    %v527 = vld [vmem:[#allocation2 + $0xec8] sm:$0xff]
    %v528 = vld [vmem:[#allocation2 + $0xed0] sm:$0xff]
    %v529 = vld [vmem:[#allocation2 + $0xed8] sm:$0xff]
    %v530 = vld [vmem:[#allocation2 + $0xee0] sm:$0xff]
    %v531 = vld [vmem:[#allocation2 + $0xee8] sm:$0xff]
    %v532 = vld [vmem:[#allocation2 + $0xef0] sm:$0xff]
    %v533 = vld [vmem:[#allocation2 + $0xef8] sm:$0xff]
    %v534 = vld [vmem:[#allocation2 + $0xf00] sm:$0xff]
    %v535 = vld [vmem:[#allocation2 + $0xf08] sm:$0xff]
    %v536 = vld [vmem:[#allocation2 + $0xf10] sm:$0xff]
    %v537 = vld [vmem:[#allocation2 + $0xf18] sm:$0xff]
    %v538 = vld [vmem:[#allocation2 + $0xf20] sm:$0xff]
    %v539 = vld [vmem:[#allocation2 + $0xf28] sm:$0xff]
    %v540 = vld [vmem:[#allocation2 + $0xf30] sm:$0xff]
    %v541 = vld [vmem:[#allocation2 + $0xf38] sm:$0xff]
    %v542 = vld [vmem:[#allocation2 + $0xf40] sm:$0xff]
    %v543 = vld [vmem:[#allocation2 + $0xf48] sm:$0xff]
    %v544 = vld [vmem:[#allocation2 + $0xf50] sm:$0xff]
    %v545 = vld [vmem:[#allocation2 + $0xf58] sm:$0xff]
    %v546 = vld [vmem:[#allocation2 + $0xf60] sm:$0xff]
    %v547 = vld [vmem:[#allocation2 + $0xf68] sm:$0xff]
    %v548 = vld [vmem:[#allocation2 + $0xf70] sm:$0xff]
    %v549 = vld [vmem:[#allocation2 + $0xf78] sm:$0xff]
    %v550 = vld [vmem:[#allocation2 + $0xf80] sm:$0xff]
    %v551 = vld [vmem:[#allocation2 + $0xf88] sm:$0xff]
    %v552 = vld [vmem:[#allocation2 + $0xf90] sm:$0xff]
    %v553 = vld [vmem:[#allocation2 + $0xf98] sm:$0xff]
    %v554 = vld [vmem:[#allocation2 + $0xfa0] sm:$0xff]
    %v555 = vld [vmem:[#allocation2 + $0xfa8] sm:$0xff]
    %v556 = vld [vmem:[#allocation2 + $0xfb0] sm:$0xff]
    %v557 = vld [vmem:[#allocation2 + $0xfb8] sm:$0xff]
    %v558 = vld [vmem:[#allocation2 + $0xfc0] sm:$0xff]
    %v559 = vld [vmem:[#allocation2 + $0xfc8] sm:$0xff]
    %v560 = vld [vmem:[#allocation2 + $0xfd0] sm:$0xff]
    %v561 = vld [vmem:[#allocation2 + $0xfd8] sm:$0xff]
    %v562 = vld [vmem:[#allocation2 + $0xfe0] sm:$0xff]
    %v563 = vld [vmem:[#allocation2 + $0xfe8] sm:$0xff]
    %v564 = vld [vmem:[#allocation2 + $0xff0] sm:$0xff]
    %v565 = vld [vmem:[#allocation2 + $0xff8] sm:$0xff]
    %v566 = vld [vmem:[#allocation2 + $0x1000] sm:$0xff]
    %v567 = vld [vmem:[#allocation2 + $0x1008] sm:$0xff]
    %v568 = vld [vmem:[#allocation2 + $0x1010] sm:$0xff]
    %v569 = vld [vmem:[#allocation2 + $0x1018] sm:$0xff]
    %v570 = vld [vmem:[#allocation2 + $0x1020] sm:$0xff]
    %v571 = vld [vmem:[#allocation2 + $0x1028] sm:$0xff]
    %v572 = vld [vmem:[#allocation2 + $0x1030] sm:$0xff]
    %v573 = vld [vmem:[#allocation2 + $0x1038] sm:$0xff]
    %v574 = vld [vmem:[#allocation2 + $0x1040] sm:$0xff]
    %v575 = vld [vmem:[#allocation2 + $0x1048] sm:$0xff]
    %v576 = vld [vmem:[#allocation2 + $0x1050] sm:$0xff]
    %v577 = vld [vmem:[#allocation2 + $0x1058] sm:$0xff]
    %v578 = vld [vmem:[#allocation2 + $0x1060] sm:$0xff]
    %v579 = vld [vmem:[#allocation2 + $0x1068] sm:$0xff]
    %v580 = vld [vmem:[#allocation2 + $0x1070] sm:$0xff]
    %v581 = vld [vmem:[#allocation2 + $0x1078] sm:$0xff]
    %v582 = vld [vmem:[#allocation2 + $0x1080] sm:$0xff]
    %v583 = vld [vmem:[#allocation2 + $0x1088] sm:$0xff]
    %v584 = vld [vmem:[#allocation2 + $0x1090] sm:$0xff]
    %v585 = vld [vmem:[#allocation2 + $0x1098] sm:$0xff]
    %v586 = vld [vmem:[#allocation2 + $0x10a0] sm:$0xff]
    %v587 = vld [vmem:[#allocation2 + $0x10a8] sm:$0xff]
    %v588 = vld [vmem:[#allocation2 + $0x10b0] sm:$0xff]
    %v589 = vld [vmem:[#allocation2 + $0x10b8] sm:$0xff]
    %v590 = vld [vmem:[#allocation2 + $0x10c0] sm:$0xff]
    %v591 = vld [vmem:[#allocation2 + $0x10c8] sm:$0xff]
    %v592 = vld [vmem:[#allocation2 + $0x10d0] sm:$0xff]
    %v593 = vld [vmem:[#allocation2 + $0x10d8] sm:$0xff]
    %v594 = vld [vmem:[#allocation2 + $0x10e0] sm:$0xff]
    %v595 = vld [vmem:[#allocation2 + $0x10e8] sm:$0xff]
    %v596 = vld [vmem:[#allocation2 + $0x10f0] sm:$0xff]
    %v597 = vld [vmem:[#allocation2 + $0x10f8] sm:$0xff]
    %v598 = vld [vmem:[#allocation2 + $0x1100] sm:$0xff]
    %v599 = vld [vmem:[#allocation2 + $0x1108] sm:$0xff]
    %v600 = vld [vmem:[#allocation2 + $0x1110] sm:$0xff]
    %v601 = vld [vmem:[#allocation2 + $0x1118] sm:$0xff]
    %v602 = vld [vmem:[#allocation2 + $0x1120] sm:$0xff]
    %v603 = vld [vmem:[#allocation2 + $0x1128] sm:$0xff]
    %v604 = vld [vmem:[#allocation2 + $0x1130] sm:$0xff]
    %v605 = vld [vmem:[#allocation2 + $0x1138] sm:$0xff]
    %v606 = vld [vmem:[#allocation2 + $0x1140] sm:$0xff]
    %v607 = vld [vmem:[#allocation2 + $0x1148] sm:$0xff]
    %v608 = vld [vmem:[#allocation2 + $0x1150] sm:$0xff]
    %v609 = vld [vmem:[#allocation2 + $0x1158] sm:$0xff]
    %v610 = vld [vmem:[#allocation2 + $0x1160] sm:$0xff]
    %v611 = vld [vmem:[#allocation2 + $0x1168] sm:$0xff]
    %v612 = vld [vmem:[#allocation2 + $0x1170] sm:$0xff]
    %v613 = vld [vmem:[#allocation2 + $0x1178] sm:$0xff]
    %v614 = vld [vmem:[#allocation2 + $0x1180] sm:$0xff]
    %v615 = vld [vmem:[#allocation2 + $0x1188] sm:$0xff]
    %v616 = vld [vmem:[#allocation2 + $0x1190] sm:$0xff]
    %v617 = vld [vmem:[#allocation2 + $0x1198] sm:$0xff]
    %v618 = vld [vmem:[#allocation2 + $0x11a0] sm:$0xff]
    %v619 = vld [vmem:[#allocation2 + $0x11a8] sm:$0xff]
    %v620 = vld [vmem:[#allocation2 + $0x11b0] sm:$0xff]
    %v621 = vld [vmem:[#allocation2 + $0x11b8] sm:$0xff]
    %v622 = vld [vmem:[#allocation2 + $0x11c0] sm:$0xff]
    %v623 = vld [vmem:[#allocation2 + $0x11c8] sm:$0xff]
    %v624 = vld [vmem:[#allocation2 + $0x11d0] sm:$0xff]
    %v625 = vld [vmem:[#allocation2 + $0x11d8] sm:$0xff]
    %v626 = vld [vmem:[#allocation2 + $0x11e0] sm:$0xff]
    %v627 = vld [vmem:[#allocation2 + $0x11e8] sm:$0xff]
    %v628 = vld [vmem:[#allocation2 + $0x11f0] sm:$0xff]
    %v629 = vld [vmem:[#allocation2 + $0x11f8] sm:$0xff]
    %v630 = vld [vmem:[#allocation4] sm:$0x3f]
    %v631 = vld [vmem:[#allocation6] sm:$0x3f]
    %v632 = vld [vmem:[%s0] sm:$0xff]
    %v633 = vld [vmem:[%s0 + $0x8] sm:$0xff]
    %v634 = vld [vmem:[%s0 + $0x10] sm:$0xff]
    %v635 = vld [vmem:[%s0 + $0x18] sm:$0xff]
    %v636 = vld [vmem:[%s0 + $0x20] sm:$0xff]
    %v637 = vld [vmem:[%s0 + $0x28] sm:$0xff]
    %v638 = vld [vmem:[%s0 + $0x30] sm:$0xff]
    %v639 = vld [vmem:[%s0 + $0x38] sm:$0xff]
    %v640 = vld [vmem:[%s0 + $0x40] sm:$0xff]
    %v641 = vld [vmem:[%s0 + $0x48] sm:$0xff]
    %v642 = vld [vmem:[%s0 + $0x50] sm:$0xff]
    %v643 = vld [vmem:[%s0 + $0x58] sm:$0xff]
    %v656 = vunpack.c.l.b16 %v632
    %v657 = vunpack.c.h.b16 %v632
    %v658 = vunpack.c.l.b16 %v633
    %v659 = vunpack.c.h.b16 %v633
    %v660 = vunpack.c.l.b16 %v634
    %v661 = vunpack.c.h.b16 %v634
    %v662 = vunpack.c.l.b16 %v635
    %v663 = vunpack.c.h.b16 %v635
    %v664 = vunpack.c.l.b16 %v636
    %v665 = vunpack.c.h.b16 %v636
    %v666 = vunpack.c.l.b16 %v637
    %v667 = vunpack.c.h.b16 %v637
    %v668 = vunpack.c.l.b16 %v638
    %v669 = vunpack.c.h.b16 %v638
    %v670 = vunpack.c.l.b16 %v639
    %v671 = vunpack.c.h.b16 %v639
    %v672 = vunpack.c.l.b16 %v640
    %v673 = vunpack.c.h.b16 %v640
    %v674 = vunpack.c.l.b16 %v641
    %v675 = vunpack.c.h.b16 %v641
    %v676 = vunpack.c.l.b16 %v642
    %v677 = vunpack.c.h.b16 %v642
    %v678 = vunpack.c.l.b16 %v643
    %v679 = vunpack.c.h.b16 %v643
    %v680 = vpack.c.b16 %v668, %v656
    %v681 = vpack.c.b16 %v669, %v657
    %v682 = vpack.c.b16 %v670, %v658
    %v683 = vpack.c.b16 %v671, %v659
    %v684 = vpack.c.b16 %v672, %v660
    %v685 = vpack.c.b16 %v673, %v661
    %v686 = vpack.c.b16 %v674, %v662
    %v687 = vpack.c.b16 %v675, %v663
    %v688 = vpack.c.b16 %v676, %v664
    %v689 = vpack.c.b16 %v677, %v665
    %v690 = vpack.c.b16 %v678, %v666
    %v691 = vpack.c.b16 %v679, %v667
    %v1280 = vunpack.c.l.b16 %v54
    %v1281 = vunpack.c.h.b16 %v54
    %v1282 = vunpack.c.l.b16 %v55
    %v1283 = vunpack.c.h.b16 %v55
    %v1284 = vunpack.c.l.b16 %v56
    %v1285 = vunpack.c.h.b16 %v56
    %v1286 = vunpack.c.l.b16 %v57
    %v1287 = vunpack.c.h.b16 %v57
    %v1288 = vunpack.c.l.b16 %v58
    %v1289 = vunpack.c.h.b16 %v58
    %v1290 = vunpack.c.l.b16 %v59
    %v1291 = vunpack.c.h.b16 %v59
    %v1292 = vunpack.c.l.b16 %v60
    %v1293 = vunpack.c.h.b16 %v60
    %v1294 = vunpack.c.l.b16 %v61
    %v1295 = vunpack.c.h.b16 %v61
    %v1296 = vunpack.c.l.b16 %v62
    %v1297 = vunpack.c.h.b16 %v62
    %v1298 = vunpack.c.l.b16 %v63
    %v1299 = vunpack.c.h.b16 %v63
    %v1300 = vunpack.c.l.b16 %v64
    %v1301 = vunpack.c.h.b16 %v64
    %v1302 = vunpack.c.l.b16 %v65
    %v1303 = vunpack.c.h.b16 %v65
    %v1304 = vunpack.c.l.b16 %v66
    %v1305 = vunpack.c.h.b16 %v66
    %v1306 = vunpack.c.l.b16 %v67
    %v1307 = vunpack.c.h.b16 %v67
    %v1308 = vunpack.c.l.b16 %v68
    %v1309 = vunpack.c.h.b16 %v68
    %v1310 = vunpack.c.l.b16 %v69
    %v1311 = vunpack.c.h.b16 %v69
    %v1312 = vunpack.c.l.b16 %v70
    %v1313 = vunpack.c.h.b16 %v70
    %v1314 = vunpack.c.l.b16 %v71
    %v1315 = vunpack.c.h.b16 %v71
    %v1316 = vunpack.c.l.b16 %v72
    %v1317 = vunpack.c.h.b16 %v72
    %v1318 = vunpack.c.l.b16 %v73
    %v1319 = vunpack.c.h.b16 %v73
    %v1320 = vunpack.c.l.b16 %v74
    %v1321 = vunpack.c.h.b16 %v74
    %v1322 = vunpack.c.l.b16 %v75
    %v1323 = vunpack.c.h.b16 %v75
    %v1324 = vunpack.c.l.b16 %v76
    %v1325 = vunpack.c.h.b16 %v76
    %v1326 = vunpack.c.l.b16 %v77
    %v1327 = vunpack.c.h.b16 %v77
    %v1328 = vunpack.c.l.b16 %v78
    %v1329 = vunpack.c.h.b16 %v78
    %v1330 = vunpack.c.l.b16 %v79
    %v1331 = vunpack.c.h.b16 %v79
    %v1332 = vunpack.c.l.b16 %v80
    %v1333 = vunpack.c.h.b16 %v80
    %v1334 = vunpack.c.l.b16 %v81
    %v1335 = vunpack.c.h.b16 %v81
    %v1336 = vunpack.c.l.b16 %v82
    %v1337 = vunpack.c.h.b16 %v82
    %v1338 = vunpack.c.l.b16 %v83
    %v1339 = vunpack.c.h.b16 %v83
    %v1340 = vunpack.c.l.b16 %v84
    %v1341 = vunpack.c.h.b16 %v84
    %v1342 = vunpack.c.l.b16 %v85
    %v1343 = vunpack.c.h.b16 %v85
    %v1344 = vunpack.c.l.b16 %v86
    %v1345 = vunpack.c.h.b16 %v86
    %v1346 = vunpack.c.l.b16 %v87
    %v1347 = vunpack.c.h.b16 %v87
    %v1348 = vunpack.c.l.b16 %v88
    %v1349 = vunpack.c.h.b16 %v88
    %v1350 = vunpack.c.l.b16 %v89
    %v1351 = vunpack.c.h.b16 %v89
    %v1352 = vunpack.c.l.b16 %v90
    %v1353 = vunpack.c.h.b16 %v90
    %v1354 = vunpack.c.l.b16 %v91
    %v1355 = vunpack.c.h.b16 %v91
    %v1356 = vunpack.c.l.b16 %v92
    %v1357 = vunpack.c.h.b16 %v92
    %v1358 = vunpack.c.l.b16 %v93
    %v1359 = vunpack.c.h.b16 %v93
    %v1360 = vunpack.c.l.b16 %v94
    %v1361 = vunpack.c.h.b16 %v94
    %v1362 = vunpack.c.l.b16 %v95
    %v1363 = vunpack.c.h.b16 %v95
    %v1364 = vunpack.c.l.b16 %v96
    %v1365 = vunpack.c.h.b16 %v96
    %v1366 = vunpack.c.l.b16 %v97
    %v1367 = vunpack.c.h.b16 %v97
    %v1368 = vunpack.c.l.b16 %v98
    %v1369 = vunpack.c.h.b16 %v98
    %v1370 = vunpack.c.l.b16 %v99
    %v1371 = vunpack.c.h.b16 %v99
    %v1372 = vunpack.c.l.b16 %v100
    %v1373 = vunpack.c.h.b16 %v100
    %v1374 = vunpack.c.l.b16 %v101
    %v1375 = vunpack.c.h.b16 %v101
    %v1376 = vunpack.c.l.b16 %v102
    %v1377 = vunpack.c.h.b16 %v102
    %v1378 = vunpack.c.l.b16 %v103
    %v1379 = vunpack.c.h.b16 %v103
    %v1380 = vunpack.c.l.b16 %v104
    %v1381 = vunpack.c.h.b16 %v104
    %v1382 = vunpack.c.l.b16 %v105
    %v1383 = vunpack.c.h.b16 %v105
    %v1384 = vunpack.c.l.b16 %v106
    %v1385 = vunpack.c.h.b16 %v106
    %v1386 = vunpack.c.l.b16 %v107
    %v1387 = vunpack.c.h.b16 %v107
    %v1388 = vunpack.c.l.b16 %v108
    %v1389 = vunpack.c.h.b16 %v108
    %v1390 = vunpack.c.l.b16 %v109
    %v1391 = vunpack.c.h.b16 %v109
    %v1392 = vunpack.c.l.b16 %v110
    %v1393 = vunpack.c.h.b16 %v110
    %v1394 = vunpack.c.l.b16 %v111
    %v1395 = vunpack.c.h.b16 %v111
    %v1396 = vunpack.c.l.b16 %v112
    %v1397 = vunpack.c.h.b16 %v112
    %v1398 = vunpack.c.l.b16 %v113
    %v1399 = vunpack.c.h.b16 %v113
    %v1400 = vunpack.c.l.b16 %v114
    %v1401 = vunpack.c.h.b16 %v114
    %v1402 = vunpack.c.l.b16 %v115
    %v1403 = vunpack.c.h.b16 %v115
    %v1404 = vunpack.c.l.b16 %v116
    %v1405 = vunpack.c.h.b16 %v116
    %v1406 = vunpack.c.l.b16 %v117
    %v1407 = vunpack.c.h.b16 %v117
    %v1408 = vunpack.c.l.b16 %v118
    %v1409 = vunpack.c.h.b16 %v118
    %v1410 = vunpack.c.l.b16 %v119
    %v1411 = vunpack.c.h.b16 %v119
    %v1412 = vunpack.c.l.b16 %v120
    %v1413 = vunpack.c.h.b16 %v120
    %v1414 = vunpack.c.l.b16 %v121
    %v1415 = vunpack.c.h.b16 %v121
    %v1416 = vunpack.c.l.b16 %v122
    %v1417 = vunpack.c.h.b16 %v122
    %v1418 = vunpack.c.l.b16 %v123
    %v1419 = vunpack.c.h.b16 %v123
    %v1420 = vunpack.c.l.b16 %v124
    %v1421 = vunpack.c.h.b16 %v124
    %v1422 = vunpack.c.l.b16 %v125
    %v1423 = vunpack.c.h.b16 %v125
    %v1424 = vunpack.c.l.b16 %v126
    %v1425 = vunpack.c.h.b16 %v126
    %v1426 = vunpack.c.l.b16 %v127
    %v1427 = vunpack.c.h.b16 %v127
    %v1428 = vunpack.c.l.b16 %v128
    %v1429 = vunpack.c.h.b16 %v128
    %v1430 = vunpack.c.l.b16 %v129
    %v1431 = vunpack.c.h.b16 %v129
    %v1432 = vunpack.c.l.b16 %v130
    %v1433 = vunpack.c.h.b16 %v130
    %v1434 = vunpack.c.l.b16 %v131
    %v1435 = vunpack.c.h.b16 %v131
    %v1436 = vunpack.c.l.b16 %v132
    %v1437 = vunpack.c.h.b16 %v132
    %v1438 = vunpack.c.l.b16 %v133
    %v1439 = vunpack.c.h.b16 %v133
    %v1440 = vunpack.c.l.b16 %v134
    %v1441 = vunpack.c.h.b16 %v134
    %v1442 = vunpack.c.l.b16 %v135
    %v1443 = vunpack.c.h.b16 %v135
    %v1444 = vunpack.c.l.b16 %v136
    %v1445 = vunpack.c.h.b16 %v136
    %v1446 = vunpack.c.l.b16 %v137
    %v1447 = vunpack.c.h.b16 %v137
    %v1448 = vunpack.c.l.b16 %v138
    %v1449 = vunpack.c.h.b16 %v138
    %v1450 = vunpack.c.l.b16 %v139
    %v1451 = vunpack.c.h.b16 %v139
    %v1452 = vunpack.c.l.b16 %v140
    %v1453 = vunpack.c.h.b16 %v140
    %v1454 = vunpack.c.l.b16 %v141
    %v1455 = vunpack.c.h.b16 %v141
    %v1456 = vunpack.c.l.b16 %v142
    %v1457 = vunpack.c.h.b16 %v142
    %v1458 = vunpack.c.l.b16 %v143
    %v1459 = vunpack.c.h.b16 %v143
    %v1460 = vunpack.c.l.b16 %v144
    %v1461 = vunpack.c.h.b16 %v144
    %v1462 = vunpack.c.l.b16 %v145
    %v1463 = vunpack.c.h.b16 %v145
    %v1464 = vunpack.c.l.b16 %v146
    %v1465 = vunpack.c.h.b16 %v146
    %v1466 = vunpack.c.l.b16 %v147
    %v1467 = vunpack.c.h.b16 %v147
    %v1468 = vunpack.c.l.b16 %v148
    %v1469 = vunpack.c.h.b16 %v148
    %v1470 = vunpack.c.l.b16 %v149
    %v1471 = vunpack.c.h.b16 %v149
    %v1472 = vunpack.c.l.b16 %v150
    %v1473 = vunpack.c.h.b16 %v150
    %v1474 = vunpack.c.l.b16 %v151
    %v1475 = vunpack.c.h.b16 %v151
    %v1476 = vunpack.c.l.b16 %v152
    %v1477 = vunpack.c.h.b16 %v152
    %v1478 = vunpack.c.l.b16 %v153
    %v1479 = vunpack.c.h.b16 %v153
    %v1480 = vunpack.c.l.b16 %v154
    %v1481 = vunpack.c.h.b16 %v154
    %v1482 = vunpack.c.l.b16 %v155
    %v1483 = vunpack.c.h.b16 %v155
    %v1484 = vunpack.c.l.b16 %v156
    %v1485 = vunpack.c.h.b16 %v156
    %v1486 = vunpack.c.l.b16 %v157
    %v1487 = vunpack.c.h.b16 %v157
    %v1488 = vunpack.c.l.b16 %v158
    %v1489 = vunpack.c.h.b16 %v158
    %v1490 = vunpack.c.l.b16 %v159
    %v1491 = vunpack.c.h.b16 %v159
    %v1492 = vunpack.c.l.b16 %v160
    %v1493 = vunpack.c.h.b16 %v160
    %v1494 = vunpack.c.l.b16 %v161
    %v1495 = vunpack.c.h.b16 %v161
    %v1496 = vunpack.c.l.b16 %v162
    %v1497 = vunpack.c.h.b16 %v162
    %v1498 = vunpack.c.l.b16 %v163
    %v1499 = vunpack.c.h.b16 %v163
    %v1500 = vunpack.c.l.b16 %v164
    %v1501 = vunpack.c.h.b16 %v164
    %v1502 = vunpack.c.l.b16 %v165
    %v1503 = vunpack.c.h.b16 %v165
    %v1504 = vunpack.c.l.b16 %v166
    %v1505 = vunpack.c.h.b16 %v166
    %v1506 = vunpack.c.l.b16 %v167
    %v1507 = vunpack.c.h.b16 %v167
    %v1508 = vunpack.c.l.b16 %v168
    %v1509 = vunpack.c.h.b16 %v168
    %v1510 = vunpack.c.l.b16 %v169
    %v1511 = vunpack.c.h.b16 %v169
    %v1512 = vunpack.c.l.b16 %v170
    %v1513 = vunpack.c.h.b16 %v170
    %v1514 = vunpack.c.l.b16 %v171
    %v1515 = vunpack.c.h.b16 %v171
    %v1516 = vunpack.c.l.b16 %v172
    %v1517 = vunpack.c.h.b16 %v172
    %v1518 = vunpack.c.l.b16 %v173
    %v1519 = vunpack.c.h.b16 %v173
    %v1520 = vunpack.c.l.b16 %v174
    %v1521 = vunpack.c.h.b16 %v174
    %v1522 = vunpack.c.l.b16 %v175
    %v1523 = vunpack.c.h.b16 %v175
    %v1524 = vunpack.c.l.b16 %v176
    %v1525 = vunpack.c.h.b16 %v176
    %v1526 = vunpack.c.l.b16 %v177
    %v1527 = vunpack.c.h.b16 %v177
    %v1528 = vunpack.c.l.b16 %v178
    %v1529 = vunpack.c.h.b16 %v178
    %v1530 = vunpack.c.l.b16 %v179
    %v1531 = vunpack.c.h.b16 %v179
    %v1532 = vunpack.c.l.b16 %v180
    %v1533 = vunpack.c.h.b16 %v180
    %v1534 = vunpack.c.l.b16 %v181
    %v1535 = vunpack.c.h.b16 %v181
    %v1536 = vunpack.c.l.b16 %v182
    %v1537 = vunpack.c.h.b16 %v182
    %v1538 = vunpack.c.l.b16 %v183
    %v1539 = vunpack.c.h.b16 %v183
    %v1540 = vunpack.c.l.b16 %v184
    %v1541 = vunpack.c.h.b16 %v184
    %v1542 = vunpack.c.l.b16 %v185
    %v1543 = vunpack.c.h.b16 %v185
    %v1544 = vunpack.c.l.b16 %v186
    %v1545 = vunpack.c.h.b16 %v186
    %v1546 = vunpack.c.l.b16 %v187
    %v1547 = vunpack.c.h.b16 %v187
    %v1548 = vunpack.c.l.b16 %v188
    %v1549 = vunpack.c.h.b16 %v188
    %v1550 = vunpack.c.l.b16 %v189
    %v1551 = vunpack.c.h.b16 %v189
    %v1552 = vunpack.c.l.b16 %v190
    %v1553 = vunpack.c.h.b16 %v190
    %v1554 = vunpack.c.l.b16 %v191
    %v1555 = vunpack.c.h.b16 %v191
    %v1556 = vunpack.c.l.b16 %v192
    %v1557 = vunpack.c.h.b16 %v192
    %v1558 = vunpack.c.l.b16 %v193
    %v1559 = vunpack.c.h.b16 %v193
    %v1560 = vunpack.c.l.b16 %v194
    %v1561 = vunpack.c.h.b16 %v194
    %v1562 = vunpack.c.l.b16 %v195
    %v1563 = vunpack.c.h.b16 %v195
    %v1564 = vunpack.c.l.b16 %v196
    %v1565 = vunpack.c.h.b16 %v196
    %v1566 = vunpack.c.l.b16 %v197
    %v1567 = vunpack.c.h.b16 %v197
    %v1568 = vunpack.c.l.b16 %v198
    %v1569 = vunpack.c.h.b16 %v198
    %v1570 = vunpack.c.l.b16 %v199
    %v1571 = vunpack.c.h.b16 %v199
    %v1572 = vunpack.c.l.b16 %v200
    %v1573 = vunpack.c.h.b16 %v200
    %v1574 = vunpack.c.l.b16 %v201
    %v1575 = vunpack.c.h.b16 %v201
    %v1576 = vunpack.c.l.b16 %v202
    %v1577 = vunpack.c.h.b16 %v202
    %v1578 = vunpack.c.l.b16 %v203
    %v1579 = vunpack.c.h.b16 %v203
    %v1580 = vunpack.c.l.b16 %v204
    %v1581 = vunpack.c.h.b16 %v204
    %v1582 = vunpack.c.l.b16 %v205
    %v1583 = vunpack.c.h.b16 %v205
    %v1584 = vunpack.c.l.b16 %v206
    %v1585 = vunpack.c.h.b16 %v206
    %v1586 = vunpack.c.l.b16 %v207
    %v1587 = vunpack.c.h.b16 %v207
    %v1588 = vunpack.c.l.b16 %v208
    %v1589 = vunpack.c.h.b16 %v208
    %v1590 = vunpack.c.l.b16 %v209
    %v1591 = vunpack.c.h.b16 %v209
    %v1592 = vunpack.c.l.b16 %v210
    %v1593 = vunpack.c.h.b16 %v210
    %v1594 = vunpack.c.l.b16 %v211
    %v1595 = vunpack.c.h.b16 %v211
    %v1596 = vunpack.c.l.b16 %v212
    %v1597 = vunpack.c.h.b16 %v212
    %v1598 = vunpack.c.l.b16 %v213
    %v1599 = vunpack.c.h.b16 %v213
    %v1600 = vunpack.c.l.b16 %v214
    %v1601 = vunpack.c.h.b16 %v214
    %v1602 = vunpack.c.l.b16 %v215
    %v1603 = vunpack.c.h.b16 %v215
    %v1604 = vunpack.c.l.b16 %v216
    %v1605 = vunpack.c.h.b16 %v216
    %v1606 = vunpack.c.l.b16 %v217
    %v1607 = vunpack.c.h.b16 %v217
    %v1608 = vunpack.c.l.b16 %v218
    %v1609 = vunpack.c.h.b16 %v218
    %v1610 = vunpack.c.l.b16 %v219
    %v1611 = vunpack.c.h.b16 %v219
    %v1612 = vunpack.c.l.b16 %v220
    %v1613 = vunpack.c.h.b16 %v220
    %v1614 = vunpack.c.l.b16 %v221
    %v1615 = vunpack.c.h.b16 %v221
    %v1616 = vunpack.c.l.b16 %v222
    %v1617 = vunpack.c.h.b16 %v222
    %v1618 = vunpack.c.l.b16 %v223
    %v1619 = vunpack.c.h.b16 %v223
    %v1620 = vunpack.c.l.b16 %v224
    %v1621 = vunpack.c.h.b16 %v224
    %v1622 = vunpack.c.l.b16 %v225
    %v1623 = vunpack.c.h.b16 %v225
    %v1624 = vunpack.c.l.b16 %v226
    %v1625 = vunpack.c.h.b16 %v226
    %v1626 = vunpack.c.l.b16 %v227
    %v1627 = vunpack.c.h.b16 %v227
    %v1628 = vunpack.c.l.b16 %v228
    %v1629 = vunpack.c.h.b16 %v228
    %v1630 = vunpack.c.l.b16 %v229
    %v1631 = vunpack.c.h.b16 %v229
    %v1632 = vunpack.c.l.b16 %v230
    %v1633 = vunpack.c.h.b16 %v230
    %v1634 = vunpack.c.l.b16 %v231
    %v1635 = vunpack.c.h.b16 %v231
    %v1636 = vunpack.c.l.b16 %v232
    %v1637 = vunpack.c.h.b16 %v232
    %v1638 = vunpack.c.l.b16 %v233
    %v1639 = vunpack.c.h.b16 %v233
    %v1640 = vunpack.c.l.b16 %v234
    %v1641 = vunpack.c.h.b16 %v234
    %v1642 = vunpack.c.l.b16 %v235
    %v1643 = vunpack.c.h.b16 %v235
    %v1644 = vunpack.c.l.b16 %v236
    %v1645 = vunpack.c.h.b16 %v236
    %v1646 = vunpack.c.l.b16 %v237
    %v1647 = vunpack.c.h.b16 %v237
    %v1648 = vunpack.c.l.b16 %v238
    %v1649 = vunpack.c.h.b16 %v238
    %v1650 = vunpack.c.l.b16 %v239
    %v1651 = vunpack.c.h.b16 %v239
    %v1652 = vunpack.c.l.b16 %v240
    %v1653 = vunpack.c.h.b16 %v240
    %v1654 = vunpack.c.l.b16 %v241
    %v1655 = vunpack.c.h.b16 %v241
    %v1656 = vunpack.c.l.b16 %v242
    %v1657 = vunpack.c.h.b16 %v242
    %v1658 = vunpack.c.l.b16 %v243
    %v1659 = vunpack.c.h.b16 %v243
    %v1660 = vunpack.c.l.b16 %v244
    %v1661 = vunpack.c.h.b16 %v244
    %v1662 = vunpack.c.l.b16 %v245
    %v1663 = vunpack.c.h.b16 %v245
    %v1664 = vunpack.c.l.b16 %v246
    %v1665 = vunpack.c.h.b16 %v246
    %v1666 = vunpack.c.l.b16 %v247
    %v1667 = vunpack.c.h.b16 %v247
    %v1668 = vunpack.c.l.b16 %v248
    %v1669 = vunpack.c.h.b16 %v248
    %v1670 = vunpack.c.l.b16 %v249
    %v1671 = vunpack.c.h.b16 %v249
    %v1672 = vunpack.c.l.b16 %v250
    %v1673 = vunpack.c.h.b16 %v250
    %v1674 = vunpack.c.l.b16 %v251
    %v1675 = vunpack.c.h.b16 %v251
    %v1676 = vunpack.c.l.b16 %v252
    %v1677 = vunpack.c.h.b16 %v252
    %v1678 = vunpack.c.l.b16 %v253
    %v1679 = vunpack.c.h.b16 %v253
    %v1680 = vunpack.c.l.b16 %v254
    %v1681 = vunpack.c.h.b16 %v254
    %v1682 = vunpack.c.l.b16 %v255
    %v1683 = vunpack.c.h.b16 %v255
    %v1684 = vunpack.c.l.b16 %v256
    %v1685 = vunpack.c.h.b16 %v256
    %v1686 = vunpack.c.l.b16 %v257
    %v1687 = vunpack.c.h.b16 %v257
    %v1688 = vunpack.c.l.b16 %v258
    %v1689 = vunpack.c.h.b16 %v258
    %v1690 = vunpack.c.l.b16 %v259
    %v1691 = vunpack.c.h.b16 %v259
    %v1692 = vunpack.c.l.b16 %v260
    %v1693 = vunpack.c.h.b16 %v260
    %v1694 = vunpack.c.l.b16 %v261
    %v1695 = vunpack.c.h.b16 %v261
    %v1696 = vunpack.c.l.b16 %v262
    %v1697 = vunpack.c.h.b16 %v262
    %v1698 = vunpack.c.l.b16 %v263
    %v1699 = vunpack.c.h.b16 %v263
    %v1700 = vunpack.c.l.b16 %v264
    %v1701 = vunpack.c.h.b16 %v264
    %v1702 = vunpack.c.l.b16 %v265
    %v1703 = vunpack.c.h.b16 %v265
    %v1704 = vunpack.c.l.b16 %v266
    %v1705 = vunpack.c.h.b16 %v266
    %v1706 = vunpack.c.l.b16 %v267
    %v1707 = vunpack.c.h.b16 %v267
    %v1708 = vunpack.c.l.b16 %v268
    %v1709 = vunpack.c.h.b16 %v268
    %v1710 = vunpack.c.l.b16 %v269
    %v1711 = vunpack.c.h.b16 %v269
    %v1712 = vunpack.c.l.b16 %v270
    %v1713 = vunpack.c.h.b16 %v270
    %v1714 = vunpack.c.l.b16 %v271
    %v1715 = vunpack.c.h.b16 %v271
    %v1716 = vunpack.c.l.b16 %v272
    %v1717 = vunpack.c.h.b16 %v272
    %v1718 = vunpack.c.l.b16 %v273
    %v1719 = vunpack.c.h.b16 %v273
    %v1720 = vunpack.c.l.b16 %v274
    %v1721 = vunpack.c.h.b16 %v274
    %v1722 = vunpack.c.l.b16 %v275
    %v1723 = vunpack.c.h.b16 %v275
    %v1724 = vunpack.c.l.b16 %v276
    %v1725 = vunpack.c.h.b16 %v276
    %v1726 = vunpack.c.l.b16 %v277
    %v1727 = vunpack.c.h.b16 %v277
    %v1728 = vunpack.c.l.b16 %v278
    %v1729 = vunpack.c.h.b16 %v278
    %v1730 = vunpack.c.l.b16 %v279
    %v1731 = vunpack.c.h.b16 %v279
    %v1732 = vunpack.c.l.b16 %v280
    %v1733 = vunpack.c.h.b16 %v280
    %v1734 = vunpack.c.l.b16 %v281
    %v1735 = vunpack.c.h.b16 %v281
    %v1736 = vunpack.c.l.b16 %v282
    %v1737 = vunpack.c.h.b16 %v282
    %v1738 = vunpack.c.l.b16 %v283
    %v1739 = vunpack.c.h.b16 %v283
    %v1740 = vunpack.c.l.b16 %v284
    %v1741 = vunpack.c.h.b16 %v284
    %v1742 = vunpack.c.l.b16 %v285
    %v1743 = vunpack.c.h.b16 %v285
    %v1744 = vunpack.c.l.b16 %v286
    %v1745 = vunpack.c.h.b16 %v286
    %v1746 = vunpack.c.l.b16 %v287
    %v1747 = vunpack.c.h.b16 %v287
    %v1748 = vunpack.c.l.b16 %v288
    %v1749 = vunpack.c.h.b16 %v288
    %v1750 = vunpack.c.l.b16 %v289
    %v1751 = vunpack.c.h.b16 %v289
    %v1752 = vunpack.c.l.b16 %v290
    %v1753 = vunpack.c.h.b16 %v290
    %v1754 = vunpack.c.l.b16 %v291
    %v1755 = vunpack.c.h.b16 %v291
    %v1756 = vunpack.c.l.b16 %v292
    %v1757 = vunpack.c.h.b16 %v292
    %v1758 = vunpack.c.l.b16 %v293
    %v1759 = vunpack.c.h.b16 %v293
    %v1760 = vunpack.c.l.b16 %v294
    %v1761 = vunpack.c.h.b16 %v294
    %v1762 = vunpack.c.l.b16 %v295
    %v1763 = vunpack.c.h.b16 %v295
    %v1764 = vunpack.c.l.b16 %v296
    %v1765 = vunpack.c.h.b16 %v296
    %v1766 = vunpack.c.l.b16 %v297
    %v1767 = vunpack.c.h.b16 %v297
    %v1768 = vunpack.c.l.b16 %v298
    %v1769 = vunpack.c.h.b16 %v298
    %v1770 = vunpack.c.l.b16 %v299
    %v1771 = vunpack.c.h.b16 %v299
    %v1772 = vunpack.c.l.b16 %v300
    %v1773 = vunpack.c.h.b16 %v300
    %v1774 = vunpack.c.l.b16 %v301
    %v1775 = vunpack.c.h.b16 %v301
    %v1776 = vunpack.c.l.b16 %v302
    %v1777 = vunpack.c.h.b16 %v302
    %v1778 = vunpack.c.l.b16 %v303
    %v1779 = vunpack.c.h.b16 %v303
    %v1780 = vunpack.c.l.b16 %v304
    %v1781 = vunpack.c.h.b16 %v304
    %v1782 = vunpack.c.l.b16 %v305
    %v1783 = vunpack.c.h.b16 %v305
    %v1784 = vunpack.c.l.b16 %v306
    %v1785 = vunpack.c.h.b16 %v306
    %v1786 = vunpack.c.l.b16 %v307
    %v1787 = vunpack.c.h.b16 %v307
    %v1788 = vunpack.c.l.b16 %v308
    %v1789 = vunpack.c.h.b16 %v308
    %v1790 = vunpack.c.l.b16 %v309
    %v1791 = vunpack.c.h.b16 %v309
    %v1792 = vunpack.c.l.b16 %v310
    %v1793 = vunpack.c.h.b16 %v310
    %v1794 = vunpack.c.l.b16 %v311
    %v1795 = vunpack.c.h.b16 %v311
    %v1796 = vunpack.c.l.b16 %v312
    %v1797 = vunpack.c.h.b16 %v312
    %v1798 = vunpack.c.l.b16 %v313
    %v1799 = vunpack.c.h.b16 %v313
    %v1800 = vunpack.c.l.b16 %v314
    %v1801 = vunpack.c.h.b16 %v314
    %v1802 = vunpack.c.l.b16 %v315
    %v1803 = vunpack.c.h.b16 %v315
    %v1804 = vunpack.c.l.b16 %v316
    %v1805 = vunpack.c.h.b16 %v316
    %v1806 = vunpack.c.l.b16 %v317
    %v1807 = vunpack.c.h.b16 %v317
    %v1808 = vunpack.c.l.b16 %v318
    %v1809 = vunpack.c.h.b16 %v318
    %v1810 = vunpack.c.l.b16 %v319
    %v1811 = vunpack.c.h.b16 %v319
    %v1812 = vunpack.c.l.b16 %v320
    %v1813 = vunpack.c.h.b16 %v320
    %v1814 = vunpack.c.l.b16 %v321
    %v1815 = vunpack.c.h.b16 %v321
    %v1816 = vunpack.c.l.b16 %v322
    %v1817 = vunpack.c.h.b16 %v322
    %v1818 = vunpack.c.l.b16 %v323
    %v1819 = vunpack.c.h.b16 %v323
    %v1820 = vunpack.c.l.b16 %v324
    %v1821 = vunpack.c.h.b16 %v324
    %v1822 = vunpack.c.l.b16 %v325
    %v1823 = vunpack.c.h.b16 %v325
    %v1824 = vunpack.c.l.b16 %v326
    %v1825 = vunpack.c.h.b16 %v326
    %v1826 = vunpack.c.l.b16 %v327
    %v1827 = vunpack.c.h.b16 %v327
    %v1828 = vunpack.c.l.b16 %v328
    %v1829 = vunpack.c.h.b16 %v328
    %v1830 = vunpack.c.l.b16 %v329
    %v1831 = vunpack.c.h.b16 %v329
    %v1832 = vunpack.c.l.b16 %v330
    %v1833 = vunpack.c.h.b16 %v330
    %v1834 = vunpack.c.l.b16 %v331
    %v1835 = vunpack.c.h.b16 %v331
    %v1836 = vunpack.c.l.b16 %v332
    %v1837 = vunpack.c.h.b16 %v332
    %v1838 = vunpack.c.l.b16 %v333
    %v1839 = vunpack.c.h.b16 %v333
    %v1840 = vunpack.c.l.b16 %v334
    %v1841 = vunpack.c.h.b16 %v334
    %v1842 = vunpack.c.l.b16 %v335
    %v1843 = vunpack.c.h.b16 %v335
    %v1844 = vunpack.c.l.b16 %v336
    %v1845 = vunpack.c.h.b16 %v336
    %v1846 = vunpack.c.l.b16 %v337
    %v1847 = vunpack.c.h.b16 %v337
    %v1848 = vunpack.c.l.b16 %v338
    %v1849 = vunpack.c.h.b16 %v338
    %v1850 = vunpack.c.l.b16 %v339
    %v1851 = vunpack.c.h.b16 %v339
    %v1852 = vunpack.c.l.b16 %v340
    %v1853 = vunpack.c.h.b16 %v340
    %v1854 = vunpack.c.l.b16 %v341
    %v1855 = vunpack.c.h.b16 %v341
    %v1856 = vunpack.c.l.b16 %v342
    %v1857 = vunpack.c.h.b16 %v342
    %v1858 = vunpack.c.l.b16 %v343
    %v1859 = vunpack.c.h.b16 %v343
    %v1860 = vunpack.c.l.b16 %v344
    %v1861 = vunpack.c.h.b16 %v344
    %v1862 = vunpack.c.l.b16 %v345
    %v1863 = vunpack.c.h.b16 %v345
    %v1864 = vunpack.c.l.b16 %v346
    %v1865 = vunpack.c.h.b16 %v346
    %v1866 = vunpack.c.l.b16 %v347
    %v1867 = vunpack.c.h.b16 %v347
    %v1868 = vunpack.c.l.b16 %v348
    %v1869 = vunpack.c.h.b16 %v348
    %v1870 = vunpack.c.l.b16 %v349
    %v1871 = vunpack.c.h.b16 %v349
    %v1872 = vunpack.c.l.b16 %v350
    %v1873 = vunpack.c.h.b16 %v350
    %v1874 = vunpack.c.l.b16 %v351
    %v1875 = vunpack.c.h.b16 %v351
    %v1876 = vunpack.c.l.b16 %v352
    %v1877 = vunpack.c.h.b16 %v352
    %v1878 = vunpack.c.l.b16 %v353
    %v1879 = vunpack.c.h.b16 %v353
    %v1880 = vunpack.c.l.b16 %v354
    %v1881 = vunpack.c.h.b16 %v354
    %v1882 = vunpack.c.l.b16 %v355
    %v1883 = vunpack.c.h.b16 %v355
    %v1884 = vunpack.c.l.b16 %v356
    %v1885 = vunpack.c.h.b16 %v356
    %v1886 = vunpack.c.l.b16 %v357
    %v1887 = vunpack.c.h.b16 %v357
    %v1888 = vunpack.c.l.b16 %v358
    %v1889 = vunpack.c.h.b16 %v358
    %v1890 = vunpack.c.l.b16 %v359
    %v1891 = vunpack.c.h.b16 %v359
    %v1892 = vunpack.c.l.b16 %v360
    %v1893 = vunpack.c.h.b16 %v360
    %v1894 = vunpack.c.l.b16 %v361
    %v1895 = vunpack.c.h.b16 %v361
    %v1896 = vunpack.c.l.b16 %v362
    %v1897 = vunpack.c.h.b16 %v362
    %v1898 = vunpack.c.l.b16 %v363
    %v1899 = vunpack.c.h.b16 %v363
    %v1900 = vunpack.c.l.b16 %v364
    %v1901 = vunpack.c.h.b16 %v364
    %v1902 = vunpack.c.l.b16 %v365
    %v1903 = vunpack.c.h.b16 %v365
    %v1904 = vunpack.c.l.b16 %v366
    %v1905 = vunpack.c.h.b16 %v366
    %v1906 = vunpack.c.l.b16 %v367
    %v1907 = vunpack.c.h.b16 %v367
    %v1908 = vunpack.c.l.b16 %v368
    %v1909 = vunpack.c.h.b16 %v368
    %v1910 = vunpack.c.l.b16 %v369
    %v1911 = vunpack.c.h.b16 %v369
    %v1912 = vunpack.c.l.b16 %v370
    %v1913 = vunpack.c.h.b16 %v370
    %v1914 = vunpack.c.l.b16 %v371
    %v1915 = vunpack.c.h.b16 %v371
    %v1916 = vunpack.c.l.b16 %v372
    %v1917 = vunpack.c.h.b16 %v372
    %v1918 = vunpack.c.l.b16 %v373
    %v1919 = vunpack.c.h.b16 %v373
    %v1920 = vunpack.c.l.b16 %v374
    %v1921 = vunpack.c.h.b16 %v374
    %v1922 = vunpack.c.l.b16 %v375
    %v1923 = vunpack.c.h.b16 %v375
    %v1924 = vunpack.c.l.b16 %v376
    %v1925 = vunpack.c.h.b16 %v376
    %v1926 = vunpack.c.l.b16 %v377
    %v1927 = vunpack.c.h.b16 %v377
    %v1928 = vunpack.c.l.b16 %v378
    %v1929 = vunpack.c.h.b16 %v378
    %v1930 = vunpack.c.l.b16 %v379
    %v1931 = vunpack.c.h.b16 %v379
    %v1932 = vunpack.c.l.b16 %v380
    %v1933 = vunpack.c.h.b16 %v380
    %v1934 = vunpack.c.l.b16 %v381
    %v1935 = vunpack.c.h.b16 %v381
    %v1936 = vunpack.c.l.b16 %v382
    %v1937 = vunpack.c.h.b16 %v382
    %v1938 = vunpack.c.l.b16 %v383
    %v1939 = vunpack.c.h.b16 %v383
    %v1940 = vunpack.c.l.b16 %v384
    %v1941 = vunpack.c.h.b16 %v384
    %v1942 = vunpack.c.l.b16 %v385
    %v1943 = vunpack.c.h.b16 %v385
    %v1944 = vunpack.c.l.b16 %v386
    %v1945 = vunpack.c.h.b16 %v386
    %v1946 = vunpack.c.l.b16 %v387
    %v1947 = vunpack.c.h.b16 %v387
    %v1948 = vunpack.c.l.b16 %v388
    %v1949 = vunpack.c.h.b16 %v388
    %v1950 = vunpack.c.l.b16 %v389
    %v1951 = vunpack.c.h.b16 %v389
    %v1952 = vunpack.c.l.b16 %v390
    %v1953 = vunpack.c.h.b16 %v390
    %v1954 = vunpack.c.l.b16 %v391
    %v1955 = vunpack.c.h.b16 %v391
    %v1956 = vunpack.c.l.b16 %v392
    %v1957 = vunpack.c.h.b16 %v392
    %v1958 = vunpack.c.l.b16 %v393
    %v1959 = vunpack.c.h.b16 %v393
    %v1960 = vunpack.c.l.b16 %v394
    %v1961 = vunpack.c.h.b16 %v394
    %v1962 = vunpack.c.l.b16 %v395
    %v1963 = vunpack.c.h.b16 %v395
    %v1964 = vunpack.c.l.b16 %v396
    %v1965 = vunpack.c.h.b16 %v396
    %v1966 = vunpack.c.l.b16 %v397
    %v1967 = vunpack.c.h.b16 %v397
    %v1968 = vunpack.c.l.b16 %v398
    %v1969 = vunpack.c.h.b16 %v398
    %v1970 = vunpack.c.l.b16 %v399
    %v1971 = vunpack.c.h.b16 %v399
    %v1972 = vunpack.c.l.b16 %v400
    %v1973 = vunpack.c.h.b16 %v400
    %v1974 = vunpack.c.l.b16 %v401
    %v1975 = vunpack.c.h.b16 %v401
    %v1976 = vunpack.c.l.b16 %v402
    %v1977 = vunpack.c.h.b16 %v402
    %v1978 = vunpack.c.l.b16 %v403
    %v1979 = vunpack.c.h.b16 %v403
    %v1980 = vunpack.c.l.b16 %v404
    %v1981 = vunpack.c.h.b16 %v404
    %v1982 = vunpack.c.l.b16 %v405
    %v1983 = vunpack.c.h.b16 %v405
    %v1984 = vunpack.c.l.b16 %v406
    %v1985 = vunpack.c.h.b16 %v406
    %v1986 = vunpack.c.l.b16 %v407
    %v1987 = vunpack.c.h.b16 %v407
    %v1988 = vunpack.c.l.b16 %v408
    %v1989 = vunpack.c.h.b16 %v408
    %v1990 = vunpack.c.l.b16 %v409
    %v1991 = vunpack.c.h.b16 %v409
    %v1992 = vunpack.c.l.b16 %v410
    %v1993 = vunpack.c.h.b16 %v410
    %v1994 = vunpack.c.l.b16 %v411
    %v1995 = vunpack.c.h.b16 %v411
    %v1996 = vunpack.c.l.b16 %v412
    %v1997 = vunpack.c.h.b16 %v412
    %v1998 = vunpack.c.l.b16 %v413
    %v1999 = vunpack.c.h.b16 %v413
    %v2000 = vunpack.c.l.b16 %v414
    %v2001 = vunpack.c.h.b16 %v414
    %v2002 = vunpack.c.l.b16 %v415
    %v2003 = vunpack.c.h.b16 %v415
    %v2004 = vunpack.c.l.b16 %v416
    %v2005 = vunpack.c.h.b16 %v416
    %v2006 = vunpack.c.l.b16 %v417
    %v2007 = vunpack.c.h.b16 %v417
    %v2008 = vunpack.c.l.b16 %v418
    %v2009 = vunpack.c.h.b16 %v418
    %v2010 = vunpack.c.l.b16 %v419
    %v2011 = vunpack.c.h.b16 %v419
    %v2012 = vunpack.c.l.b16 %v420
    %v2013 = vunpack.c.h.b16 %v420
    %v2014 = vunpack.c.l.b16 %v421
    %v2015 = vunpack.c.h.b16 %v421
    %v2016 = vunpack.c.l.b16 %v422
    %v2017 = vunpack.c.h.b16 %v422
    %v2018 = vunpack.c.l.b16 %v423
    %v2019 = vunpack.c.h.b16 %v423
    %v2020 = vunpack.c.l.b16 %v424
    %v2021 = vunpack.c.h.b16 %v424
    %v2022 = vunpack.c.l.b16 %v425
    %v2023 = vunpack.c.h.b16 %v425
    %v2024 = vunpack.c.l.b16 %v426
    %v2025 = vunpack.c.h.b16 %v426
    %v2026 = vunpack.c.l.b16 %v427
    %v2027 = vunpack.c.h.b16 %v427
    %v2028 = vunpack.c.l.b16 %v428
    %v2029 = vunpack.c.h.b16 %v428
    %v2030 = vunpack.c.l.b16 %v429
    %v2031 = vunpack.c.h.b16 %v429
    %v2032 = vunpack.c.l.b16 %v430
    %v2033 = vunpack.c.h.b16 %v430
    %v2034 = vunpack.c.l.b16 %v431
    %v2035 = vunpack.c.h.b16 %v431
    %v2036 = vunpack.c.l.b16 %v432
    %v2037 = vunpack.c.h.b16 %v432
    %v2038 = vunpack.c.l.b16 %v433
    %v2039 = vunpack.c.h.b16 %v433
    %v2040 = vunpack.c.l.b16 %v434
    %v2041 = vunpack.c.h.b16 %v434
    %v2042 = vunpack.c.l.b16 %v435
    %v2043 = vunpack.c.h.b16 %v435
    %v2044 = vunpack.c.l.b16 %v436
    %v2045 = vunpack.c.h.b16 %v436
    %v2046 = vunpack.c.l.b16 %v437
    %v2047 = vunpack.c.h.b16 %v437
    %v2048 = vunpack.c.l.b16 %v438
    %v2049 = vunpack.c.h.b16 %v438
    %v2050 = vunpack.c.l.b16 %v439
    %v2051 = vunpack.c.h.b16 %v439
    %v2052 = vunpack.c.l.b16 %v440
    %v2053 = vunpack.c.h.b16 %v440
    %v2054 = vunpack.c.l.b16 %v441
    %v2055 = vunpack.c.h.b16 %v441
    %v2056 = vunpack.c.l.b16 %v442
    %v2057 = vunpack.c.h.b16 %v442
    %v2058 = vunpack.c.l.b16 %v443
    %v2059 = vunpack.c.h.b16 %v443
    %v2060 = vunpack.c.l.b16 %v444
    %v2061 = vunpack.c.h.b16 %v444
    %v2062 = vunpack.c.l.b16 %v445
    %v2063 = vunpack.c.h.b16 %v445
    %v2064 = vunpack.c.l.b16 %v446
    %v2065 = vunpack.c.h.b16 %v446
    %v2066 = vunpack.c.l.b16 %v447
    %v2067 = vunpack.c.h.b16 %v447
    %v2068 = vunpack.c.l.b16 %v448
    %v2069 = vunpack.c.h.b16 %v448
    %v2070 = vunpack.c.l.b16 %v449
    %v2071 = vunpack.c.h.b16 %v449
    %v2072 = vunpack.c.l.b16 %v450
    %v2073 = vunpack.c.h.b16 %v450
    %v2074 = vunpack.c.l.b16 %v451
    %v2075 = vunpack.c.h.b16 %v451
    %v2076 = vunpack.c.l.b16 %v452
    %v2077 = vunpack.c.h.b16 %v452
    %v2078 = vunpack.c.l.b16 %v453
    %v2079 = vunpack.c.h.b16 %v453
    %v2080 = vunpack.c.l.b16 %v454
    %v2081 = vunpack.c.h.b16 %v454
    %v2082 = vunpack.c.l.b16 %v455
    %v2083 = vunpack.c.h.b16 %v455
    %v2084 = vunpack.c.l.b16 %v456
    %v2085 = vunpack.c.h.b16 %v456
    %v2086 = vunpack.c.l.b16 %v457
    %v2087 = vunpack.c.h.b16 %v457
    %v2088 = vunpack.c.l.b16 %v458
    %v2089 = vunpack.c.h.b16 %v458
    %v2090 = vunpack.c.l.b16 %v459
    %v2091 = vunpack.c.h.b16 %v459
    %v2092 = vunpack.c.l.b16 %v460
    %v2093 = vunpack.c.h.b16 %v460
    %v2094 = vunpack.c.l.b16 %v461
    %v2095 = vunpack.c.h.b16 %v461
    %v2096 = vunpack.c.l.b16 %v462
    %v2097 = vunpack.c.h.b16 %v462
    %v2098 = vunpack.c.l.b16 %v463
    %v2099 = vunpack.c.h.b16 %v463
    %v2100 = vunpack.c.l.b16 %v464
    %v2101 = vunpack.c.h.b16 %v464
    %v2102 = vunpack.c.l.b16 %v465
    %v2103 = vunpack.c.h.b16 %v465
    %v2104 = vunpack.c.l.b16 %v466
    %v2105 = vunpack.c.h.b16 %v466
    %v2106 = vunpack.c.l.b16 %v467
    %v2107 = vunpack.c.h.b16 %v467
    %v2108 = vunpack.c.l.b16 %v468
    %v2109 = vunpack.c.h.b16 %v468
    %v2110 = vunpack.c.l.b16 %v469
    %v2111 = vunpack.c.h.b16 %v469
    %v2112 = vunpack.c.l.b16 %v470
    %v2113 = vunpack.c.h.b16 %v470
    %v2114 = vunpack.c.l.b16 %v471
    %v2115 = vunpack.c.h.b16 %v471
    %v2116 = vunpack.c.l.b16 %v472
    %v2117 = vunpack.c.h.b16 %v472
    %v2118 = vunpack.c.l.b16 %v473
    %v2119 = vunpack.c.h.b16 %v473
    %v2120 = vunpack.c.l.b16 %v474
    %v2121 = vunpack.c.h.b16 %v474
    %v2122 = vunpack.c.l.b16 %v475
    %v2123 = vunpack.c.h.b16 %v475
    %v2124 = vunpack.c.l.b16 %v476
    %v2125 = vunpack.c.h.b16 %v476
    %v2126 = vunpack.c.l.b16 %v477
    %v2127 = vunpack.c.h.b16 %v477
    %v2128 = vunpack.c.l.b16 %v478
    %v2129 = vunpack.c.h.b16 %v478
    %v2130 = vunpack.c.l.b16 %v479
    %v2131 = vunpack.c.h.b16 %v479
    %v2132 = vunpack.c.l.b16 %v480
    %v2133 = vunpack.c.h.b16 %v480
    %v2134 = vunpack.c.l.b16 %v481
    %v2135 = vunpack.c.h.b16 %v481
    %v2136 = vunpack.c.l.b16 %v482
    %v2137 = vunpack.c.h.b16 %v482
    %v2138 = vunpack.c.l.b16 %v483
    %v2139 = vunpack.c.h.b16 %v483
    %v2140 = vunpack.c.l.b16 %v484
    %v2141 = vunpack.c.h.b16 %v484
    %v2142 = vunpack.c.l.b16 %v485
    %v2143 = vunpack.c.h.b16 %v485
    %v2144 = vunpack.c.l.b16 %v486
    %v2145 = vunpack.c.h.b16 %v486
    %v2146 = vunpack.c.l.b16 %v487
    %v2147 = vunpack.c.h.b16 %v487
    %v2148 = vunpack.c.l.b16 %v488
    %v2149 = vunpack.c.h.b16 %v488
    %v2150 = vunpack.c.l.b16 %v489
    %v2151 = vunpack.c.h.b16 %v489
    %v2152 = vunpack.c.l.b16 %v490
    %v2153 = vunpack.c.h.b16 %v490
    %v2154 = vunpack.c.l.b16 %v491
    %v2155 = vunpack.c.h.b16 %v491
    %v2156 = vunpack.c.l.b16 %v492
    %v2157 = vunpack.c.h.b16 %v492
    %v2158 = vunpack.c.l.b16 %v493
    %v2159 = vunpack.c.h.b16 %v493
    %v2160 = vunpack.c.l.b16 %v494
    %v2161 = vunpack.c.h.b16 %v494
    %v2162 = vunpack.c.l.b16 %v495
    %v2163 = vunpack.c.h.b16 %v495
    %v2164 = vunpack.c.l.b16 %v496
    %v2165 = vunpack.c.h.b16 %v496
    %v2166 = vunpack.c.l.b16 %v497
    %v2167 = vunpack.c.h.b16 %v497
    %v2168 = vunpack.c.l.b16 %v498
    %v2169 = vunpack.c.h.b16 %v498
    %v2170 = vunpack.c.l.b16 %v499
    %v2171 = vunpack.c.h.b16 %v499
    %v2172 = vunpack.c.l.b16 %v500
    %v2173 = vunpack.c.h.b16 %v500
    %v2174 = vunpack.c.l.b16 %v501
    %v2175 = vunpack.c.h.b16 %v501
    %v2176 = vunpack.c.l.b16 %v502
    %v2177 = vunpack.c.h.b16 %v502
    %v2178 = vunpack.c.l.b16 %v503
    %v2179 = vunpack.c.h.b16 %v503
    %v2180 = vunpack.c.l.b16 %v504
    %v2181 = vunpack.c.h.b16 %v504
    %v2182 = vunpack.c.l.b16 %v505
    %v2183 = vunpack.c.h.b16 %v505
    %v2184 = vunpack.c.l.b16 %v506
    %v2185 = vunpack.c.h.b16 %v506
    %v2186 = vunpack.c.l.b16 %v507
    %v2187 = vunpack.c.h.b16 %v507
    %v2188 = vunpack.c.l.b16 %v508
    %v2189 = vunpack.c.h.b16 %v508
    %v2190 = vunpack.c.l.b16 %v509
    %v2191 = vunpack.c.h.b16 %v509
    %v2192 = vunpack.c.l.b16 %v510
    %v2193 = vunpack.c.h.b16 %v510
    %v2194 = vunpack.c.l.b16 %v511
    %v2195 = vunpack.c.h.b16 %v511
    %v2196 = vunpack.c.l.b16 %v512
    %v2197 = vunpack.c.h.b16 %v512
    %v2198 = vunpack.c.l.b16 %v513
    %v2199 = vunpack.c.h.b16 %v513
    %v2200 = vunpack.c.l.b16 %v514
    %v2201 = vunpack.c.h.b16 %v514
    %v2202 = vunpack.c.l.b16 %v515
    %v2203 = vunpack.c.h.b16 %v515
    %v2204 = vunpack.c.l.b16 %v516
    %v2205 = vunpack.c.h.b16 %v516
    %v2206 = vunpack.c.l.b16 %v517
    %v2207 = vunpack.c.h.b16 %v517
    %v2208 = vunpack.c.l.b16 %v518
    %v2209 = vunpack.c.h.b16 %v518
    %v2210 = vunpack.c.l.b16 %v519
    %v2211 = vunpack.c.h.b16 %v519
    %v2212 = vunpack.c.l.b16 %v520
    %v2213 = vunpack.c.h.b16 %v520
    %v2214 = vunpack.c.l.b16 %v521
    %v2215 = vunpack.c.h.b16 %v521
    %v2216 = vunpack.c.l.b16 %v522
    %v2217 = vunpack.c.h.b16 %v522
    %v2218 = vunpack.c.l.b16 %v523
    %v2219 = vunpack.c.h.b16 %v523
    %v2220 = vunpack.c.l.b16 %v524
    %v2221 = vunpack.c.h.b16 %v524
    %v2222 = vunpack.c.l.b16 %v525
    %v2223 = vunpack.c.h.b16 %v525
    %v2224 = vunpack.c.l.b16 %v526
    %v2225 = vunpack.c.h.b16 %v526
    %v2226 = vunpack.c.l.b16 %v527
    %v2227 = vunpack.c.h.b16 %v527
    %v2228 = vunpack.c.l.b16 %v528
    %v2229 = vunpack.c.h.b16 %v528
    %v2230 = vunpack.c.l.b16 %v529
    %v2231 = vunpack.c.h.b16 %v529
    %v2232 = vunpack.c.l.b16 %v530
    %v2233 = vunpack.c.h.b16 %v530
    %v2234 = vunpack.c.l.b16 %v531
    %v2235 = vunpack.c.h.b16 %v531
    %v2236 = vunpack.c.l.b16 %v532
    %v2237 = vunpack.c.h.b16 %v532
    %v2238 = vunpack.c.l.b16 %v533
    %v2239 = vunpack.c.h.b16 %v533
    %v2240 = vunpack.c.l.b16 %v534
    %v2241 = vunpack.c.h.b16 %v534
    %v2242 = vunpack.c.l.b16 %v535
    %v2243 = vunpack.c.h.b16 %v535
    %v2244 = vunpack.c.l.b16 %v536
    %v2245 = vunpack.c.h.b16 %v536
    %v2246 = vunpack.c.l.b16 %v537
    %v2247 = vunpack.c.h.b16 %v537
    %v2248 = vunpack.c.l.b16 %v538
    %v2249 = vunpack.c.h.b16 %v538
    %v2250 = vunpack.c.l.b16 %v539
    %v2251 = vunpack.c.h.b16 %v539
    %v2252 = vunpack.c.l.b16 %v540
    %v2253 = vunpack.c.h.b16 %v540
    %v2254 = vunpack.c.l.b16 %v541
    %v2255 = vunpack.c.h.b16 %v541
    %v2256 = vunpack.c.l.b16 %v542
    %v2257 = vunpack.c.h.b16 %v542
    %v2258 = vunpack.c.l.b16 %v543
    %v2259 = vunpack.c.h.b16 %v543
    %v2260 = vunpack.c.l.b16 %v544
    %v2261 = vunpack.c.h.b16 %v544
    %v2262 = vunpack.c.l.b16 %v545
    %v2263 = vunpack.c.h.b16 %v545
    %v2264 = vunpack.c.l.b16 %v546
    %v2265 = vunpack.c.h.b16 %v546
    %v2266 = vunpack.c.l.b16 %v547
    %v2267 = vunpack.c.h.b16 %v547
    %v2268 = vunpack.c.l.b16 %v548
    %v2269 = vunpack.c.h.b16 %v548
    %v2270 = vunpack.c.l.b16 %v549
    %v2271 = vunpack.c.h.b16 %v549
    %v2272 = vunpack.c.l.b16 %v550
    %v2273 = vunpack.c.h.b16 %v550
    %v2274 = vunpack.c.l.b16 %v551
    %v2275 = vunpack.c.h.b16 %v551
    %v2276 = vunpack.c.l.b16 %v552
    %v2277 = vunpack.c.h.b16 %v552
    %v2278 = vunpack.c.l.b16 %v553
    %v2279 = vunpack.c.h.b16 %v553
    %v2280 = vunpack.c.l.b16 %v554
    %v2281 = vunpack.c.h.b16 %v554
    %v2282 = vunpack.c.l.b16 %v555
    %v2283 = vunpack.c.h.b16 %v555
    %v2284 = vunpack.c.l.b16 %v556
    %v2285 = vunpack.c.h.b16 %v556
    %v2286 = vunpack.c.l.b16 %v557
    %v2287 = vunpack.c.h.b16 %v557
    %v2288 = vunpack.c.l.b16 %v558
    %v2289 = vunpack.c.h.b16 %v558
    %v2290 = vunpack.c.l.b16 %v559
    %v2291 = vunpack.c.h.b16 %v559
    %v2292 = vunpack.c.l.b16 %v560
    %v2293 = vunpack.c.h.b16 %v560
    %v2294 = vunpack.c.l.b16 %v561
    %v2295 = vunpack.c.h.b16 %v561
    %v2296 = vunpack.c.l.b16 %v562
    %v2297 = vunpack.c.h.b16 %v562
    %v2298 = vunpack.c.l.b16 %v563
    %v2299 = vunpack.c.h.b16 %v563
    %v2300 = vunpack.c.l.b16 %v564
    %v2301 = vunpack.c.h.b16 %v564
    %v2302 = vunpack.c.l.b16 %v565
    %v2303 = vunpack.c.h.b16 %v565
    %v2304 = vunpack.c.l.b16 %v566
    %v2305 = vunpack.c.h.b16 %v566
    %v2306 = vunpack.c.l.b16 %v567
    %v2307 = vunpack.c.h.b16 %v567
    %v2308 = vunpack.c.l.b16 %v568
    %v2309 = vunpack.c.h.b16 %v568
    %v2310 = vunpack.c.l.b16 %v569
    %v2311 = vunpack.c.h.b16 %v569
    %v2312 = vunpack.c.l.b16 %v570
    %v2313 = vunpack.c.h.b16 %v570
    %v2314 = vunpack.c.l.b16 %v571
    %v2315 = vunpack.c.h.b16 %v571
    %v2316 = vunpack.c.l.b16 %v572
    %v2317 = vunpack.c.h.b16 %v572
    %v2318 = vunpack.c.l.b16 %v573
    %v2319 = vunpack.c.h.b16 %v573
    %v2320 = vunpack.c.l.b16 %v574
    %v2321 = vunpack.c.h.b16 %v574
    %v2322 = vunpack.c.l.b16 %v575
    %v2323 = vunpack.c.h.b16 %v575
    %v2324 = vunpack.c.l.b16 %v576
    %v2325 = vunpack.c.h.b16 %v576
    %v2326 = vunpack.c.l.b16 %v577
    %v2327 = vunpack.c.h.b16 %v577
    %v2328 = vunpack.c.l.b16 %v578
    %v2329 = vunpack.c.h.b16 %v578
    %v2330 = vunpack.c.l.b16 %v579
    %v2331 = vunpack.c.h.b16 %v579
    %v2332 = vunpack.c.l.b16 %v580
    %v2333 = vunpack.c.h.b16 %v580
    %v2334 = vunpack.c.l.b16 %v581
    %v2335 = vunpack.c.h.b16 %v581
    %v2336 = vunpack.c.l.b16 %v582
    %v2337 = vunpack.c.h.b16 %v582
    %v2338 = vunpack.c.l.b16 %v583
    %v2339 = vunpack.c.h.b16 %v583
    %v2340 = vunpack.c.l.b16 %v584
    %v2341 = vunpack.c.h.b16 %v584
    %v2342 = vunpack.c.l.b16 %v585
    %v2343 = vunpack.c.h.b16 %v585
    %v2344 = vunpack.c.l.b16 %v586
    %v2345 = vunpack.c.h.b16 %v586
    %v2346 = vunpack.c.l.b16 %v587
    %v2347 = vunpack.c.h.b16 %v587
    %v2348 = vunpack.c.l.b16 %v588
    %v2349 = vunpack.c.h.b16 %v588
    %v2350 = vunpack.c.l.b16 %v589
    %v2351 = vunpack.c.h.b16 %v589
    %v2352 = vunpack.c.l.b16 %v590
    %v2353 = vunpack.c.h.b16 %v590
    %v2354 = vunpack.c.l.b16 %v591
    %v2355 = vunpack.c.h.b16 %v591
    %v2356 = vunpack.c.l.b16 %v592
    %v2357 = vunpack.c.h.b16 %v592
    %v2358 = vunpack.c.l.b16 %v593
    %v2359 = vunpack.c.h.b16 %v593
    %v2360 = vunpack.c.l.b16 %v594
    %v2361 = vunpack.c.h.b16 %v594
    %v2362 = vunpack.c.l.b16 %v595
    %v2363 = vunpack.c.h.b16 %v595
    %v2364 = vunpack.c.l.b16 %v596
    %v2365 = vunpack.c.h.b16 %v596
    %v2366 = vunpack.c.l.b16 %v597
    %v2367 = vunpack.c.h.b16 %v597
    %v2368 = vunpack.c.l.b16 %v598
    %v2369 = vunpack.c.h.b16 %v598
    %v2370 = vunpack.c.l.b16 %v599
    %v2371 = vunpack.c.h.b16 %v599
    %v2372 = vunpack.c.l.b16 %v600
    %v2373 = vunpack.c.h.b16 %v600
    %v2374 = vunpack.c.l.b16 %v601
    %v2375 = vunpack.c.h.b16 %v601
    %v2376 = vunpack.c.l.b16 %v602
    %v2377 = vunpack.c.h.b16 %v602
    %v2378 = vunpack.c.l.b16 %v603
    %v2379 = vunpack.c.h.b16 %v603
    %v2380 = vunpack.c.l.b16 %v604
    %v2381 = vunpack.c.h.b16 %v604
    %v2382 = vunpack.c.l.b16 %v605
    %v2383 = vunpack.c.h.b16 %v605
    %v2384 = vunpack.c.l.b16 %v606
    %v2385 = vunpack.c.h.b16 %v606
    %v2386 = vunpack.c.l.b16 %v607
    %v2387 = vunpack.c.h.b16 %v607
    %v2388 = vunpack.c.l.b16 %v608
    %v2389 = vunpack.c.h.b16 %v608
    %v2390 = vunpack.c.l.b16 %v609
    %v2391 = vunpack.c.h.b16 %v609
    %v2392 = vunpack.c.l.b16 %v610
    %v2393 = vunpack.c.h.b16 %v610
    %v2394 = vunpack.c.l.b16 %v611
    %v2395 = vunpack.c.h.b16 %v611
    %v2396 = vunpack.c.l.b16 %v612
    %v2397 = vunpack.c.h.b16 %v612
    %v2398 = vunpack.c.l.b16 %v613
    %v2399 = vunpack.c.h.b16 %v613
    %v2400 = vunpack.c.l.b16 %v614
    %v2401 = vunpack.c.h.b16 %v614
    %v2402 = vunpack.c.l.b16 %v615
    %v2403 = vunpack.c.h.b16 %v615
    %v2404 = vunpack.c.l.b16 %v616
    %v2405 = vunpack.c.h.b16 %v616
    %v2406 = vunpack.c.l.b16 %v617
    %v2407 = vunpack.c.h.b16 %v617
    %v2408 = vunpack.c.l.b16 %v618
    %v2409 = vunpack.c.h.b16 %v618
    %v2410 = vunpack.c.l.b16 %v619
    %v2411 = vunpack.c.h.b16 %v619
    %v2412 = vunpack.c.l.b16 %v620
    %v2413 = vunpack.c.h.b16 %v620
    %v2414 = vunpack.c.l.b16 %v621
    %v2415 = vunpack.c.h.b16 %v621
    %v2416 = vunpack.c.l.b16 %v622
    %v2417 = vunpack.c.h.b16 %v622
    %v2418 = vunpack.c.l.b16 %v623
    %v2419 = vunpack.c.h.b16 %v623
    %v2420 = vunpack.c.l.b16 %v624
    %v2421 = vunpack.c.h.b16 %v624
    %v2422 = vunpack.c.l.b16 %v625
    %v2423 = vunpack.c.h.b16 %v625
    %v2424 = vunpack.c.l.b16 %v626
    %v2425 = vunpack.c.h.b16 %v626
    %v2426 = vunpack.c.l.b16 %v627
    %v2427 = vunpack.c.h.b16 %v627
    %v2428 = vunpack.c.l.b16 %v628
    %v2429 = vunpack.c.h.b16 %v628
    %v2430 = vunpack.c.l.b16 %v629
    %v2431 = vunpack.c.h.b16 %v629
    %v2432 = vpack.c.b16 %v1286, %v1280
    %v2433 = vpack.c.b16 %v1287, %v1281
    %v2434 = vpack.c.b16 %v1288, %v1282
    %v2435 = vpack.c.b16 %v1289, %v1283
    %v2436 = vpack.c.b16 %v1290, %v1284
    %v2437 = vpack.c.b16 %v1291, %v1285
    %v2438 = vpack.c.b16 %v1298, %v1292
    %v2439 = vpack.c.b16 %v1299, %v1293
    %v2440 = vpack.c.b16 %v1300, %v1294
    %v2441 = vpack.c.b16 %v1301, %v1295
    %v2442 = vpack.c.b16 %v1302, %v1296
    %v2443 = vpack.c.b16 %v1303, %v1297
    %v2444 = vpack.c.b16 %v1310, %v1304
    %v2445 = vpack.c.b16 %v1311, %v1305
    %v2446 = vpack.c.b16 %v1312, %v1306
    %v2447 = vpack.c.b16 %v1313, %v1307
    %v2448 = vpack.c.b16 %v1314, %v1308
    %v2449 = vpack.c.b16 %v1315, %v1309
    %v2450 = vpack.c.b16 %v1322, %v1316
    %v2451 = vpack.c.b16 %v1323, %v1317
    %v2452 = vpack.c.b16 %v1324, %v1318
    %v2453 = vpack.c.b16 %v1325, %v1319
    %v2454 = vpack.c.b16 %v1326, %v1320
    %v2455 = vpack.c.b16 %v1327, %v1321
    %v2456 = vpack.c.b16 %v1334, %v1328
    %v2457 = vpack.c.b16 %v1335, %v1329
    %v2458 = vpack.c.b16 %v1336, %v1330
    %v2459 = vpack.c.b16 %v1337, %v1331
    %v2460 = vpack.c.b16 %v1338, %v1332
    %v2461 = vpack.c.b16 %v1339, %v1333
    %v2462 = vpack.c.b16 %v1346, %v1340
    %v2463 = vpack.c.b16 %v1347, %v1341
    %v2464 = vpack.c.b16 %v1348, %v1342
    %v2465 = vpack.c.b16 %v1349, %v1343
    %v2466 = vpack.c.b16 %v1350, %v1344
    %v2467 = vpack.c.b16 %v1351, %v1345
    %v2468 = vpack.c.b16 %v1358, %v1352
    %v2469 = vpack.c.b16 %v1359, %v1353
    %v2470 = vpack.c.b16 %v1360, %v1354
    %v2471 = vpack.c.b16 %v1361, %v1355
    %v2472 = vpack.c.b16 %v1362, %v1356
    %v2473 = vpack.c.b16 %v1363, %v1357
    %v2474 = vpack.c.b16 %v1370, %v1364
    %v2475 = vpack.c.b16 %v1371, %v1365
    %v2476 = vpack.c.b16 %v1372, %v1366
    %v2477 = vpack.c.b16 %v1373, %v1367
    %v2478 = vpack.c.b16 %v1374, %v1368
    %v2479 = vpack.c.b16 %v1375, %v1369
    %v2480 = vpack.c.b16 %v1382, %v1376
    %v2481 = vpack.c.b16 %v1383, %v1377
    %v2482 = vpack.c.b16 %v1384, %v1378
    %v2483 = vpack.c.b16 %v1385, %v1379
    %v2484 = vpack.c.b16 %v1386, %v1380
    %v2485 = vpack.c.b16 %v1387, %v1381
    %v2486 = vpack.c.b16 %v1394, %v1388
    %v2487 = vpack.c.b16 %v1395, %v1389
    %v2488 = vpack.c.b16 %v1396, %v1390
    %v2489 = vpack.c.b16 %v1397, %v1391
    %v2490 = vpack.c.b16 %v1398, %v1392
    %v2491 = vpack.c.b16 %v1399, %v1393
    %v2492 = vpack.c.b16 %v1406, %v1400
    %v2493 = vpack.c.b16 %v1407, %v1401
    %v2494 = vpack.c.b16 %v1408, %v1402
    %v2495 = vpack.c.b16 %v1409, %v1403
    %v2496 = vpack.c.b16 %v1410, %v1404
    %v2497 = vpack.c.b16 %v1411, %v1405
    %v2498 = vpack.c.b16 %v1418, %v1412
    %v2499 = vpack.c.b16 %v1419, %v1413
    %v2500 = vpack.c.b16 %v1420, %v1414
    %v2501 = vpack.c.b16 %v1421, %v1415
    %v2502 = vpack.c.b16 %v1422, %v1416
    %v2503 = vpack.c.b16 %v1423, %v1417
    %v2504 = vpack.c.b16 %v1430, %v1424
    %v2505 = vpack.c.b16 %v1431, %v1425
    %v2506 = vpack.c.b16 %v1432, %v1426
    %v2507 = vpack.c.b16 %v1433, %v1427
    %v2508 = vpack.c.b16 %v1434, %v1428
    %v2509 = vpack.c.b16 %v1435, %v1429
    %v2510 = vpack.c.b16 %v1442, %v1436
    %v2511 = vpack.c.b16 %v1443, %v1437
    %v2512 = vpack.c.b16 %v1444, %v1438
    %v2513 = vpack.c.b16 %v1445, %v1439
    %v2514 = vpack.c.b16 %v1446, %v1440
    %v2515 = vpack.c.b16 %v1447, %v1441
    %v2516 = vpack.c.b16 %v1454, %v1448
    %v2517 = vpack.c.b16 %v1455, %v1449
    %v2518 = vpack.c.b16 %v1456, %v1450
    %v2519 = vpack.c.b16 %v1457, %v1451
    %v2520 = vpack.c.b16 %v1458, %v1452
    %v2521 = vpack.c.b16 %v1459, %v1453
    %v2522 = vpack.c.b16 %v1466, %v1460
    %v2523 = vpack.c.b16 %v1467, %v1461
    %v2524 = vpack.c.b16 %v1468, %v1462
    %v2525 = vpack.c.b16 %v1469, %v1463
    %v2526 = vpack.c.b16 %v1470, %v1464
    %v2527 = vpack.c.b16 %v1471, %v1465
    %v2528 = vpack.c.b16 %v1478, %v1472
    %v2529 = vpack.c.b16 %v1479, %v1473
    %v2530 = vpack.c.b16 %v1480, %v1474
    %v2531 = vpack.c.b16 %v1481, %v1475
    %v2532 = vpack.c.b16 %v1482, %v1476
    %v2533 = vpack.c.b16 %v1483, %v1477
    %v2534 = vpack.c.b16 %v1490, %v1484
    %v2535 = vpack.c.b16 %v1491, %v1485
    %v2536 = vpack.c.b16 %v1492, %v1486
    %v2537 = vpack.c.b16 %v1493, %v1487
    %v2538 = vpack.c.b16 %v1494, %v1488
    %v2539 = vpack.c.b16 %v1495, %v1489
    %v2540 = vpack.c.b16 %v1502, %v1496
    %v2541 = vpack.c.b16 %v1503, %v1497
    %v2542 = vpack.c.b16 %v1504, %v1498
    %v2543 = vpack.c.b16 %v1505, %v1499
    %v2544 = vpack.c.b16 %v1506, %v1500
    %v2545 = vpack.c.b16 %v1507, %v1501
    %v2546 = vpack.c.b16 %v1514, %v1508
    %v2547 = vpack.c.b16 %v1515, %v1509
    %v2548 = vpack.c.b16 %v1516, %v1510
    %v2549 = vpack.c.b16 %v1517, %v1511
    %v2550 = vpack.c.b16 %v1518, %v1512
    %v2551 = vpack.c.b16 %v1519, %v1513
    %v2552 = vpack.c.b16 %v1526, %v1520
    %v2553 = vpack.c.b16 %v1527, %v1521
    %v2554 = vpack.c.b16 %v1528, %v1522
    %v2555 = vpack.c.b16 %v1529, %v1523
    %v2556 = vpack.c.b16 %v1530, %v1524
    %v2557 = vpack.c.b16 %v1531, %v1525
    %v2558 = vpack.c.b16 %v1538, %v1532
    %v2559 = vpack.c.b16 %v1539, %v1533
    %v2560 = vpack.c.b16 %v1540, %v1534
    %v2561 = vpack.c.b16 %v1541, %v1535
    %v2562 = vpack.c.b16 %v1542, %v1536
    %v2563 = vpack.c.b16 %v1543, %v1537
    %v2564 = vpack.c.b16 %v1550, %v1544
    %v2565 = vpack.c.b16 %v1551, %v1545
    %v2566 = vpack.c.b16 %v1552, %v1546
    %v2567 = vpack.c.b16 %v1553, %v1547
    %v2568 = vpack.c.b16 %v1554, %v1548
    %v2569 = vpack.c.b16 %v1555, %v1549
    %v2570 = vpack.c.b16 %v1562, %v1556
    %v2571 = vpack.c.b16 %v1563, %v1557
    %v2572 = vpack.c.b16 %v1564, %v1558
    %v2573 = vpack.c.b16 %v1565, %v1559
    %v2574 = vpack.c.b16 %v1566, %v1560
    %v2575 = vpack.c.b16 %v1567, %v1561
    %v2576 = vpack.c.b16 %v1574, %v1568
    %v2577 = vpack.c.b16 %v1575, %v1569
    %v2578 = vpack.c.b16 %v1576, %v1570
    %v2579 = vpack.c.b16 %v1577, %v1571
    %v2580 = vpack.c.b16 %v1578, %v1572
    %v2581 = vpack.c.b16 %v1579, %v1573
    %v2582 = vpack.c.b16 %v1586, %v1580
    %v2583 = vpack.c.b16 %v1587, %v1581
    %v2584 = vpack.c.b16 %v1588, %v1582
    %v2585 = vpack.c.b16 %v1589, %v1583
    %v2586 = vpack.c.b16 %v1590, %v1584
    %v2587 = vpack.c.b16 %v1591, %v1585
    %v2588 = vpack.c.b16 %v1598, %v1592
    %v2589 = vpack.c.b16 %v1599, %v1593
    %v2590 = vpack.c.b16 %v1600, %v1594
    %v2591 = vpack.c.b16 %v1601, %v1595
    %v2592 = vpack.c.b16 %v1602, %v1596
    %v2593 = vpack.c.b16 %v1603, %v1597
    %v2594 = vpack.c.b16 %v1610, %v1604
    %v2595 = vpack.c.b16 %v1611, %v1605
    %v2596 = vpack.c.b16 %v1612, %v1606
    %v2597 = vpack.c.b16 %v1613, %v1607
    %v2598 = vpack.c.b16 %v1614, %v1608
    %v2599 = vpack.c.b16 %v1615, %v1609
    %v2600 = vpack.c.b16 %v1622, %v1616
    %v2601 = vpack.c.b16 %v1623, %v1617
    %v2602 = vpack.c.b16 %v1624, %v1618
    %v2603 = vpack.c.b16 %v1625, %v1619
    %v2604 = vpack.c.b16 %v1626, %v1620
    %v2605 = vpack.c.b16 %v1627, %v1621
    %v2606 = vpack.c.b16 %v1634, %v1628
    %v2607 = vpack.c.b16 %v1635, %v1629
    %v2608 = vpack.c.b16 %v1636, %v1630
    %v2609 = vpack.c.b16 %v1637, %v1631
    %v2610 = vpack.c.b16 %v1638, %v1632
    %v2611 = vpack.c.b16 %v1639, %v1633
    %v2612 = vpack.c.b16 %v1646, %v1640
    %v2613 = vpack.c.b16 %v1647, %v1641
    %v2614 = vpack.c.b16 %v1648, %v1642
    %v2615 = vpack.c.b16 %v1649, %v1643
    %v2616 = vpack.c.b16 %v1650, %v1644
    %v2617 = vpack.c.b16 %v1651, %v1645
    %v2618 = vpack.c.b16 %v1658, %v1652
    %v2619 = vpack.c.b16 %v1659, %v1653
    %v2620 = vpack.c.b16 %v1660, %v1654
    %v2621 = vpack.c.b16 %v1661, %v1655
    %v2622 = vpack.c.b16 %v1662, %v1656
    %v2623 = vpack.c.b16 %v1663, %v1657
    %v2624 = vpack.c.b16 %v1670, %v1664
    %v2625 = vpack.c.b16 %v1671, %v1665
    %v2626 = vpack.c.b16 %v1672, %v1666
    %v2627 = vpack.c.b16 %v1673, %v1667
    %v2628 = vpack.c.b16 %v1674, %v1668
    %v2629 = vpack.c.b16 %v1675, %v1669
    %v2630 = vpack.c.b16 %v1682, %v1676
    %v2631 = vpack.c.b16 %v1683, %v1677
    %v2632 = vpack.c.b16 %v1684, %v1678
    %v2633 = vpack.c.b16 %v1685, %v1679
    %v2634 = vpack.c.b16 %v1686, %v1680
    %v2635 = vpack.c.b16 %v1687, %v1681
    %v2636 = vpack.c.b16 %v1694, %v1688
    %v2637 = vpack.c.b16 %v1695, %v1689
    %v2638 = vpack.c.b16 %v1696, %v1690
    %v2639 = vpack.c.b16 %v1697, %v1691
    %v2640 = vpack.c.b16 %v1698, %v1692
    %v2641 = vpack.c.b16 %v1699, %v1693
    %v2642 = vpack.c.b16 %v1706, %v1700
    %v2643 = vpack.c.b16 %v1707, %v1701
    %v2644 = vpack.c.b16 %v1708, %v1702
    %v2645 = vpack.c.b16 %v1709, %v1703
    %v2646 = vpack.c.b16 %v1710, %v1704
    %v2647 = vpack.c.b16 %v1711, %v1705
    %v2648 = vpack.c.b16 %v1718, %v1712
    %v2649 = vpack.c.b16 %v1719, %v1713
    %v2650 = vpack.c.b16 %v1720, %v1714
    %v2651 = vpack.c.b16 %v1721, %v1715
    %v2652 = vpack.c.b16 %v1722, %v1716
    %v2653 = vpack.c.b16 %v1723, %v1717
    %v2654 = vpack.c.b16 %v1730, %v1724
    %v2655 = vpack.c.b16 %v1731, %v1725
    %v2656 = vpack.c.b16 %v1732, %v1726
    %v2657 = vpack.c.b16 %v1733, %v1727
    %v2658 = vpack.c.b16 %v1734, %v1728
    %v2659 = vpack.c.b16 %v1735, %v1729
    %v2660 = vpack.c.b16 %v1742, %v1736
    %v2661 = vpack.c.b16 %v1743, %v1737
    %v2662 = vpack.c.b16 %v1744, %v1738
    %v2663 = vpack.c.b16 %v1745, %v1739
    %v2664 = vpack.c.b16 %v1746, %v1740
    %v2665 = vpack.c.b16 %v1747, %v1741
    %v2666 = vpack.c.b16 %v1754, %v1748
    %v2667 = vpack.c.b16 %v1755, %v1749
    %v2668 = vpack.c.b16 %v1756, %v1750
    %v2669 = vpack.c.b16 %v1757, %v1751
    %v2670 = vpack.c.b16 %v1758, %v1752
    %v2671 = vpack.c.b16 %v1759, %v1753
    %v2672 = vpack.c.b16 %v1766, %v1760
    %v2673 = vpack.c.b16 %v1767, %v1761
    %v2674 = vpack.c.b16 %v1768, %v1762
    %v2675 = vpack.c.b16 %v1769, %v1763
    %v2676 = vpack.c.b16 %v1770, %v1764
    %v2677 = vpack.c.b16 %v1771, %v1765
    %v2678 = vpack.c.b16 %v1778, %v1772
    %v2679 = vpack.c.b16 %v1779, %v1773
    %v2680 = vpack.c.b16 %v1780, %v1774
    %v2681 = vpack.c.b16 %v1781, %v1775
    %v2682 = vpack.c.b16 %v1782, %v1776
    %v2683 = vpack.c.b16 %v1783, %v1777
    %v2684 = vpack.c.b16 %v1790, %v1784
    %v2685 = vpack.c.b16 %v1791, %v1785
    %v2686 = vpack.c.b16 %v1792, %v1786
    %v2687 = vpack.c.b16 %v1793, %v1787
    %v2688 = vpack.c.b16 %v1794, %v1788
    %v2689 = vpack.c.b16 %v1795, %v1789
    %v2690 = vpack.c.b16 %v1802, %v1796
    %v2691 = vpack.c.b16 %v1803, %v1797
    %v2692 = vpack.c.b16 %v1804, %v1798
    %v2693 = vpack.c.b16 %v1805, %v1799
    %v2694 = vpack.c.b16 %v1806, %v1800
    %v2695 = vpack.c.b16 %v1807, %v1801
    %v2696 = vpack.c.b16 %v1814, %v1808
    %v2697 = vpack.c.b16 %v1815, %v1809
    %v2698 = vpack.c.b16 %v1816, %v1810
    %v2699 = vpack.c.b16 %v1817, %v1811
    %v2700 = vpack.c.b16 %v1818, %v1812
    %v2701 = vpack.c.b16 %v1819, %v1813
    %v2702 = vpack.c.b16 %v1826, %v1820
    %v2703 = vpack.c.b16 %v1827, %v1821
    %v2704 = vpack.c.b16 %v1828, %v1822
    %v2705 = vpack.c.b16 %v1829, %v1823
    %v2706 = vpack.c.b16 %v1830, %v1824
    %v2707 = vpack.c.b16 %v1831, %v1825
    %v2708 = vpack.c.b16 %v1838, %v1832
    %v2709 = vpack.c.b16 %v1839, %v1833
    %v2710 = vpack.c.b16 %v1840, %v1834
    %v2711 = vpack.c.b16 %v1841, %v1835
    %v2712 = vpack.c.b16 %v1842, %v1836
    %v2713 = vpack.c.b16 %v1843, %v1837
    %v2714 = vpack.c.b16 %v1850, %v1844
    %v2715 = vpack.c.b16 %v1851, %v1845
    %v2716 = vpack.c.b16 %v1852, %v1846
    %v2717 = vpack.c.b16 %v1853, %v1847
    %v2718 = vpack.c.b16 %v1854, %v1848
    %v2719 = vpack.c.b16 %v1855, %v1849
    %v2720 = vpack.c.b16 %v1862, %v1856
    %v2721 = vpack.c.b16 %v1863, %v1857
    %v2722 = vpack.c.b16 %v1864, %v1858
    %v2723 = vpack.c.b16 %v1865, %v1859
    %v2724 = vpack.c.b16 %v1866, %v1860
    %v2725 = vpack.c.b16 %v1867, %v1861
    %v2726 = vpack.c.b16 %v1874, %v1868
    %v2727 = vpack.c.b16 %v1875, %v1869
    %v2728 = vpack.c.b16 %v1876, %v1870
    %v2729 = vpack.c.b16 %v1877, %v1871
    %v2730 = vpack.c.b16 %v1878, %v1872
    %v2731 = vpack.c.b16 %v1879, %v1873
    %v2732 = vpack.c.b16 %v1886, %v1880
    %v2733 = vpack.c.b16 %v1887, %v1881
    %v2734 = vpack.c.b16 %v1888, %v1882
    %v2735 = vpack.c.b16 %v1889, %v1883
    %v2736 = vpack.c.b16 %v1890, %v1884
    %v2737 = vpack.c.b16 %v1891, %v1885
    %v2738 = vpack.c.b16 %v1898, %v1892
    %v2739 = vpack.c.b16 %v1899, %v1893
    %v2740 = vpack.c.b16 %v1900, %v1894
    %v2741 = vpack.c.b16 %v1901, %v1895
    %v2742 = vpack.c.b16 %v1902, %v1896
    %v2743 = vpack.c.b16 %v1903, %v1897
    %v2744 = vpack.c.b16 %v1910, %v1904
    %v2745 = vpack.c.b16 %v1911, %v1905
    %v2746 = vpack.c.b16 %v1912, %v1906
    %v2747 = vpack.c.b16 %v1913, %v1907
    %v2748 = vpack.c.b16 %v1914, %v1908
    %v2749 = vpack.c.b16 %v1915, %v1909
    %v2750 = vpack.c.b16 %v1922, %v1916
    %v2751 = vpack.c.b16 %v1923, %v1917
    %v2752 = vpack.c.b16 %v1924, %v1918
    %v2753 = vpack.c.b16 %v1925, %v1919
    %v2754 = vpack.c.b16 %v1926, %v1920
    %v2755 = vpack.c.b16 %v1927, %v1921
    %v2756 = vpack.c.b16 %v1934, %v1928
    %v2757 = vpack.c.b16 %v1935, %v1929
    %v2758 = vpack.c.b16 %v1936, %v1930
    %v2759 = vpack.c.b16 %v1937, %v1931
    %v2760 = vpack.c.b16 %v1938, %v1932
    %v2761 = vpack.c.b16 %v1939, %v1933
    %v2762 = vpack.c.b16 %v1946, %v1940
    %v2763 = vpack.c.b16 %v1947, %v1941
    %v2764 = vpack.c.b16 %v1948, %v1942
    %v2765 = vpack.c.b16 %v1949, %v1943
    %v2766 = vpack.c.b16 %v1950, %v1944
    %v2767 = vpack.c.b16 %v1951, %v1945
    %v2768 = vpack.c.b16 %v1958, %v1952
    %v2769 = vpack.c.b16 %v1959, %v1953
    %v2770 = vpack.c.b16 %v1960, %v1954
    %v2771 = vpack.c.b16 %v1961, %v1955
    %v2772 = vpack.c.b16 %v1962, %v1956
    %v2773 = vpack.c.b16 %v1963, %v1957
    %v2774 = vpack.c.b16 %v1970, %v1964
    %v2775 = vpack.c.b16 %v1971, %v1965
    %v2776 = vpack.c.b16 %v1972, %v1966
    %v2777 = vpack.c.b16 %v1973, %v1967
    %v2778 = vpack.c.b16 %v1974, %v1968
    %v2779 = vpack.c.b16 %v1975, %v1969
    %v2780 = vpack.c.b16 %v1982, %v1976
    %v2781 = vpack.c.b16 %v1983, %v1977
    %v2782 = vpack.c.b16 %v1984, %v1978
    %v2783 = vpack.c.b16 %v1985, %v1979
    %v2784 = vpack.c.b16 %v1986, %v1980
    %v2785 = vpack.c.b16 %v1987, %v1981
    %v2786 = vpack.c.b16 %v1994, %v1988
    %v2787 = vpack.c.b16 %v1995, %v1989
    %v2788 = vpack.c.b16 %v1996, %v1990
    %v2789 = vpack.c.b16 %v1997, %v1991
    %v2790 = vpack.c.b16 %v1998, %v1992
    %v2791 = vpack.c.b16 %v1999, %v1993
    %v2792 = vpack.c.b16 %v2006, %v2000
    %v2793 = vpack.c.b16 %v2007, %v2001
    %v2794 = vpack.c.b16 %v2008, %v2002
    %v2795 = vpack.c.b16 %v2009, %v2003
    %v2796 = vpack.c.b16 %v2010, %v2004
    %v2797 = vpack.c.b16 %v2011, %v2005
    %v2798 = vpack.c.b16 %v2018, %v2012
    %v2799 = vpack.c.b16 %v2019, %v2013
    %v2800 = vpack.c.b16 %v2020, %v2014
    %v2801 = vpack.c.b16 %v2021, %v2015
    %v2802 = vpack.c.b16 %v2022, %v2016
    %v2803 = vpack.c.b16 %v2023, %v2017
    %v2804 = vpack.c.b16 %v2030, %v2024
    %v2805 = vpack.c.b16 %v2031, %v2025
    %v2806 = vpack.c.b16 %v2032, %v2026
    %v2807 = vpack.c.b16 %v2033, %v2027
    %v2808 = vpack.c.b16 %v2034, %v2028
    %v2809 = vpack.c.b16 %v2035, %v2029
    %v2810 = vpack.c.b16 %v2042, %v2036
    %v2811 = vpack.c.b16 %v2043, %v2037
    %v2812 = vpack.c.b16 %v2044, %v2038
    %v2813 = vpack.c.b16 %v2045, %v2039
    %v2814 = vpack.c.b16 %v2046, %v2040
    %v2815 = vpack.c.b16 %v2047, %v2041
    %v2816 = vpack.c.b16 %v2054, %v2048
    %v2817 = vpack.c.b16 %v2055, %v2049
    %v2818 = vpack.c.b16 %v2056, %v2050
    %v2819 = vpack.c.b16 %v2057, %v2051
    %v2820 = vpack.c.b16 %v2058, %v2052
    %v2821 = vpack.c.b16 %v2059, %v2053
    %v2822 = vpack.c.b16 %v2066, %v2060
    %v2823 = vpack.c.b16 %v2067, %v2061
    %v2824 = vpack.c.b16 %v2068, %v2062
    %v2825 = vpack.c.b16 %v2069, %v2063
    %v2826 = vpack.c.b16 %v2070, %v2064
    %v2827 = vpack.c.b16 %v2071, %v2065
    %v2828 = vpack.c.b16 %v2078, %v2072
    %v2829 = vpack.c.b16 %v2079, %v2073
    %v2830 = vpack.c.b16 %v2080, %v2074
    %v2831 = vpack.c.b16 %v2081, %v2075
    %v2832 = vpack.c.b16 %v2082, %v2076
    %v2833 = vpack.c.b16 %v2083, %v2077
    %v2834 = vpack.c.b16 %v2090, %v2084
    %v2835 = vpack.c.b16 %v2091, %v2085
    %v2836 = vpack.c.b16 %v2092, %v2086
    %v2837 = vpack.c.b16 %v2093, %v2087
    %v2838 = vpack.c.b16 %v2094, %v2088
    %v2839 = vpack.c.b16 %v2095, %v2089
    %v2840 = vpack.c.b16 %v2102, %v2096
    %v2841 = vpack.c.b16 %v2103, %v2097
    %v2842 = vpack.c.b16 %v2104, %v2098
    %v2843 = vpack.c.b16 %v2105, %v2099
    %v2844 = vpack.c.b16 %v2106, %v2100
    %v2845 = vpack.c.b16 %v2107, %v2101
    %v2846 = vpack.c.b16 %v2114, %v2108
    %v2847 = vpack.c.b16 %v2115, %v2109
    %v2848 = vpack.c.b16 %v2116, %v2110
    %v2849 = vpack.c.b16 %v2117, %v2111
    %v2850 = vpack.c.b16 %v2118, %v2112
    %v2851 = vpack.c.b16 %v2119, %v2113
    %v2852 = vpack.c.b16 %v2126, %v2120
    %v2853 = vpack.c.b16 %v2127, %v2121
    %v2854 = vpack.c.b16 %v2128, %v2122
    %v2855 = vpack.c.b16 %v2129, %v2123
    %v2856 = vpack.c.b16 %v2130, %v2124
    %v2857 = vpack.c.b16 %v2131, %v2125
    %v2858 = vpack.c.b16 %v2138, %v2132
    %v2859 = vpack.c.b16 %v2139, %v2133
    %v2860 = vpack.c.b16 %v2140, %v2134
    %v2861 = vpack.c.b16 %v2141, %v2135
    %v2862 = vpack.c.b16 %v2142, %v2136
    %v2863 = vpack.c.b16 %v2143, %v2137
    %v2864 = vpack.c.b16 %v2150, %v2144
    %v2865 = vpack.c.b16 %v2151, %v2145
    %v2866 = vpack.c.b16 %v2152, %v2146
    %v2867 = vpack.c.b16 %v2153, %v2147
    %v2868 = vpack.c.b16 %v2154, %v2148
    %v2869 = vpack.c.b16 %v2155, %v2149
    %v2870 = vpack.c.b16 %v2162, %v2156
    %v2871 = vpack.c.b16 %v2163, %v2157
    %v2872 = vpack.c.b16 %v2164, %v2158
    %v2873 = vpack.c.b16 %v2165, %v2159
    %v2874 = vpack.c.b16 %v2166, %v2160
    %v2875 = vpack.c.b16 %v2167, %v2161
    %v2876 = vpack.c.b16 %v2174, %v2168
    %v2877 = vpack.c.b16 %v2175, %v2169
    %v2878 = vpack.c.b16 %v2176, %v2170
    %v2879 = vpack.c.b16 %v2177, %v2171
    %v2880 = vpack.c.b16 %v2178, %v2172
    %v2881 = vpack.c.b16 %v2179, %v2173
    %v2882 = vpack.c.b16 %v2186, %v2180
    %v2883 = vpack.c.b16 %v2187, %v2181
    %v2884 = vpack.c.b16 %v2188, %v2182
    %v2885 = vpack.c.b16 %v2189, %v2183
    %v2886 = vpack.c.b16 %v2190, %v2184
    %v2887 = vpack.c.b16 %v2191, %v2185
    %v2888 = vpack.c.b16 %v2198, %v2192
    %v2889 = vpack.c.b16 %v2199, %v2193
    %v2890 = vpack.c.b16 %v2200, %v2194
    %v2891 = vpack.c.b16 %v2201, %v2195
    %v2892 = vpack.c.b16 %v2202, %v2196
    %v2893 = vpack.c.b16 %v2203, %v2197
    %v2894 = vpack.c.b16 %v2210, %v2204
    %v2895 = vpack.c.b16 %v2211, %v2205
    %v2896 = vpack.c.b16 %v2212, %v2206
    %v2897 = vpack.c.b16 %v2213, %v2207
    %v2898 = vpack.c.b16 %v2214, %v2208
    %v2899 = vpack.c.b16 %v2215, %v2209
    %v2900 = vpack.c.b16 %v2222, %v2216
    %v2901 = vpack.c.b16 %v2223, %v2217
    %v2902 = vpack.c.b16 %v2224, %v2218
    %v2903 = vpack.c.b16 %v2225, %v2219
    %v2904 = vpack.c.b16 %v2226, %v2220
    %v2905 = vpack.c.b16 %v2227, %v2221
    %v2906 = vpack.c.b16 %v2234, %v2228
    %v2907 = vpack.c.b16 %v2235, %v2229
    %v2908 = vpack.c.b16 %v2236, %v2230
    %v2909 = vpack.c.b16 %v2237, %v2231
    %v2910 = vpack.c.b16 %v2238, %v2232
    %v2911 = vpack.c.b16 %v2239, %v2233
    %v2912 = vpack.c.b16 %v2246, %v2240
    %v2913 = vpack.c.b16 %v2247, %v2241
    %v2914 = vpack.c.b16 %v2248, %v2242
    %v2915 = vpack.c.b16 %v2249, %v2243
    %v2916 = vpack.c.b16 %v2250, %v2244
    %v2917 = vpack.c.b16 %v2251, %v2245
    %v2918 = vpack.c.b16 %v2258, %v2252
    %v2919 = vpack.c.b16 %v2259, %v2253
    %v2920 = vpack.c.b16 %v2260, %v2254
    %v2921 = vpack.c.b16 %v2261, %v2255
    %v2922 = vpack.c.b16 %v2262, %v2256
    %v2923 = vpack.c.b16 %v2263, %v2257
    %v2924 = vpack.c.b16 %v2270, %v2264
    %v2925 = vpack.c.b16 %v2271, %v2265
    %v2926 = vpack.c.b16 %v2272, %v2266
    %v2927 = vpack.c.b16 %v2273, %v2267
    %v2928 = vpack.c.b16 %v2274, %v2268
    %v2929 = vpack.c.b16 %v2275, %v2269
    %v2930 = vpack.c.b16 %v2282, %v2276
    %v2931 = vpack.c.b16 %v2283, %v2277
    %v2932 = vpack.c.b16 %v2284, %v2278
    %v2933 = vpack.c.b16 %v2285, %v2279
    %v2934 = vpack.c.b16 %v2286, %v2280
    %v2935 = vpack.c.b16 %v2287, %v2281
    %v2936 = vpack.c.b16 %v2294, %v2288
    %v2937 = vpack.c.b16 %v2295, %v2289
    %v2938 = vpack.c.b16 %v2296, %v2290
    %v2939 = vpack.c.b16 %v2297, %v2291
    %v2940 = vpack.c.b16 %v2298, %v2292
    %v2941 = vpack.c.b16 %v2299, %v2293
    %v2942 = vpack.c.b16 %v2306, %v2300
    %v2943 = vpack.c.b16 %v2307, %v2301
    %v2944 = vpack.c.b16 %v2308, %v2302
    %v2945 = vpack.c.b16 %v2309, %v2303
    %v2946 = vpack.c.b16 %v2310, %v2304
    %v2947 = vpack.c.b16 %v2311, %v2305
    %v2948 = vpack.c.b16 %v2318, %v2312
    %v2949 = vpack.c.b16 %v2319, %v2313
    %v2950 = vpack.c.b16 %v2320, %v2314
    %v2951 = vpack.c.b16 %v2321, %v2315
    %v2952 = vpack.c.b16 %v2322, %v2316
    %v2953 = vpack.c.b16 %v2323, %v2317
    %v2954 = vpack.c.b16 %v2330, %v2324
    %v2955 = vpack.c.b16 %v2331, %v2325
    %v2956 = vpack.c.b16 %v2332, %v2326
    %v2957 = vpack.c.b16 %v2333, %v2327
    %v2958 = vpack.c.b16 %v2334, %v2328
    %v2959 = vpack.c.b16 %v2335, %v2329
    %v2960 = vpack.c.b16 %v2342, %v2336
    %v2961 = vpack.c.b16 %v2343, %v2337
    %v2962 = vpack.c.b16 %v2344, %v2338
    %v2963 = vpack.c.b16 %v2345, %v2339
    %v2964 = vpack.c.b16 %v2346, %v2340
    %v2965 = vpack.c.b16 %v2347, %v2341
    %v2966 = vpack.c.b16 %v2354, %v2348
    %v2967 = vpack.c.b16 %v2355, %v2349
    %v2968 = vpack.c.b16 %v2356, %v2350
    %v2969 = vpack.c.b16 %v2357, %v2351
    %v2970 = vpack.c.b16 %v2358, %v2352
    %v2971 = vpack.c.b16 %v2359, %v2353
    %v2972 = vpack.c.b16 %v2366, %v2360
    %v2973 = vpack.c.b16 %v2367, %v2361
    %v2974 = vpack.c.b16 %v2368, %v2362
    %v2975 = vpack.c.b16 %v2369, %v2363
    %v2976 = vpack.c.b16 %v2370, %v2364
    %v2977 = vpack.c.b16 %v2371, %v2365
    %v2978 = vpack.c.b16 %v2378, %v2372
    %v2979 = vpack.c.b16 %v2379, %v2373
    %v2980 = vpack.c.b16 %v2380, %v2374
    %v2981 = vpack.c.b16 %v2381, %v2375
    %v2982 = vpack.c.b16 %v2382, %v2376
    %v2983 = vpack.c.b16 %v2383, %v2377
    %v2984 = vpack.c.b16 %v2390, %v2384
    %v2985 = vpack.c.b16 %v2391, %v2385
    %v2986 = vpack.c.b16 %v2392, %v2386
    %v2987 = vpack.c.b16 %v2393, %v2387
    %v2988 = vpack.c.b16 %v2394, %v2388
    %v2989 = vpack.c.b16 %v2395, %v2389
    %v2990 = vpack.c.b16 %v2402, %v2396
    %v2991 = vpack.c.b16 %v2403, %v2397
    %v2992 = vpack.c.b16 %v2404, %v2398
    %v2993 = vpack.c.b16 %v2405, %v2399
    %v2994 = vpack.c.b16 %v2406, %v2400
    %v2995 = vpack.c.b16 %v2407, %v2401
    %v2996 = vpack.c.b16 %v2414, %v2408
    %v2997 = vpack.c.b16 %v2415, %v2409
    %v2998 = vpack.c.b16 %v2416, %v2410
    %v2999 = vpack.c.b16 %v2417, %v2411
    %v3000 = vpack.c.b16 %v2418, %v2412
    %v3001 = vpack.c.b16 %v2419, %v2413
    %v3002 = vpack.c.b16 %v2426, %v2420
    %v3003 = vpack.c.b16 %v2427, %v2421
    %v3004 = vpack.c.b16 %v2428, %v2422
    %v3005 = vpack.c.b16 %v2429, %v2423
    %v3006 = vpack.c.b16 %v2430, %v2424
    %v3007 = vpack.c.b16 %v2431, %v2425
    %3584 = vmatprep.subr.bf16.mxu0 %v2475
    %3585 = vmatpush1.bf16.msra.mxu0 %v2474
    %3586 = vmatprep.subr.bf16.mxu0 %v2469
    %3587 = vmatpush1.bf16.msra.mxu0 %v2468
    %3588 = vmatprep.subr.bf16.mxu0 %v2463
    %3589 = vmatpush1.bf16.msra.mxu0 %v2462
    %3590 = vmatprep.subr.bf16.mxu0 %v2457
    %3591 = vmatpush1.bf16.msra.mxu0 %v2456
    %3592 = vmatprep.subr.bf16.mxu0 %v2451
    %3593 = vmatpush1.bf16.msra.mxu0 %v2450
    %3594 = vmatprep.subr.bf16.mxu0 %v2445
    %3595 = vmatpush1.bf16.msra.mxu0 %v2444
    %3596 = vmatprep.subr.bf16.mxu0 %v2439
    %3597 = vmatpush1.bf16.msra.mxu0 %v2438
    %3598 = vmatprep.subr.bf16.mxu0 %v2433
    %3599 = vmatpush1.bf16.msra.mxu0 %v2432
    %3600 = vmatprep.subr.bf16.mxu0 %v2523
    %3601 = vmatpush2.bf16.msra.mxu0 %v2522
    %3602 = vmatprep.subr.bf16.mxu0 %v2517
    %3603 = vmatpush2.bf16.msra.mxu0 %v2516
    %3604 = vmatprep.subr.bf16.mxu0 %v2511
    %3605 = vmatpush2.bf16.msra.mxu0 %v2510
    %3606 = vmatprep.subr.bf16.mxu0 %v2505
    %3607 = vmatpush2.bf16.msra.mxu0 %v2504
    %3608 = vmatprep.subr.bf16.mxu0 %v2499
    %3609 = vmatpush2.bf16.msra.mxu0 %v2498
    %3610 = vmatprep.subr.bf16.mxu0 %v2493
    %3611 = vmatpush2.bf16.msra.mxu0 %v2492
    %3612 = vmatprep.subr.bf16.mxu0 %v2487
    %3613 = vmatpush2.bf16.msra.mxu0 %v2486
    %3614 = vmatprep.subr.bf16.mxu0 %v2481
    %3615 = vmatpush2.bf16.msra.mxu0 %v2480
    %3616 = vmatprep.mubr.bf16.mxu0 %v681
    %3617 = vmatmul.mubr.bf16.gmra.mxu0 %v680
    %v3618 = vpop.f32.mrf.mxu0
    %v3619 = vadd.f32 0.0, %v3618
    %v3620 = vpop.f32.mrf.mxu0
    %v3621 = vadd.f32 0.0, %v3620
    %v3622 = vpop.f32.mrf.mxu0
    %v3623 = vadd.f32 0.0, %v3622
    %v3624 = vpop.f32.mrf.mxu0
    %v3625 = vadd.f32 0.0, %v3624
    %3626 = vdwg.mxu0
    %3627 = vmatprep.subr.bf16.mxu0 %v2571
    %3628 = vmatpush1.bf16.msra.mxu0 %v2570
    %3629 = vmatprep.subr.bf16.mxu0 %v2565
    %3630 = vmatpush1.bf16.msra.mxu0 %v2564
    %3631 = vmatprep.subr.bf16.mxu0 %v2559
    %3632 = vmatpush1.bf16.msra.mxu0 %v2558
    %3633 = vmatprep.subr.bf16.mxu0 %v2553
    %3634 = vmatpush1.bf16.msra.mxu0 %v2552
    %3635 = vmatprep.subr.bf16.mxu0 %v2547
    %3636 = vmatpush1.bf16.msra.mxu0 %v2546
    %3637 = vmatprep.subr.bf16.mxu0 %v2541
    %3638 = vmatpush1.bf16.msra.mxu0 %v2540
    %3639 = vmatprep.subr.bf16.mxu0 %v2535
    %3640 = vmatpush1.bf16.msra.mxu0 %v2534
    %3641 = vmatprep.subr.bf16.mxu0 %v2529
    %3642 = vmatpush1.bf16.msra.mxu0 %v2528
    %3643 = vmatprep.subr.bf16.mxu0 %v2619
    %3644 = vmatpush2.bf16.msra.mxu0 %v2618
    %3645 = vmatprep.subr.bf16.mxu0 %v2613
    %3646 = vmatpush2.bf16.msra.mxu0 %v2612
    %3647 = vmatprep.subr.bf16.mxu0 %v2607
    %3648 = vmatpush2.bf16.msra.mxu0 %v2606
    %3649 = vmatprep.subr.bf16.mxu0 %v2601
    %3650 = vmatpush2.bf16.msra.mxu0 %v2600
    %3651 = vmatprep.subr.bf16.mxu0 %v2595
    %3652 = vmatpush2.bf16.msra.mxu0 %v2594
    %3653 = vmatprep.subr.bf16.mxu0 %v2589
    %3654 = vmatpush2.bf16.msra.mxu0 %v2588
    %3655 = vmatprep.subr.bf16.mxu0 %v2583
    %3656 = vmatpush2.bf16.msra.mxu0 %v2582
    %3657 = vmatprep.subr.bf16.mxu0 %v2577
    %3658 = vmatpush2.bf16.msra.mxu0 %v2576
    %3659 = vmatprep.mubr.bf16.mxu0 %v683
    %3660 = vmatmul.mubr.bf16.gmra.mxu0 %v682
    %v3661 = vpop.f32.mrf.mxu0
    %v3662 = vadd.f32 %v3619, %v3661
    %v3663 = vpop.f32.mrf.mxu0
    %v3664 = vadd.f32 %v3621, %v3663
    %v3665 = vpop.f32.mrf.mxu0
    %v3666 = vadd.f32 %v3623, %v3665
    %v3667 = vpop.f32.mrf.mxu0
    %v3668 = vadd.f32 %v3625, %v3667
    %3669 = vdwg.mxu0
    %3670 = vmatprep.subr.bf16.mxu0 %v2667
    %3671 = vmatpush1.bf16.msra.mxu0 %v2666
    %3672 = vmatprep.subr.bf16.mxu0 %v2661
    %3673 = vmatpush1.bf16.msra.mxu0 %v2660
    %3674 = vmatprep.subr.bf16.mxu0 %v2655
    %3675 = vmatpush1.bf16.msra.mxu0 %v2654
    %3676 = vmatprep.subr.bf16.mxu0 %v2649
    %3677 = vmatpush1.bf16.msra.mxu0 %v2648
    %3678 = vmatprep.subr.bf16.mxu0 %v2643
    %3679 = vmatpush1.bf16.msra.mxu0 %v2642
    %3680 = vmatprep.subr.bf16.mxu0 %v2637
    %3681 = vmatpush1.bf16.msra.mxu0 %v2636
    %3682 = vmatprep.subr.bf16.mxu0 %v2631
    %3683 = vmatpush1.bf16.msra.mxu0 %v2630
    %3684 = vmatprep.subr.bf16.mxu0 %v2625
    %3685 = vmatpush1.bf16.msra.mxu0 %v2624
    %3686 = vmatprep.subr.bf16.mxu0 %v2715
    %3687 = vmatpush2.bf16.msra.mxu0 %v2714
    %3688 = vmatprep.subr.bf16.mxu0 %v2709
    %3689 = vmatpush2.bf16.msra.mxu0 %v2708
    %3690 = vmatprep.subr.bf16.mxu0 %v2703
    %3691 = vmatpush2.bf16.msra.mxu0 %v2702
    %3692 = vmatprep.subr.bf16.mxu0 %v2697
    %3693 = vmatpush2.bf16.msra.mxu0 %v2696
    %3694 = vmatprep.subr.bf16.mxu0 %v2691
    %3695 = vmatpush2.bf16.msra.mxu0 %v2690
    %3696 = vmatprep.subr.bf16.mxu0 %v2685
    %3697 = vmatpush2.bf16.msra.mxu0 %v2684
    %3698 = vmatprep.subr.bf16.mxu0 %v2679
    %3699 = vmatpush2.bf16.msra.mxu0 %v2678
    %3700 = vmatprep.subr.bf16.mxu0 %v2673
    %3701 = vmatpush2.bf16.msra.mxu0 %v2672
    %3702 = vmatprep.mubr.bf16.mxu0 %v685
    %3703 = vmatmul.mubr.bf16.gmra.mxu0 %v684
    %v3704 = vpop.f32.mrf.mxu0
    %v3705 = vadd.f32 %v3662, %v3704
    %v3706 = vpop.f32.mrf.mxu0
    %v3707 = vadd.f32 %v3664, %v3706
    %v3708 = vpop.f32.mrf.mxu0
    %v3709 = vadd.f32 %v3666, %v3708
    %v3710 = vpop.f32.mrf.mxu0
    %v3711 = vadd.f32 %v3668, %v3710
    %3712 = vdwg.mxu0
    %3713 = vmatprep.subr.bf16.mxu0 %v2763
    %3714 = vmatpush1.bf16.msra.mxu0 %v2762
    %3715 = vmatprep.subr.bf16.mxu0 %v2757
    %3716 = vmatpush1.bf16.msra.mxu0 %v2756
    %3717 = vmatprep.subr.bf16.mxu0 %v2751
    %3718 = vmatpush1.bf16.msra.mxu0 %v2750
    %3719 = vmatprep.subr.bf16.mxu0 %v2745
    %3720 = vmatpush1.bf16.msra.mxu0 %v2744
    %3721 = vmatprep.subr.bf16.mxu0 %v2739
    %3722 = vmatpush1.bf16.msra.mxu0 %v2738
    %3723 = vmatprep.subr.bf16.mxu0 %v2733
    %3724 = vmatpush1.bf16.msra.mxu0 %v2732
    %3725 = vmatprep.subr.bf16.mxu0 %v2727
    %3726 = vmatpush1.bf16.msra.mxu0 %v2726
    %3727 = vmatprep.subr.bf16.mxu0 %v2721
    %3728 = vmatpush1.bf16.msra.mxu0 %v2720
    %3729 = vmatprep.subr.bf16.mxu0 %v2811
    %3730 = vmatpush2.bf16.msra.mxu0 %v2810
    %3731 = vmatprep.subr.bf16.mxu0 %v2805
    %3732 = vmatpush2.bf16.msra.mxu0 %v2804
    %3733 = vmatprep.subr.bf16.mxu0 %v2799
    %3734 = vmatpush2.bf16.msra.mxu0 %v2798
    %3735 = vmatprep.subr.bf16.mxu0 %v2793
    %3736 = vmatpush2.bf16.msra.mxu0 %v2792
    %3737 = vmatprep.subr.bf16.mxu0 %v2787
    %3738 = vmatpush2.bf16.msra.mxu0 %v2786
    %3739 = vmatprep.subr.bf16.mxu0 %v2781
    %3740 = vmatpush2.bf16.msra.mxu0 %v2780
    %3741 = vmatprep.subr.bf16.mxu0 %v2775
    %3742 = vmatpush2.bf16.msra.mxu0 %v2774
    %3743 = vmatprep.subr.bf16.mxu0 %v2769
    %3744 = vmatpush2.bf16.msra.mxu0 %v2768
    %3745 = vmatprep.mubr.bf16.mxu0 %v687
    %3746 = vmatmul.mubr.bf16.gmra.mxu0 %v686
    %v3747 = vpop.f32.mrf.mxu0
    %v3748 = vadd.f32 %v3705, %v3747
    %v3749 = vpop.f32.mrf.mxu0
    %v3750 = vadd.f32 %v3707, %v3749
    %v3751 = vpop.f32.mrf.mxu0
    %v3752 = vadd.f32 %v3709, %v3751
    %v3753 = vpop.f32.mrf.mxu0
    %v3754 = vadd.f32 %v3711, %v3753
    %3755 = vdwg.mxu0
    %3756 = vmatprep.subr.bf16.mxu0 %v2859
    %3757 = vmatpush1.bf16.msra.mxu0 %v2858
    %3758 = vmatprep.subr.bf16.mxu0 %v2853
    %3759 = vmatpush1.bf16.msra.mxu0 %v2852
    %3760 = vmatprep.subr.bf16.mxu0 %v2847
    %3761 = vmatpush1.bf16.msra.mxu0 %v2846
    %3762 = vmatprep.subr.bf16.mxu0 %v2841
    %3763 = vmatpush1.bf16.msra.mxu0 %v2840
    %3764 = vmatprep.subr.bf16.mxu0 %v2835
    %3765 = vmatpush1.bf16.msra.mxu0 %v2834
    %3766 = vmatprep.subr.bf16.mxu0 %v2829
    %3767 = vmatpush1.bf16.msra.mxu0 %v2828
    %3768 = vmatprep.subr.bf16.mxu0 %v2823
    %3769 = vmatpush1.bf16.msra.mxu0 %v2822
    %3770 = vmatprep.subr.bf16.mxu0 %v2817
    %3771 = vmatpush1.bf16.msra.mxu0 %v2816
    %3772 = vmatprep.subr.bf16.mxu0 %v2907
    %3773 = vmatpush2.bf16.msra.mxu0 %v2906
    %3774 = vmatprep.subr.bf16.mxu0 %v2901
    %3775 = vmatpush2.bf16.msra.mxu0 %v2900
    %3776 = vmatprep.subr.bf16.mxu0 %v2895
    %3777 = vmatpush2.bf16.msra.mxu0 %v2894
    %3778 = vmatprep.subr.bf16.mxu0 %v2889
    %3779 = vmatpush2.bf16.msra.mxu0 %v2888
    %3780 = vmatprep.subr.bf16.mxu0 %v2883
    %3781 = vmatpush2.bf16.msra.mxu0 %v2882
    %3782 = vmatprep.subr.bf16.mxu0 %v2877
    %3783 = vmatpush2.bf16.msra.mxu0 %v2876
    %3784 = vmatprep.subr.bf16.mxu0 %v2871
    %3785 = vmatpush2.bf16.msra.mxu0 %v2870
    %3786 = vmatprep.subr.bf16.mxu0 %v2865
    %3787 = vmatpush2.bf16.msra.mxu0 %v2864
    %3788 = vmatprep.mubr.bf16.mxu0 %v689
    %3789 = vmatmul.mubr.bf16.gmra.mxu0 %v688
    %v3790 = vpop.f32.mrf.mxu0
    %v3791 = vadd.f32 %v3748, %v3790
    %v3792 = vpop.f32.mrf.mxu0
    %v3793 = vadd.f32 %v3750, %v3792
    %v3794 = vpop.f32.mrf.mxu0
    %v3795 = vadd.f32 %v3752, %v3794
    %v3796 = vpop.f32.mrf.mxu0
    %v3797 = vadd.f32 %v3754, %v3796
    %3798 = vdwg.mxu0
    %3799 = vmatprep.subr.bf16.mxu0 %v2955
    %3800 = vmatpush1.bf16.msra.mxu0 %v2954
    %3801 = vmatprep.subr.bf16.mxu0 %v2949
    %3802 = vmatpush1.bf16.msra.mxu0 %v2948
    %3803 = vmatprep.subr.bf16.mxu0 %v2943
    %3804 = vmatpush1.bf16.msra.mxu0 %v2942
    %3805 = vmatprep.subr.bf16.mxu0 %v2937
    %3806 = vmatpush1.bf16.msra.mxu0 %v2936
    %3807 = vmatprep.subr.bf16.mxu0 %v2931
    %3808 = vmatpush1.bf16.msra.mxu0 %v2930
    %3809 = vmatprep.subr.bf16.mxu0 %v2925
    %3810 = vmatpush1.bf16.msra.mxu0 %v2924
    %3811 = vmatprep.subr.bf16.mxu0 %v2919
    %3812 = vmatpush1.bf16.msra.mxu0 %v2918
    %3813 = vmatprep.subr.bf16.mxu0 %v2913
    %3814 = vmatpush1.bf16.msra.mxu0 %v2912
    %3815 = vmatprep.subr.bf16.mxu0 %v3003
    %3816 = vmatpush2.bf16.msra.mxu0 %v3002
    %3817 = vmatprep.subr.bf16.mxu0 %v2997
    %3818 = vmatpush2.bf16.msra.mxu0 %v2996
    %3819 = vmatprep.subr.bf16.mxu0 %v2991
    %3820 = vmatpush2.bf16.msra.mxu0 %v2990
    %3821 = vmatprep.subr.bf16.mxu0 %v2985
    %3822 = vmatpush2.bf16.msra.mxu0 %v2984
    %3823 = vmatprep.subr.bf16.mxu0 %v2979
    %3824 = vmatpush2.bf16.msra.mxu0 %v2978
    %3825 = vmatprep.subr.bf16.mxu0 %v2973
    %3826 = vmatpush2.bf16.msra.mxu0 %v2972
    %3827 = vmatprep.subr.bf16.mxu0 %v2967
    %3828 = vmatpush2.bf16.msra.mxu0 %v2966
    %3829 = vmatprep.subr.bf16.mxu0 %v2961
    %3830 = vmatpush2.bf16.msra.mxu0 %v2960
    %3831 = vmatprep.mubr.bf16.mxu0 %v691
    %3832 = vmatmul.mubr.bf16.gmra.mxu0 %v690
    %v3833 = vpop.f32.mrf.mxu0
    %v3834 = vadd.f32 %v3791, %v3833
    %v3835 = vpop.f32.mrf.mxu0
    %v3836 = vadd.f32 %v3793, %v3835
    %v3837 = vpop.f32.mrf.mxu0
    %v3838 = vadd.f32 %v3795, %v3837
    %v3839 = vpop.f32.mrf.mxu0
    %v3840 = vadd.f32 %v3797, %v3839
    %3841 = vdwg.mxu0
    %3842 = vmatprep.subr.bf16.mxu0 %v2477
    %3843 = vmatpush1.bf16.msra.mxu0 %v2476
    %3844 = vmatprep.subr.bf16.mxu0 %v2471
    %3845 = vmatpush1.bf16.msra.mxu0 %v2470
    %3846 = vmatprep.subr.bf16.mxu0 %v2465
    %3847 = vmatpush1.bf16.msra.mxu0 %v2464
    %3848 = vmatprep.subr.bf16.mxu0 %v2459
    %3849 = vmatpush1.bf16.msra.mxu0 %v2458
    %3850 = vmatprep.subr.bf16.mxu0 %v2453
    %3851 = vmatpush1.bf16.msra.mxu0 %v2452
    %3852 = vmatprep.subr.bf16.mxu0 %v2447
    %3853 = vmatpush1.bf16.msra.mxu0 %v2446
    %3854 = vmatprep.subr.bf16.mxu0 %v2441
    %3855 = vmatpush1.bf16.msra.mxu0 %v2440
    %3856 = vmatprep.subr.bf16.mxu0 %v2435
    %3857 = vmatpush1.bf16.msra.mxu0 %v2434
    %3858 = vmatprep.subr.bf16.mxu0 %v2525
    %3859 = vmatpush2.bf16.msra.mxu0 %v2524
    %3860 = vmatprep.subr.bf16.mxu0 %v2519
    %3861 = vmatpush2.bf16.msra.mxu0 %v2518
    %3862 = vmatprep.subr.bf16.mxu0 %v2513
    %3863 = vmatpush2.bf16.msra.mxu0 %v2512
    %3864 = vmatprep.subr.bf16.mxu0 %v2507
    %3865 = vmatpush2.bf16.msra.mxu0 %v2506
    %3866 = vmatprep.subr.bf16.mxu0 %v2501
    %3867 = vmatpush2.bf16.msra.mxu0 %v2500
    %3868 = vmatprep.subr.bf16.mxu0 %v2495
    %3869 = vmatpush2.bf16.msra.mxu0 %v2494
    %3870 = vmatprep.subr.bf16.mxu0 %v2489
    %3871 = vmatpush2.bf16.msra.mxu0 %v2488
    %3872 = vmatprep.subr.bf16.mxu0 %v2483
    %3873 = vmatpush2.bf16.msra.mxu0 %v2482
    %3874 = vmatprep.mubr.bf16.mxu0 %v681
    %3875 = vmatmul.mubr.bf16.gmra.mxu0 %v680
    %v3876 = vpop.f32.mrf.mxu0
    %v3877 = vadd.f32 0.0, %v3876
    %v3878 = vpop.f32.mrf.mxu0
    %v3879 = vadd.f32 0.0, %v3878
    %v3880 = vpop.f32.mrf.mxu0
    %v3881 = vadd.f32 0.0, %v3880
    %v3882 = vpop.f32.mrf.mxu0
    %v3883 = vadd.f32 0.0, %v3882
    %3884 = vdwg.mxu0
    %3885 = vmatprep.subr.bf16.mxu0 %v2573
    %3886 = vmatpush1.bf16.msra.mxu0 %v2572
    %3887 = vmatprep.subr.bf16.mxu0 %v2567
    %3888 = vmatpush1.bf16.msra.mxu0 %v2566
    %3889 = vmatprep.subr.bf16.mxu0 %v2561
    %3890 = vmatpush1.bf16.msra.mxu0 %v2560
    %3891 = vmatprep.subr.bf16.mxu0 %v2555
    %3892 = vmatpush1.bf16.msra.mxu0 %v2554
    %3893 = vmatprep.subr.bf16.mxu0 %v2549
    %3894 = vmatpush1.bf16.msra.mxu0 %v2548
    %3895 = vmatprep.subr.bf16.mxu0 %v2543
    %3896 = vmatpush1.bf16.msra.mxu0 %v2542
    %3897 = vmatprep.subr.bf16.mxu0 %v2537
    %3898 = vmatpush1.bf16.msra.mxu0 %v2536
    %3899 = vmatprep.subr.bf16.mxu0 %v2531
    %3900 = vmatpush1.bf16.msra.mxu0 %v2530
    %3901 = vmatprep.subr.bf16.mxu0 %v2621
    %3902 = vmatpush2.bf16.msra.mxu0 %v2620
    %3903 = vmatprep.subr.bf16.mxu0 %v2615
    %3904 = vmatpush2.bf16.msra.mxu0 %v2614
    %3905 = vmatprep.subr.bf16.mxu0 %v2609
    %3906 = vmatpush2.bf16.msra.mxu0 %v2608
    %3907 = vmatprep.subr.bf16.mxu0 %v2603
    %3908 = vmatpush2.bf16.msra.mxu0 %v2602
    %3909 = vmatprep.subr.bf16.mxu0 %v2597
    %3910 = vmatpush2.bf16.msra.mxu0 %v2596
    %3911 = vmatprep.subr.bf16.mxu0 %v2591
    %3912 = vmatpush2.bf16.msra.mxu0 %v2590
    %3913 = vmatprep.subr.bf16.mxu0 %v2585
    %3914 = vmatpush2.bf16.msra.mxu0 %v2584
    %3915 = vmatprep.subr.bf16.mxu0 %v2579
    %3916 = vmatpush2.bf16.msra.mxu0 %v2578
    %3917 = vmatprep.mubr.bf16.mxu0 %v683
    %3918 = vmatmul.mubr.bf16.gmra.mxu0 %v682
    %v3919 = vpop.f32.mrf.mxu0
    %v3920 = vadd.f32 %v3877, %v3919
    %v3921 = vpop.f32.mrf.mxu0
    %v3922 = vadd.f32 %v3879, %v3921
    %v3923 = vpop.f32.mrf.mxu0
    %v3924 = vadd.f32 %v3881, %v3923
    %v3925 = vpop.f32.mrf.mxu0
    %v3926 = vadd.f32 %v3883, %v3925
    %3927 = vdwg.mxu0
    %3928 = vmatprep.subr.bf16.mxu0 %v2669
    %3929 = vmatpush1.bf16.msra.mxu0 %v2668
    %3930 = vmatprep.subr.bf16.mxu0 %v2663
    %3931 = vmatpush1.bf16.msra.mxu0 %v2662
    %3932 = vmatprep.subr.bf16.mxu0 %v2657
    %3933 = vmatpush1.bf16.msra.mxu0 %v2656
    %3934 = vmatprep.subr.bf16.mxu0 %v2651
    %3935 = vmatpush1.bf16.msra.mxu0 %v2650
    %3936 = vmatprep.subr.bf16.mxu0 %v2645
    %3937 = vmatpush1.bf16.msra.mxu0 %v2644
    %3938 = vmatprep.subr.bf16.mxu0 %v2639
    %3939 = vmatpush1.bf16.msra.mxu0 %v2638
    %3940 = vmatprep.subr.bf16.mxu0 %v2633
    %3941 = vmatpush1.bf16.msra.mxu0 %v2632
    %3942 = vmatprep.subr.bf16.mxu0 %v2627
    %3943 = vmatpush1.bf16.msra.mxu0 %v2626
    %3944 = vmatprep.subr.bf16.mxu0 %v2717
    %3945 = vmatpush2.bf16.msra.mxu0 %v2716
    %3946 = vmatprep.subr.bf16.mxu0 %v2711
    %3947 = vmatpush2.bf16.msra.mxu0 %v2710
    %3948 = vmatprep.subr.bf16.mxu0 %v2705
    %3949 = vmatpush2.bf16.msra.mxu0 %v2704
    %3950 = vmatprep.subr.bf16.mxu0 %v2699
    %3951 = vmatpush2.bf16.msra.mxu0 %v2698
    %3952 = vmatprep.subr.bf16.mxu0 %v2693
    %3953 = vmatpush2.bf16.msra.mxu0 %v2692
    %3954 = vmatprep.subr.bf16.mxu0 %v2687
    %3955 = vmatpush2.bf16.msra.mxu0 %v2686
    %3956 = vmatprep.subr.bf16.mxu0 %v2681
    %3957 = vmatpush2.bf16.msra.mxu0 %v2680
    %3958 = vmatprep.subr.bf16.mxu0 %v2675
    %3959 = vmatpush2.bf16.msra.mxu0 %v2674
    %3960 = vmatprep.mubr.bf16.mxu0 %v685
    %3961 = vmatmul.mubr.bf16.gmra.mxu0 %v684
    %v3962 = vpop.f32.mrf.mxu0
    %v3963 = vadd.f32 %v3920, %v3962
    %v3964 = vpop.f32.mrf.mxu0
    %v3965 = vadd.f32 %v3922, %v3964
    %v3966 = vpop.f32.mrf.mxu0
    %v3967 = vadd.f32 %v3924, %v3966
    %v3968 = vpop.f32.mrf.mxu0
    %v3969 = vadd.f32 %v3926, %v3968
    %3970 = vdwg.mxu0
    %3971 = vmatprep.subr.bf16.mxu0 %v2765
    %3972 = vmatpush1.bf16.msra.mxu0 %v2764
    %3973 = vmatprep.subr.bf16.mxu0 %v2759
    %3974 = vmatpush1.bf16.msra.mxu0 %v2758
    %3975 = vmatprep.subr.bf16.mxu0 %v2753
    %3976 = vmatpush1.bf16.msra.mxu0 %v2752
    %3977 = vmatprep.subr.bf16.mxu0 %v2747
    %3978 = vmatpush1.bf16.msra.mxu0 %v2746
    %3979 = vmatprep.subr.bf16.mxu0 %v2741
    %3980 = vmatpush1.bf16.msra.mxu0 %v2740
    %3981 = vmatprep.subr.bf16.mxu0 %v2735
    %3982 = vmatpush1.bf16.msra.mxu0 %v2734
    %3983 = vmatprep.subr.bf16.mxu0 %v2729
    %3984 = vmatpush1.bf16.msra.mxu0 %v2728
    %3985 = vmatprep.subr.bf16.mxu0 %v2723
    %3986 = vmatpush1.bf16.msra.mxu0 %v2722
    %3987 = vmatprep.subr.bf16.mxu0 %v2813
    %3988 = vmatpush2.bf16.msra.mxu0 %v2812
    %3989 = vmatprep.subr.bf16.mxu0 %v2807
    %3990 = vmatpush2.bf16.msra.mxu0 %v2806
    %3991 = vmatprep.subr.bf16.mxu0 %v2801
    %3992 = vmatpush2.bf16.msra.mxu0 %v2800
    %3993 = vmatprep.subr.bf16.mxu0 %v2795
    %3994 = vmatpush2.bf16.msra.mxu0 %v2794
    %3995 = vmatprep.subr.bf16.mxu0 %v2789
    %3996 = vmatpush2.bf16.msra.mxu0 %v2788
    %3997 = vmatprep.subr.bf16.mxu0 %v2783
    %3998 = vmatpush2.bf16.msra.mxu0 %v2782
    %3999 = vmatprep.subr.bf16.mxu0 %v2777
    %4000 = vmatpush2.bf16.msra.mxu0 %v2776
    %4001 = vmatprep.subr.bf16.mxu0 %v2771
    %4002 = vmatpush2.bf16.msra.mxu0 %v2770
    %4003 = vmatprep.mubr.bf16.mxu0 %v687
    %4004 = vmatmul.mubr.bf16.gmra.mxu0 %v686
    %v4005 = vpop.f32.mrf.mxu0
    %v4006 = vadd.f32 %v3963, %v4005
    %v4007 = vpop.f32.mrf.mxu0
    %v4008 = vadd.f32 %v3965, %v4007
    %v4009 = vpop.f32.mrf.mxu0
    %v4010 = vadd.f32 %v3967, %v4009
    %v4011 = vpop.f32.mrf.mxu0
    %v4012 = vadd.f32 %v3969, %v4011
    %4013 = vdwg.mxu0
    %4014 = vmatprep.subr.bf16.mxu0 %v2861
    %4015 = vmatpush1.bf16.msra.mxu0 %v2860
    %4016 = vmatprep.subr.bf16.mxu0 %v2855
    %4017 = vmatpush1.bf16.msra.mxu0 %v2854
    %4018 = vmatprep.subr.bf16.mxu0 %v2849
    %4019 = vmatpush1.bf16.msra.mxu0 %v2848
    %4020 = vmatprep.subr.bf16.mxu0 %v2843
    %4021 = vmatpush1.bf16.msra.mxu0 %v2842
    %4022 = vmatprep.subr.bf16.mxu0 %v2837
    %4023 = vmatpush1.bf16.msra.mxu0 %v2836
    %4024 = vmatprep.subr.bf16.mxu0 %v2831
    %4025 = vmatpush1.bf16.msra.mxu0 %v2830
    %4026 = vmatprep.subr.bf16.mxu0 %v2825
    %4027 = vmatpush1.bf16.msra.mxu0 %v2824
    %4028 = vmatprep.subr.bf16.mxu0 %v2819
    %4029 = vmatpush1.bf16.msra.mxu0 %v2818
    %4030 = vmatprep.subr.bf16.mxu0 %v2909
    %4031 = vmatpush2.bf16.msra.mxu0 %v2908
    %4032 = vmatprep.subr.bf16.mxu0 %v2903
    %4033 = vmatpush2.bf16.msra.mxu0 %v2902
    %4034 = vmatprep.subr.bf16.mxu0 %v2897
    %4035 = vmatpush2.bf16.msra.mxu0 %v2896
    %4036 = vmatprep.subr.bf16.mxu0 %v2891
    %4037 = vmatpush2.bf16.msra.mxu0 %v2890
    %4038 = vmatprep.subr.bf16.mxu0 %v2885
    %4039 = vmatpush2.bf16.msra.mxu0 %v2884
    %4040 = vmatprep.subr.bf16.mxu0 %v2879
    %4041 = vmatpush2.bf16.msra.mxu0 %v2878
    %4042 = vmatprep.subr.bf16.mxu0 %v2873
    %4043 = vmatpush2.bf16.msra.mxu0 %v2872
    %4044 = vmatprep.subr.bf16.mxu0 %v2867
    %4045 = vmatpush2.bf16.msra.mxu0 %v2866
    %4046 = vmatprep.mubr.bf16.mxu0 %v689
    %4047 = vmatmul.mubr.bf16.gmra.mxu0 %v688
    %v4048 = vpop.f32.mrf.mxu0
    %v4049 = vadd.f32 %v4006, %v4048
    %v4050 = vpop.f32.mrf.mxu0
    %v4051 = vadd.f32 %v4008, %v4050
    %v4052 = vpop.f32.mrf.mxu0
    %v4053 = vadd.f32 %v4010, %v4052
    %v4054 = vpop.f32.mrf.mxu0
    %v4055 = vadd.f32 %v4012, %v4054
    %4056 = vdwg.mxu0
    %4057 = vmatprep.subr.bf16.mxu0 %v2957
    %4058 = vmatpush1.bf16.msra.mxu0 %v2956
    %4059 = vmatprep.subr.bf16.mxu0 %v2951
    %4060 = vmatpush1.bf16.msra.mxu0 %v2950
    %4061 = vmatprep.subr.bf16.mxu0 %v2945
    %4062 = vmatpush1.bf16.msra.mxu0 %v2944
    %4063 = vmatprep.subr.bf16.mxu0 %v2939
    %4064 = vmatpush1.bf16.msra.mxu0 %v2938
    %4065 = vmatprep.subr.bf16.mxu0 %v2933
    %4066 = vmatpush1.bf16.msra.mxu0 %v2932
    %4067 = vmatprep.subr.bf16.mxu0 %v2927
    %4068 = vmatpush1.bf16.msra.mxu0 %v2926
    %4069 = vmatprep.subr.bf16.mxu0 %v2921
    %4070 = vmatpush1.bf16.msra.mxu0 %v2920
    %4071 = vmatprep.subr.bf16.mxu0 %v2915
    %4072 = vmatpush1.bf16.msra.mxu0 %v2914
    %4073 = vmatprep.subr.bf16.mxu0 %v3005
    %4074 = vmatpush2.bf16.msra.mxu0 %v3004
    %4075 = vmatprep.subr.bf16.mxu0 %v2999
    %4076 = vmatpush2.bf16.msra.mxu0 %v2998
    %4077 = vmatprep.subr.bf16.mxu0 %v2993
    %4078 = vmatpush2.bf16.msra.mxu0 %v2992
    %4079 = vmatprep.subr.bf16.mxu0 %v2987
    %4080 = vmatpush2.bf16.msra.mxu0 %v2986
    %4081 = vmatprep.subr.bf16.mxu0 %v2981
    %4082 = vmatpush2.bf16.msra.mxu0 %v2980
    %4083 = vmatprep.subr.bf16.mxu0 %v2975
    %4084 = vmatpush2.bf16.msra.mxu0 %v2974
    %4085 = vmatprep.subr.bf16.mxu0 %v2969
    %4086 = vmatpush2.bf16.msra.mxu0 %v2968
    %4087 = vmatprep.subr.bf16.mxu0 %v2963
    %4088 = vmatpush2.bf16.msra.mxu0 %v2962
    %4089 = vmatprep.mubr.bf16.mxu0 %v691
    %4090 = vmatmul.mubr.bf16.gmra.mxu0 %v690
    %v4091 = vpop.f32.mrf.mxu0
    %v4092 = vadd.f32 %v4049, %v4091
    %v4093 = vpop.f32.mrf.mxu0
    %v4094 = vadd.f32 %v4051, %v4093
    %v4095 = vpop.f32.mrf.mxu0
    %v4096 = vadd.f32 %v4053, %v4095
    %v4097 = vpop.f32.mrf.mxu0
    %v4098 = vadd.f32 %v4055, %v4097
    %4099 = vdwg.mxu0
    %4100 = vmatprep.subr.bf16.mxu0 %v2479
    %4101 = vmatpush1.bf16.msra.mxu0 %v2478
    %4102 = vmatprep.subr.bf16.mxu0 %v2473
    %4103 = vmatpush1.bf16.msra.mxu0 %v2472
    %4104 = vmatprep.subr.bf16.mxu0 %v2467
    %4105 = vmatpush1.bf16.msra.mxu0 %v2466
    %4106 = vmatprep.subr.bf16.mxu0 %v2461
    %4107 = vmatpush1.bf16.msra.mxu0 %v2460
    %4108 = vmatprep.subr.bf16.mxu0 %v2455
    %4109 = vmatpush1.bf16.msra.mxu0 %v2454
    %4110 = vmatprep.subr.bf16.mxu0 %v2449
    %4111 = vmatpush1.bf16.msra.mxu0 %v2448
    %4112 = vmatprep.subr.bf16.mxu0 %v2443
    %4113 = vmatpush1.bf16.msra.mxu0 %v2442
    %4114 = vmatprep.subr.bf16.mxu0 %v2437
    %4115 = vmatpush1.bf16.msra.mxu0 %v2436
    %4116 = vmatprep.subr.bf16.mxu0 %v2527
    %4117 = vmatpush2.bf16.msra.mxu0 %v2526
    %4118 = vmatprep.subr.bf16.mxu0 %v2521
    %4119 = vmatpush2.bf16.msra.mxu0 %v2520
    %4120 = vmatprep.subr.bf16.mxu0 %v2515
    %4121 = vmatpush2.bf16.msra.mxu0 %v2514
    %4122 = vmatprep.subr.bf16.mxu0 %v2509
    %4123 = vmatpush2.bf16.msra.mxu0 %v2508
    %4124 = vmatprep.subr.bf16.mxu0 %v2503
    %4125 = vmatpush2.bf16.msra.mxu0 %v2502
    %4126 = vmatprep.subr.bf16.mxu0 %v2497
    %4127 = vmatpush2.bf16.msra.mxu0 %v2496
    %4128 = vmatprep.subr.bf16.mxu0 %v2491
    %4129 = vmatpush2.bf16.msra.mxu0 %v2490
    %4130 = vmatprep.subr.bf16.mxu0 %v2485
    %4131 = vmatpush2.bf16.msra.mxu0 %v2484
    %4132 = vmatprep.mubr.bf16.mxu0 %v681
    %4133 = vmatmul.mubr.bf16.gmra.mxu0 %v680
    %v4134 = vpop.f32.mrf.mxu0
    %v4135 = vadd.f32 0.0, %v4134
    %v4136 = vpop.f32.mrf.mxu0
    %v4137 = vadd.f32 0.0, %v4136
    %v4138 = vpop.f32.mrf.mxu0
    %v4139 = vadd.f32 0.0, %v4138
    %v4140 = vpop.f32.mrf.mxu0
    %v4141 = vadd.f32 0.0, %v4140
    %4142 = vdwg.mxu0
    %4143 = vmatprep.subr.bf16.mxu0 %v2575
    %4144 = vmatpush1.bf16.msra.mxu0 %v2574
    %4145 = vmatprep.subr.bf16.mxu0 %v2569
    %4146 = vmatpush1.bf16.msra.mxu0 %v2568
    %4147 = vmatprep.subr.bf16.mxu0 %v2563
    %4148 = vmatpush1.bf16.msra.mxu0 %v2562
    %4149 = vmatprep.subr.bf16.mxu0 %v2557
    %4150 = vmatpush1.bf16.msra.mxu0 %v2556
    %4151 = vmatprep.subr.bf16.mxu0 %v2551
    %4152 = vmatpush1.bf16.msra.mxu0 %v2550
    %4153 = vmatprep.subr.bf16.mxu0 %v2545
    %4154 = vmatpush1.bf16.msra.mxu0 %v2544
    %4155 = vmatprep.subr.bf16.mxu0 %v2539
    %4156 = vmatpush1.bf16.msra.mxu0 %v2538
    %4157 = vmatprep.subr.bf16.mxu0 %v2533
    %4158 = vmatpush1.bf16.msra.mxu0 %v2532
    %4159 = vmatprep.subr.bf16.mxu0 %v2623
    %4160 = vmatpush2.bf16.msra.mxu0 %v2622
    %4161 = vmatprep.subr.bf16.mxu0 %v2617
    %4162 = vmatpush2.bf16.msra.mxu0 %v2616
    %4163 = vmatprep.subr.bf16.mxu0 %v2611
    %4164 = vmatpush2.bf16.msra.mxu0 %v2610
    %4165 = vmatprep.subr.bf16.mxu0 %v2605
    %4166 = vmatpush2.bf16.msra.mxu0 %v2604
    %4167 = vmatprep.subr.bf16.mxu0 %v2599
    %4168 = vmatpush2.bf16.msra.mxu0 %v2598
    %4169 = vmatprep.subr.bf16.mxu0 %v2593
    %4170 = vmatpush2.bf16.msra.mxu0 %v2592
    %4171 = vmatprep.subr.bf16.mxu0 %v2587
    %4172 = vmatpush2.bf16.msra.mxu0 %v2586
    %4173 = vmatprep.subr.bf16.mxu0 %v2581
    %4174 = vmatpush2.bf16.msra.mxu0 %v2580
    %4175 = vmatprep.mubr.bf16.mxu0 %v683
    %4176 = vmatmul.mubr.bf16.gmra.mxu0 %v682
    %v4177 = vpop.f32.mrf.mxu0
    %v4178 = vadd.f32 %v4135, %v4177
    %v4179 = vpop.f32.mrf.mxu0
    %v4180 = vadd.f32 %v4137, %v4179
    %v4181 = vpop.f32.mrf.mxu0
    %v4182 = vadd.f32 %v4139, %v4181
    %v4183 = vpop.f32.mrf.mxu0
    %v4184 = vadd.f32 %v4141, %v4183
    %4185 = vdwg.mxu0
    %4186 = vmatprep.subr.bf16.mxu0 %v2671
    %4187 = vmatpush1.bf16.msra.mxu0 %v2670
    %4188 = vmatprep.subr.bf16.mxu0 %v2665
    %4189 = vmatpush1.bf16.msra.mxu0 %v2664
    %4190 = vmatprep.subr.bf16.mxu0 %v2659
    %4191 = vmatpush1.bf16.msra.mxu0 %v2658
    %4192 = vmatprep.subr.bf16.mxu0 %v2653
    %4193 = vmatpush1.bf16.msra.mxu0 %v2652
    %4194 = vmatprep.subr.bf16.mxu0 %v2647
    %4195 = vmatpush1.bf16.msra.mxu0 %v2646
    %4196 = vmatprep.subr.bf16.mxu0 %v2641
    %4197 = vmatpush1.bf16.msra.mxu0 %v2640
    %4198 = vmatprep.subr.bf16.mxu0 %v2635
    %4199 = vmatpush1.bf16.msra.mxu0 %v2634
    %4200 = vmatprep.subr.bf16.mxu0 %v2629
    %4201 = vmatpush1.bf16.msra.mxu0 %v2628
    %4202 = vmatprep.subr.bf16.mxu0 %v2719
    %4203 = vmatpush2.bf16.msra.mxu0 %v2718
    %4204 = vmatprep.subr.bf16.mxu0 %v2713
    %4205 = vmatpush2.bf16.msra.mxu0 %v2712
    %4206 = vmatprep.subr.bf16.mxu0 %v2707
    %4207 = vmatpush2.bf16.msra.mxu0 %v2706
    %4208 = vmatprep.subr.bf16.mxu0 %v2701
    %4209 = vmatpush2.bf16.msra.mxu0 %v2700
    %4210 = vmatprep.subr.bf16.mxu0 %v2695
    %4211 = vmatpush2.bf16.msra.mxu0 %v2694
    %4212 = vmatprep.subr.bf16.mxu0 %v2689
    %4213 = vmatpush2.bf16.msra.mxu0 %v2688
    %4214 = vmatprep.subr.bf16.mxu0 %v2683
    %4215 = vmatpush2.bf16.msra.mxu0 %v2682
    %4216 = vmatprep.subr.bf16.mxu0 %v2677
    %4217 = vmatpush2.bf16.msra.mxu0 %v2676
    %4218 = vmatprep.mubr.bf16.mxu0 %v685
    %4219 = vmatmul.mubr.bf16.gmra.mxu0 %v684
    %v4220 = vpop.f32.mrf.mxu0
    %v4221 = vadd.f32 %v4178, %v4220
    %v4222 = vpop.f32.mrf.mxu0
    %v4223 = vadd.f32 %v4180, %v4222
    %v4224 = vpop.f32.mrf.mxu0
    %v4225 = vadd.f32 %v4182, %v4224
    %v4226 = vpop.f32.mrf.mxu0
    %v4227 = vadd.f32 %v4184, %v4226
    %4228 = vdwg.mxu0
    %4229 = vmatprep.subr.bf16.mxu0 %v2767
    %4230 = vmatpush1.bf16.msra.mxu0 %v2766
    %4231 = vmatprep.subr.bf16.mxu0 %v2761
    %4232 = vmatpush1.bf16.msra.mxu0 %v2760
    %4233 = vmatprep.subr.bf16.mxu0 %v2755
    %4234 = vmatpush1.bf16.msra.mxu0 %v2754
    %4235 = vmatprep.subr.bf16.mxu0 %v2749
    %4236 = vmatpush1.bf16.msra.mxu0 %v2748
    %4237 = vmatprep.subr.bf16.mxu0 %v2743
    %4238 = vmatpush1.bf16.msra.mxu0 %v2742
    %4239 = vmatprep.subr.bf16.mxu0 %v2737
    %4240 = vmatpush1.bf16.msra.mxu0 %v2736
    %4241 = vmatprep.subr.bf16.mxu0 %v2731
    %4242 = vmatpush1.bf16.msra.mxu0 %v2730
    %4243 = vmatprep.subr.bf16.mxu0 %v2725
    %4244 = vmatpush1.bf16.msra.mxu0 %v2724
    %4245 = vmatprep.subr.bf16.mxu0 %v2815
    %4246 = vmatpush2.bf16.msra.mxu0 %v2814
    %4247 = vmatprep.subr.bf16.mxu0 %v2809
    %4248 = vmatpush2.bf16.msra.mxu0 %v2808
    %4249 = vmatprep.subr.bf16.mxu0 %v2803
    %4250 = vmatpush2.bf16.msra.mxu0 %v2802
    %4251 = vmatprep.subr.bf16.mxu0 %v2797
    %4252 = vmatpush2.bf16.msra.mxu0 %v2796
    %4253 = vmatprep.subr.bf16.mxu0 %v2791
    %4254 = vmatpush2.bf16.msra.mxu0 %v2790
    %4255 = vmatprep.subr.bf16.mxu0 %v2785
    %4256 = vmatpush2.bf16.msra.mxu0 %v2784
    %4257 = vmatprep.subr.bf16.mxu0 %v2779
    %4258 = vmatpush2.bf16.msra.mxu0 %v2778
    %4259 = vmatprep.subr.bf16.mxu0 %v2773
    %4260 = vmatpush2.bf16.msra.mxu0 %v2772
    %4261 = vmatprep.mubr.bf16.mxu0 %v687
    %4262 = vmatmul.mubr.bf16.gmra.mxu0 %v686
    %v4263 = vpop.f32.mrf.mxu0
    %v4264 = vadd.f32 %v4221, %v4263
    %v4265 = vpop.f32.mrf.mxu0
    %v4266 = vadd.f32 %v4223, %v4265
    %v4267 = vpop.f32.mrf.mxu0
    %v4268 = vadd.f32 %v4225, %v4267
    %v4269 = vpop.f32.mrf.mxu0
    %v4270 = vadd.f32 %v4227, %v4269
    %4271 = vdwg.mxu0
    %4272 = vmatprep.subr.bf16.mxu0 %v2863
    %4273 = vmatpush1.bf16.msra.mxu0 %v2862
    %4274 = vmatprep.subr.bf16.mxu0 %v2857
    %4275 = vmatpush1.bf16.msra.mxu0 %v2856
    %4276 = vmatprep.subr.bf16.mxu0 %v2851
    %4277 = vmatpush1.bf16.msra.mxu0 %v2850
    %4278 = vmatprep.subr.bf16.mxu0 %v2845
    %4279 = vmatpush1.bf16.msra.mxu0 %v2844
    %4280 = vmatprep.subr.bf16.mxu0 %v2839
    %4281 = vmatpush1.bf16.msra.mxu0 %v2838
    %4282 = vmatprep.subr.bf16.mxu0 %v2833
    %4283 = vmatpush1.bf16.msra.mxu0 %v2832
    %4284 = vmatprep.subr.bf16.mxu0 %v2827
    %4285 = vmatpush1.bf16.msra.mxu0 %v2826
    %4286 = vmatprep.subr.bf16.mxu0 %v2821
    %4287 = vmatpush1.bf16.msra.mxu0 %v2820
    %4288 = vmatprep.subr.bf16.mxu0 %v2911
    %4289 = vmatpush2.bf16.msra.mxu0 %v2910
    %4290 = vmatprep.subr.bf16.mxu0 %v2905
    %4291 = vmatpush2.bf16.msra.mxu0 %v2904
    %4292 = vmatprep.subr.bf16.mxu0 %v2899
    %4293 = vmatpush2.bf16.msra.mxu0 %v2898
    %4294 = vmatprep.subr.bf16.mxu0 %v2893
    %4295 = vmatpush2.bf16.msra.mxu0 %v2892
    %4296 = vmatprep.subr.bf16.mxu0 %v2887
    %4297 = vmatpush2.bf16.msra.mxu0 %v2886
    %4298 = vmatprep.subr.bf16.mxu0 %v2881
    %4299 = vmatpush2.bf16.msra.mxu0 %v2880
    %4300 = vmatprep.subr.bf16.mxu0 %v2875
    %4301 = vmatpush2.bf16.msra.mxu0 %v2874
    %4302 = vmatprep.subr.bf16.mxu0 %v2869
    %4303 = vmatpush2.bf16.msra.mxu0 %v2868
    %4304 = vmatprep.mubr.bf16.mxu0 %v689
    %4305 = vmatmul.mubr.bf16.gmra.mxu0 %v688
    %v4306 = vpop.f32.mrf.mxu0
    %v4307 = vadd.f32 %v4264, %v4306
    %v4308 = vpop.f32.mrf.mxu0
    %v4309 = vadd.f32 %v4266, %v4308
    %v4310 = vpop.f32.mrf.mxu0
    %v4311 = vadd.f32 %v4268, %v4310
    %v4312 = vpop.f32.mrf.mxu0
    %v4313 = vadd.f32 %v4270, %v4312
    %4314 = vdwg.mxu0
    %4315 = vmatprep.subr.bf16.mxu0 %v2959
    %4316 = vmatpush1.bf16.msra.mxu0 %v2958
    %4317 = vmatprep.subr.bf16.mxu0 %v2953
    %4318 = vmatpush1.bf16.msra.mxu0 %v2952
    %4319 = vmatprep.subr.bf16.mxu0 %v2947
    %4320 = vmatpush1.bf16.msra.mxu0 %v2946
    %4321 = vmatprep.subr.bf16.mxu0 %v2941
    %4322 = vmatpush1.bf16.msra.mxu0 %v2940
    %4323 = vmatprep.subr.bf16.mxu0 %v2935
    %4324 = vmatpush1.bf16.msra.mxu0 %v2934
    %4325 = vmatprep.subr.bf16.mxu0 %v2929
    %4326 = vmatpush1.bf16.msra.mxu0 %v2928
    %4327 = vmatprep.subr.bf16.mxu0 %v2923
    %4328 = vmatpush1.bf16.msra.mxu0 %v2922
    %4329 = vmatprep.subr.bf16.mxu0 %v2917
    %4330 = vmatpush1.bf16.msra.mxu0 %v2916
    %4331 = vmatprep.subr.bf16.mxu0 %v3007
    %4332 = vmatpush2.bf16.msra.mxu0 %v3006
    %4333 = vmatprep.subr.bf16.mxu0 %v3001
    %4334 = vmatpush2.bf16.msra.mxu0 %v3000
    %4335 = vmatprep.subr.bf16.mxu0 %v2995
    %4336 = vmatpush2.bf16.msra.mxu0 %v2994
    %4337 = vmatprep.subr.bf16.mxu0 %v2989
    %4338 = vmatpush2.bf16.msra.mxu0 %v2988
    %4339 = vmatprep.subr.bf16.mxu0 %v2983
    %4340 = vmatpush2.bf16.msra.mxu0 %v2982
    %4341 = vmatprep.subr.bf16.mxu0 %v2977
    %4342 = vmatpush2.bf16.msra.mxu0 %v2976
    %4343 = vmatprep.subr.bf16.mxu0 %v2971
    %4344 = vmatpush2.bf16.msra.mxu0 %v2970
    %4345 = vmatprep.subr.bf16.mxu0 %v2965
    %4346 = vmatpush2.bf16.msra.mxu0 %v2964
    %4347 = vmatprep.mubr.bf16.mxu0 %v691
    %4348 = vmatmul.mubr.bf16.gmra.mxu0 %v690
    %v4349 = vpop.f32.mrf.mxu0
    %v4350 = vadd.f32 %v4307, %v4349
    %v4351 = vpop.f32.mrf.mxu0
    %v4352 = vadd.f32 %v4309, %v4351
    %v4353 = vpop.f32.mrf.mxu0
    %v4354 = vadd.f32 %v4311, %v4353
    %v4355 = vpop.f32.mrf.mxu0
    %v4356 = vadd.f32 %v4313, %v4355
    %4357 = vdwg.mxu0
    %v4359 = vlaneseq
    %v4360 = vshrl.u32 %v4359, 7
    %v4361 = vsub.s32 0, %v4360
    %v4362 = vrot.slane %v630, %v4361
    %v4363 = vlaneseq
    %v4364 = vshrl.u32 %v4363, 7
    %v4365 = vsub.s32 1, %v4364
    %v4366 = vrot.slane %v630, %v4365
    %v4367 = vlaneseq
    %v4368 = vshrl.u32 %v4367, 7
    %v4369 = vsub.s32 2, %v4368
    %v4370 = vrot.slane %v630, %v4369
    %v4371 = vlaneseq
    %v4372 = vshrl.u32 %v4371, 7
    %v4373 = vsub.s32 3, %v4372
    %v4374 = vrot.slane %v630, %v4373
    %v4375 = vlaneseq
    %v4376 = vshrl.u32 %v4375, 7
    %v4377 = vsub.s32 4, %v4376
    %v4378 = vrot.slane %v630, %v4377
    %v4379 = vlaneseq
    %v4380 = vshrl.u32 %v4379, 7
    %v4381 = vsub.s32 5, %v4380
    %v4382 = vrot.slane %v630, %v4381
    %v4389 = vmul.f32 %v3834, %v4362
    %v4390 = vmul.f32 %v3836, %v4366
    %v4391 = vmul.f32 %v4092, %v4370
    %v4392 = vmul.f32 %v4094, %v4374
    %v4393 = vmul.f32 %v4350, %v4378
    %v4394 = vmul.f32 %v4352, %v4382
    %v4395 = vmul.f32 %v3838, %v4362
    %v4396 = vmul.f32 %v3840, %v4366
    %v4397 = vmul.f32 %v4096, %v4370
    %v4398 = vmul.f32 %v4098, %v4374
    %v4399 = vmul.f32 %v4354, %v4378
    %v4400 = vmul.f32 %v4356, %v4382
    %v4402 = vlaneseq
    %v4403 = vshrl.u32 %v4402, 7
    %v4404 = vsub.s32 0, %v4403
    %v4405 = vrot.slane %v631, %v4404
    %v4406 = vlaneseq
    %v4407 = vshrl.u32 %v4406, 7
    %v4408 = vsub.s32 1, %v4407
    %v4409 = vrot.slane %v631, %v4408
    %v4410 = vlaneseq
    %v4411 = vshrl.u32 %v4410, 7
    %v4412 = vsub.s32 2, %v4411
    %v4413 = vrot.slane %v631, %v4412
    %v4414 = vlaneseq
    %v4415 = vshrl.u32 %v4414, 7
    %v4416 = vsub.s32 3, %v4415
    %v4417 = vrot.slane %v631, %v4416
    %v4418 = vlaneseq
    %v4419 = vshrl.u32 %v4418, 7
    %v4420 = vsub.s32 4, %v4419
    %v4421 = vrot.slane %v631, %v4420
    %v4422 = vlaneseq
    %v4423 = vshrl.u32 %v4422, 7
    %v4424 = vsub.s32 5, %v4423
    %v4425 = vrot.slane %v631, %v4424
    %v4432 = vadd.f32 %v4389, %v4405
    %v4433 = vadd.f32 %v4390, %v4409
    %v4434 = vadd.f32 %v4391, %v4413
    %v4435 = vadd.f32 %v4392, %v4417
    %v4436 = vadd.f32 %v4393, %v4421
    %v4437 = vadd.f32 %v4394, %v4425
    %v4438 = vadd.f32 %v4395, %v4405
    %v4439 = vadd.f32 %v4396, %v4409
    %v4440 = vadd.f32 %v4397, %v4413
    %v4441 = vadd.f32 %v4398, %v4417
    %v4442 = vadd.f32 %v4399, %v4421
    %v4443 = vadd.f32 %v4400, %v4425
    %v4444 = vmax.f32 %v4432, 0.0
    %v4445 = vmax.f32 %v4433, 0.0
    %v4446 = vmax.f32 %v4434, 0.0
    %v4447 = vmax.f32 %v4435, 0.0
    %v4448 = vmax.f32 %v4436, 0.0
    %v4449 = vmax.f32 %v4437, 0.0
    %v4450 = vmax.f32 %v4438, 0.0
    %v4451 = vmax.f32 %v4439, 0.0
    %v4452 = vmax.f32 %v4440, 0.0
    %v4453 = vmax.f32 %v4441, 0.0
    %v4454 = vmax.f32 %v4442, 0.0
    %v4455 = vmax.f32 %v4443, 0.0
    %s4456 = scalar_lea.vmem %s0, 96
    %v4457 = vld [vmem:[%s4456] sm:$0xff]
    %v4458 = vld [vmem:[%s4456 + $0x8] sm:$0xff]
    %v4459 = vld [vmem:[%s4456 + $0x10] sm:$0xff]
    %v4460 = vld [vmem:[%s4456 + $0x18] sm:$0xff]
    %v4461 = vld [vmem:[%s4456 + $0x20] sm:$0xff]
    %v4462 = vld [vmem:[%s4456 + $0x28] sm:$0xff]
    %v4463 = vld [vmem:[%s4456 + $0x30] sm:$0xff]
    %v4464 = vld [vmem:[%s4456 + $0x38] sm:$0xff]
    %v4465 = vld [vmem:[%s4456 + $0x40] sm:$0xff]
    %v4466 = vld [vmem:[%s4456 + $0x48] sm:$0xff]
    %v4467 = vld [vmem:[%s4456 + $0x50] sm:$0xff]
    %v4468 = vld [vmem:[%s4456 + $0x58] sm:$0xff]
    %v4481 = vunpack.c.l.b16 %v4457
    %v4482 = vunpack.c.h.b16 %v4457
    %v4483 = vunpack.c.l.b16 %v4458
    %v4484 = vunpack.c.h.b16 %v4458
    %v4485 = vunpack.c.l.b16 %v4459
    %v4486 = vunpack.c.h.b16 %v4459
    %v4487 = vunpack.c.l.b16 %v4460
    %v4488 = vunpack.c.h.b16 %v4460
    %v4489 = vunpack.c.l.b16 %v4461
    %v4490 = vunpack.c.h.b16 %v4461
    %v4491 = vunpack.c.l.b16 %v4462
    %v4492 = vunpack.c.h.b16 %v4462
    %v4493 = vunpack.c.l.b16 %v4463
    %v4494 = vunpack.c.h.b16 %v4463
    %v4495 = vunpack.c.l.b16 %v4464
    %v4496 = vunpack.c.h.b16 %v4464
    %v4497 = vunpack.c.l.b16 %v4465
    %v4498 = vunpack.c.h.b16 %v4465
    %v4499 = vunpack.c.l.b16 %v4466
    %v4500 = vunpack.c.h.b16 %v4466
    %v4501 = vunpack.c.l.b16 %v4467
    %v4502 = vunpack.c.h.b16 %v4467
    %v4503 = vunpack.c.l.b16 %v4468
    %v4504 = vunpack.c.h.b16 %v4468
    %v4505 = vpack.c.b16 %v4493, %v4481
    %v4506 = vpack.c.b16 %v4494, %v4482
    %v4507 = vpack.c.b16 %v4495, %v4483
    %v4508 = vpack.c.b16 %v4496, %v4484
    %v4509 = vpack.c.b16 %v4497, %v4485
    %v4510 = vpack.c.b16 %v4498, %v4486
    %v4511 = vpack.c.b16 %v4499, %v4487
    %v4512 = vpack.c.b16 %v4500, %v4488
    %v4513 = vpack.c.b16 %v4501, %v4489
    %v4514 = vpack.c.b16 %v4502, %v4490
    %v4515 = vpack.c.b16 %v4503, %v4491
    %v4516 = vpack.c.b16 %v4504, %v4492
    %4529 = vmatprep.subr.bf16.mxu0 %v2475
    %4530 = vmatpush1.bf16.msra.mxu0 %v2474
    %4531 = vmatprep.subr.bf16.mxu0 %v2469
    %4532 = vmatpush1.bf16.msra.mxu0 %v2468
    %4533 = vmatprep.subr.bf16.mxu0 %v2463
    %4534 = vmatpush1.bf16.msra.mxu0 %v2462
    %4535 = vmatprep.subr.bf16.mxu0 %v2457
    %4536 = vmatpush1.bf16.msra.mxu0 %v2456
    %4537 = vmatprep.subr.bf16.mxu0 %v2451
    %4538 = vmatpush1.bf16.msra.mxu0 %v2450
    %4539 = vmatprep.subr.bf16.mxu0 %v2445
    %4540 = vmatpush1.bf16.msra.mxu0 %v2444
    %4541 = vmatprep.subr.bf16.mxu0 %v2439
    %4542 = vmatpush1.bf16.msra.mxu0 %v2438
    %4543 = vmatprep.subr.bf16.mxu0 %v2433
    %4544 = vmatpush1.bf16.msra.mxu0 %v2432
    %4545 = vmatprep.subr.bf16.mxu0 %v2523
    %4546 = vmatpush2.bf16.msra.mxu0 %v2522
    %4547 = vmatprep.subr.bf16.mxu0 %v2517
    %4548 = vmatpush2.bf16.msra.mxu0 %v2516
    %4549 = vmatprep.subr.bf16.mxu0 %v2511
    %4550 = vmatpush2.bf16.msra.mxu0 %v2510
    %4551 = vmatprep.subr.bf16.mxu0 %v2505
    %4552 = vmatpush2.bf16.msra.mxu0 %v2504
    %4553 = vmatprep.subr.bf16.mxu0 %v2499
    %4554 = vmatpush2.bf16.msra.mxu0 %v2498
    %4555 = vmatprep.subr.bf16.mxu0 %v2493
    %4556 = vmatpush2.bf16.msra.mxu0 %v2492
    %4557 = vmatprep.subr.bf16.mxu0 %v2487
    %4558 = vmatpush2.bf16.msra.mxu0 %v2486
    %4559 = vmatprep.subr.bf16.mxu0 %v2481
    %4560 = vmatpush2.bf16.msra.mxu0 %v2480
    %4561 = vmatprep.mubr.bf16.mxu0 %v4506
    %4562 = vmatmul.mubr.bf16.gmra.mxu0 %v4505
    %v4563 = vpop.f32.mrf.mxu0
    %v4564 = vadd.f32 0.0, %v4563
    %v4565 = vpop.f32.mrf.mxu0
    %v4566 = vadd.f32 0.0, %v4565
    %v4567 = vpop.f32.mrf.mxu0
    %v4568 = vadd.f32 0.0, %v4567
    %v4569 = vpop.f32.mrf.mxu0
    %v4570 = vadd.f32 0.0, %v4569
    %4571 = vdwg.mxu0
    %4572 = vmatprep.subr.bf16.mxu0 %v2571
    %4573 = vmatpush1.bf16.msra.mxu0 %v2570
    %4574 = vmatprep.subr.bf16.mxu0 %v2565
    %4575 = vmatpush1.bf16.msra.mxu0 %v2564
    %4576 = vmatprep.subr.bf16.mxu0 %v2559
    %4577 = vmatpush1.bf16.msra.mxu0 %v2558
    %4578 = vmatprep.subr.bf16.mxu0 %v2553
    %4579 = vmatpush1.bf16.msra.mxu0 %v2552
    %4580 = vmatprep.subr.bf16.mxu0 %v2547
    %4581 = vmatpush1.bf16.msra.mxu0 %v2546
    %4582 = vmatprep.subr.bf16.mxu0 %v2541
    %4583 = vmatpush1.bf16.msra.mxu0 %v2540
    %4584 = vmatprep.subr.bf16.mxu0 %v2535
    %4585 = vmatpush1.bf16.msra.mxu0 %v2534
    %4586 = vmatprep.subr.bf16.mxu0 %v2529
    %4587 = vmatpush1.bf16.msra.mxu0 %v2528
    %4588 = vmatprep.subr.bf16.mxu0 %v2619
    %4589 = vmatpush2.bf16.msra.mxu0 %v2618
    %4590 = vmatprep.subr.bf16.mxu0 %v2613
    %4591 = vmatpush2.bf16.msra.mxu0 %v2612
    %4592 = vmatprep.subr.bf16.mxu0 %v2607
    %4593 = vmatpush2.bf16.msra.mxu0 %v2606
    %4594 = vmatprep.subr.bf16.mxu0 %v2601
    %4595 = vmatpush2.bf16.msra.mxu0 %v2600
    %4596 = vmatprep.subr.bf16.mxu0 %v2595
    %4597 = vmatpush2.bf16.msra.mxu0 %v2594
    %4598 = vmatprep.subr.bf16.mxu0 %v2589
    %4599 = vmatpush2.bf16.msra.mxu0 %v2588
    %4600 = vmatprep.subr.bf16.mxu0 %v2583
    %4601 = vmatpush2.bf16.msra.mxu0 %v2582
    %4602 = vmatprep.subr.bf16.mxu0 %v2577
    %4603 = vmatpush2.bf16.msra.mxu0 %v2576
    %4604 = vmatprep.mubr.bf16.mxu0 %v4508
    %4605 = vmatmul.mubr.bf16.gmra.mxu0 %v4507
    %v4606 = vpop.f32.mrf.mxu0
    %v4607 = vadd.f32 %v4564, %v4606
    %v4608 = vpop.f32.mrf.mxu0
    %v4609 = vadd.f32 %v4566, %v4608
    %v4610 = vpop.f32.mrf.mxu0
    %v4611 = vadd.f32 %v4568, %v4610
    %v4612 = vpop.f32.mrf.mxu0
    %v4613 = vadd.f32 %v4570, %v4612
    %4614 = vdwg.mxu0
    %4615 = vmatprep.subr.bf16.mxu0 %v2667
    %4616 = vmatpush1.bf16.msra.mxu0 %v2666
    %4617 = vmatprep.subr.bf16.mxu0 %v2661
    %4618 = vmatpush1.bf16.msra.mxu0 %v2660
    %4619 = vmatprep.subr.bf16.mxu0 %v2655
    %4620 = vmatpush1.bf16.msra.mxu0 %v2654
    %4621 = vmatprep.subr.bf16.mxu0 %v2649
    %4622 = vmatpush1.bf16.msra.mxu0 %v2648
    %4623 = vmatprep.subr.bf16.mxu0 %v2643
    %4624 = vmatpush1.bf16.msra.mxu0 %v2642
    %4625 = vmatprep.subr.bf16.mxu0 %v2637
    %4626 = vmatpush1.bf16.msra.mxu0 %v2636
    %4627 = vmatprep.subr.bf16.mxu0 %v2631
    %4628 = vmatpush1.bf16.msra.mxu0 %v2630
    %4629 = vmatprep.subr.bf16.mxu0 %v2625
    %4630 = vmatpush1.bf16.msra.mxu0 %v2624
    %4631 = vmatprep.subr.bf16.mxu0 %v2715
    %4632 = vmatpush2.bf16.msra.mxu0 %v2714
    %4633 = vmatprep.subr.bf16.mxu0 %v2709
    %4634 = vmatpush2.bf16.msra.mxu0 %v2708
    %4635 = vmatprep.subr.bf16.mxu0 %v2703
    %4636 = vmatpush2.bf16.msra.mxu0 %v2702
    %4637 = vmatprep.subr.bf16.mxu0 %v2697
    %4638 = vmatpush2.bf16.msra.mxu0 %v2696
    %4639 = vmatprep.subr.bf16.mxu0 %v2691
    %4640 = vmatpush2.bf16.msra.mxu0 %v2690
    %4641 = vmatprep.subr.bf16.mxu0 %v2685
    %4642 = vmatpush2.bf16.msra.mxu0 %v2684
    %4643 = vmatprep.subr.bf16.mxu0 %v2679
    %4644 = vmatpush2.bf16.msra.mxu0 %v2678
    %4645 = vmatprep.subr.bf16.mxu0 %v2673
    %4646 = vmatpush2.bf16.msra.mxu0 %v2672
    %4647 = vmatprep.mubr.bf16.mxu0 %v4510
    %4648 = vmatmul.mubr.bf16.gmra.mxu0 %v4509
    %v4649 = vpop.f32.mrf.mxu0
    %v4650 = vadd.f32 %v4607, %v4649
    %v4651 = vpop.f32.mrf.mxu0
    %v4652 = vadd.f32 %v4609, %v4651
    %v4653 = vpop.f32.mrf.mxu0
    %v4654 = vadd.f32 %v4611, %v4653
    %v4655 = vpop.f32.mrf.mxu0
    %v4656 = vadd.f32 %v4613, %v4655
    %4657 = vdwg.mxu0
    %4658 = vmatprep.subr.bf16.mxu0 %v2763
    %4659 = vmatpush1.bf16.msra.mxu0 %v2762
    %4660 = vmatprep.subr.bf16.mxu0 %v2757
    %4661 = vmatpush1.bf16.msra.mxu0 %v2756
    %4662 = vmatprep.subr.bf16.mxu0 %v2751
    %4663 = vmatpush1.bf16.msra.mxu0 %v2750
    %4664 = vmatprep.subr.bf16.mxu0 %v2745
    %4665 = vmatpush1.bf16.msra.mxu0 %v2744
    %4666 = vmatprep.subr.bf16.mxu0 %v2739
    %4667 = vmatpush1.bf16.msra.mxu0 %v2738
    %4668 = vmatprep.subr.bf16.mxu0 %v2733
    %4669 = vmatpush1.bf16.msra.mxu0 %v2732
    %4670 = vmatprep.subr.bf16.mxu0 %v2727
    %4671 = vmatpush1.bf16.msra.mxu0 %v2726
    %4672 = vmatprep.subr.bf16.mxu0 %v2721
    %4673 = vmatpush1.bf16.msra.mxu0 %v2720
    %4674 = vmatprep.subr.bf16.mxu0 %v2811
    %4675 = vmatpush2.bf16.msra.mxu0 %v2810
    %4676 = vmatprep.subr.bf16.mxu0 %v2805
    %4677 = vmatpush2.bf16.msra.mxu0 %v2804
    %4678 = vmatprep.subr.bf16.mxu0 %v2799
    %4679 = vmatpush2.bf16.msra.mxu0 %v2798
    %4680 = vmatprep.subr.bf16.mxu0 %v2793
    %4681 = vmatpush2.bf16.msra.mxu0 %v2792
    %4682 = vmatprep.subr.bf16.mxu0 %v2787
    %4683 = vmatpush2.bf16.msra.mxu0 %v2786
    %4684 = vmatprep.subr.bf16.mxu0 %v2781
    %4685 = vmatpush2.bf16.msra.mxu0 %v2780
    %4686 = vmatprep.subr.bf16.mxu0 %v2775
    %4687 = vmatpush2.bf16.msra.mxu0 %v2774
    %4688 = vmatprep.subr.bf16.mxu0 %v2769
    %4689 = vmatpush2.bf16.msra.mxu0 %v2768
    %4690 = vmatprep.mubr.bf16.mxu0 %v4512
    %4691 = vmatmul.mubr.bf16.gmra.mxu0 %v4511
    %v4692 = vpop.f32.mrf.mxu0
    %v4693 = vadd.f32 %v4650, %v4692
    %v4694 = vpop.f32.mrf.mxu0
    %v4695 = vadd.f32 %v4652, %v4694
    %v4696 = vpop.f32.mrf.mxu0
    %v4697 = vadd.f32 %v4654, %v4696
    %v4698 = vpop.f32.mrf.mxu0
    %v4699 = vadd.f32 %v4656, %v4698
    %4700 = vdwg.mxu0
    %4701 = vmatprep.subr.bf16.mxu0 %v2859
    %4702 = vmatpush1.bf16.msra.mxu0 %v2858
    %4703 = vmatprep.subr.bf16.mxu0 %v2853
    %4704 = vmatpush1.bf16.msra.mxu0 %v2852
    %4705 = vmatprep.subr.bf16.mxu0 %v2847
    %4706 = vmatpush1.bf16.msra.mxu0 %v2846
    %4707 = vmatprep.subr.bf16.mxu0 %v2841
    %4708 = vmatpush1.bf16.msra.mxu0 %v2840
    %4709 = vmatprep.subr.bf16.mxu0 %v2835
    %4710 = vmatpush1.bf16.msra.mxu0 %v2834
    %4711 = vmatprep.subr.bf16.mxu0 %v2829
    %4712 = vmatpush1.bf16.msra.mxu0 %v2828
    %4713 = vmatprep.subr.bf16.mxu0 %v2823
    %4714 = vmatpush1.bf16.msra.mxu0 %v2822
    %4715 = vmatprep.subr.bf16.mxu0 %v2817
    %4716 = vmatpush1.bf16.msra.mxu0 %v2816
    %4717 = vmatprep.subr.bf16.mxu0 %v2907
    %4718 = vmatpush2.bf16.msra.mxu0 %v2906
    %4719 = vmatprep.subr.bf16.mxu0 %v2901
    %4720 = vmatpush2.bf16.msra.mxu0 %v2900
    %4721 = vmatprep.subr.bf16.mxu0 %v2895
    %4722 = vmatpush2.bf16.msra.mxu0 %v2894
    %4723 = vmatprep.subr.bf16.mxu0 %v2889
    %4724 = vmatpush2.bf16.msra.mxu0 %v2888
    %4725 = vmatprep.subr.bf16.mxu0 %v2883
    %4726 = vmatpush2.bf16.msra.mxu0 %v2882
    %4727 = vmatprep.subr.bf16.mxu0 %v2877
    %4728 = vmatpush2.bf16.msra.mxu0 %v2876
    %4729 = vmatprep.subr.bf16.mxu0 %v2871
    %4730 = vmatpush2.bf16.msra.mxu0 %v2870
    %4731 = vmatprep.subr.bf16.mxu0 %v2865
    %4732 = vmatpush2.bf16.msra.mxu0 %v2864
    %4733 = vmatprep.mubr.bf16.mxu0 %v4514
    %4734 = vmatmul.mubr.bf16.gmra.mxu0 %v4513
    %v4735 = vpop.f32.mrf.mxu0
    %v4736 = vadd.f32 %v4693, %v4735
    %v4737 = vpop.f32.mrf.mxu0
    %v4738 = vadd.f32 %v4695, %v4737
    %v4739 = vpop.f32.mrf.mxu0
    %v4740 = vadd.f32 %v4697, %v4739
    %v4741 = vpop.f32.mrf.mxu0
    %v4742 = vadd.f32 %v4699, %v4741
    %4743 = vdwg.mxu0
    %4744 = vmatprep.subr.bf16.mxu0 %v2955
    %4745 = vmatpush1.bf16.msra.mxu0 %v2954
    %4746 = vmatprep.subr.bf16.mxu0 %v2949
    %4747 = vmatpush1.bf16.msra.mxu0 %v2948
    %4748 = vmatprep.subr.bf16.mxu0 %v2943
    %4749 = vmatpush1.bf16.msra.mxu0 %v2942
    %4750 = vmatprep.subr.bf16.mxu0 %v2937
    %4751 = vmatpush1.bf16.msra.mxu0 %v2936
    %4752 = vmatprep.subr.bf16.mxu0 %v2931
    %4753 = vmatpush1.bf16.msra.mxu0 %v2930
    %4754 = vmatprep.subr.bf16.mxu0 %v2925
    %4755 = vmatpush1.bf16.msra.mxu0 %v2924
    %4756 = vmatprep.subr.bf16.mxu0 %v2919
    %4757 = vmatpush1.bf16.msra.mxu0 %v2918
    %4758 = vmatprep.subr.bf16.mxu0 %v2913
    %4759 = vmatpush1.bf16.msra.mxu0 %v2912
    %4760 = vmatprep.subr.bf16.mxu0 %v3003
    %4761 = vmatpush2.bf16.msra.mxu0 %v3002
    %4762 = vmatprep.subr.bf16.mxu0 %v2997
    %4763 = vmatpush2.bf16.msra.mxu0 %v2996
    %4764 = vmatprep.subr.bf16.mxu0 %v2991
    %4765 = vmatpush2.bf16.msra.mxu0 %v2990
    %4766 = vmatprep.subr.bf16.mxu0 %v2985
    %4767 = vmatpush2.bf16.msra.mxu0 %v2984
    %4768 = vmatprep.subr.bf16.mxu0 %v2979
    %4769 = vmatpush2.bf16.msra.mxu0 %v2978
    %4770 = vmatprep.subr.bf16.mxu0 %v2973
    %4771 = vmatpush2.bf16.msra.mxu0 %v2972
    %4772 = vmatprep.subr.bf16.mxu0 %v2967
    %4773 = vmatpush2.bf16.msra.mxu0 %v2966
    %4774 = vmatprep.subr.bf16.mxu0 %v2961
    %4775 = vmatpush2.bf16.msra.mxu0 %v2960
    %4776 = vmatprep.mubr.bf16.mxu0 %v4516
    %4777 = vmatmul.mubr.bf16.gmra.mxu0 %v4515
    %v4778 = vpop.f32.mrf.mxu0
    %v4779 = vadd.f32 %v4736, %v4778
    %v4780 = vpop.f32.mrf.mxu0
    %v4781 = vadd.f32 %v4738, %v4780
    %v4782 = vpop.f32.mrf.mxu0
    %v4783 = vadd.f32 %v4740, %v4782
    %v4784 = vpop.f32.mrf.mxu0
    %v4785 = vadd.f32 %v4742, %v4784
    %4786 = vdwg.mxu0
    %4787 = vmatprep.subr.bf16.mxu0 %v2477
    %4788 = vmatpush1.bf16.msra.mxu0 %v2476
    %4789 = vmatprep.subr.bf16.mxu0 %v2471
    %4790 = vmatpush1.bf16.msra.mxu0 %v2470
    %4791 = vmatprep.subr.bf16.mxu0 %v2465
    %4792 = vmatpush1.bf16.msra.mxu0 %v2464
    %4793 = vmatprep.subr.bf16.mxu0 %v2459
    %4794 = vmatpush1.bf16.msra.mxu0 %v2458
    %4795 = vmatprep.subr.bf16.mxu0 %v2453
    %4796 = vmatpush1.bf16.msra.mxu0 %v2452
    %4797 = vmatprep.subr.bf16.mxu0 %v2447
    %4798 = vmatpush1.bf16.msra.mxu0 %v2446
    %4799 = vmatprep.subr.bf16.mxu0 %v2441
    %4800 = vmatpush1.bf16.msra.mxu0 %v2440
    %4801 = vmatprep.subr.bf16.mxu0 %v2435
    %4802 = vmatpush1.bf16.msra.mxu0 %v2434
    %4803 = vmatprep.subr.bf16.mxu0 %v2525
    %4804 = vmatpush2.bf16.msra.mxu0 %v2524
    %4805 = vmatprep.subr.bf16.mxu0 %v2519
    %4806 = vmatpush2.bf16.msra.mxu0 %v2518
    %4807 = vmatprep.subr.bf16.mxu0 %v2513
    %4808 = vmatpush2.bf16.msra.mxu0 %v2512
    %4809 = vmatprep.subr.bf16.mxu0 %v2507
    %4810 = vmatpush2.bf16.msra.mxu0 %v2506
    %4811 = vmatprep.subr.bf16.mxu0 %v2501
    %4812 = vmatpush2.bf16.msra.mxu0 %v2500
    %4813 = vmatprep.subr.bf16.mxu0 %v2495
    %4814 = vmatpush2.bf16.msra.mxu0 %v2494
    %4815 = vmatprep.subr.bf16.mxu0 %v2489
    %4816 = vmatpush2.bf16.msra.mxu0 %v2488
    %4817 = vmatprep.subr.bf16.mxu0 %v2483
    %4818 = vmatpush2.bf16.msra.mxu0 %v2482
    %4819 = vmatprep.mubr.bf16.mxu0 %v4506
    %4820 = vmatmul.mubr.bf16.gmra.mxu0 %v4505
    %v4821 = vpop.f32.mrf.mxu0
    %v4822 = vadd.f32 0.0, %v4821
    %v4823 = vpop.f32.mrf.mxu0
    %v4824 = vadd.f32 0.0, %v4823
    %v4825 = vpop.f32.mrf.mxu0
    %v4826 = vadd.f32 0.0, %v4825
    %v4827 = vpop.f32.mrf.mxu0
    %v4828 = vadd.f32 0.0, %v4827
    %4829 = vdwg.mxu0
    %4830 = vmatprep.subr.bf16.mxu0 %v2573
    %4831 = vmatpush1.bf16.msra.mxu0 %v2572
    %4832 = vmatprep.subr.bf16.mxu0 %v2567
    %4833 = vmatpush1.bf16.msra.mxu0 %v2566
    %4834 = vmatprep.subr.bf16.mxu0 %v2561
    %4835 = vmatpush1.bf16.msra.mxu0 %v2560
    %4836 = vmatprep.subr.bf16.mxu0 %v2555
    %4837 = vmatpush1.bf16.msra.mxu0 %v2554
    %4838 = vmatprep.subr.bf16.mxu0 %v2549
    %4839 = vmatpush1.bf16.msra.mxu0 %v2548
    %4840 = vmatprep.subr.bf16.mxu0 %v2543
    %4841 = vmatpush1.bf16.msra.mxu0 %v2542
    %4842 = vmatprep.subr.bf16.mxu0 %v2537
    %4843 = vmatpush1.bf16.msra.mxu0 %v2536
    %4844 = vmatprep.subr.bf16.mxu0 %v2531
    %4845 = vmatpush1.bf16.msra.mxu0 %v2530
    %4846 = vmatprep.subr.bf16.mxu0 %v2621
    %4847 = vmatpush2.bf16.msra.mxu0 %v2620
    %4848 = vmatprep.subr.bf16.mxu0 %v2615
    %4849 = vmatpush2.bf16.msra.mxu0 %v2614
    %4850 = vmatprep.subr.bf16.mxu0 %v2609
    %4851 = vmatpush2.bf16.msra.mxu0 %v2608
    %4852 = vmatprep.subr.bf16.mxu0 %v2603
    %4853 = vmatpush2.bf16.msra.mxu0 %v2602
    %4854 = vmatprep.subr.bf16.mxu0 %v2597
    %4855 = vmatpush2.bf16.msra.mxu0 %v2596
    %4856 = vmatprep.subr.bf16.mxu0 %v2591
    %4857 = vmatpush2.bf16.msra.mxu0 %v2590
    %4858 = vmatprep.subr.bf16.mxu0 %v2585
    %4859 = vmatpush2.bf16.msra.mxu0 %v2584
    %4860 = vmatprep.subr.bf16.mxu0 %v2579
    %4861 = vmatpush2.bf16.msra.mxu0 %v2578
    %4862 = vmatprep.mubr.bf16.mxu0 %v4508
    %4863 = vmatmul.mubr.bf16.gmra.mxu0 %v4507
    %v4864 = vpop.f32.mrf.mxu0
    %v4865 = vadd.f32 %v4822, %v4864
    %v4866 = vpop.f32.mrf.mxu0
    %v4867 = vadd.f32 %v4824, %v4866
    %v4868 = vpop.f32.mrf.mxu0
    %v4869 = vadd.f32 %v4826, %v4868
    %v4870 = vpop.f32.mrf.mxu0
    %v4871 = vadd.f32 %v4828, %v4870
    %4872 = vdwg.mxu0
    %4873 = vmatprep.subr.bf16.mxu0 %v2669
    %4874 = vmatpush1.bf16.msra.mxu0 %v2668
    %4875 = vmatprep.subr.bf16.mxu0 %v2663
    %4876 = vmatpush1.bf16.msra.mxu0 %v2662
    %4877 = vmatprep.subr.bf16.mxu0 %v2657
    %4878 = vmatpush1.bf16.msra.mxu0 %v2656
    %4879 = vmatprep.subr.bf16.mxu0 %v2651
    %4880 = vmatpush1.bf16.msra.mxu0 %v2650
    %4881 = vmatprep.subr.bf16.mxu0 %v2645
    %4882 = vmatpush1.bf16.msra.mxu0 %v2644
    %4883 = vmatprep.subr.bf16.mxu0 %v2639
    %4884 = vmatpush1.bf16.msra.mxu0 %v2638
    %4885 = vmatprep.subr.bf16.mxu0 %v2633
    %4886 = vmatpush1.bf16.msra.mxu0 %v2632
    %4887 = vmatprep.subr.bf16.mxu0 %v2627
    %4888 = vmatpush1.bf16.msra.mxu0 %v2626
    %4889 = vmatprep.subr.bf16.mxu0 %v2717
    %4890 = vmatpush2.bf16.msra.mxu0 %v2716
    %4891 = vmatprep.subr.bf16.mxu0 %v2711
    %4892 = vmatpush2.bf16.msra.mxu0 %v2710
    %4893 = vmatprep.subr.bf16.mxu0 %v2705
    %4894 = vmatpush2.bf16.msra.mxu0 %v2704
    %4895 = vmatprep.subr.bf16.mxu0 %v2699
    %4896 = vmatpush2.bf16.msra.mxu0 %v2698
    %4897 = vmatprep.subr.bf16.mxu0 %v2693
    %4898 = vmatpush2.bf16.msra.mxu0 %v2692
    %4899 = vmatprep.subr.bf16.mxu0 %v2687
    %4900 = vmatpush2.bf16.msra.mxu0 %v2686
    %4901 = vmatprep.subr.bf16.mxu0 %v2681
    %4902 = vmatpush2.bf16.msra.mxu0 %v2680
    %4903 = vmatprep.subr.bf16.mxu0 %v2675
    %4904 = vmatpush2.bf16.msra.mxu0 %v2674
    %4905 = vmatprep.mubr.bf16.mxu0 %v4510
    %4906 = vmatmul.mubr.bf16.gmra.mxu0 %v4509
    %v4907 = vpop.f32.mrf.mxu0
    %v4908 = vadd.f32 %v4865, %v4907
    %v4909 = vpop.f32.mrf.mxu0
    %v4910 = vadd.f32 %v4867, %v4909
    %v4911 = vpop.f32.mrf.mxu0
    %v4912 = vadd.f32 %v4869, %v4911
    %v4913 = vpop.f32.mrf.mxu0
    %v4914 = vadd.f32 %v4871, %v4913
    %4915 = vdwg.mxu0
    %4916 = vmatprep.subr.bf16.mxu0 %v2765
    %4917 = vmatpush1.bf16.msra.mxu0 %v2764
    %4918 = vmatprep.subr.bf16.mxu0 %v2759
    %4919 = vmatpush1.bf16.msra.mxu0 %v2758
    %4920 = vmatprep.subr.bf16.mxu0 %v2753
    %4921 = vmatpush1.bf16.msra.mxu0 %v2752
    %4922 = vmatprep.subr.bf16.mxu0 %v2747
    %4923 = vmatpush1.bf16.msra.mxu0 %v2746
    %4924 = vmatprep.subr.bf16.mxu0 %v2741
    %4925 = vmatpush1.bf16.msra.mxu0 %v2740
    %4926 = vmatprep.subr.bf16.mxu0 %v2735
    %4927 = vmatpush1.bf16.msra.mxu0 %v2734
    %4928 = vmatprep.subr.bf16.mxu0 %v2729
    %4929 = vmatpush1.bf16.msra.mxu0 %v2728
    %4930 = vmatprep.subr.bf16.mxu0 %v2723
    %4931 = vmatpush1.bf16.msra.mxu0 %v2722
    %4932 = vmatprep.subr.bf16.mxu0 %v2813
    %4933 = vmatpush2.bf16.msra.mxu0 %v2812
    %4934 = vmatprep.subr.bf16.mxu0 %v2807
    %4935 = vmatpush2.bf16.msra.mxu0 %v2806
    %4936 = vmatprep.subr.bf16.mxu0 %v2801
    %4937 = vmatpush2.bf16.msra.mxu0 %v2800
    %4938 = vmatprep.subr.bf16.mxu0 %v2795
    %4939 = vmatpush2.bf16.msra.mxu0 %v2794
    %4940 = vmatprep.subr.bf16.mxu0 %v2789
    %4941 = vmatpush2.bf16.msra.mxu0 %v2788
    %4942 = vmatprep.subr.bf16.mxu0 %v2783
    %4943 = vmatpush2.bf16.msra.mxu0 %v2782
    %4944 = vmatprep.subr.bf16.mxu0 %v2777
    %4945 = vmatpush2.bf16.msra.mxu0 %v2776
    %4946 = vmatprep.subr.bf16.mxu0 %v2771
    %4947 = vmatpush2.bf16.msra.mxu0 %v2770
    %4948 = vmatprep.mubr.bf16.mxu0 %v4512
    %4949 = vmatmul.mubr.bf16.gmra.mxu0 %v4511
    %v4950 = vpop.f32.mrf.mxu0
    %v4951 = vadd.f32 %v4908, %v4950
    %v4952 = vpop.f32.mrf.mxu0
    %v4953 = vadd.f32 %v4910, %v4952
    %v4954 = vpop.f32.mrf.mxu0
    %v4955 = vadd.f32 %v4912, %v4954
    %v4956 = vpop.f32.mrf.mxu0
    %v4957 = vadd.f32 %v4914, %v4956
    %4958 = vdwg.mxu0
    %4959 = vmatprep.subr.bf16.mxu0 %v2861
    %4960 = vmatpush1.bf16.msra.mxu0 %v2860
    %4961 = vmatprep.subr.bf16.mxu0 %v2855
    %4962 = vmatpush1.bf16.msra.mxu0 %v2854
    %4963 = vmatprep.subr.bf16.mxu0 %v2849
    %4964 = vmatpush1.bf16.msra.mxu0 %v2848
    %4965 = vmatprep.subr.bf16.mxu0 %v2843
    %4966 = vmatpush1.bf16.msra.mxu0 %v2842
    %4967 = vmatprep.subr.bf16.mxu0 %v2837
    %4968 = vmatpush1.bf16.msra.mxu0 %v2836
    %4969 = vmatprep.subr.bf16.mxu0 %v2831
    %4970 = vmatpush1.bf16.msra.mxu0 %v2830
    %4971 = vmatprep.subr.bf16.mxu0 %v2825
    %4972 = vmatpush1.bf16.msra.mxu0 %v2824
    %4973 = vmatprep.subr.bf16.mxu0 %v2819
    %4974 = vmatpush1.bf16.msra.mxu0 %v2818
    %4975 = vmatprep.subr.bf16.mxu0 %v2909
    %4976 = vmatpush2.bf16.msra.mxu0 %v2908
    %4977 = vmatprep.subr.bf16.mxu0 %v2903
    %4978 = vmatpush2.bf16.msra.mxu0 %v2902
    %4979 = vmatprep.subr.bf16.mxu0 %v2897
    %4980 = vmatpush2.bf16.msra.mxu0 %v2896
    %4981 = vmatprep.subr.bf16.mxu0 %v2891
    %4982 = vmatpush2.bf16.msra.mxu0 %v2890
    %4983 = vmatprep.subr.bf16.mxu0 %v2885
    %4984 = vmatpush2.bf16.msra.mxu0 %v2884
    %4985 = vmatprep.subr.bf16.mxu0 %v2879
    %4986 = vmatpush2.bf16.msra.mxu0 %v2878
    %4987 = vmatprep.subr.bf16.mxu0 %v2873
    %4988 = vmatpush2.bf16.msra.mxu0 %v2872
    %4989 = vmatprep.subr.bf16.mxu0 %v2867
    %4990 = vmatpush2.bf16.msra.mxu0 %v2866
    %4991 = vmatprep.mubr.bf16.mxu0 %v4514
    %4992 = vmatmul.mubr.bf16.gmra.mxu0 %v4513
    %v4993 = vpop.f32.mrf.mxu0
    %v4994 = vadd.f32 %v4951, %v4993
    %v4995 = vpop.f32.mrf.mxu0
    %v4996 = vadd.f32 %v4953, %v4995
    %v4997 = vpop.f32.mrf.mxu0
    %v4998 = vadd.f32 %v4955, %v4997
    %v4999 = vpop.f32.mrf.mxu0
    %v5000 = vadd.f32 %v4957, %v4999
    %5001 = vdwg.mxu0
    %5002 = vmatprep.subr.bf16.mxu0 %v2957
    %5003 = vmatpush1.bf16.msra.mxu0 %v2956
    %5004 = vmatprep.subr.bf16.mxu0 %v2951
    %5005 = vmatpush1.bf16.msra.mxu0 %v2950
    %5006 = vmatprep.subr.bf16.mxu0 %v2945
    %5007 = vmatpush1.bf16.msra.mxu0 %v2944
    %5008 = vmatprep.subr.bf16.mxu0 %v2939
    %5009 = vmatpush1.bf16.msra.mxu0 %v2938
    %5010 = vmatprep.subr.bf16.mxu0 %v2933
    %5011 = vmatpush1.bf16.msra.mxu0 %v2932
    %5012 = vmatprep.subr.bf16.mxu0 %v2927
    %5013 = vmatpush1.bf16.msra.mxu0 %v2926
    %5014 = vmatprep.subr.bf16.mxu0 %v2921
    %5015 = vmatpush1.bf16.msra.mxu0 %v2920
    %5016 = vmatprep.subr.bf16.mxu0 %v2915
    %5017 = vmatpush1.bf16.msra.mxu0 %v2914
    %5018 = vmatprep.subr.bf16.mxu0 %v3005
    %5019 = vmatpush2.bf16.msra.mxu0 %v3004
    %5020 = vmatprep.subr.bf16.mxu0 %v2999
    %5021 = vmatpush2.bf16.msra.mxu0 %v2998
    %5022 = vmatprep.subr.bf16.mxu0 %v2993
    %5023 = vmatpush2.bf16.msra.mxu0 %v2992
    %5024 = vmatprep.subr.bf16.mxu0 %v2987
    %5025 = vmatpush2.bf16.msra.mxu0 %v2986
    %5026 = vmatprep.subr.bf16.mxu0 %v2981
    %5027 = vmatpush2.bf16.msra.mxu0 %v2980
    %5028 = vmatprep.subr.bf16.mxu0 %v2975
    %5029 = vmatpush2.bf16.msra.mxu0 %v2974
    %5030 = vmatprep.subr.bf16.mxu0 %v2969
    %5031 = vmatpush2.bf16.msra.mxu0 %v2968
    %5032 = vmatprep.subr.bf16.mxu0 %v2963
    %5033 = vmatpush2.bf16.msra.mxu0 %v2962
    %5034 = vmatprep.mubr.bf16.mxu0 %v4516
    %5035 = vmatmul.mubr.bf16.gmra.mxu0 %v4515
    %v5036 = vpop.f32.mrf.mxu0
    %v5037 = vadd.f32 %v4994, %v5036
    %v5038 = vpop.f32.mrf.mxu0
    %v5039 = vadd.f32 %v4996, %v5038
    %v5040 = vpop.f32.mrf.mxu0
    %v5041 = vadd.f32 %v4998, %v5040
    %v5042 = vpop.f32.mrf.mxu0
    %v5043 = vadd.f32 %v5000, %v5042
    %5044 = vdwg.mxu0
    %5045 = vmatprep.subr.bf16.mxu0 %v2479
    %5046 = vmatpush1.bf16.msra.mxu0 %v2478
    %5047 = vmatprep.subr.bf16.mxu0 %v2473
    %5048 = vmatpush1.bf16.msra.mxu0 %v2472
    %5049 = vmatprep.subr.bf16.mxu0 %v2467
    %5050 = vmatpush1.bf16.msra.mxu0 %v2466
    %5051 = vmatprep.subr.bf16.mxu0 %v2461
    %5052 = vmatpush1.bf16.msra.mxu0 %v2460
    %5053 = vmatprep.subr.bf16.mxu0 %v2455
    %5054 = vmatpush1.bf16.msra.mxu0 %v2454
    %5055 = vmatprep.subr.bf16.mxu0 %v2449
    %5056 = vmatpush1.bf16.msra.mxu0 %v2448
    %5057 = vmatprep.subr.bf16.mxu0 %v2443
    %5058 = vmatpush1.bf16.msra.mxu0 %v2442
    %5059 = vmatprep.subr.bf16.mxu0 %v2437
    %5060 = vmatpush1.bf16.msra.mxu0 %v2436
    %5061 = vmatprep.subr.bf16.mxu0 %v2527
    %5062 = vmatpush2.bf16.msra.mxu0 %v2526
    %5063 = vmatprep.subr.bf16.mxu0 %v2521
    %5064 = vmatpush2.bf16.msra.mxu0 %v2520
    %5065 = vmatprep.subr.bf16.mxu0 %v2515
    %5066 = vmatpush2.bf16.msra.mxu0 %v2514
    %5067 = vmatprep.subr.bf16.mxu0 %v2509
    %5068 = vmatpush2.bf16.msra.mxu0 %v2508
    %5069 = vmatprep.subr.bf16.mxu0 %v2503
    %5070 = vmatpush2.bf16.msra.mxu0 %v2502
    %5071 = vmatprep.subr.bf16.mxu0 %v2497
    %5072 = vmatpush2.bf16.msra.mxu0 %v2496
    %5073 = vmatprep.subr.bf16.mxu0 %v2491
    %5074 = vmatpush2.bf16.msra.mxu0 %v2490
    %5075 = vmatprep.subr.bf16.mxu0 %v2485
    %5076 = vmatpush2.bf16.msra.mxu0 %v2484
    %5077 = vmatprep.mubr.bf16.mxu0 %v4506
    %5078 = vmatmul.mubr.bf16.gmra.mxu0 %v4505
    %v5079 = vpop.f32.mrf.mxu0
    %v5080 = vadd.f32 0.0, %v5079
    %v5081 = vpop.f32.mrf.mxu0
    %v5082 = vadd.f32 0.0, %v5081
    %v5083 = vpop.f32.mrf.mxu0
    %v5084 = vadd.f32 0.0, %v5083
    %v5085 = vpop.f32.mrf.mxu0
    %v5086 = vadd.f32 0.0, %v5085
    %5087 = vdwg.mxu0
    %5088 = vmatprep.subr.bf16.mxu0 %v2575
    %5089 = vmatpush1.bf16.msra.mxu0 %v2574
    %5090 = vmatprep.subr.bf16.mxu0 %v2569
    %5091 = vmatpush1.bf16.msra.mxu0 %v2568
    %5092 = vmatprep.subr.bf16.mxu0 %v2563
    %5093 = vmatpush1.bf16.msra.mxu0 %v2562
    %5094 = vmatprep.subr.bf16.mxu0 %v2557
    %5095 = vmatpush1.bf16.msra.mxu0 %v2556
    %5096 = vmatprep.subr.bf16.mxu0 %v2551
    %5097 = vmatpush1.bf16.msra.mxu0 %v2550
    %5098 = vmatprep.subr.bf16.mxu0 %v2545
    %5099 = vmatpush1.bf16.msra.mxu0 %v2544
    %5100 = vmatprep.subr.bf16.mxu0 %v2539
    %5101 = vmatpush1.bf16.msra.mxu0 %v2538
    %5102 = vmatprep.subr.bf16.mxu0 %v2533
    %5103 = vmatpush1.bf16.msra.mxu0 %v2532
    %5104 = vmatprep.subr.bf16.mxu0 %v2623
    %5105 = vmatpush2.bf16.msra.mxu0 %v2622
    %5106 = vmatprep.subr.bf16.mxu0 %v2617
    %5107 = vmatpush2.bf16.msra.mxu0 %v2616
    %5108 = vmatprep.subr.bf16.mxu0 %v2611
    %5109 = vmatpush2.bf16.msra.mxu0 %v2610
    %5110 = vmatprep.subr.bf16.mxu0 %v2605
    %5111 = vmatpush2.bf16.msra.mxu0 %v2604
    %5112 = vmatprep.subr.bf16.mxu0 %v2599
    %5113 = vmatpush2.bf16.msra.mxu0 %v2598
    %5114 = vmatprep.subr.bf16.mxu0 %v2593
    %5115 = vmatpush2.bf16.msra.mxu0 %v2592
    %5116 = vmatprep.subr.bf16.mxu0 %v2587
    %5117 = vmatpush2.bf16.msra.mxu0 %v2586
    %5118 = vmatprep.subr.bf16.mxu0 %v2581
    %5119 = vmatpush2.bf16.msra.mxu0 %v2580
    %5120 = vmatprep.mubr.bf16.mxu0 %v4508
    %5121 = vmatmul.mubr.bf16.gmra.mxu0 %v4507
    %v5122 = vpop.f32.mrf.mxu0
    %v5123 = vadd.f32 %v5080, %v5122
    %v5124 = vpop.f32.mrf.mxu0
    %v5125 = vadd.f32 %v5082, %v5124
    %v5126 = vpop.f32.mrf.mxu0
    %v5127 = vadd.f32 %v5084, %v5126
    %v5128 = vpop.f32.mrf.mxu0
    %v5129 = vadd.f32 %v5086, %v5128
    %5130 = vdwg.mxu0
    %5131 = vmatprep.subr.bf16.mxu0 %v2671
    %5132 = vmatpush1.bf16.msra.mxu0 %v2670
    %5133 = vmatprep.subr.bf16.mxu0 %v2665
    %5134 = vmatpush1.bf16.msra.mxu0 %v2664
    %5135 = vmatprep.subr.bf16.mxu0 %v2659
    %5136 = vmatpush1.bf16.msra.mxu0 %v2658
    %5137 = vmatprep.subr.bf16.mxu0 %v2653
    %5138 = vmatpush1.bf16.msra.mxu0 %v2652
    %5139 = vmatprep.subr.bf16.mxu0 %v2647
    %5140 = vmatpush1.bf16.msra.mxu0 %v2646
    %5141 = vmatprep.subr.bf16.mxu0 %v2641
    %5142 = vmatpush1.bf16.msra.mxu0 %v2640
    %5143 = vmatprep.subr.bf16.mxu0 %v2635
    %5144 = vmatpush1.bf16.msra.mxu0 %v2634
    %5145 = vmatprep.subr.bf16.mxu0 %v2629
    %5146 = vmatpush1.bf16.msra.mxu0 %v2628
    %5147 = vmatprep.subr.bf16.mxu0 %v2719
    %5148 = vmatpush2.bf16.msra.mxu0 %v2718
    %5149 = vmatprep.subr.bf16.mxu0 %v2713
    %5150 = vmatpush2.bf16.msra.mxu0 %v2712
    %5151 = vmatprep.subr.bf16.mxu0 %v2707
    %5152 = vmatpush2.bf16.msra.mxu0 %v2706
    %5153 = vmatprep.subr.bf16.mxu0 %v2701
    %5154 = vmatpush2.bf16.msra.mxu0 %v2700
    %5155 = vmatprep.subr.bf16.mxu0 %v2695
    %5156 = vmatpush2.bf16.msra.mxu0 %v2694
    %5157 = vmatprep.subr.bf16.mxu0 %v2689
    %5158 = vmatpush2.bf16.msra.mxu0 %v2688
    %5159 = vmatprep.subr.bf16.mxu0 %v2683
    %5160 = vmatpush2.bf16.msra.mxu0 %v2682
    %5161 = vmatprep.subr.bf16.mxu0 %v2677
    %5162 = vmatpush2.bf16.msra.mxu0 %v2676
    %5163 = vmatprep.mubr.bf16.mxu0 %v4510
    %5164 = vmatmul.mubr.bf16.gmra.mxu0 %v4509
    %v5165 = vpop.f32.mrf.mxu0
    %v5166 = vadd.f32 %v5123, %v5165
    %v5167 = vpop.f32.mrf.mxu0
    %v5168 = vadd.f32 %v5125, %v5167
    %v5169 = vpop.f32.mrf.mxu0
    %v5170 = vadd.f32 %v5127, %v5169
    %v5171 = vpop.f32.mrf.mxu0
    %v5172 = vadd.f32 %v5129, %v5171
    %5173 = vdwg.mxu0
    %5174 = vmatprep.subr.bf16.mxu0 %v2767
    %5175 = vmatpush1.bf16.msra.mxu0 %v2766
    %5176 = vmatprep.subr.bf16.mxu0 %v2761
    %5177 = vmatpush1.bf16.msra.mxu0 %v2760
    %5178 = vmatprep.subr.bf16.mxu0 %v2755
    %5179 = vmatpush1.bf16.msra.mxu0 %v2754
    %5180 = vmatprep.subr.bf16.mxu0 %v2749
    %5181 = vmatpush1.bf16.msra.mxu0 %v2748
    %5182 = vmatprep.subr.bf16.mxu0 %v2743
    %5183 = vmatpush1.bf16.msra.mxu0 %v2742
    %5184 = vmatprep.subr.bf16.mxu0 %v2737
    %5185 = vmatpush1.bf16.msra.mxu0 %v2736
    %5186 = vmatprep.subr.bf16.mxu0 %v2731
    %5187 = vmatpush1.bf16.msra.mxu0 %v2730
    %5188 = vmatprep.subr.bf16.mxu0 %v2725
    %5189 = vmatpush1.bf16.msra.mxu0 %v2724
    %5190 = vmatprep.subr.bf16.mxu0 %v2815
    %5191 = vmatpush2.bf16.msra.mxu0 %v2814
    %5192 = vmatprep.subr.bf16.mxu0 %v2809
    %5193 = vmatpush2.bf16.msra.mxu0 %v2808
    %5194 = vmatprep.subr.bf16.mxu0 %v2803
    %5195 = vmatpush2.bf16.msra.mxu0 %v2802
    %5196 = vmatprep.subr.bf16.mxu0 %v2797
    %5197 = vmatpush2.bf16.msra.mxu0 %v2796
    %5198 = vmatprep.subr.bf16.mxu0 %v2791
    %5199 = vmatpush2.bf16.msra.mxu0 %v2790
    %5200 = vmatprep.subr.bf16.mxu0 %v2785
    %5201 = vmatpush2.bf16.msra.mxu0 %v2784
    %5202 = vmatprep.subr.bf16.mxu0 %v2779
    %5203 = vmatpush2.bf16.msra.mxu0 %v2778
    %5204 = vmatprep.subr.bf16.mxu0 %v2773
    %5205 = vmatpush2.bf16.msra.mxu0 %v2772
    %5206 = vmatprep.mubr.bf16.mxu0 %v4512
    %5207 = vmatmul.mubr.bf16.gmra.mxu0 %v4511
    %v5208 = vpop.f32.mrf.mxu0
    %v5209 = vadd.f32 %v5166, %v5208
    %v5210 = vpop.f32.mrf.mxu0
    %v5211 = vadd.f32 %v5168, %v5210
    %v5212 = vpop.f32.mrf.mxu0
    %v5213 = vadd.f32 %v5170, %v5212
    %v5214 = vpop.f32.mrf.mxu0
    %v5215 = vadd.f32 %v5172, %v5214
    %5216 = vdwg.mxu0
    %5217 = vmatprep.subr.bf16.mxu0 %v2863
    %5218 = vmatpush1.bf16.msra.mxu0 %v2862
    %5219 = vmatprep.subr.bf16.mxu0 %v2857
    %5220 = vmatpush1.bf16.msra.mxu0 %v2856
    %5221 = vmatprep.subr.bf16.mxu0 %v2851
    %5222 = vmatpush1.bf16.msra.mxu0 %v2850
    %5223 = vmatprep.subr.bf16.mxu0 %v2845
    %5224 = vmatpush1.bf16.msra.mxu0 %v2844
    %5225 = vmatprep.subr.bf16.mxu0 %v2839
    %5226 = vmatpush1.bf16.msra.mxu0 %v2838
    %5227 = vmatprep.subr.bf16.mxu0 %v2833
    %5228 = vmatpush1.bf16.msra.mxu0 %v2832
    %5229 = vmatprep.subr.bf16.mxu0 %v2827
    %5230 = vmatpush1.bf16.msra.mxu0 %v2826
    %5231 = vmatprep.subr.bf16.mxu0 %v2821
    %5232 = vmatpush1.bf16.msra.mxu0 %v2820
    %5233 = vmatprep.subr.bf16.mxu0 %v2911
    %5234 = vmatpush2.bf16.msra.mxu0 %v2910
    %5235 = vmatprep.subr.bf16.mxu0 %v2905
    %5236 = vmatpush2.bf16.msra.mxu0 %v2904
    %5237 = vmatprep.subr.bf16.mxu0 %v2899
    %5238 = vmatpush2.bf16.msra.mxu0 %v2898
    %5239 = vmatprep.subr.bf16.mxu0 %v2893
    %5240 = vmatpush2.bf16.msra.mxu0 %v2892
    %5241 = vmatprep.subr.bf16.mxu0 %v2887
    %5242 = vmatpush2.bf16.msra.mxu0 %v2886
    %5243 = vmatprep.subr.bf16.mxu0 %v2881
    %5244 = vmatpush2.bf16.msra.mxu0 %v2880
    %5245 = vmatprep.subr.bf16.mxu0 %v2875
    %5246 = vmatpush2.bf16.msra.mxu0 %v2874
    %5247 = vmatprep.subr.bf16.mxu0 %v2869
    %5248 = vmatpush2.bf16.msra.mxu0 %v2868
    %5249 = vmatprep.mubr.bf16.mxu0 %v4514
    %5250 = vmatmul.mubr.bf16.gmra.mxu0 %v4513
    %v5251 = vpop.f32.mrf.mxu0
    %v5252 = vadd.f32 %v5209, %v5251
    %v5253 = vpop.f32.mrf.mxu0
    %v5254 = vadd.f32 %v5211, %v5253
    %v5255 = vpop.f32.mrf.mxu0
    %v5256 = vadd.f32 %v5213, %v5255
    %v5257 = vpop.f32.mrf.mxu0
    %v5258 = vadd.f32 %v5215, %v5257
    %5259 = vdwg.mxu0
    %5260 = vmatprep.subr.bf16.mxu0 %v2959
    %5261 = vmatpush1.bf16.msra.mxu0 %v2958
    %5262 = vmatprep.subr.bf16.mxu0 %v2953
    %5263 = vmatpush1.bf16.msra.mxu0 %v2952
    %5264 = vmatprep.subr.bf16.mxu0 %v2947
    %5265 = vmatpush1.bf16.msra.mxu0 %v2946
    %5266 = vmatprep.subr.bf16.mxu0 %v2941
    %5267 = vmatpush1.bf16.msra.mxu0 %v2940
    %5268 = vmatprep.subr.bf16.mxu0 %v2935
    %5269 = vmatpush1.bf16.msra.mxu0 %v2934
    %5270 = vmatprep.subr.bf16.mxu0 %v2929
    %5271 = vmatpush1.bf16.msra.mxu0 %v2928
    %5272 = vmatprep.subr.bf16.mxu0 %v2923
    %5273 = vmatpush1.bf16.msra.mxu0 %v2922
    %5274 = vmatprep.subr.bf16.mxu0 %v2917
    %5275 = vmatpush1.bf16.msra.mxu0 %v2916
    %5276 = vmatprep.subr.bf16.mxu0 %v3007
    %5277 = vmatpush2.bf16.msra.mxu0 %v3006
    %5278 = vmatprep.subr.bf16.mxu0 %v3001
    %5279 = vmatpush2.bf16.msra.mxu0 %v3000
    %5280 = vmatprep.subr.bf16.mxu0 %v2995
    %5281 = vmatpush2.bf16.msra.mxu0 %v2994
    %5282 = vmatprep.subr.bf16.mxu0 %v2989
    %5283 = vmatpush2.bf16.msra.mxu0 %v2988
    %5284 = vmatprep.subr.bf16.mxu0 %v2983
    %5285 = vmatpush2.bf16.msra.mxu0 %v2982
    %5286 = vmatprep.subr.bf16.mxu0 %v2977
    %5287 = vmatpush2.bf16.msra.mxu0 %v2976
    %5288 = vmatprep.subr.bf16.mxu0 %v2971
    %5289 = vmatpush2.bf16.msra.mxu0 %v2970
    %5290 = vmatprep.subr.bf16.mxu0 %v2965
    %5291 = vmatpush2.bf16.msra.mxu0 %v2964
    %5292 = vmatprep.mubr.bf16.mxu0 %v4516
    %5293 = vmatmul.mubr.bf16.gmra.mxu0 %v4515
    %v5294 = vpop.f32.mrf.mxu0
    %v5295 = vadd.f32 %v5252, %v5294
    %v5296 = vpop.f32.mrf.mxu0
    %v5297 = vadd.f32 %v5254, %v5296
    %v5298 = vpop.f32.mrf.mxu0
    %v5299 = vadd.f32 %v5256, %v5298
    %v5300 = vpop.f32.mrf.mxu0
    %v5301 = vadd.f32 %v5258, %v5300
    %5302 = vdwg.mxu0
    %v5303 = vmul.f32 %v4779, %v4362
    %v5304 = vmul.f32 %v4781, %v4366
    %v5305 = vmul.f32 %v5037, %v4370
    %v5306 = vmul.f32 %v5039, %v4374
    %v5307 = vmul.f32 %v5295, %v4378
    %v5308 = vmul.f32 %v5297, %v4382
    %v5309 = vmul.f32 %v4783, %v4362
    %v5310 = vmul.f32 %v4785, %v4366
    %v5311 = vmul.f32 %v5041, %v4370
    %v5312 = vmul.f32 %v5043, %v4374
    %v5313 = vmul.f32 %v5299, %v4378
    %v5314 = vmul.f32 %v5301, %v4382
    %v5315 = vadd.f32 %v5303, %v4405
    %v5316 = vadd.f32 %v5304, %v4409
    %v5317 = vadd.f32 %v5305, %v4413
    %v5318 = vadd.f32 %v5306, %v4417
    %v5319 = vadd.f32 %v5307, %v4421
    %v5320 = vadd.f32 %v5308, %v4425
    %v5321 = vadd.f32 %v5309, %v4405
    %v5322 = vadd.f32 %v5310, %v4409
    %v5323 = vadd.f32 %v5311, %v4413
    %v5324 = vadd.f32 %v5312, %v4417
    %v5325 = vadd.f32 %v5313, %v4421
    %v5326 = vadd.f32 %v5314, %v4425
    %v5327 = vmax.f32 %v5315, 0.0
    %v5328 = vmax.f32 %v5316, 0.0
    %v5329 = vmax.f32 %v5317, 0.0
    %v5330 = vmax.f32 %v5318, 0.0
    %v5331 = vmax.f32 %v5319, 0.0
    %v5332 = vmax.f32 %v5320, 0.0
    %v5333 = vmax.f32 %v5321, 0.0
    %v5334 = vmax.f32 %v5322, 0.0
    %v5335 = vmax.f32 %v5323, 0.0
    %v5336 = vmax.f32 %v5324, 0.0
    %v5337 = vmax.f32 %v5325, 0.0
    %v5338 = vmax.f32 %v5326, 0.0
    %v5339 = vmax.f32 %v4444, %v5327
    %v5340 = vmax.f32 %v4445, %v5328
    %v5341 = vmax.f32 %v4446, %v5329
    %v5342 = vmax.f32 %v4447, %v5330
    %v5343 = vmax.f32 %v4448, %v5331
    %v5344 = vmax.f32 %v4449, %v5332
    %v5345 = vmax.f32 %v4450, %v5333
    %v5346 = vmax.f32 %v4451, %v5334
    %v5347 = vmax.f32 %v4452, %v5335
    %v5348 = vmax.f32 %v4453, %v5336
    %v5349 = vmax.f32 %v4454, %v5337
    %v5350 = vmax.f32 %v4455, %v5338
    %v5351 = vmax.f32 %v5339, %v5342
    %v5352 = vmax.f32 %v5340, %v5343
    %v5353 = vmax.f32 %v5341, %v5344
    %v5354 = vmax.f32 %v5345, %v5348
    %v5355 = vmax.f32 %v5346, %v5349
    %v5356 = vmax.f32 %v5347, %v5350
    %v5357 = vpack.c.bf16 %v5354, %v5351
    %v5358 = vpack.c.bf16 %v5355, %v5352
    %v5359 = vpack.c.bf16 %v5356, %v5353
    %v5363 = vunpack.c.l.b16 %v5357
    %v5364 = vunpack.c.l.b16 %v5358
    %v5365 = vunpack.c.l.b16 %v5359
    %v5366 = vunpack.c.h.b16 %v5357
    %v5367 = vunpack.c.h.b16 %v5358
    %v5368 = vunpack.c.h.b16 %v5359
    %v5369 = vpack.c.b16 %v5364, %v5363
    %v5370 = vpack.c.b16 %v5365, %v5365
    %v5371 = vpack.c.b16 %v5367, %v5366
    %v5372 = vpack.c.b16 %v5368, %v5368
    %5377 = vst [vmem:[%s4] sm:$0xff] %v5369
    %5378 = vst [vmem:[%s4 + $0x8] sm:$0xf] %v5370
    %5379 = vst [vmem:[%s4 + $0xc] sm:$0xff] %v5371
    %5380 = vst [vmem:[%s4 + $0x14] sm:$0xf] %v5372
    // Predicated region
    $region30: #{fashion_cnn_forward.4} parent=1 // pred_check
      _
    $region31: #{fashion_cnn_forward.4} parent=1 // pred_check_branch
      %5382 = sbr.rel (0) target = $region33
    $region32: #{fashion_cnn_forward.4} parent=1 // pred_region
      _
    $region33: #{fashion_cnn_forward.4} parent=1 // pred_fallthru
      _
    // Predicated region
    $region34: #{fashion_cnn_forward.4} parent=1 // pred_check
      _
    $region35: #{fashion_cnn_forward.4} parent=1 // pred_check_branch
      %5384 = sbr.rel (0) target = $region37
    $region36: #{fashion_cnn_forward.4} parent=1 // pred_region
      _
    $region37: #{fashion_cnn_forward.4} parent=1 // pred_fallthru
      _
    %5385 = vsyncpa [#allocation3], 1
    %5386 = vsyncpa [#allocation5], 1

// kernel: fashion_cnn_forward.5
$region0: #{fashion_cnn_forward.5}
  #allocation0 [shape = 'u32[]', space=smem, size = 0x4, offset = 0x4, fixed_abs, tag = 'smem constant byte address 0x4 - core index']
  #allocation1 [shape = 'u32[144,128]{1,0:T(1,128)}', space=vmem, size = 0x12000, scoped, tag = 'internal scratch']
  %s0 = inlined_call_operand.vmem [shape: bf16[16,2304], index: 0, kind: input, shape index: {}]
  %s1 = inlined_call_operand.vmem [shape: bf16[2304,600], index: 1, kind: input, shape index: {}]
  %s2 = inlined_call_operand.vmem [shape: f32[1,600], index: 2, kind: input, shape index: {}]
  %s3 = inlined_call_operand.vmem [shape: bf16[600,128], index: 3, kind: input, shape index: {}]
  %s4 = inlined_call_operand.vmem [shape: f32[1,128], index: 4, kind: input, shape index: {}]
  %s5 = inlined_call_operand.vmem [shape: bf16[128,128], index: 5, kind: input, shape index: {}]
  %s6 = inlined_call_operand.vmem [shape: f32[1,128], index: 6, kind: input, shape index: {}]
  %s7 = inlined_call_operand.vmem [shape: f32[16,128], index: 7, kind: output, shape index: {}]
  %s8 = sld [smem:[#allocation0]]
  $region38: #{fashion_cnn_forward.5} parent=0
    _
  %s10 = ssub.s32 1, %s8
  %s11 = scalar_select 0, %s10, %s8
  // Predicated region
  $region2: #{fashion_cnn_forward.5} parent=0 // pred_check
    _
  $region3: #{fashion_cnn_forward.5} parent=0 // pred_check_branch
    %13 = sbr.rel (0) target = $region5
  $region4: #{fashion_cnn_forward.5} parent=0 // pred_region
    _
  $region5: #{fashion_cnn_forward.5} parent=0 // pred_fallthru
    _
  // Predicated region
  $region6: #{fashion_cnn_forward.5} parent=0 // pred_check
    _
  $region7: #{fashion_cnn_forward.5} parent=0 // pred_check_branch
    %15 = sbr.rel (0) target = $region9
  $region8: #{fashion_cnn_forward.5} parent=0 // pred_region
    _
  $region9: #{fashion_cnn_forward.5} parent=0 // pred_fallthru
    _
  // Predicated region
  $region10: #{fashion_cnn_forward.5} parent=0 // pred_check
    _
  $region11: #{fashion_cnn_forward.5} parent=0 // pred_check_branch
    %17 = sbr.rel (0) target = $region13
  $region12: #{fashion_cnn_forward.5} parent=0 // pred_region
    _
  $region13: #{fashion_cnn_forward.5} parent=0 // pred_fallthru
    _
  // Predicated region
  $region14: #{fashion_cnn_forward.5} parent=0 // pred_check
    _
  $region15: #{fashion_cnn_forward.5} parent=0 // pred_check_branch
    %19 = sbr.rel (0) target = $region17
  $region16: #{fashion_cnn_forward.5} parent=0 // pred_region
    _
  $region17: #{fashion_cnn_forward.5} parent=0 // pred_fallthru
    _
  // Predicated region
  $region18: #{fashion_cnn_forward.5} parent=0 // pred_check
    _
  $region19: #{fashion_cnn_forward.5} parent=0 // pred_check_branch
    %21 = sbr.rel (0) target = $region21
  $region20: #{fashion_cnn_forward.5} parent=0 // pred_region
    _
  $region21: #{fashion_cnn_forward.5} parent=0 // pred_fallthru
    _
  // Predicated region
  $region22: #{fashion_cnn_forward.5} parent=0 // pred_check
    _
  $region23: #{fashion_cnn_forward.5} parent=0 // pred_check_branch
    %23 = sbr.rel (0) target = $region25
  $region24: #{fashion_cnn_forward.5} parent=0 // pred_region
    _
  $region25: #{fashion_cnn_forward.5} parent=0 // pred_fallthru
    _
  // Predicated region
  $region26: #{fashion_cnn_forward.5} parent=0 // pred_check
    _
  $region27: #{fashion_cnn_forward.5} parent=0 // pred_check_branch
    %25 = sbr.rel (0) target = $region29
  $region28: #{fashion_cnn_forward.5} parent=0 // pred_region
    _
  $region29: #{fashion_cnn_forward.5} parent=0 // pred_fallthru
    _
  %v27 = vld [vmem:[%s0] sm:$0xff]
  %v28 = vld [vmem:[%s0 + $0x8] sm:$0xff]
  %v29 = vld [vmem:[%s0 + $0x10] sm:$0xff]
  %v30 = vld [vmem:[%s0 + $0x18] sm:$0xff]
  %v31 = vld [vmem:[%s0 + $0x20] sm:$0xff]
  %v32 = vld [vmem:[%s0 + $0x28] sm:$0xff]
  %v33 = vld [vmem:[%s0 + $0x30] sm:$0xff]
  %v34 = vld [vmem:[%s0 + $0x38] sm:$0xff]
  %v35 = vld [vmem:[%s0 + $0x40] sm:$0xff]
  %v36 = vld [vmem:[%s0 + $0x48] sm:$0xff]
  %v37 = vld [vmem:[%s0 + $0x50] sm:$0xff]
  %v38 = vld [vmem:[%s0 + $0x58] sm:$0xff]
  %v39 = vld [vmem:[%s0 + $0x60] sm:$0xff]
  %v40 = vld [vmem:[%s0 + $0x68] sm:$0xff]
  %v41 = vld [vmem:[%s0 + $0x70] sm:$0xff]
  %v42 = vld [vmem:[%s0 + $0x78] sm:$0xff]
  %v43 = vld [vmem:[%s0 + $0x80] sm:$0xff]
  %v44 = vld [vmem:[%s0 + $0x88] sm:$0xff]
  %v45 = vld [vmem:[%s1] sm:$0xff]
  %v46 = vld [vmem:[%s1 + $0x8] sm:$0xff]
  %v47 = vld [vmem:[%s1 + $0x10] sm:$0xf]
  %v48 = vld [vmem:[%s1 + $0x14] sm:$0xff]
  %v49 = vld [vmem:[%s1 + $0x1c] sm:$0xff]
  %v50 = vld [vmem:[%s1 + $0x24] sm:$0xf]
  %v51 = vld [vmem:[%s1 + $0x28] sm:$0xff]
  %v52 = vld [vmem:[%s1 + $0x30] sm:$0xff]
  %v53 = vld [vmem:[%s1 + $0x38] sm:$0xf]
  %v54 = vld [vmem:[%s1 + $0x3c] sm:$0xff]
  %v55 = vld [vmem:[%s1 + $0x44] sm:$0xff]
  %v56 = vld [vmem:[%s1 + $0x4c] sm:$0xf]
  %v57 = vld [vmem:[%s1 + $0x50] sm:$0xff]
  %v58 = vld [vmem:[%s1 + $0x58] sm:$0xff]
  %v59 = vld [vmem:[%s1 + $0x60] sm:$0xf]
  %v60 = vld [vmem:[%s1 + $0x64] sm:$0xff]
  %v61 = vld [vmem:[%s1 + $0x6c] sm:$0xff]
  %v62 = vld [vmem:[%s1 + $0x74] sm:$0xf]
  %v63 = vld [vmem:[%s1 + $0x78] sm:$0xff]
  %v64 = vld [vmem:[%s1 + $0x80] sm:$0xff]
  %v65 = vld [vmem:[%s1 + $0x88] sm:$0xf]
  %v66 = vld [vmem:[%s1 + $0x8c] sm:$0xff]
  %v67 = vld [vmem:[%s1 + $0x94] sm:$0xff]
  %v68 = vld [vmem:[%s1 + $0x9c] sm:$0xf]
  %v69 = vld [vmem:[%s1 + $0xa0] sm:$0xff]
  %v70 = vld [vmem:[%s1 + $0xa8] sm:$0xff]
  %v71 = vld [vmem:[%s1 + $0xb0] sm:$0xf]
  %v72 = vld [vmem:[%s1 + $0xb4] sm:$0xff]
  %v73 = vld [vmem:[%s1 + $0xbc] sm:$0xff]
  %v74 = vld [vmem:[%s1 + $0xc4] sm:$0xf]
  %v75 = vld [vmem:[%s1 + $0xc8] sm:$0xff]
  %v76 = vld [vmem:[%s1 + $0xd0] sm:$0xff]
  %v77 = vld [vmem:[%s1 + $0xd8] sm:$0xf]
  %v78 = vld [vmem:[%s1 + $0xdc] sm:$0xff]
  %v79 = vld [vmem:[%s1 + $0xe4] sm:$0xff]
  %v80 = vld [vmem:[%s1 + $0xec] sm:$0xf]
  %v81 = vld [vmem:[%s1 + $0xf0] sm:$0xff]
  %v82 = vld [vmem:[%s1 + $0xf8] sm:$0xff]
  %v83 = vld [vmem:[%s1 + $0x100] sm:$0xf]
  %v84 = vld [vmem:[%s1 + $0x104] sm:$0xff]
  %v85 = vld [vmem:[%s1 + $0x10c] sm:$0xff]
  %v86 = vld [vmem:[%s1 + $0x114] sm:$0xf]
  %v87 = vld [vmem:[%s1 + $0x118] sm:$0xff]
  %v88 = vld [vmem:[%s1 + $0x120] sm:$0xff]
  %v89 = vld [vmem:[%s1 + $0x128] sm:$0xf]
  %v90 = vld [vmem:[%s1 + $0x12c] sm:$0xff]
  %v91 = vld [vmem:[%s1 + $0x134] sm:$0xff]
  %v92 = vld [vmem:[%s1 + $0x13c] sm:$0xf]
  %v93 = vld [vmem:[%s1 + $0x140] sm:$0xff]
  %v94 = vld [vmem:[%s1 + $0x148] sm:$0xff]
  %v95 = vld [vmem:[%s1 + $0x150] sm:$0xf]
  %v96 = vld [vmem:[%s1 + $0x154] sm:$0xff]
  %v97 = vld [vmem:[%s1 + $0x15c] sm:$0xff]
  %v98 = vld [vmem:[%s1 + $0x164] sm:$0xf]
  %v99 = vld [vmem:[%s1 + $0x168] sm:$0xff]
  %v100 = vld [vmem:[%s1 + $0x170] sm:$0xff]
  %v101 = vld [vmem:[%s1 + $0x178] sm:$0xf]
  %v102 = vld [vmem:[%s1 + $0x17c] sm:$0xff]
  %v103 = vld [vmem:[%s1 + $0x184] sm:$0xff]
  %v104 = vld [vmem:[%s1 + $0x18c] sm:$0xf]
  %v105 = vld [vmem:[%s1 + $0x190] sm:$0xff]
  %v106 = vld [vmem:[%s1 + $0x198] sm:$0xff]
  %v107 = vld [vmem:[%s1 + $0x1a0] sm:$0xf]
  %v108 = vld [vmem:[%s1 + $0x1a4] sm:$0xff]
  %v109 = vld [vmem:[%s1 + $0x1ac] sm:$0xff]
  %v110 = vld [vmem:[%s1 + $0x1b4] sm:$0xf]
  %v111 = vld [vmem:[%s1 + $0x1b8] sm:$0xff]
  %v112 = vld [vmem:[%s1 + $0x1c0] sm:$0xff]
  %v113 = vld [vmem:[%s1 + $0x1c8] sm:$0xf]
  %v114 = vld [vmem:[%s1 + $0x1cc] sm:$0xff]
  %v115 = vld [vmem:[%s1 + $0x1d4] sm:$0xff]
  %v116 = vld [vmem:[%s1 + $0x1dc] sm:$0xf]
  %v117 = vld [vmem:[%s1 + $0x1e0] sm:$0xff]
  %v118 = vld [vmem:[%s1 + $0x1e8] sm:$0xff]
  %v119 = vld [vmem:[%s1 + $0x1f0] sm:$0xf]
  %v120 = vld [vmem:[%s1 + $0x1f4] sm:$0xff]
  %v121 = vld [vmem:[%s1 + $0x1fc] sm:$0xff]
  %v122 = vld [vmem:[%s1 + $0x204] sm:$0xf]
  %v123 = vld [vmem:[%s1 + $0x208] sm:$0xff]
  %v124 = vld [vmem:[%s1 + $0x210] sm:$0xff]
  %v125 = vld [vmem:[%s1 + $0x218] sm:$0xf]
  %v126 = vld [vmem:[%s1 + $0x21c] sm:$0xff]
  %v127 = vld [vmem:[%s1 + $0x224] sm:$0xff]
  %v128 = vld [vmem:[%s1 + $0x22c] sm:$0xf]
  %v129 = vld [vmem:[%s1 + $0x230] sm:$0xff]
  %v130 = vld [vmem:[%s1 + $0x238] sm:$0xff]
  %v131 = vld [vmem:[%s1 + $0x240] sm:$0xf]
  %v132 = vld [vmem:[%s1 + $0x244] sm:$0xff]
  %v133 = vld [vmem:[%s1 + $0x24c] sm:$0xff]
  %v134 = vld [vmem:[%s1 + $0x254] sm:$0xf]
  %v135 = vld [vmem:[%s1 + $0x258] sm:$0xff]
  %v136 = vld [vmem:[%s1 + $0x260] sm:$0xff]
  %v137 = vld [vmem:[%s1 + $0x268] sm:$0xf]
  %v138 = vld [vmem:[%s1 + $0x26c] sm:$0xff]
  %v139 = vld [vmem:[%s1 + $0x274] sm:$0xff]
  %v140 = vld [vmem:[%s1 + $0x27c] sm:$0xf]
  %v141 = vld [vmem:[%s1 + $0x280] sm:$0xff]
  %v142 = vld [vmem:[%s1 + $0x288] sm:$0xff]
  %v143 = vld [vmem:[%s1 + $0x290] sm:$0xf]
  %v144 = vld [vmem:[%s1 + $0x294] sm:$0xff]
  %v145 = vld [vmem:[%s1 + $0x29c] sm:$0xff]
  %v146 = vld [vmem:[%s1 + $0x2a4] sm:$0xf]
  %v147 = vld [vmem:[%s1 + $0x2a8] sm:$0xff]
  %v148 = vld [vmem:[%s1 + $0x2b0] sm:$0xff]
  %v149 = vld [vmem:[%s1 + $0x2b8] sm:$0xf]
  %v150 = vld [vmem:[%s1 + $0x2bc] sm:$0xff]
  %v151 = vld [vmem:[%s1 + $0x2c4] sm:$0xff]
  %v152 = vld [vmem:[%s1 + $0x2cc] sm:$0xf]
  %v153 = vld [vmem:[%s1 + $0x2d0] sm:$0xff]
  %v154 = vld [vmem:[%s1 + $0x2d8] sm:$0xff]
  %v155 = vld [vmem:[%s1 + $0x2e0] sm:$0xf]
  %v156 = vld [vmem:[%s1 + $0x2e4] sm:$0xff]
  %v157 = vld [vmem:[%s1 + $0x2ec] sm:$0xff]
  %v158 = vld [vmem:[%s1 + $0x2f4] sm:$0xf]
  %v159 = vld [vmem:[%s1 + $0x2f8] sm:$0xff]
  %v160 = vld [vmem:[%s1 + $0x300] sm:$0xff]
  %v161 = vld [vmem:[%s1 + $0x308] sm:$0xf]
  %v162 = vld [vmem:[%s1 + $0x30c] sm:$0xff]
  %v163 = vld [vmem:[%s1 + $0x314] sm:$0xff]
  %v164 = vld [vmem:[%s1 + $0x31c] sm:$0xf]
  %v165 = vld [vmem:[%s1 + $0x320] sm:$0xff]
  %v166 = vld [vmem:[%s1 + $0x328] sm:$0xff]
  %v167 = vld [vmem:[%s1 + $0x330] sm:$0xf]
  %v168 = vld [vmem:[%s1 + $0x334] sm:$0xff]
  %v169 = vld [vmem:[%s1 + $0x33c] sm:$0xff]
  %v170 = vld [vmem:[%s1 + $0x344] sm:$0xf]
  %v171 = vld [vmem:[%s1 + $0x348] sm:$0xff]
  %v172 = vld [vmem:[%s1 + $0x350] sm:$0xff]
  %v173 = vld [vmem:[%s1 + $0x358] sm:$0xf]
  %v174 = vld [vmem:[%s1 + $0x35c] sm:$0xff]
  %v175 = vld [vmem:[%s1 + $0x364] sm:$0xff]
  %v176 = vld [vmem:[%s1 + $0x36c] sm:$0xf]
  %v177 = vld [vmem:[%s1 + $0x370] sm:$0xff]
  %v178 = vld [vmem:[%s1 + $0x378] sm:$0xff]
  %v179 = vld [vmem:[%s1 + $0x380] sm:$0xf]
  %v180 = vld [vmem:[%s1 + $0x384] sm:$0xff]
  %v181 = vld [vmem:[%s1 + $0x38c] sm:$0xff]
  %v182 = vld [vmem:[%s1 + $0x394] sm:$0xf]
  %v183 = vld [vmem:[%s1 + $0x398] sm:$0xff]
  %v184 = vld [vmem:[%s1 + $0x3a0] sm:$0xff]
  %v185 = vld [vmem:[%s1 + $0x3a8] sm:$0xf]
  %v186 = vld [vmem:[%s1 + $0x3ac] sm:$0xff]
  %v187 = vld [vmem:[%s1 + $0x3b4] sm:$0xff]
  %v188 = vld [vmem:[%s1 + $0x3bc] sm:$0xf]
  %v189 = vld [vmem:[%s1 + $0x3c0] sm:$0xff]
  %v190 = vld [vmem:[%s1 + $0x3c8] sm:$0xff]
  %v191 = vld [vmem:[%s1 + $0x3d0] sm:$0xf]
  %v192 = vld [vmem:[%s1 + $0x3d4] sm:$0xff]
  %v193 = vld [vmem:[%s1 + $0x3dc] sm:$0xff]
  %v194 = vld [vmem:[%s1 + $0x3e4] sm:$0xf]
  %v195 = vld [vmem:[%s1 + $0x3e8] sm:$0xff]
  %v196 = vld [vmem:[%s1 + $0x3f0] sm:$0xff]
  %v197 = vld [vmem:[%s1 + $0x3f8] sm:$0xf]
  %v198 = vld [vmem:[%s1 + $0x3fc] sm:$0xff]
  %v199 = vld [vmem:[%s1 + $0x404] sm:$0xff]
  %v200 = vld [vmem:[%s1 + $0x40c] sm:$0xf]
  %v201 = vld [vmem:[%s1 + $0x410] sm:$0xff]
  %v202 = vld [vmem:[%s1 + $0x418] sm:$0xff]
  %v203 = vld [vmem:[%s1 + $0x420] sm:$0xf]
  %v204 = vld [vmem:[%s1 + $0x424] sm:$0xff]
  %v205 = vld [vmem:[%s1 + $0x42c] sm:$0xff]
  %v206 = vld [vmem:[%s1 + $0x434] sm:$0xf]
  %v207 = vld [vmem:[%s1 + $0x438] sm:$0xff]
  %v208 = vld [vmem:[%s1 + $0x440] sm:$0xff]
  %v209 = vld [vmem:[%s1 + $0x448] sm:$0xf]
  %v210 = vld [vmem:[%s1 + $0x44c] sm:$0xff]
  %v211 = vld [vmem:[%s1 + $0x454] sm:$0xff]
  %v212 = vld [vmem:[%s1 + $0x45c] sm:$0xf]
  %v213 = vld [vmem:[%s1 + $0x460] sm:$0xff]
  %v214 = vld [vmem:[%s1 + $0x468] sm:$0xff]
  %v215 = vld [vmem:[%s1 + $0x470] sm:$0xf]
  %v216 = vld [vmem:[%s1 + $0x474] sm:$0xff]
  %v217 = vld [vmem:[%s1 + $0x47c] sm:$0xff]
  %v218 = vld [vmem:[%s1 + $0x484] sm:$0xf]
  %v219 = vld [vmem:[%s1 + $0x488] sm:$0xff]
  %v220 = vld [vmem:[%s1 + $0x490] sm:$0xff]
  %v221 = vld [vmem:[%s1 + $0x498] sm:$0xf]
  %v222 = vld [vmem:[%s1 + $0x49c] sm:$0xff]
  %v223 = vld [vmem:[%s1 + $0x4a4] sm:$0xff]
  %v224 = vld [vmem:[%s1 + $0x4ac] sm:$0xf]
  %v225 = vld [vmem:[%s1 + $0x4b0] sm:$0xff]
  %v226 = vld [vmem:[%s1 + $0x4b8] sm:$0xff]
  %v227 = vld [vmem:[%s1 + $0x4c0] sm:$0xf]
  %v228 = vld [vmem:[%s1 + $0x4c4] sm:$0xff]
  %v229 = vld [vmem:[%s1 + $0x4cc] sm:$0xff]
  %v230 = vld [vmem:[%s1 + $0x4d4] sm:$0xf]
  %v231 = vld [vmem:[%s1 + $0x4d8] sm:$0xff]
  %v232 = vld [vmem:[%s1 + $0x4e0] sm:$0xff]
  %v233 = vld [vmem:[%s1 + $0x4e8] sm:$0xf]
  %v234 = vld [vmem:[%s1 + $0x4ec] sm:$0xff]
  %v235 = vld [vmem:[%s1 + $0x4f4] sm:$0xff]
  %v236 = vld [vmem:[%s1 + $0x4fc] sm:$0xf]
  %v237 = vld [vmem:[%s1 + $0x500] sm:$0xff]
  %v238 = vld [vmem:[%s1 + $0x508] sm:$0xff]
  %v239 = vld [vmem:[%s1 + $0x510] sm:$0xf]
  %v240 = vld [vmem:[%s1 + $0x514] sm:$0xff]
  %v241 = vld [vmem:[%s1 + $0x51c] sm:$0xff]
  %v242 = vld [vmem:[%s1 + $0x524] sm:$0xf]
  %v243 = vld [vmem:[%s1 + $0x528] sm:$0xff]
  %v244 = vld [vmem:[%s1 + $0x530] sm:$0xff]
  %v245 = vld [vmem:[%s1 + $0x538] sm:$0xf]
  %v246 = vld [vmem:[%s1 + $0x53c] sm:$0xff]
  %v247 = vld [vmem:[%s1 + $0x544] sm:$0xff]
  %v248 = vld [vmem:[%s1 + $0x54c] sm:$0xf]
  %v249 = vld [vmem:[%s1 + $0x550] sm:$0xff]
  %v250 = vld [vmem:[%s1 + $0x558] sm:$0xff]
  %v251 = vld [vmem:[%s1 + $0x560] sm:$0xf]
  %v252 = vld [vmem:[%s1 + $0x564] sm:$0xff]
  %v253 = vld [vmem:[%s1 + $0x56c] sm:$0xff]
  %v254 = vld [vmem:[%s1 + $0x574] sm:$0xf]
  %v255 = vld [vmem:[%s1 + $0x578] sm:$0xff]
  %v256 = vld [vmem:[%s1 + $0x580] sm:$0xff]
  %v257 = vld [vmem:[%s1 + $0x588] sm:$0xf]
  %v258 = vld [vmem:[%s1 + $0x58c] sm:$0xff]
  %v259 = vld [vmem:[%s1 + $0x594] sm:$0xff]
  %v260 = vld [vmem:[%s1 + $0x59c] sm:$0xf]
  %v261 = vld [vmem:[%s1 + $0x5a0] sm:$0xff]
  %v262 = vld [vmem:[%s1 + $0x5a8] sm:$0xff]
  %v263 = vld [vmem:[%s1 + $0x5b0] sm:$0xf]
  %v264 = vld [vmem:[%s1 + $0x5b4] sm:$0xff]
  %v265 = vld [vmem:[%s1 + $0x5bc] sm:$0xff]
  %v266 = vld [vmem:[%s1 + $0x5c4] sm:$0xf]
  %v267 = vld [vmem:[%s1 + $0x5c8] sm:$0xff]
  %v268 = vld [vmem:[%s1 + $0x5d0] sm:$0xff]
  %v269 = vld [vmem:[%s1 + $0x5d8] sm:$0xf]
  %v270 = vld [vmem:[%s1 + $0x5dc] sm:$0xff]
  %v271 = vld [vmem:[%s1 + $0x5e4] sm:$0xff]
  %v272 = vld [vmem:[%s1 + $0x5ec] sm:$0xf]
  %v273 = vld [vmem:[%s1 + $0x5f0] sm:$0xff]
  %v274 = vld [vmem:[%s1 + $0x5f8] sm:$0xff]
  %v275 = vld [vmem:[%s1 + $0x600] sm:$0xf]
  %v276 = vld [vmem:[%s1 + $0x604] sm:$0xff]
  %v277 = vld [vmem:[%s1 + $0x60c] sm:$0xff]
  %v278 = vld [vmem:[%s1 + $0x614] sm:$0xf]
  %v279 = vld [vmem:[%s1 + $0x618] sm:$0xff]
  %v280 = vld [vmem:[%s1 + $0x620] sm:$0xff]
  %v281 = vld [vmem:[%s1 + $0x628] sm:$0xf]
  %v282 = vld [vmem:[%s1 + $0x62c] sm:$0xff]
  %v283 = vld [vmem:[%s1 + $0x634] sm:$0xff]
  %v284 = vld [vmem:[%s1 + $0x63c] sm:$0xf]
  %v285 = vld [vmem:[%s1 + $0x640] sm:$0xff]
  %v286 = vld [vmem:[%s1 + $0x648] sm:$0xff]
  %v287 = vld [vmem:[%s1 + $0x650] sm:$0xf]
  %v288 = vld [vmem:[%s1 + $0x654] sm:$0xff]
  %v289 = vld [vmem:[%s1 + $0x65c] sm:$0xff]
  %v290 = vld [vmem:[%s1 + $0x664] sm:$0xf]
  %v291 = vld [vmem:[%s1 + $0x668] sm:$0xff]
  %v292 = vld [vmem:[%s1 + $0x670] sm:$0xff]
  %v293 = vld [vmem:[%s1 + $0x678] sm:$0xf]
  %v294 = vld [vmem:[%s1 + $0x67c] sm:$0xff]
  %v295 = vld [vmem:[%s1 + $0x684] sm:$0xff]
  %v296 = vld [vmem:[%s1 + $0x68c] sm:$0xf]
  %v297 = vld [vmem:[%s1 + $0x690] sm:$0xff]
  %v298 = vld [vmem:[%s1 + $0x698] sm:$0xff]
  %v299 = vld [vmem:[%s1 + $0x6a0] sm:$0xf]
  %v300 = vld [vmem:[%s1 + $0x6a4] sm:$0xff]
  %v301 = vld [vmem:[%s1 + $0x6ac] sm:$0xff]
  %v302 = vld [vmem:[%s1 + $0x6b4] sm:$0xf]
  %v303 = vld [vmem:[%s1 + $0x6b8] sm:$0xff]
  %v304 = vld [vmem:[%s1 + $0x6c0] sm:$0xff]
  %v305 = vld [vmem:[%s1 + $0x6c8] sm:$0xf]
  %v306 = vld [vmem:[%s1 + $0x6cc] sm:$0xff]
  %v307 = vld [vmem:[%s1 + $0x6d4] sm:$0xff]
  %v308 = vld [vmem:[%s1 + $0x6dc] sm:$0xf]
  %v309 = vld [vmem:[%s1 + $0x6e0] sm:$0xff]
  %v310 = vld [vmem:[%s1 + $0x6e8] sm:$0xff]
  %v311 = vld [vmem:[%s1 + $0x6f0] sm:$0xf]
  %v312 = vld [vmem:[%s1 + $0x6f4] sm:$0xff]
  %v313 = vld [vmem:[%s1 + $0x6fc] sm:$0xff]
  %v314 = vld [vmem:[%s1 + $0x704] sm:$0xf]
  %v315 = vld [vmem:[%s1 + $0x708] sm:$0xff]
  %v316 = vld [vmem:[%s1 + $0x710] sm:$0xff]
  %v317 = vld [vmem:[%s1 + $0x718] sm:$0xf]
  %v318 = vld [vmem:[%s1 + $0x71c] sm:$0xff]
  %v319 = vld [vmem:[%s1 + $0x724] sm:$0xff]
  %v320 = vld [vmem:[%s1 + $0x72c] sm:$0xf]
  %v321 = vld [vmem:[%s1 + $0x730] sm:$0xff]
  %v322 = vld [vmem:[%s1 + $0x738] sm:$0xff]
  %v323 = vld [vmem:[%s1 + $0x740] sm:$0xf]
  %v324 = vld [vmem:[%s1 + $0x744] sm:$0xff]
  %v325 = vld [vmem:[%s1 + $0x74c] sm:$0xff]
  %v326 = vld [vmem:[%s1 + $0x754] sm:$0xf]
  %v327 = vld [vmem:[%s1 + $0x758] sm:$0xff]
  %v328 = vld [vmem:[%s1 + $0x760] sm:$0xff]
  %v329 = vld [vmem:[%s1 + $0x768] sm:$0xf]
  %v330 = vld [vmem:[%s1 + $0x76c] sm:$0xff]
  %v331 = vld [vmem:[%s1 + $0x774] sm:$0xff]
  %v332 = vld [vmem:[%s1 + $0x77c] sm:$0xf]
  %v333 = vld [vmem:[%s1 + $0x780] sm:$0xff]
  %v334 = vld [vmem:[%s1 + $0x788] sm:$0xff]
  %v335 = vld [vmem:[%s1 + $0x790] sm:$0xf]
  %v336 = vld [vmem:[%s1 + $0x794] sm:$0xff]
  %v337 = vld [vmem:[%s1 + $0x79c] sm:$0xff]
  %v338 = vld [vmem:[%s1 + $0x7a4] sm:$0xf]
  %v339 = vld [vmem:[%s1 + $0x7a8] sm:$0xff]
  %v340 = vld [vmem:[%s1 + $0x7b0] sm:$0xff]
  %v341 = vld [vmem:[%s1 + $0x7b8] sm:$0xf]
  %v342 = vld [vmem:[%s1 + $0x7bc] sm:$0xff]
  %v343 = vld [vmem:[%s1 + $0x7c4] sm:$0xff]
  %v344 = vld [vmem:[%s1 + $0x7cc] sm:$0xf]
  %v345 = vld [vmem:[%s1 + $0x7d0] sm:$0xff]
  %v346 = vld [vmem:[%s1 + $0x7d8] sm:$0xff]
  %v347 = vld [vmem:[%s1 + $0x7e0] sm:$0xf]
  %v348 = vld [vmem:[%s1 + $0x7e4] sm:$0xff]
  %v349 = vld [vmem:[%s1 + $0x7ec] sm:$0xff]
  %v350 = vld [vmem:[%s1 + $0x7f4] sm:$0xf]
  %v351 = vld [vmem:[%s1 + $0x7f8] sm:$0xff]
  %v352 = vld [vmem:[%s1 + $0x800] sm:$0xff]
  %v353 = vld [vmem:[%s1 + $0x808] sm:$0xf]
  %v354 = vld [vmem:[%s1 + $0x80c] sm:$0xff]
  %v355 = vld [vmem:[%s1 + $0x814] sm:$0xff]
  %v356 = vld [vmem:[%s1 + $0x81c] sm:$0xf]
  %v357 = vld [vmem:[%s1 + $0x820] sm:$0xff]
  %v358 = vld [vmem:[%s1 + $0x828] sm:$0xff]
  %v359 = vld [vmem:[%s1 + $0x830] sm:$0xf]
  %v360 = vld [vmem:[%s1 + $0x834] sm:$0xff]
  %v361 = vld [vmem:[%s1 + $0x83c] sm:$0xff]
  %v362 = vld [vmem:[%s1 + $0x844] sm:$0xf]
  %v363 = vld [vmem:[%s1 + $0x848] sm:$0xff]
  %v364 = vld [vmem:[%s1 + $0x850] sm:$0xff]
  %v365 = vld [vmem:[%s1 + $0x858] sm:$0xf]
  %v366 = vld [vmem:[%s1 + $0x85c] sm:$0xff]
  %v367 = vld [vmem:[%s1 + $0x864] sm:$0xff]
  %v368 = vld [vmem:[%s1 + $0x86c] sm:$0xf]
  %v369 = vld [vmem:[%s1 + $0x870] sm:$0xff]
  %v370 = vld [vmem:[%s1 + $0x878] sm:$0xff]
  %v371 = vld [vmem:[%s1 + $0x880] sm:$0xf]
  %v372 = vld [vmem:[%s1 + $0x884] sm:$0xff]
  %v373 = vld [vmem:[%s1 + $0x88c] sm:$0xff]
  %v374 = vld [vmem:[%s1 + $0x894] sm:$0xf]
  %v375 = vld [vmem:[%s1 + $0x898] sm:$0xff]
  %v376 = vld [vmem:[%s1 + $0x8a0] sm:$0xff]
  %v377 = vld [vmem:[%s1 + $0x8a8] sm:$0xf]
  %v378 = vld [vmem:[%s1 + $0x8ac] sm:$0xff]
  %v379 = vld [vmem:[%s1 + $0x8b4] sm:$0xff]
  %v380 = vld [vmem:[%s1 + $0x8bc] sm:$0xf]
  %v381 = vld [vmem:[%s1 + $0x8c0] sm:$0xff]
  %v382 = vld [vmem:[%s1 + $0x8c8] sm:$0xff]
  %v383 = vld [vmem:[%s1 + $0x8d0] sm:$0xf]
  %v384 = vld [vmem:[%s1 + $0x8d4] sm:$0xff]
  %v385 = vld [vmem:[%s1 + $0x8dc] sm:$0xff]
  %v386 = vld [vmem:[%s1 + $0x8e4] sm:$0xf]
  %v387 = vld [vmem:[%s1 + $0x8e8] sm:$0xff]
  %v388 = vld [vmem:[%s1 + $0x8f0] sm:$0xff]
  %v389 = vld [vmem:[%s1 + $0x8f8] sm:$0xf]
  %v390 = vld [vmem:[%s1 + $0x8fc] sm:$0xff]
  %v391 = vld [vmem:[%s1 + $0x904] sm:$0xff]
  %v392 = vld [vmem:[%s1 + $0x90c] sm:$0xf]
  %v393 = vld [vmem:[%s1 + $0x910] sm:$0xff]
  %v394 = vld [vmem:[%s1 + $0x918] sm:$0xff]
  %v395 = vld [vmem:[%s1 + $0x920] sm:$0xf]
  %v396 = vld [vmem:[%s1 + $0x924] sm:$0xff]
  %v397 = vld [vmem:[%s1 + $0x92c] sm:$0xff]
  %v398 = vld [vmem:[%s1 + $0x934] sm:$0xf]
  %v399 = vld [vmem:[%s1 + $0x938] sm:$0xff]
  %v400 = vld [vmem:[%s1 + $0x940] sm:$0xff]
  %v401 = vld [vmem:[%s1 + $0x948] sm:$0xf]
  %v402 = vld [vmem:[%s1 + $0x94c] sm:$0xff]
  %v403 = vld [vmem:[%s1 + $0x954] sm:$0xff]
  %v404 = vld [vmem:[%s1 + $0x95c] sm:$0xf]
  %v405 = vld [vmem:[%s1 + $0x960] sm:$0xff]
  %v406 = vld [vmem:[%s1 + $0x968] sm:$0xff]
  %v407 = vld [vmem:[%s1 + $0x970] sm:$0xf]
  %v408 = vld [vmem:[%s1 + $0x974] sm:$0xff]
  %v409 = vld [vmem:[%s1 + $0x97c] sm:$0xff]
  %v410 = vld [vmem:[%s1 + $0x984] sm:$0xf]
  %v411 = vld [vmem:[%s1 + $0x988] sm:$0xff]
  %v412 = vld [vmem:[%s1 + $0x990] sm:$0xff]
  %v413 = vld [vmem:[%s1 + $0x998] sm:$0xf]
  %v414 = vld [vmem:[%s1 + $0x99c] sm:$0xff]
  %v415 = vld [vmem:[%s1 + $0x9a4] sm:$0xff]
  %v416 = vld [vmem:[%s1 + $0x9ac] sm:$0xf]
  %v417 = vld [vmem:[%s1 + $0x9b0] sm:$0xff]
  %v418 = vld [vmem:[%s1 + $0x9b8] sm:$0xff]
  %v419 = vld [vmem:[%s1 + $0x9c0] sm:$0xf]
  %v420 = vld [vmem:[%s1 + $0x9c4] sm:$0xff]
  %v421 = vld [vmem:[%s1 + $0x9cc] sm:$0xff]
  %v422 = vld [vmem:[%s1 + $0x9d4] sm:$0xf]
  %v423 = vld [vmem:[%s1 + $0x9d8] sm:$0xff]
  %v424 = vld [vmem:[%s1 + $0x9e0] sm:$0xff]
  %v425 = vld [vmem:[%s1 + $0x9e8] sm:$0xf]
  %v426 = vld [vmem:[%s1 + $0x9ec] sm:$0xff]
  %v427 = vld [vmem:[%s1 + $0x9f4] sm:$0xff]
  %v428 = vld [vmem:[%s1 + $0x9fc] sm:$0xf]
  %v429 = vld [vmem:[%s1 + $0xa00] sm:$0xff]
  %v430 = vld [vmem:[%s1 + $0xa08] sm:$0xff]
  %v431 = vld [vmem:[%s1 + $0xa10] sm:$0xf]
  %v432 = vld [vmem:[%s1 + $0xa14] sm:$0xff]
  %v433 = vld [vmem:[%s1 + $0xa1c] sm:$0xff]
  %v434 = vld [vmem:[%s1 + $0xa24] sm:$0xf]
  %v435 = vld [vmem:[%s1 + $0xa28] sm:$0xff]
  %v436 = vld [vmem:[%s1 + $0xa30] sm:$0xff]
  %v437 = vld [vmem:[%s1 + $0xa38] sm:$0xf]
  %v438 = vld [vmem:[%s1 + $0xa3c] sm:$0xff]
  %v439 = vld [vmem:[%s1 + $0xa44] sm:$0xff]
  %v440 = vld [vmem:[%s1 + $0xa4c] sm:$0xf]
  %v441 = vld [vmem:[%s1 + $0xa50] sm:$0xff]
  %v442 = vld [vmem:[%s1 + $0xa58] sm:$0xff]
  %v443 = vld [vmem:[%s1 + $0xa60] sm:$0xf]
  %v444 = vld [vmem:[%s1 + $0xa64] sm:$0xff]
  %v445 = vld [vmem:[%s1 + $0xa6c] sm:$0xff]
  %v446 = vld [vmem:[%s1 + $0xa74] sm:$0xf]
  %v447 = vld [vmem:[%s1 + $0xa78] sm:$0xff]
  %v448 = vld [vmem:[%s1 + $0xa80] sm:$0xff]
  %v449 = vld [vmem:[%s1 + $0xa88] sm:$0xf]
  %v450 = vld [vmem:[%s1 + $0xa8c] sm:$0xff]
  %v451 = vld [vmem:[%s1 + $0xa94] sm:$0xff]
  %v452 = vld [vmem:[%s1 + $0xa9c] sm:$0xf]
  %v453 = vld [vmem:[%s1 + $0xaa0] sm:$0xff]
  %v454 = vld [vmem:[%s1 + $0xaa8] sm:$0xff]
  %v455 = vld [vmem:[%s1 + $0xab0] sm:$0xf]
  %v456 = vld [vmem:[%s1 + $0xab4] sm:$0xff]
  %v457 = vld [vmem:[%s1 + $0xabc] sm:$0xff]
  %v458 = vld [vmem:[%s1 + $0xac4] sm:$0xf]
  %v459 = vld [vmem:[%s1 + $0xac8] sm:$0xff]
  %v460 = vld [vmem:[%s1 + $0xad0] sm:$0xff]
  %v461 = vld [vmem:[%s1 + $0xad8] sm:$0xf]
  %v462 = vld [vmem:[%s1 + $0xadc] sm:$0xff]
  %v463 = vld [vmem:[%s1 + $0xae4] sm:$0xff]
  %v464 = vld [vmem:[%s1 + $0xaec] sm:$0xf]
  %v465 = vld [vmem:[%s1 + $0xaf0] sm:$0xff]
  %v466 = vld [vmem:[%s1 + $0xaf8] sm:$0xff]
  %v467 = vld [vmem:[%s1 + $0xb00] sm:$0xf]
  %v468 = vld [vmem:[%s1 + $0xb04] sm:$0xff]
  %v469 = vld [vmem:[%s1 + $0xb0c] sm:$0xff]
  %v470 = vld [vmem:[%s1 + $0xb14] sm:$0xf]
  %v471 = vld [vmem:[%s1 + $0xb18] sm:$0xff]
  %v472 = vld [vmem:[%s1 + $0xb20] sm:$0xff]
  %v473 = vld [vmem:[%s1 + $0xb28] sm:$0xf]
  %v474 = vld [vmem:[%s1 + $0xb2c] sm:$0xff]
  %v475 = vld [vmem:[%s1 + $0xb34] sm:$0xff]
  %v476 = vld [vmem:[%s1 + $0xb3c] sm:$0xf]
  %v477 = vld [vmem:[%s1 + $0xb40] sm:$0xff]
  %v478 = vld [vmem:[%s1 + $0xb48] sm:$0xff]
  %v479 = vld [vmem:[%s1 + $0xb50] sm:$0xf]
  %v480 = vld [vmem:[%s1 + $0xb54] sm:$0xff]
  %v481 = vld [vmem:[%s1 + $0xb5c] sm:$0xff]
  %v482 = vld [vmem:[%s1 + $0xb64] sm:$0xf]
  %v483 = vld [vmem:[%s1 + $0xb68] sm:$0xff]
  %v484 = vld [vmem:[%s1 + $0xb70] sm:$0xff]
  %v485 = vld [vmem:[%s1 + $0xb78] sm:$0xf]
  %v486 = vld [vmem:[%s1 + $0xb7c] sm:$0xff]
  %v487 = vld [vmem:[%s1 + $0xb84] sm:$0xff]
  %v488 = vld [vmem:[%s1 + $0xb8c] sm:$0xf]
  %v489 = vld [vmem:[%s1 + $0xb90] sm:$0xff]
  %v490 = vld [vmem:[%s1 + $0xb98] sm:$0xff]
  %v491 = vld [vmem:[%s1 + $0xba0] sm:$0xf]
  %v492 = vld [vmem:[%s1 + $0xba4] sm:$0xff]
  %v493 = vld [vmem:[%s1 + $0xbac] sm:$0xff]
  %v494 = vld [vmem:[%s1 + $0xbb4] sm:$0xf]
  %v495 = vld [vmem:[%s1 + $0xbb8] sm:$0xff]
  %v496 = vld [vmem:[%s1 + $0xbc0] sm:$0xff]
  %v497 = vld [vmem:[%s1 + $0xbc8] sm:$0xf]
  %v498 = vld [vmem:[%s1 + $0xbcc] sm:$0xff]
  %v499 = vld [vmem:[%s1 + $0xbd4] sm:$0xff]
  %v500 = vld [vmem:[%s1 + $0xbdc] sm:$0xf]
  %v501 = vld [vmem:[%s1 + $0xbe0] sm:$0xff]
  %v502 = vld [vmem:[%s1 + $0xbe8] sm:$0xff]
  %v503 = vld [vmem:[%s1 + $0xbf0] sm:$0xf]
  %v504 = vld [vmem:[%s1 + $0xbf4] sm:$0xff]
  %v505 = vld [vmem:[%s1 + $0xbfc] sm:$0xff]
  %v506 = vld [vmem:[%s1 + $0xc04] sm:$0xf]
  %v507 = vld [vmem:[%s1 + $0xc08] sm:$0xff]
  %v508 = vld [vmem:[%s1 + $0xc10] sm:$0xff]
  %v509 = vld [vmem:[%s1 + $0xc18] sm:$0xf]
  %v510 = vld [vmem:[%s1 + $0xc1c] sm:$0xff]
  %v511 = vld [vmem:[%s1 + $0xc24] sm:$0xff]
  %v512 = vld [vmem:[%s1 + $0xc2c] sm:$0xf]
  %v513 = vld [vmem:[%s1 + $0xc30] sm:$0xff]
  %v514 = vld [vmem:[%s1 + $0xc38] sm:$0xff]
  %v515 = vld [vmem:[%s1 + $0xc40] sm:$0xf]
  %v516 = vld [vmem:[%s1 + $0xc44] sm:$0xff]
  %v517 = vld [vmem:[%s1 + $0xc4c] sm:$0xff]
  %v518 = vld [vmem:[%s1 + $0xc54] sm:$0xf]
  %v519 = vld [vmem:[%s1 + $0xc58] sm:$0xff]
  %v520 = vld [vmem:[%s1 + $0xc60] sm:$0xff]
  %v521 = vld [vmem:[%s1 + $0xc68] sm:$0xf]
  %v522 = vld [vmem:[%s1 + $0xc6c] sm:$0xff]
  %v523 = vld [vmem:[%s1 + $0xc74] sm:$0xff]
  %v524 = vld [vmem:[%s1 + $0xc7c] sm:$0xf]
  %v525 = vld [vmem:[%s1 + $0xc80] sm:$0xff]
  %v526 = vld [vmem:[%s1 + $0xc88] sm:$0xff]
  %v527 = vld [vmem:[%s1 + $0xc90] sm:$0xf]
  %v528 = vld [vmem:[%s1 + $0xc94] sm:$0xff]
  %v529 = vld [vmem:[%s1 + $0xc9c] sm:$0xff]
  %v530 = vld [vmem:[%s1 + $0xca4] sm:$0xf]
  %v531 = vld [vmem:[%s1 + $0xca8] sm:$0xff]
  %v532 = vld [vmem:[%s1 + $0xcb0] sm:$0xff]
  %v533 = vld [vmem:[%s1 + $0xcb8] sm:$0xf]
  %v534 = vld [vmem:[%s1 + $0xcbc] sm:$0xff]
  %v535 = vld [vmem:[%s1 + $0xcc4] sm:$0xff]
  %v536 = vld [vmem:[%s1 + $0xccc] sm:$0xf]
  %v537 = vld [vmem:[%s1 + $0xcd0] sm:$0xff]
  %v538 = vld [vmem:[%s1 + $0xcd8] sm:$0xff]
  %v539 = vld [vmem:[%s1 + $0xce0] sm:$0xf]
  %v540 = vld [vmem:[%s1 + $0xce4] sm:$0xff]
  %v541 = vld [vmem:[%s1 + $0xcec] sm:$0xff]
  %v542 = vld [vmem:[%s1 + $0xcf4] sm:$0xf]
  %v543 = vld [vmem:[%s1 + $0xcf8] sm:$0xff]
  %v544 = vld [vmem:[%s1 + $0xd00] sm:$0xff]
  %v545 = vld [vmem:[%s1 + $0xd08] sm:$0xf]
  %v546 = vld [vmem:[%s1 + $0xd0c] sm:$0xff]
  %v547 = vld [vmem:[%s1 + $0xd14] sm:$0xff]
  %v548 = vld [vmem:[%s1 + $0xd1c] sm:$0xf]
  %v549 = vld [vmem:[%s1 + $0xd20] sm:$0xff]
  %v550 = vld [vmem:[%s1 + $0xd28] sm:$0xff]
  %v551 = vld [vmem:[%s1 + $0xd30] sm:$0xf]
  %v552 = vld [vmem:[%s1 + $0xd34] sm:$0xff]
  %v553 = vld [vmem:[%s1 + $0xd3c] sm:$0xff]
  %v554 = vld [vmem:[%s1 + $0xd44] sm:$0xf]
  %v555 = vld [vmem:[%s1 + $0xd48] sm:$0xff]
  %v556 = vld [vmem:[%s1 + $0xd50] sm:$0xff]
  %v557 = vld [vmem:[%s1 + $0xd58] sm:$0xf]
  %v558 = vld [vmem:[%s1 + $0xd5c] sm:$0xff]
  %v559 = vld [vmem:[%s1 + $0xd64] sm:$0xff]
  %v560 = vld [vmem:[%s1 + $0xd6c] sm:$0xf]
  %v561 = vld [vmem:[%s1 + $0xd70] sm:$0xff]
  %v562 = vld [vmem:[%s1 + $0xd78] sm:$0xff]
  %v563 = vld [vmem:[%s1 + $0xd80] sm:$0xf]
  %v564 = vld [vmem:[%s1 + $0xd84] sm:$0xff]
  %v565 = vld [vmem:[%s1 + $0xd8c] sm:$0xff]
  %v566 = vld [vmem:[%s1 + $0xd94] sm:$0xf]
  %v567 = vld [vmem:[%s1 + $0xd98] sm:$0xff]
  %v568 = vld [vmem:[%s1 + $0xda0] sm:$0xff]
  %v569 = vld [vmem:[%s1 + $0xda8] sm:$0xf]
  %v570 = vld [vmem:[%s1 + $0xdac] sm:$0xff]
  %v571 = vld [vmem:[%s1 + $0xdb4] sm:$0xff]
  %v572 = vld [vmem:[%s1 + $0xdbc] sm:$0xf]
  %v573 = vld [vmem:[%s1 + $0xdc0] sm:$0xff]
  %v574 = vld [vmem:[%s1 + $0xdc8] sm:$0xff]
  %v575 = vld [vmem:[%s1 + $0xdd0] sm:$0xf]
  %v576 = vld [vmem:[%s1 + $0xdd4] sm:$0xff]
  %v577 = vld [vmem:[%s1 + $0xddc] sm:$0xff]
  %v578 = vld [vmem:[%s1 + $0xde4] sm:$0xf]
  %v579 = vld [vmem:[%s1 + $0xde8] sm:$0xff]
  %v580 = vld [vmem:[%s1 + $0xdf0] sm:$0xff]
  %v581 = vld [vmem:[%s1 + $0xdf8] sm:$0xf]
  %v582 = vld [vmem:[%s1 + $0xdfc] sm:$0xff]
  %v583 = vld [vmem:[%s1 + $0xe04] sm:$0xff]
  %v584 = vld [vmem:[%s1 + $0xe0c] sm:$0xf]
  %v585 = vld [vmem:[%s1 + $0xe10] sm:$0xff]
  %v586 = vld [vmem:[%s1 + $0xe18] sm:$0xff]
  %v587 = vld [vmem:[%s1 + $0xe20] sm:$0xf]
  %v588 = vld [vmem:[%s1 + $0xe24] sm:$0xff]
  %v589 = vld [vmem:[%s1 + $0xe2c] sm:$0xff]
  %v590 = vld [vmem:[%s1 + $0xe34] sm:$0xf]
  %v591 = vld [vmem:[%s1 + $0xe38] sm:$0xff]
  %v592 = vld [vmem:[%s1 + $0xe40] sm:$0xff]
  %v593 = vld [vmem:[%s1 + $0xe48] sm:$0xf]
  %v594 = vld [vmem:[%s1 + $0xe4c] sm:$0xff]
  %v595 = vld [vmem:[%s1 + $0xe54] sm:$0xff]
  %v596 = vld [vmem:[%s1 + $0xe5c] sm:$0xf]
  %v597 = vld [vmem:[%s1 + $0xe60] sm:$0xff]
  %v598 = vld [vmem:[%s1 + $0xe68] sm:$0xff]
  %v599 = vld [vmem:[%s1 + $0xe70] sm:$0xf]
  %v600 = vld [vmem:[%s1 + $0xe74] sm:$0xff]
  %v601 = vld [vmem:[%s1 + $0xe7c] sm:$0xff]
  %v602 = vld [vmem:[%s1 + $0xe84] sm:$0xf]
  %v603 = vld [vmem:[%s1 + $0xe88] sm:$0xff]
  %v604 = vld [vmem:[%s1 + $0xe90] sm:$0xff]
  %v605 = vld [vmem:[%s1 + $0xe98] sm:$0xf]
  %v606 = vld [vmem:[%s1 + $0xe9c] sm:$0xff]
  %v607 = vld [vmem:[%s1 + $0xea4] sm:$0xff]
  %v608 = vld [vmem:[%s1 + $0xeac] sm:$0xf]
  %v609 = vld [vmem:[%s1 + $0xeb0] sm:$0xff]
  %v610 = vld [vmem:[%s1 + $0xeb8] sm:$0xff]
  %v611 = vld [vmem:[%s1 + $0xec0] sm:$0xf]
  %v612 = vld [vmem:[%s1 + $0xec4] sm:$0xff]
  %v613 = vld [vmem:[%s1 + $0xecc] sm:$0xff]
  %v614 = vld [vmem:[%s1 + $0xed4] sm:$0xf]
  %v615 = vld [vmem:[%s1 + $0xed8] sm:$0xff]
  %v616 = vld [vmem:[%s1 + $0xee0] sm:$0xff]
  %v617 = vld [vmem:[%s1 + $0xee8] sm:$0xf]
  %v618 = vld [vmem:[%s1 + $0xeec] sm:$0xff]
  %v619 = vld [vmem:[%s1 + $0xef4] sm:$0xff]
  %v620 = vld [vmem:[%s1 + $0xefc] sm:$0xf]
  %v621 = vld [vmem:[%s1 + $0xf00] sm:$0xff]
  %v622 = vld [vmem:[%s1 + $0xf08] sm:$0xff]
  %v623 = vld [vmem:[%s1 + $0xf10] sm:$0xf]
  %v624 = vld [vmem:[%s1 + $0xf14] sm:$0xff]
  %v625 = vld [vmem:[%s1 + $0xf1c] sm:$0xff]
  %v626 = vld [vmem:[%s1 + $0xf24] sm:$0xf]
  %v627 = vld [vmem:[%s1 + $0xf28] sm:$0xff]
  %v628 = vld [vmem:[%s1 + $0xf30] sm:$0xff]
  %v629 = vld [vmem:[%s1 + $0xf38] sm:$0xf]
  %v630 = vld [vmem:[%s1 + $0xf3c] sm:$0xff]
  %v631 = vld [vmem:[%s1 + $0xf44] sm:$0xff]
  %v632 = vld [vmem:[%s1 + $0xf4c] sm:$0xf]
  %v633 = vld [vmem:[%s1 + $0xf50] sm:$0xff]
  %v634 = vld [vmem:[%s1 + $0xf58] sm:$0xff]
  %v635 = vld [vmem:[%s1 + $0xf60] sm:$0xf]
  %v636 = vld [vmem:[%s1 + $0xf64] sm:$0xff]
  %v637 = vld [vmem:[%s1 + $0xf6c] sm:$0xff]
  %v638 = vld [vmem:[%s1 + $0xf74] sm:$0xf]
  %v639 = vld [vmem:[%s1 + $0xf78] sm:$0xff]
  %v640 = vld [vmem:[%s1 + $0xf80] sm:$0xff]
  %v641 = vld [vmem:[%s1 + $0xf88] sm:$0xf]
  %v642 = vld [vmem:[%s1 + $0xf8c] sm:$0xff]
  %v643 = vld [vmem:[%s1 + $0xf94] sm:$0xff]
  %v644 = vld [vmem:[%s1 + $0xf9c] sm:$0xf]
  %v645 = vld [vmem:[%s1 + $0xfa0] sm:$0xff]
  %v646 = vld [vmem:[%s1 + $0xfa8] sm:$0xff]
  %v647 = vld [vmem:[%s1 + $0xfb0] sm:$0xf]
  %v648 = vld [vmem:[%s1 + $0xfb4] sm:$0xff]
  %v649 = vld [vmem:[%s1 + $0xfbc] sm:$0xff]
  %v650 = vld [vmem:[%s1 + $0xfc4] sm:$0xf]
  %v651 = vld [vmem:[%s1 + $0xfc8] sm:$0xff]
  %v652 = vld [vmem:[%s1 + $0xfd0] sm:$0xff]
  %v653 = vld [vmem:[%s1 + $0xfd8] sm:$0xf]
  %v654 = vld [vmem:[%s1 + $0xfdc] sm:$0xff]
  %v655 = vld [vmem:[%s1 + $0xfe4] sm:$0xff]
  %v656 = vld [vmem:[%s1 + $0xfec] sm:$0xf]
  %v657 = vld [vmem:[%s1 + $0xff0] sm:$0xff]
  %v658 = vld [vmem:[%s1 + $0xff8] sm:$0xff]
  %v659 = vld [vmem:[%s1 + $0x1000] sm:$0xf]
  %v660 = vld [vmem:[%s1 + $0x1004] sm:$0xff]
  %v661 = vld [vmem:[%s1 + $0x100c] sm:$0xff]
  %v662 = vld [vmem:[%s1 + $0x1014] sm:$0xf]
  %v663 = vld [vmem:[%s1 + $0x1018] sm:$0xff]
  %v664 = vld [vmem:[%s1 + $0x1020] sm:$0xff]
  %v665 = vld [vmem:[%s1 + $0x1028] sm:$0xf]
  %v666 = vld [vmem:[%s1 + $0x102c] sm:$0xff]
  %v667 = vld [vmem:[%s1 + $0x1034] sm:$0xff]
  %v668 = vld [vmem:[%s1 + $0x103c] sm:$0xf]
  %v669 = vld [vmem:[%s1 + $0x1040] sm:$0xff]
  %v670 = vld [vmem:[%s1 + $0x1048] sm:$0xff]
  %v671 = vld [vmem:[%s1 + $0x1050] sm:$0xf]
  %v672 = vld [vmem:[%s1 + $0x1054] sm:$0xff]
  %v673 = vld [vmem:[%s1 + $0x105c] sm:$0xff]
  %v674 = vld [vmem:[%s1 + $0x1064] sm:$0xf]
  %v675 = vld [vmem:[%s1 + $0x1068] sm:$0xff]
  %v676 = vld [vmem:[%s1 + $0x1070] sm:$0xff]
  %v677 = vld [vmem:[%s1 + $0x1078] sm:$0xf]
  %v678 = vld [vmem:[%s1 + $0x107c] sm:$0xff]
  %v679 = vld [vmem:[%s1 + $0x1084] sm:$0xff]
  %v680 = vld [vmem:[%s1 + $0x108c] sm:$0xf]
  %v681 = vld [vmem:[%s1 + $0x1090] sm:$0xff]
  %v682 = vld [vmem:[%s1 + $0x1098] sm:$0xff]
  %v683 = vld [vmem:[%s1 + $0x10a0] sm:$0xf]
  %v684 = vld [vmem:[%s1 + $0x10a4] sm:$0xff]
  %v685 = vld [vmem:[%s1 + $0x10ac] sm:$0xff]
  %v686 = vld [vmem:[%s1 + $0x10b4] sm:$0xf]
  %v687 = vld [vmem:[%s1 + $0x10b8] sm:$0xff]
  %v688 = vld [vmem:[%s1 + $0x10c0] sm:$0xff]
  %v689 = vld [vmem:[%s1 + $0x10c8] sm:$0xf]
  %v690 = vld [vmem:[%s1 + $0x10cc] sm:$0xff]
  %v691 = vld [vmem:[%s1 + $0x10d4] sm:$0xff]
  %v692 = vld [vmem:[%s1 + $0x10dc] sm:$0xf]
  %v693 = vld [vmem:[%s1 + $0x10e0] sm:$0xff]
  %v694 = vld [vmem:[%s1 + $0x10e8] sm:$0xff]
  %v695 = vld [vmem:[%s1 + $0x10f0] sm:$0xf]
  %v696 = vld [vmem:[%s1 + $0x10f4] sm:$0xff]
  %v697 = vld [vmem:[%s1 + $0x10fc] sm:$0xff]
  %v698 = vld [vmem:[%s1 + $0x1104] sm:$0xf]
  %v699 = vld [vmem:[%s1 + $0x1108] sm:$0xff]
  %v700 = vld [vmem:[%s1 + $0x1110] sm:$0xff]
  %v701 = vld [vmem:[%s1 + $0x1118] sm:$0xf]
  %v702 = vld [vmem:[%s1 + $0x111c] sm:$0xff]
  %v703 = vld [vmem:[%s1 + $0x1124] sm:$0xff]
  %v704 = vld [vmem:[%s1 + $0x112c] sm:$0xf]
  %v705 = vld [vmem:[%s1 + $0x1130] sm:$0xff]
  %v706 = vld [vmem:[%s1 + $0x1138] sm:$0xff]
  %v707 = vld [vmem:[%s1 + $0x1140] sm:$0xf]
  %v708 = vld [vmem:[%s1 + $0x1144] sm:$0xff]
  %v709 = vld [vmem:[%s1 + $0x114c] sm:$0xff]
  %v710 = vld [vmem:[%s1 + $0x1154] sm:$0xf]
  %v711 = vld [vmem:[%s1 + $0x1158] sm:$0xff]
  %v712 = vld [vmem:[%s1 + $0x1160] sm:$0xff]
  %v713 = vld [vmem:[%s1 + $0x1168] sm:$0xf]
  %v714 = vld [vmem:[%s1 + $0x116c] sm:$0xff]
  %v715 = vld [vmem:[%s1 + $0x1174] sm:$0xff]
  %v716 = vld [vmem:[%s1 + $0x117c] sm:$0xf]
  %v717 = vld [vmem:[%s1 + $0x1180] sm:$0xff]
  %v718 = vld [vmem:[%s1 + $0x1188] sm:$0xff]
  %v719 = vld [vmem:[%s1 + $0x1190] sm:$0xf]
  %v720 = vld [vmem:[%s1 + $0x1194] sm:$0xff]
  %v721 = vld [vmem:[%s1 + $0x119c] sm:$0xff]
  %v722 = vld [vmem:[%s1 + $0x11a4] sm:$0xf]
  %v723 = vld [vmem:[%s1 + $0x11a8] sm:$0xff]
  %v724 = vld [vmem:[%s1 + $0x11b0] sm:$0xff]
  %v725 = vld [vmem:[%s1 + $0x11b8] sm:$0xf]
  %v726 = vld [vmem:[%s1 + $0x11bc] sm:$0xff]
  %v727 = vld [vmem:[%s1 + $0x11c4] sm:$0xff]
  %v728 = vld [vmem:[%s1 + $0x11cc] sm:$0xf]
  %v729 = vld [vmem:[%s1 + $0x11d0] sm:$0xff]
  %v730 = vld [vmem:[%s1 + $0x11d8] sm:$0xff]
  %v731 = vld [vmem:[%s1 + $0x11e0] sm:$0xf]
  %v732 = vld [vmem:[%s1 + $0x11e4] sm:$0xff]
  %v733 = vld [vmem:[%s1 + $0x11ec] sm:$0xff]
  %v734 = vld [vmem:[%s1 + $0x11f4] sm:$0xf]
  %v735 = vld [vmem:[%s1 + $0x11f8] sm:$0xff]
  %v736 = vld [vmem:[%s1 + $0x1200] sm:$0xff]
  %v737 = vld [vmem:[%s1 + $0x1208] sm:$0xf]
  %v738 = vld [vmem:[%s1 + $0x120c] sm:$0xff]
  %v739 = vld [vmem:[%s1 + $0x1214] sm:$0xff]
  %v740 = vld [vmem:[%s1 + $0x121c] sm:$0xf]
  %v741 = vld [vmem:[%s1 + $0x1220] sm:$0xff]
  %v742 = vld [vmem:[%s1 + $0x1228] sm:$0xff]
  %v743 = vld [vmem:[%s1 + $0x1230] sm:$0xf]
  %v744 = vld [vmem:[%s1 + $0x1234] sm:$0xff]
  %v745 = vld [vmem:[%s1 + $0x123c] sm:$0xff]
  %v746 = vld [vmem:[%s1 + $0x1244] sm:$0xf]
  %v747 = vld [vmem:[%s1 + $0x1248] sm:$0xff]
  %v748 = vld [vmem:[%s1 + $0x1250] sm:$0xff]
  %v749 = vld [vmem:[%s1 + $0x1258] sm:$0xf]
  %v750 = vld [vmem:[%s1 + $0x125c] sm:$0xff]
  %v751 = vld [vmem:[%s1 + $0x1264] sm:$0xff]
  %v752 = vld [vmem:[%s1 + $0x126c] sm:$0xf]
  %v753 = vld [vmem:[%s1 + $0x1270] sm:$0xff]
  %v754 = vld [vmem:[%s1 + $0x1278] sm:$0xff]
  %v755 = vld [vmem:[%s1 + $0x1280] sm:$0xf]
  %v756 = vld [vmem:[%s1 + $0x1284] sm:$0xff]
  %v757 = vld [vmem:[%s1 + $0x128c] sm:$0xff]
  %v758 = vld [vmem:[%s1 + $0x1294] sm:$0xf]
  %v759 = vld [vmem:[%s1 + $0x1298] sm:$0xff]
  %v760 = vld [vmem:[%s1 + $0x12a0] sm:$0xff]
  %v761 = vld [vmem:[%s1 + $0x12a8] sm:$0xf]
  %v762 = vld [vmem:[%s1 + $0x12ac] sm:$0xff]
  %v763 = vld [vmem:[%s1 + $0x12b4] sm:$0xff]
  %v764 = vld [vmem:[%s1 + $0x12bc] sm:$0xf]
  %v765 = vld [vmem:[%s1 + $0x12c0] sm:$0xff]
  %v766 = vld [vmem:[%s1 + $0x12c8] sm:$0xff]
  %v767 = vld [vmem:[%s1 + $0x12d0] sm:$0xf]
  %v768 = vld [vmem:[%s1 + $0x12d4] sm:$0xff]
  %v769 = vld [vmem:[%s1 + $0x12dc] sm:$0xff]
  %v770 = vld [vmem:[%s1 + $0x12e4] sm:$0xf]
  %v771 = vld [vmem:[%s1 + $0x12e8] sm:$0xff]
  %v772 = vld [vmem:[%s1 + $0x12f0] sm:$0xff]
  %v773 = vld [vmem:[%s1 + $0x12f8] sm:$0xf]
  %v774 = vld [vmem:[%s1 + $0x12fc] sm:$0xff]
  %v775 = vld [vmem:[%s1 + $0x1304] sm:$0xff]
  %v776 = vld [vmem:[%s1 + $0x130c] sm:$0xf]
  %v777 = vld [vmem:[%s1 + $0x1310] sm:$0xff]
  %v778 = vld [vmem:[%s1 + $0x1318] sm:$0xff]
  %v779 = vld [vmem:[%s1 + $0x1320] sm:$0xf]
  %v780 = vld [vmem:[%s1 + $0x1324] sm:$0xff]
  %v781 = vld [vmem:[%s1 + $0x132c] sm:$0xff]
  %v782 = vld [vmem:[%s1 + $0x1334] sm:$0xf]
  %v783 = vld [vmem:[%s1 + $0x1338] sm:$0xff]
  %v784 = vld [vmem:[%s1 + $0x1340] sm:$0xff]
  %v785 = vld [vmem:[%s1 + $0x1348] sm:$0xf]
  %v786 = vld [vmem:[%s1 + $0x134c] sm:$0xff]
  %v787 = vld [vmem:[%s1 + $0x1354] sm:$0xff]
  %v788 = vld [vmem:[%s1 + $0x135c] sm:$0xf]
  %v789 = vld [vmem:[%s1 + $0x1360] sm:$0xff]
  %v790 = vld [vmem:[%s1 + $0x1368] sm:$0xff]
  %v791 = vld [vmem:[%s1 + $0x1370] sm:$0xf]
  %v792 = vld [vmem:[%s1 + $0x1374] sm:$0xff]
  %v793 = vld [vmem:[%s1 + $0x137c] sm:$0xff]
  %v794 = vld [vmem:[%s1 + $0x1384] sm:$0xf]
  %v795 = vld [vmem:[%s1 + $0x1388] sm:$0xff]
  %v796 = vld [vmem:[%s1 + $0x1390] sm:$0xff]
  %v797 = vld [vmem:[%s1 + $0x1398] sm:$0xf]
  %v798 = vld [vmem:[%s1 + $0x139c] sm:$0xff]
  %v799 = vld [vmem:[%s1 + $0x13a4] sm:$0xff]
  %v800 = vld [vmem:[%s1 + $0x13ac] sm:$0xf]
  %v801 = vld [vmem:[%s1 + $0x13b0] sm:$0xff]
  %v802 = vld [vmem:[%s1 + $0x13b8] sm:$0xff]
  %v803 = vld [vmem:[%s1 + $0x13c0] sm:$0xf]
  %v804 = vld [vmem:[%s1 + $0x13c4] sm:$0xff]
  %v805 = vld [vmem:[%s1 + $0x13cc] sm:$0xff]
  %v806 = vld [vmem:[%s1 + $0x13d4] sm:$0xf]
  %v807 = vld [vmem:[%s1 + $0x13d8] sm:$0xff]
  %v808 = vld [vmem:[%s1 + $0x13e0] sm:$0xff]
  %v809 = vld [vmem:[%s1 + $0x13e8] sm:$0xf]
  %v810 = vld [vmem:[%s1 + $0x13ec] sm:$0xff]
  %v811 = vld [vmem:[%s1 + $0x13f4] sm:$0xff]
  %v812 = vld [vmem:[%s1 + $0x13fc] sm:$0xf]
  %v813 = vld [vmem:[%s1 + $0x1400] sm:$0xff]
  %v814 = vld [vmem:[%s1 + $0x1408] sm:$0xff]
  %v815 = vld [vmem:[%s1 + $0x1410] sm:$0xf]
  %v816 = vld [vmem:[%s1 + $0x1414] sm:$0xff]
  %v817 = vld [vmem:[%s1 + $0x141c] sm:$0xff]
  %v818 = vld [vmem:[%s1 + $0x1424] sm:$0xf]
  %v819 = vld [vmem:[%s1 + $0x1428] sm:$0xff]
  %v820 = vld [vmem:[%s1 + $0x1430] sm:$0xff]
  %v821 = vld [vmem:[%s1 + $0x1438] sm:$0xf]
  %v822 = vld [vmem:[%s1 + $0x143c] sm:$0xff]
  %v823 = vld [vmem:[%s1 + $0x1444] sm:$0xff]
  %v824 = vld [vmem:[%s1 + $0x144c] sm:$0xf]
  %v825 = vld [vmem:[%s1 + $0x1450] sm:$0xff]
  %v826 = vld [vmem:[%s1 + $0x1458] sm:$0xff]
  %v827 = vld [vmem:[%s1 + $0x1460] sm:$0xf]
  %v828 = vld [vmem:[%s1 + $0x1464] sm:$0xff]
  %v829 = vld [vmem:[%s1 + $0x146c] sm:$0xff]
  %v830 = vld [vmem:[%s1 + $0x1474] sm:$0xf]
  %v831 = vld [vmem:[%s1 + $0x1478] sm:$0xff]
  %v832 = vld [vmem:[%s1 + $0x1480] sm:$0xff]
  %v833 = vld [vmem:[%s1 + $0x1488] sm:$0xf]
  %v834 = vld [vmem:[%s1 + $0x148c] sm:$0xff]
  %v835 = vld [vmem:[%s1 + $0x1494] sm:$0xff]
  %v836 = vld [vmem:[%s1 + $0x149c] sm:$0xf]
  %v837 = vld [vmem:[%s1 + $0x14a0] sm:$0xff]
  %v838 = vld [vmem:[%s1 + $0x14a8] sm:$0xff]
  %v839 = vld [vmem:[%s1 + $0x14b0] sm:$0xf]
  %v840 = vld [vmem:[%s1 + $0x14b4] sm:$0xff]
  %v841 = vld [vmem:[%s1 + $0x14bc] sm:$0xff]
  %v842 = vld [vmem:[%s1 + $0x14c4] sm:$0xf]
  %v843 = vld [vmem:[%s1 + $0x14c8] sm:$0xff]
  %v844 = vld [vmem:[%s1 + $0x14d0] sm:$0xff]
  %v845 = vld [vmem:[%s1 + $0x14d8] sm:$0xf]
  %v846 = vld [vmem:[%s1 + $0x14dc] sm:$0xff]
  %v847 = vld [vmem:[%s1 + $0x14e4] sm:$0xff]
  %v848 = vld [vmem:[%s1 + $0x14ec] sm:$0xf]
  %v849 = vld [vmem:[%s1 + $0x14f0] sm:$0xff]
  %v850 = vld [vmem:[%s1 + $0x14f8] sm:$0xff]
  %v851 = vld [vmem:[%s1 + $0x1500] sm:$0xf]
  %v852 = vld [vmem:[%s1 + $0x1504] sm:$0xff]
  %v853 = vld [vmem:[%s1 + $0x150c] sm:$0xff]
  %v854 = vld [vmem:[%s1 + $0x1514] sm:$0xf]
  %v855 = vld [vmem:[%s1 + $0x1518] sm:$0xff]
  %v856 = vld [vmem:[%s1 + $0x1520] sm:$0xff]
  %v857 = vld [vmem:[%s1 + $0x1528] sm:$0xf]
  %v858 = vld [vmem:[%s1 + $0x152c] sm:$0xff]
  %v859 = vld [vmem:[%s1 + $0x1534] sm:$0xff]
  %v860 = vld [vmem:[%s1 + $0x153c] sm:$0xf]
  %v861 = vld [vmem:[%s1 + $0x1540] sm:$0xff]
  %v862 = vld [vmem:[%s1 + $0x1548] sm:$0xff]
  %v863 = vld [vmem:[%s1 + $0x1550] sm:$0xf]
  %v864 = vld [vmem:[%s1 + $0x1554] sm:$0xff]
  %v865 = vld [vmem:[%s1 + $0x155c] sm:$0xff]
  %v866 = vld [vmem:[%s1 + $0x1564] sm:$0xf]
  %v867 = vld [vmem:[%s1 + $0x1568] sm:$0xff]
  %v868 = vld [vmem:[%s1 + $0x1570] sm:$0xff]
  %v869 = vld [vmem:[%s1 + $0x1578] sm:$0xf]
  %v870 = vld [vmem:[%s1 + $0x157c] sm:$0xff]
  %v871 = vld [vmem:[%s1 + $0x1584] sm:$0xff]
  %v872 = vld [vmem:[%s1 + $0x158c] sm:$0xf]
  %v873 = vld [vmem:[%s1 + $0x1590] sm:$0xff]
  %v874 = vld [vmem:[%s1 + $0x1598] sm:$0xff]
  %v875 = vld [vmem:[%s1 + $0x15a0] sm:$0xf]
  %v876 = vld [vmem:[%s1 + $0x15a4] sm:$0xff]
  %v877 = vld [vmem:[%s1 + $0x15ac] sm:$0xff]
  %v878 = vld [vmem:[%s1 + $0x15b4] sm:$0xf]
  %v879 = vld [vmem:[%s1 + $0x15b8] sm:$0xff]
  %v880 = vld [vmem:[%s1 + $0x15c0] sm:$0xff]
  %v881 = vld [vmem:[%s1 + $0x15c8] sm:$0xf]
  %v882 = vld [vmem:[%s1 + $0x15cc] sm:$0xff]
  %v883 = vld [vmem:[%s1 + $0x15d4] sm:$0xff]
  %v884 = vld [vmem:[%s1 + $0x15dc] sm:$0xf]
  %v885 = vld [vmem:[%s1 + $0x15e0] sm:$0xff]
  %v886 = vld [vmem:[%s1 + $0x15e8] sm:$0xff]
  %v887 = vld [vmem:[%s1 + $0x15f0] sm:$0xf]
  %v888 = vld [vmem:[%s1 + $0x15f4] sm:$0xff]
  %v889 = vld [vmem:[%s1 + $0x15fc] sm:$0xff]
  %v890 = vld [vmem:[%s1 + $0x1604] sm:$0xf]
  %v891 = vld [vmem:[%s1 + $0x1608] sm:$0xff]
  %v892 = vld [vmem:[%s1 + $0x1610] sm:$0xff]
  %v893 = vld [vmem:[%s1 + $0x1618] sm:$0xf]
  %v894 = vld [vmem:[%s1 + $0x161c] sm:$0xff]
  %v895 = vld [vmem:[%s1 + $0x1624] sm:$0xff]
  %v896 = vld [vmem:[%s1 + $0x162c] sm:$0xf]
  %v897 = vld [vmem:[%s1 + $0x1630] sm:$0xff]
  %v898 = vld [vmem:[%s1 + $0x1638] sm:$0xff]
  %v899 = vld [vmem:[%s1 + $0x1640] sm:$0xf]
  %v900 = vld [vmem:[%s1 + $0x1644] sm:$0xff]
  %v901 = vld [vmem:[%s1 + $0x164c] sm:$0xff]
  %v902 = vld [vmem:[%s1 + $0x1654] sm:$0xf]
  %v903 = vld [vmem:[%s1 + $0x1658] sm:$0xff]
  %v904 = vld [vmem:[%s1 + $0x1660] sm:$0xff]
  %v905 = vld [vmem:[%s1 + $0x1668] sm:$0xf]
  %v906 = vld [vmem:[%s1 + $0x166c] sm:$0xff]
  %v907 = vld [vmem:[%s1 + $0x1674] sm:$0xff]
  %v908 = vld [vmem:[%s1 + $0x167c] sm:$0xf]
  %v909 = vld [vmem:[%s2] sm:$0x1f]
  %v911 = vlaneseq
  %v912 = vshrl.u32 %v911, 7
  %v913 = vsub.s32 0, %v912
  %v914 = vrot.slane %v909, %v913
  %v915 = vlaneseq
  %v916 = vshrl.u32 %v915, 7
  %v917 = vsub.s32 1, %v916
  %v918 = vrot.slane %v909, %v917
  %v919 = vlaneseq
  %v920 = vshrl.u32 %v919, 7
  %v921 = vsub.s32 2, %v920
  %v922 = vrot.slane %v909, %v921
  %v923 = vlaneseq
  %v924 = vshrl.u32 %v923, 7
  %v925 = vsub.s32 3, %v924
  %v926 = vrot.slane %v909, %v925
  %v927 = vlaneseq
  %v928 = vshrl.u32 %v927, 7
  %v929 = vsub.s32 4, %v928
  %v930 = vrot.slane %v909, %v929
  %v954 = vunpack.c.l.b16 %v27
  %v955 = vunpack.c.h.b16 %v27
  %v956 = vunpack.c.l.b16 %v28
  %v957 = vunpack.c.h.b16 %v28
  %v958 = vunpack.c.l.b16 %v29
  %v959 = vunpack.c.h.b16 %v29
  %v960 = vunpack.c.l.b16 %v30
  %v961 = vunpack.c.h.b16 %v30
  %v962 = vunpack.c.l.b16 %v31
  %v963 = vunpack.c.h.b16 %v31
  %v964 = vunpack.c.l.b16 %v32
  %v965 = vunpack.c.h.b16 %v32
  %v966 = vunpack.c.l.b16 %v33
  %v967 = vunpack.c.h.b16 %v33
  %v968 = vunpack.c.l.b16 %v34
  %v969 = vunpack.c.h.b16 %v34
  %v970 = vunpack.c.l.b16 %v35
  %v971 = vunpack.c.h.b16 %v35
  %v972 = vunpack.c.l.b16 %v36
  %v973 = vunpack.c.h.b16 %v36
  %v974 = vunpack.c.l.b16 %v37
  %v975 = vunpack.c.h.b16 %v37
  %v976 = vunpack.c.l.b16 %v38
  %v977 = vunpack.c.h.b16 %v38
  %v978 = vunpack.c.l.b16 %v39
  %v979 = vunpack.c.h.b16 %v39
  %v980 = vunpack.c.l.b16 %v40
  %v981 = vunpack.c.h.b16 %v40
  %v982 = vunpack.c.l.b16 %v41
  %v983 = vunpack.c.h.b16 %v41
  %v984 = vunpack.c.l.b16 %v42
  %v985 = vunpack.c.h.b16 %v42
  %v986 = vunpack.c.l.b16 %v43
  %v987 = vunpack.c.h.b16 %v43
  %v988 = vunpack.c.l.b16 %v44
  %v989 = vunpack.c.h.b16 %v44
  %v990 = vpack.c.b16 %v972, %v954
  %v991 = vpack.c.b16 %v973, %v955
  %v992 = vpack.c.b16 %v974, %v956
  %v993 = vpack.c.b16 %v975, %v957
  %v994 = vpack.c.b16 %v976, %v958
  %v995 = vpack.c.b16 %v977, %v959
  %v996 = vpack.c.b16 %v978, %v960
  %v997 = vpack.c.b16 %v979, %v961
  %v998 = vpack.c.b16 %v980, %v962
  %v999 = vpack.c.b16 %v981, %v963
  %v1000 = vpack.c.b16 %v982, %v964
  %v1001 = vpack.c.b16 %v983, %v965
  %v1002 = vpack.c.b16 %v984, %v966
  %v1003 = vpack.c.b16 %v985, %v967
  %v1004 = vpack.c.b16 %v986, %v968
  %v1005 = vpack.c.b16 %v987, %v969
  %v1006 = vpack.c.b16 %v988, %v970
  %v1007 = vpack.c.b16 %v989, %v971
  %v1890 = vunpack.c.l.b16 %v45
  %v1891 = vunpack.c.h.b16 %v45
  %v1892 = vunpack.c.l.b16 %v46
  %v1893 = vunpack.c.h.b16 %v46
  %v1894 = vunpack.c.l.b16 %v47
  %v1895 = vunpack.c.l.b16 %v48
  %v1896 = vunpack.c.h.b16 %v48
  %v1897 = vunpack.c.l.b16 %v49
  %v1898 = vunpack.c.h.b16 %v49
  %v1899 = vunpack.c.l.b16 %v50
  %v1900 = vunpack.c.l.b16 %v51
  %v1901 = vunpack.c.h.b16 %v51
  %v1902 = vunpack.c.l.b16 %v52
  %v1903 = vunpack.c.h.b16 %v52
  %v1904 = vunpack.c.l.b16 %v53
  %v1905 = vunpack.c.l.b16 %v54
  %v1906 = vunpack.c.h.b16 %v54
  %v1907 = vunpack.c.l.b16 %v55
  %v1908 = vunpack.c.h.b16 %v55
  %v1909 = vunpack.c.l.b16 %v56
  %v1910 = vunpack.c.l.b16 %v57
  %v1911 = vunpack.c.h.b16 %v57
  %v1912 = vunpack.c.l.b16 %v58
  %v1913 = vunpack.c.h.b16 %v58
  %v1914 = vunpack.c.l.b16 %v59
  %v1915 = vunpack.c.l.b16 %v60
  %v1916 = vunpack.c.h.b16 %v60
  %v1917 = vunpack.c.l.b16 %v61
  %v1918 = vunpack.c.h.b16 %v61
  %v1919 = vunpack.c.l.b16 %v62
  %v1920 = vunpack.c.l.b16 %v63
  %v1921 = vunpack.c.h.b16 %v63
  %v1922 = vunpack.c.l.b16 %v64
  %v1923 = vunpack.c.h.b16 %v64
  %v1924 = vunpack.c.l.b16 %v65
  %v1925 = vunpack.c.l.b16 %v66
  %v1926 = vunpack.c.h.b16 %v66
  %v1927 = vunpack.c.l.b16 %v67
  %v1928 = vunpack.c.h.b16 %v67
  %v1929 = vunpack.c.l.b16 %v68
  %v1930 = vunpack.c.l.b16 %v69
  %v1931 = vunpack.c.h.b16 %v69
  %v1932 = vunpack.c.l.b16 %v70
  %v1933 = vunpack.c.h.b16 %v70
  %v1934 = vunpack.c.l.b16 %v71
  %v1935 = vunpack.c.l.b16 %v72
  %v1936 = vunpack.c.h.b16 %v72
  %v1937 = vunpack.c.l.b16 %v73
  %v1938 = vunpack.c.h.b16 %v73
  %v1939 = vunpack.c.l.b16 %v74
  %v1940 = vunpack.c.l.b16 %v75
  %v1941 = vunpack.c.h.b16 %v75
  %v1942 = vunpack.c.l.b16 %v76
  %v1943 = vunpack.c.h.b16 %v76
  %v1944 = vunpack.c.l.b16 %v77
  %v1945 = vunpack.c.l.b16 %v78
  %v1946 = vunpack.c.h.b16 %v78
  %v1947 = vunpack.c.l.b16 %v79
  %v1948 = vunpack.c.h.b16 %v79
  %v1949 = vunpack.c.l.b16 %v80
  %v1950 = vunpack.c.l.b16 %v81
  %v1951 = vunpack.c.h.b16 %v81
  %v1952 = vunpack.c.l.b16 %v82
  %v1953 = vunpack.c.h.b16 %v82
  %v1954 = vunpack.c.l.b16 %v83
  %v1955 = vunpack.c.l.b16 %v84
  %v1956 = vunpack.c.h.b16 %v84
  %v1957 = vunpack.c.l.b16 %v85
  %v1958 = vunpack.c.h.b16 %v85
  %v1959 = vunpack.c.l.b16 %v86
  %v1960 = vunpack.c.l.b16 %v87
  %v1961 = vunpack.c.h.b16 %v87
  %v1962 = vunpack.c.l.b16 %v88
  %v1963 = vunpack.c.h.b16 %v88
  %v1964 = vunpack.c.l.b16 %v89
  %v1965 = vunpack.c.l.b16 %v90
  %v1966 = vunpack.c.h.b16 %v90
  %v1967 = vunpack.c.l.b16 %v91
  %v1968 = vunpack.c.h.b16 %v91
  %v1969 = vunpack.c.l.b16 %v92
  %v1970 = vunpack.c.l.b16 %v93
  %v1971 = vunpack.c.h.b16 %v93
  %v1972 = vunpack.c.l.b16 %v94
  %v1973 = vunpack.c.h.b16 %v94
  %v1974 = vunpack.c.l.b16 %v95
  %v1975 = vunpack.c.l.b16 %v96
  %v1976 = vunpack.c.h.b16 %v96
  %v1977 = vunpack.c.l.b16 %v97
  %v1978 = vunpack.c.h.b16 %v97
  %v1979 = vunpack.c.l.b16 %v98
  %v1980 = vunpack.c.l.b16 %v99
  %v1981 = vunpack.c.h.b16 %v99
  %v1982 = vunpack.c.l.b16 %v100
  %v1983 = vunpack.c.h.b16 %v100
  %v1984 = vunpack.c.l.b16 %v101
  %v1985 = vunpack.c.l.b16 %v102
  %v1986 = vunpack.c.h.b16 %v102
  %v1987 = vunpack.c.l.b16 %v103
  %v1988 = vunpack.c.h.b16 %v103
  %v1989 = vunpack.c.l.b16 %v104
  %v1990 = vunpack.c.l.b16 %v105
  %v1991 = vunpack.c.h.b16 %v105
  %v1992 = vunpack.c.l.b16 %v106
  %v1993 = vunpack.c.h.b16 %v106
  %v1994 = vunpack.c.l.b16 %v107
  %v1995 = vunpack.c.l.b16 %v108
  %v1996 = vunpack.c.h.b16 %v108
  %v1997 = vunpack.c.l.b16 %v109
  %v1998 = vunpack.c.h.b16 %v109
  %v1999 = vunpack.c.l.b16 %v110
  %v2000 = vunpack.c.l.b16 %v111
  %v2001 = vunpack.c.h.b16 %v111
  %v2002 = vunpack.c.l.b16 %v112
  %v2003 = vunpack.c.h.b16 %v112
  %v2004 = vunpack.c.l.b16 %v113
  %v2005 = vunpack.c.l.b16 %v114
  %v2006 = vunpack.c.h.b16 %v114
  %v2007 = vunpack.c.l.b16 %v115
  %v2008 = vunpack.c.h.b16 %v115
  %v2009 = vunpack.c.l.b16 %v116
  %v2010 = vunpack.c.l.b16 %v117
  %v2011 = vunpack.c.h.b16 %v117
  %v2012 = vunpack.c.l.b16 %v118
  %v2013 = vunpack.c.h.b16 %v118
  %v2014 = vunpack.c.l.b16 %v119
  %v2015 = vunpack.c.l.b16 %v120
  %v2016 = vunpack.c.h.b16 %v120
  %v2017 = vunpack.c.l.b16 %v121
  %v2018 = vunpack.c.h.b16 %v121
  %v2019 = vunpack.c.l.b16 %v122
  %v2020 = vunpack.c.l.b16 %v123
  %v2021 = vunpack.c.h.b16 %v123
  %v2022 = vunpack.c.l.b16 %v124
  %v2023 = vunpack.c.h.b16 %v124
  %v2024 = vunpack.c.l.b16 %v125
  %v2025 = vunpack.c.l.b16 %v126
  %v2026 = vunpack.c.h.b16 %v126
  %v2027 = vunpack.c.l.b16 %v127
  %v2028 = vunpack.c.h.b16 %v127
  %v2029 = vunpack.c.l.b16 %v128
  %v2030 = vunpack.c.l.b16 %v129
  %v2031 = vunpack.c.h.b16 %v129
  %v2032 = vunpack.c.l.b16 %v130
  %v2033 = vunpack.c.h.b16 %v130
  %v2034 = vunpack.c.l.b16 %v131
  %v2035 = vunpack.c.l.b16 %v132
  %v2036 = vunpack.c.h.b16 %v132
  %v2037 = vunpack.c.l.b16 %v133
  %v2038 = vunpack.c.h.b16 %v133
  %v2039 = vunpack.c.l.b16 %v134
  %v2040 = vunpack.c.l.b16 %v135
  %v2041 = vunpack.c.h.b16 %v135
  %v2042 = vunpack.c.l.b16 %v136
  %v2043 = vunpack.c.h.b16 %v136
  %v2044 = vunpack.c.l.b16 %v137
  %v2045 = vunpack.c.l.b16 %v138
  %v2046 = vunpack.c.h.b16 %v138
  %v2047 = vunpack.c.l.b16 %v139
  %v2048 = vunpack.c.h.b16 %v139
  %v2049 = vunpack.c.l.b16 %v140
  %v2050 = vunpack.c.l.b16 %v141
  %v2051 = vunpack.c.h.b16 %v141
  %v2052 = vunpack.c.l.b16 %v142
  %v2053 = vunpack.c.h.b16 %v142
  %v2054 = vunpack.c.l.b16 %v143
  %v2055 = vunpack.c.l.b16 %v144
  %v2056 = vunpack.c.h.b16 %v144
  %v2057 = vunpack.c.l.b16 %v145
  %v2058 = vunpack.c.h.b16 %v145
  %v2059 = vunpack.c.l.b16 %v146
  %v2060 = vunpack.c.l.b16 %v147
  %v2061 = vunpack.c.h.b16 %v147
  %v2062 = vunpack.c.l.b16 %v148
  %v2063 = vunpack.c.h.b16 %v148
  %v2064 = vunpack.c.l.b16 %v149
  %v2065 = vunpack.c.l.b16 %v150
  %v2066 = vunpack.c.h.b16 %v150
  %v2067 = vunpack.c.l.b16 %v151
  %v2068 = vunpack.c.h.b16 %v151
  %v2069 = vunpack.c.l.b16 %v152
  %v2070 = vunpack.c.l.b16 %v153
  %v2071 = vunpack.c.h.b16 %v153
  %v2072 = vunpack.c.l.b16 %v154
  %v2073 = vunpack.c.h.b16 %v154
  %v2074 = vunpack.c.l.b16 %v155
  %v2075 = vunpack.c.l.b16 %v156
  %v2076 = vunpack.c.h.b16 %v156
  %v2077 = vunpack.c.l.b16 %v157
  %v2078 = vunpack.c.h.b16 %v157
  %v2079 = vunpack.c.l.b16 %v158
  %v2080 = vunpack.c.l.b16 %v159
  %v2081 = vunpack.c.h.b16 %v159
  %v2082 = vunpack.c.l.b16 %v160
  %v2083 = vunpack.c.h.b16 %v160
  %v2084 = vunpack.c.l.b16 %v161
  %v2085 = vunpack.c.l.b16 %v162
  %v2086 = vunpack.c.h.b16 %v162
  %v2087 = vunpack.c.l.b16 %v163
  %v2088 = vunpack.c.h.b16 %v163
  %v2089 = vunpack.c.l.b16 %v164
  %v2090 = vunpack.c.l.b16 %v165
  %v2091 = vunpack.c.h.b16 %v165
  %v2092 = vunpack.c.l.b16 %v166
  %v2093 = vunpack.c.h.b16 %v166
  %v2094 = vunpack.c.l.b16 %v167
  %v2095 = vunpack.c.l.b16 %v168
  %v2096 = vunpack.c.h.b16 %v168
  %v2097 = vunpack.c.l.b16 %v169
  %v2098 = vunpack.c.h.b16 %v169
  %v2099 = vunpack.c.l.b16 %v170
  %v2100 = vunpack.c.l.b16 %v171
  %v2101 = vunpack.c.h.b16 %v171
  %v2102 = vunpack.c.l.b16 %v172
  %v2103 = vunpack.c.h.b16 %v172
  %v2104 = vunpack.c.l.b16 %v173
  %v2105 = vunpack.c.l.b16 %v174
  %v2106 = vunpack.c.h.b16 %v174
  %v2107 = vunpack.c.l.b16 %v175
  %v2108 = vunpack.c.h.b16 %v175
  %v2109 = vunpack.c.l.b16 %v176
  %v2110 = vunpack.c.l.b16 %v177
  %v2111 = vunpack.c.h.b16 %v177
  %v2112 = vunpack.c.l.b16 %v178
  %v2113 = vunpack.c.h.b16 %v178
  %v2114 = vunpack.c.l.b16 %v179
  %v2115 = vunpack.c.l.b16 %v180
  %v2116 = vunpack.c.h.b16 %v180
  %v2117 = vunpack.c.l.b16 %v181
  %v2118 = vunpack.c.h.b16 %v181
  %v2119 = vunpack.c.l.b16 %v182
  %v2120 = vunpack.c.l.b16 %v183
  %v2121 = vunpack.c.h.b16 %v183
  %v2122 = vunpack.c.l.b16 %v184
  %v2123 = vunpack.c.h.b16 %v184
  %v2124 = vunpack.c.l.b16 %v185
  %v2125 = vunpack.c.l.b16 %v186
  %v2126 = vunpack.c.h.b16 %v186
  %v2127 = vunpack.c.l.b16 %v187
  %v2128 = vunpack.c.h.b16 %v187
  %v2129 = vunpack.c.l.b16 %v188
  %v2130 = vunpack.c.l.b16 %v189
  %v2131 = vunpack.c.h.b16 %v189
  %v2132 = vunpack.c.l.b16 %v190
  %v2133 = vunpack.c.h.b16 %v190
  %v2134 = vunpack.c.l.b16 %v191
  %v2135 = vunpack.c.l.b16 %v192
  %v2136 = vunpack.c.h.b16 %v192
  %v2137 = vunpack.c.l.b16 %v193
  %v2138 = vunpack.c.h.b16 %v193
  %v2139 = vunpack.c.l.b16 %v194
  %v2140 = vunpack.c.l.b16 %v195
  %v2141 = vunpack.c.h.b16 %v195
  %v2142 = vunpack.c.l.b16 %v196
  %v2143 = vunpack.c.h.b16 %v196
  %v2144 = vunpack.c.l.b16 %v197
  %v2145 = vunpack.c.l.b16 %v198
  %v2146 = vunpack.c.h.b16 %v198
  %v2147 = vunpack.c.l.b16 %v199
  %v2148 = vunpack.c.h.b16 %v199
  %v2149 = vunpack.c.l.b16 %v200
  %v2150 = vunpack.c.l.b16 %v201
  %v2151 = vunpack.c.h.b16 %v201
  %v2152 = vunpack.c.l.b16 %v202
  %v2153 = vunpack.c.h.b16 %v202
  %v2154 = vunpack.c.l.b16 %v203
  %v2155 = vunpack.c.l.b16 %v204
  %v2156 = vunpack.c.h.b16 %v204
  %v2157 = vunpack.c.l.b16 %v205
  %v2158 = vunpack.c.h.b16 %v205
  %v2159 = vunpack.c.l.b16 %v206
  %v2160 = vunpack.c.l.b16 %v207
  %v2161 = vunpack.c.h.b16 %v207
  %v2162 = vunpack.c.l.b16 %v208
  %v2163 = vunpack.c.h.b16 %v208
  %v2164 = vunpack.c.l.b16 %v209
  %v2165 = vunpack.c.l.b16 %v210
  %v2166 = vunpack.c.h.b16 %v210
  %v2167 = vunpack.c.l.b16 %v211
  %v2168 = vunpack.c.h.b16 %v211
  %v2169 = vunpack.c.l.b16 %v212
  %v2170 = vunpack.c.l.b16 %v213
  %v2171 = vunpack.c.h.b16 %v213
  %v2172 = vunpack.c.l.b16 %v214
  %v2173 = vunpack.c.h.b16 %v214
  %v2174 = vunpack.c.l.b16 %v215
  %v2175 = vunpack.c.l.b16 %v216
  %v2176 = vunpack.c.h.b16 %v216
  %v2177 = vunpack.c.l.b16 %v217
  %v2178 = vunpack.c.h.b16 %v217
  %v2179 = vunpack.c.l.b16 %v218
  %v2180 = vunpack.c.l.b16 %v219
  %v2181 = vunpack.c.h.b16 %v219
  %v2182 = vunpack.c.l.b16 %v220
  %v2183 = vunpack.c.h.b16 %v220
  %v2184 = vunpack.c.l.b16 %v221
  %v2185 = vunpack.c.l.b16 %v222
  %v2186 = vunpack.c.h.b16 %v222
  %v2187 = vunpack.c.l.b16 %v223
  %v2188 = vunpack.c.h.b16 %v223
  %v2189 = vunpack.c.l.b16 %v224
  %v2190 = vunpack.c.l.b16 %v225
  %v2191 = vunpack.c.h.b16 %v225
  %v2192 = vunpack.c.l.b16 %v226
  %v2193 = vunpack.c.h.b16 %v226
  %v2194 = vunpack.c.l.b16 %v227
  %v2195 = vunpack.c.l.b16 %v228
  %v2196 = vunpack.c.h.b16 %v228
  %v2197 = vunpack.c.l.b16 %v229
  %v2198 = vunpack.c.h.b16 %v229
  %v2199 = vunpack.c.l.b16 %v230
  %v2200 = vunpack.c.l.b16 %v231
  %v2201 = vunpack.c.h.b16 %v231
  %v2202 = vunpack.c.l.b16 %v232
  %v2203 = vunpack.c.h.b16 %v232
  %v2204 = vunpack.c.l.b16 %v233
  %v2205 = vunpack.c.l.b16 %v234
  %v2206 = vunpack.c.h.b16 %v234
  %v2207 = vunpack.c.l.b16 %v235
  %v2208 = vunpack.c.h.b16 %v235
  %v2209 = vunpack.c.l.b16 %v236
  %v2210 = vunpack.c.l.b16 %v237
  %v2211 = vunpack.c.h.b16 %v237
  %v2212 = vunpack.c.l.b16 %v238
  %v2213 = vunpack.c.h.b16 %v238
  %v2214 = vunpack.c.l.b16 %v239
  %v2215 = vunpack.c.l.b16 %v240
  %v2216 = vunpack.c.h.b16 %v240
  %v2217 = vunpack.c.l.b16 %v241
  %v2218 = vunpack.c.h.b16 %v241
  %v2219 = vunpack.c.l.b16 %v242
  %v2220 = vunpack.c.l.b16 %v243
  %v2221 = vunpack.c.h.b16 %v243
  %v2222 = vunpack.c.l.b16 %v244
  %v2223 = vunpack.c.h.b16 %v244
  %v2224 = vunpack.c.l.b16 %v245
  %v2225 = vunpack.c.l.b16 %v246
  %v2226 = vunpack.c.h.b16 %v246
  %v2227 = vunpack.c.l.b16 %v247
  %v2228 = vunpack.c.h.b16 %v247
  %v2229 = vunpack.c.l.b16 %v248
  %v2230 = vunpack.c.l.b16 %v249
  %v2231 = vunpack.c.h.b16 %v249
  %v2232 = vunpack.c.l.b16 %v250
  %v2233 = vunpack.c.h.b16 %v250
  %v2234 = vunpack.c.l.b16 %v251
  %v2235 = vunpack.c.l.b16 %v252
  %v2236 = vunpack.c.h.b16 %v252
  %v2237 = vunpack.c.l.b16 %v253
  %v2238 = vunpack.c.h.b16 %v253
  %v2239 = vunpack.c.l.b16 %v254
  %v2240 = vunpack.c.l.b16 %v255
  %v2241 = vunpack.c.h.b16 %v255
  %v2242 = vunpack.c.l.b16 %v256
  %v2243 = vunpack.c.h.b16 %v256
  %v2244 = vunpack.c.l.b16 %v257
  %v2245 = vunpack.c.l.b16 %v258
  %v2246 = vunpack.c.h.b16 %v258
  %v2247 = vunpack.c.l.b16 %v259
  %v2248 = vunpack.c.h.b16 %v259
  %v2249 = vunpack.c.l.b16 %v260
  %v2250 = vunpack.c.l.b16 %v261
  %v2251 = vunpack.c.h.b16 %v261
  %v2252 = vunpack.c.l.b16 %v262
  %v2253 = vunpack.c.h.b16 %v262
  %v2254 = vunpack.c.l.b16 %v263
  %v2255 = vunpack.c.l.b16 %v264
  %v2256 = vunpack.c.h.b16 %v264
  %v2257 = vunpack.c.l.b16 %v265
  %v2258 = vunpack.c.h.b16 %v265
  %v2259 = vunpack.c.l.b16 %v266
  %v2260 = vunpack.c.l.b16 %v267
  %v2261 = vunpack.c.h.b16 %v267
  %v2262 = vunpack.c.l.b16 %v268
  %v2263 = vunpack.c.h.b16 %v268
  %v2264 = vunpack.c.l.b16 %v269
  %v2265 = vunpack.c.l.b16 %v270
  %v2266 = vunpack.c.h.b16 %v270
  %v2267 = vunpack.c.l.b16 %v271
  %v2268 = vunpack.c.h.b16 %v271
  %v2269 = vunpack.c.l.b16 %v272
  %v2270 = vunpack.c.l.b16 %v273
  %v2271 = vunpack.c.h.b16 %v273
  %v2272 = vunpack.c.l.b16 %v274
  %v2273 = vunpack.c.h.b16 %v274
  %v2274 = vunpack.c.l.b16 %v275
  %v2275 = vunpack.c.l.b16 %v276
  %v2276 = vunpack.c.h.b16 %v276
  %v2277 = vunpack.c.l.b16 %v277
  %v2278 = vunpack.c.h.b16 %v277
  %v2279 = vunpack.c.l.b16 %v278
  %v2280 = vunpack.c.l.b16 %v279
  %v2281 = vunpack.c.h.b16 %v279
  %v2282 = vunpack.c.l.b16 %v280
  %v2283 = vunpack.c.h.b16 %v280
  %v2284 = vunpack.c.l.b16 %v281
  %v2285 = vunpack.c.l.b16 %v282
  %v2286 = vunpack.c.h.b16 %v282
  %v2287 = vunpack.c.l.b16 %v283
  %v2288 = vunpack.c.h.b16 %v283
  %v2289 = vunpack.c.l.b16 %v284
  %v2290 = vunpack.c.l.b16 %v285
  %v2291 = vunpack.c.h.b16 %v285
  %v2292 = vunpack.c.l.b16 %v286
  %v2293 = vunpack.c.h.b16 %v286
  %v2294 = vunpack.c.l.b16 %v287
  %v2295 = vunpack.c.l.b16 %v288
  %v2296 = vunpack.c.h.b16 %v288
  %v2297 = vunpack.c.l.b16 %v289
  %v2298 = vunpack.c.h.b16 %v289
  %v2299 = vunpack.c.l.b16 %v290
  %v2300 = vunpack.c.l.b16 %v291
  %v2301 = vunpack.c.h.b16 %v291
  %v2302 = vunpack.c.l.b16 %v292
  %v2303 = vunpack.c.h.b16 %v292
  %v2304 = vunpack.c.l.b16 %v293
  %v2305 = vunpack.c.l.b16 %v294
  %v2306 = vunpack.c.h.b16 %v294
  %v2307 = vunpack.c.l.b16 %v295
  %v2308 = vunpack.c.h.b16 %v295
  %v2309 = vunpack.c.l.b16 %v296
  %v2310 = vunpack.c.l.b16 %v297
  %v2311 = vunpack.c.h.b16 %v297
  %v2312 = vunpack.c.l.b16 %v298
  %v2313 = vunpack.c.h.b16 %v298
  %v2314 = vunpack.c.l.b16 %v299
  %v2315 = vunpack.c.l.b16 %v300
  %v2316 = vunpack.c.h.b16 %v300
  %v2317 = vunpack.c.l.b16 %v301
  %v2318 = vunpack.c.h.b16 %v301
  %v2319 = vunpack.c.l.b16 %v302
  %v2320 = vunpack.c.l.b16 %v303
  %v2321 = vunpack.c.h.b16 %v303
  %v2322 = vunpack.c.l.b16 %v304
  %v2323 = vunpack.c.h.b16 %v304
  %v2324 = vunpack.c.l.b16 %v305
  %v2325 = vunpack.c.l.b16 %v306
  %v2326 = vunpack.c.h.b16 %v306
  %v2327 = vunpack.c.l.b16 %v307
  %v2328 = vunpack.c.h.b16 %v307
  %v2329 = vunpack.c.l.b16 %v308
  %v2330 = vunpack.c.l.b16 %v309
  %v2331 = vunpack.c.h.b16 %v309
  %v2332 = vunpack.c.l.b16 %v310
  %v2333 = vunpack.c.h.b16 %v310
  %v2334 = vunpack.c.l.b16 %v311
  %v2335 = vunpack.c.l.b16 %v312
  %v2336 = vunpack.c.h.b16 %v312
  %v2337 = vunpack.c.l.b16 %v313
  %v2338 = vunpack.c.h.b16 %v313
  %v2339 = vunpack.c.l.b16 %v314
  %v2340 = vunpack.c.l.b16 %v315
  %v2341 = vunpack.c.h.b16 %v315
  %v2342 = vunpack.c.l.b16 %v316
  %v2343 = vunpack.c.h.b16 %v316
  %v2344 = vunpack.c.l.b16 %v317
  %v2345 = vunpack.c.l.b16 %v318
  %v2346 = vunpack.c.h.b16 %v318
  %v2347 = vunpack.c.l.b16 %v319
  %v2348 = vunpack.c.h.b16 %v319
  %v2349 = vunpack.c.l.b16 %v320
  %v2350 = vunpack.c.l.b16 %v321
  %v2351 = vunpack.c.h.b16 %v321
  %v2352 = vunpack.c.l.b16 %v322
  %v2353 = vunpack.c.h.b16 %v322
  %v2354 = vunpack.c.l.b16 %v323
  %v2355 = vunpack.c.l.b16 %v324
  %v2356 = vunpack.c.h.b16 %v324
  %v2357 = vunpack.c.l.b16 %v325
  %v2358 = vunpack.c.h.b16 %v325
  %v2359 = vunpack.c.l.b16 %v326
  %v2360 = vunpack.c.l.b16 %v327
  %v2361 = vunpack.c.h.b16 %v327
  %v2362 = vunpack.c.l.b16 %v328
  %v2363 = vunpack.c.h.b16 %v328
  %v2364 = vunpack.c.l.b16 %v329
  %v2365 = vunpack.c.l.b16 %v330
  %v2366 = vunpack.c.h.b16 %v330
  %v2367 = vunpack.c.l.b16 %v331
  %v2368 = vunpack.c.h.b16 %v331
  %v2369 = vunpack.c.l.b16 %v332
  %v2370 = vunpack.c.l.b16 %v333
  %v2371 = vunpack.c.h.b16 %v333
  %v2372 = vunpack.c.l.b16 %v334
  %v2373 = vunpack.c.h.b16 %v334
  %v2374 = vunpack.c.l.b16 %v335
  %v2375 = vunpack.c.l.b16 %v336
  %v2376 = vunpack.c.h.b16 %v336
  %v2377 = vunpack.c.l.b16 %v337
  %v2378 = vunpack.c.h.b16 %v337
  %v2379 = vunpack.c.l.b16 %v338
  %v2380 = vunpack.c.l.b16 %v339
  %v2381 = vunpack.c.h.b16 %v339
  %v2382 = vunpack.c.l.b16 %v340
  %v2383 = vunpack.c.h.b16 %v340
  %v2384 = vunpack.c.l.b16 %v341
  %v2385 = vunpack.c.l.b16 %v342
  %v2386 = vunpack.c.h.b16 %v342
  %v2387 = vunpack.c.l.b16 %v343
  %v2388 = vunpack.c.h.b16 %v343
  %v2389 = vunpack.c.l.b16 %v344
  %v2390 = vunpack.c.l.b16 %v345
  %v2391 = vunpack.c.h.b16 %v345
  %v2392 = vunpack.c.l.b16 %v346
  %v2393 = vunpack.c.h.b16 %v346
  %v2394 = vunpack.c.l.b16 %v347
  %v2395 = vunpack.c.l.b16 %v348
  %v2396 = vunpack.c.h.b16 %v348
  %v2397 = vunpack.c.l.b16 %v349
  %v2398 = vunpack.c.h.b16 %v349
  %v2399 = vunpack.c.l.b16 %v350
  %v2400 = vunpack.c.l.b16 %v351
  %v2401 = vunpack.c.h.b16 %v351
  %v2402 = vunpack.c.l.b16 %v352
  %v2403 = vunpack.c.h.b16 %v352
  %v2404 = vunpack.c.l.b16 %v353
  %v2405 = vunpack.c.l.b16 %v354
  %v2406 = vunpack.c.h.b16 %v354
  %v2407 = vunpack.c.l.b16 %v355
  %v2408 = vunpack.c.h.b16 %v355
  %v2409 = vunpack.c.l.b16 %v356
  %v2410 = vunpack.c.l.b16 %v357
  %v2411 = vunpack.c.h.b16 %v357
  %v2412 = vunpack.c.l.b16 %v358
  %v2413 = vunpack.c.h.b16 %v358
  %v2414 = vunpack.c.l.b16 %v359
  %v2415 = vunpack.c.l.b16 %v360
  %v2416 = vunpack.c.h.b16 %v360
  %v2417 = vunpack.c.l.b16 %v361
  %v2418 = vunpack.c.h.b16 %v361
  %v2419 = vunpack.c.l.b16 %v362
  %v2420 = vunpack.c.l.b16 %v363
  %v2421 = vunpack.c.h.b16 %v363
  %v2422 = vunpack.c.l.b16 %v364
  %v2423 = vunpack.c.h.b16 %v364
  %v2424 = vunpack.c.l.b16 %v365
  %v2425 = vunpack.c.l.b16 %v366
  %v2426 = vunpack.c.h.b16 %v366
  %v2427 = vunpack.c.l.b16 %v367
  %v2428 = vunpack.c.h.b16 %v367
  %v2429 = vunpack.c.l.b16 %v368
  %v2430 = vunpack.c.l.b16 %v369
  %v2431 = vunpack.c.h.b16 %v369
  %v2432 = vunpack.c.l.b16 %v370
  %v2433 = vunpack.c.h.b16 %v370
  %v2434 = vunpack.c.l.b16 %v371
  %v2435 = vunpack.c.l.b16 %v372
  %v2436 = vunpack.c.h.b16 %v372
  %v2437 = vunpack.c.l.b16 %v373
  %v2438 = vunpack.c.h.b16 %v373
  %v2439 = vunpack.c.l.b16 %v374
  %v2440 = vunpack.c.l.b16 %v375
  %v2441 = vunpack.c.h.b16 %v375
  %v2442 = vunpack.c.l.b16 %v376
  %v2443 = vunpack.c.h.b16 %v376
  %v2444 = vunpack.c.l.b16 %v377
  %v2445 = vunpack.c.l.b16 %v378
  %v2446 = vunpack.c.h.b16 %v378
  %v2447 = vunpack.c.l.b16 %v379
  %v2448 = vunpack.c.h.b16 %v379
  %v2449 = vunpack.c.l.b16 %v380
  %v2450 = vunpack.c.l.b16 %v381
  %v2451 = vunpack.c.h.b16 %v381
  %v2452 = vunpack.c.l.b16 %v382
  %v2453 = vunpack.c.h.b16 %v382
  %v2454 = vunpack.c.l.b16 %v383
  %v2455 = vunpack.c.l.b16 %v384
  %v2456 = vunpack.c.h.b16 %v384
  %v2457 = vunpack.c.l.b16 %v385
  %v2458 = vunpack.c.h.b16 %v385
  %v2459 = vunpack.c.l.b16 %v386
  %v2460 = vunpack.c.l.b16 %v387
  %v2461 = vunpack.c.h.b16 %v387
  %v2462 = vunpack.c.l.b16 %v388
  %v2463 = vunpack.c.h.b16 %v388
  %v2464 = vunpack.c.l.b16 %v389
  %v2465 = vunpack.c.l.b16 %v390
  %v2466 = vunpack.c.h.b16 %v390
  %v2467 = vunpack.c.l.b16 %v391
  %v2468 = vunpack.c.h.b16 %v391
  %v2469 = vunpack.c.l.b16 %v392
  %v2470 = vunpack.c.l.b16 %v393
  %v2471 = vunpack.c.h.b16 %v393
  %v2472 = vunpack.c.l.b16 %v394
  %v2473 = vunpack.c.h.b16 %v394
  %v2474 = vunpack.c.l.b16 %v395
  %v2475 = vunpack.c.l.b16 %v396
  %v2476 = vunpack.c.h.b16 %v396
  %v2477 = vunpack.c.l.b16 %v397
  %v2478 = vunpack.c.h.b16 %v397
  %v2479 = vunpack.c.l.b16 %v398
  %v2480 = vunpack.c.l.b16 %v399
  %v2481 = vunpack.c.h.b16 %v399
  %v2482 = vunpack.c.l.b16 %v400
  %v2483 = vunpack.c.h.b16 %v400
  %v2484 = vunpack.c.l.b16 %v401
  %v2485 = vunpack.c.l.b16 %v402
  %v2486 = vunpack.c.h.b16 %v402
  %v2487 = vunpack.c.l.b16 %v403
  %v2488 = vunpack.c.h.b16 %v403
  %v2489 = vunpack.c.l.b16 %v404
  %v2490 = vunpack.c.l.b16 %v405
  %v2491 = vunpack.c.h.b16 %v405
  %v2492 = vunpack.c.l.b16 %v406
  %v2493 = vunpack.c.h.b16 %v406
  %v2494 = vunpack.c.l.b16 %v407
  %v2495 = vunpack.c.l.b16 %v408
  %v2496 = vunpack.c.h.b16 %v408
  %v2497 = vunpack.c.l.b16 %v409
  %v2498 = vunpack.c.h.b16 %v409
  %v2499 = vunpack.c.l.b16 %v410
  %v2500 = vunpack.c.l.b16 %v411
  %v2501 = vunpack.c.h.b16 %v411
  %v2502 = vunpack.c.l.b16 %v412
  %v2503 = vunpack.c.h.b16 %v412
  %v2504 = vunpack.c.l.b16 %v413
  %v2505 = vunpack.c.l.b16 %v414
  %v2506 = vunpack.c.h.b16 %v414
  %v2507 = vunpack.c.l.b16 %v415
  %v2508 = vunpack.c.h.b16 %v415
  %v2509 = vunpack.c.l.b16 %v416
  %v2510 = vunpack.c.l.b16 %v417
  %v2511 = vunpack.c.h.b16 %v417
  %v2512 = vunpack.c.l.b16 %v418
  %v2513 = vunpack.c.h.b16 %v418
  %v2514 = vunpack.c.l.b16 %v419
  %v2515 = vunpack.c.l.b16 %v420
  %v2516 = vunpack.c.h.b16 %v420
  %v2517 = vunpack.c.l.b16 %v421
  %v2518 = vunpack.c.h.b16 %v421
  %v2519 = vunpack.c.l.b16 %v422
  %v2520 = vunpack.c.l.b16 %v423
  %v2521 = vunpack.c.h.b16 %v423
  %v2522 = vunpack.c.l.b16 %v424
  %v2523 = vunpack.c.h.b16 %v424
  %v2524 = vunpack.c.l.b16 %v425
  %v2525 = vunpack.c.l.b16 %v426
  %v2526 = vunpack.c.h.b16 %v426
  %v2527 = vunpack.c.l.b16 %v427
  %v2528 = vunpack.c.h.b16 %v427
  %v2529 = vunpack.c.l.b16 %v428
  %v2530 = vunpack.c.l.b16 %v429
  %v2531 = vunpack.c.h.b16 %v429
  %v2532 = vunpack.c.l.b16 %v430
  %v2533 = vunpack.c.h.b16 %v430
  %v2534 = vunpack.c.l.b16 %v431
  %v2535 = vunpack.c.l.b16 %v432
  %v2536 = vunpack.c.h.b16 %v432
  %v2537 = vunpack.c.l.b16 %v433
  %v2538 = vunpack.c.h.b16 %v433
  %v2539 = vunpack.c.l.b16 %v434
  %v2540 = vunpack.c.l.b16 %v435
  %v2541 = vunpack.c.h.b16 %v435
  %v2542 = vunpack.c.l.b16 %v436
  %v2543 = vunpack.c.h.b16 %v436
  %v2544 = vunpack.c.l.b16 %v437
  %v2545 = vunpack.c.l.b16 %v438
  %v2546 = vunpack.c.h.b16 %v438
  %v2547 = vunpack.c.l.b16 %v439
  %v2548 = vunpack.c.h.b16 %v439
  %v2549 = vunpack.c.l.b16 %v440
  %v2550 = vunpack.c.l.b16 %v441
  %v2551 = vunpack.c.h.b16 %v441
  %v2552 = vunpack.c.l.b16 %v442
  %v2553 = vunpack.c.h.b16 %v442
  %v2554 = vunpack.c.l.b16 %v443
  %v2555 = vunpack.c.l.b16 %v444
  %v2556 = vunpack.c.h.b16 %v444
  %v2557 = vunpack.c.l.b16 %v445
  %v2558 = vunpack.c.h.b16 %v445
  %v2559 = vunpack.c.l.b16 %v446
  %v2560 = vunpack.c.l.b16 %v447
  %v2561 = vunpack.c.h.b16 %v447
  %v2562 = vunpack.c.l.b16 %v448
  %v2563 = vunpack.c.h.b16 %v448
  %v2564 = vunpack.c.l.b16 %v449
  %v2565 = vunpack.c.l.b16 %v450
  %v2566 = vunpack.c.h.b16 %v450
  %v2567 = vunpack.c.l.b16 %v451
  %v2568 = vunpack.c.h.b16 %v451
  %v2569 = vunpack.c.l.b16 %v452
  %v2570 = vunpack.c.l.b16 %v453
  %v2571 = vunpack.c.h.b16 %v453
  %v2572 = vunpack.c.l.b16 %v454
  %v2573 = vunpack.c.h.b16 %v454
  %v2574 = vunpack.c.l.b16 %v455
  %v2575 = vunpack.c.l.b16 %v456
  %v2576 = vunpack.c.h.b16 %v456
  %v2577 = vunpack.c.l.b16 %v457
  %v2578 = vunpack.c.h.b16 %v457
  %v2579 = vunpack.c.l.b16 %v458
  %v2580 = vunpack.c.l.b16 %v459
  %v2581 = vunpack.c.h.b16 %v459
  %v2582 = vunpack.c.l.b16 %v460
  %v2583 = vunpack.c.h.b16 %v460
  %v2584 = vunpack.c.l.b16 %v461
  %v2585 = vunpack.c.l.b16 %v462
  %v2586 = vunpack.c.h.b16 %v462
  %v2587 = vunpack.c.l.b16 %v463
  %v2588 = vunpack.c.h.b16 %v463
  %v2589 = vunpack.c.l.b16 %v464
  %v2590 = vunpack.c.l.b16 %v465
  %v2591 = vunpack.c.h.b16 %v465
  %v2592 = vunpack.c.l.b16 %v466
  %v2593 = vunpack.c.h.b16 %v466
  %v2594 = vunpack.c.l.b16 %v467
  %v2595 = vunpack.c.l.b16 %v468
  %v2596 = vunpack.c.h.b16 %v468
  %v2597 = vunpack.c.l.b16 %v469
  %v2598 = vunpack.c.h.b16 %v469
  %v2599 = vunpack.c.l.b16 %v470
  %v2600 = vunpack.c.l.b16 %v471
  %v2601 = vunpack.c.h.b16 %v471
  %v2602 = vunpack.c.l.b16 %v472
  %v2603 = vunpack.c.h.b16 %v472
  %v2604 = vunpack.c.l.b16 %v473
  %v2605 = vunpack.c.l.b16 %v474
  %v2606 = vunpack.c.h.b16 %v474
  %v2607 = vunpack.c.l.b16 %v475
  %v2608 = vunpack.c.h.b16 %v475
  %v2609 = vunpack.c.l.b16 %v476
  %v2610 = vunpack.c.l.b16 %v477
  %v2611 = vunpack.c.h.b16 %v477
  %v2612 = vunpack.c.l.b16 %v478
  %v2613 = vunpack.c.h.b16 %v478
  %v2614 = vunpack.c.l.b16 %v479
  %v2615 = vunpack.c.l.b16 %v480
  %v2616 = vunpack.c.h.b16 %v480
  %v2617 = vunpack.c.l.b16 %v481
  %v2618 = vunpack.c.h.b16 %v481
  %v2619 = vunpack.c.l.b16 %v482
  %v2620 = vunpack.c.l.b16 %v483
  %v2621 = vunpack.c.h.b16 %v483
  %v2622 = vunpack.c.l.b16 %v484
  %v2623 = vunpack.c.h.b16 %v484
  %v2624 = vunpack.c.l.b16 %v485
  %v2625 = vunpack.c.l.b16 %v486
  %v2626 = vunpack.c.h.b16 %v486
  %v2627 = vunpack.c.l.b16 %v487
  %v2628 = vunpack.c.h.b16 %v487
  %v2629 = vunpack.c.l.b16 %v488
  %v2630 = vunpack.c.l.b16 %v489
  %v2631 = vunpack.c.h.b16 %v489
  %v2632 = vunpack.c.l.b16 %v490
  %v2633 = vunpack.c.h.b16 %v490
  %v2634 = vunpack.c.l.b16 %v491
  %v2635 = vunpack.c.l.b16 %v492
  %v2636 = vunpack.c.h.b16 %v492
  %v2637 = vunpack.c.l.b16 %v493
  %v2638 = vunpack.c.h.b16 %v493
  %v2639 = vunpack.c.l.b16 %v494
  %v2640 = vunpack.c.l.b16 %v495
  %v2641 = vunpack.c.h.b16 %v495
  %v2642 = vunpack.c.l.b16 %v496
  %v2643 = vunpack.c.h.b16 %v496
  %v2644 = vunpack.c.l.b16 %v497
  %v2645 = vunpack.c.l.b16 %v498
  %v2646 = vunpack.c.h.b16 %v498
  %v2647 = vunpack.c.l.b16 %v499
  %v2648 = vunpack.c.h.b16 %v499
  %v2649 = vunpack.c.l.b16 %v500
  %v2650 = vunpack.c.l.b16 %v501
  %v2651 = vunpack.c.h.b16 %v501
  %v2652 = vunpack.c.l.b16 %v502
  %v2653 = vunpack.c.h.b16 %v502
  %v2654 = vunpack.c.l.b16 %v503
  %v2655 = vunpack.c.l.b16 %v504
  %v2656 = vunpack.c.h.b16 %v504
  %v2657 = vunpack.c.l.b16 %v505
  %v2658 = vunpack.c.h.b16 %v505
  %v2659 = vunpack.c.l.b16 %v506
  %v2660 = vunpack.c.l.b16 %v507
  %v2661 = vunpack.c.h.b16 %v507
  %v2662 = vunpack.c.l.b16 %v508
  %v2663 = vunpack.c.h.b16 %v508
  %v2664 = vunpack.c.l.b16 %v509
  %v2665 = vunpack.c.l.b16 %v510
  %v2666 = vunpack.c.h.b16 %v510
  %v2667 = vunpack.c.l.b16 %v511
  %v2668 = vunpack.c.h.b16 %v511
  %v2669 = vunpack.c.l.b16 %v512
  %v2670 = vunpack.c.l.b16 %v513
  %v2671 = vunpack.c.h.b16 %v513
  %v2672 = vunpack.c.l.b16 %v514
  %v2673 = vunpack.c.h.b16 %v514
  %v2674 = vunpack.c.l.b16 %v515
  %v2675 = vunpack.c.l.b16 %v516
  %v2676 = vunpack.c.h.b16 %v516
  %v2677 = vunpack.c.l.b16 %v517
  %v2678 = vunpack.c.h.b16 %v517
  %v2679 = vunpack.c.l.b16 %v518
  %v2680 = vunpack.c.l.b16 %v519
  %v2681 = vunpack.c.h.b16 %v519
  %v2682 = vunpack.c.l.b16 %v520
  %v2683 = vunpack.c.h.b16 %v520
  %v2684 = vunpack.c.l.b16 %v521
  %v2685 = vunpack.c.l.b16 %v522
  %v2686 = vunpack.c.h.b16 %v522
  %v2687 = vunpack.c.l.b16 %v523
  %v2688 = vunpack.c.h.b16 %v523
  %v2689 = vunpack.c.l.b16 %v524
  %v2690 = vunpack.c.l.b16 %v525
  %v2691 = vunpack.c.h.b16 %v525
  %v2692 = vunpack.c.l.b16 %v526
  %v2693 = vunpack.c.h.b16 %v526
  %v2694 = vunpack.c.l.b16 %v527
  %v2695 = vunpack.c.l.b16 %v528
  %v2696 = vunpack.c.h.b16 %v528
  %v2697 = vunpack.c.l.b16 %v529
  %v2698 = vunpack.c.h.b16 %v529
  %v2699 = vunpack.c.l.b16 %v530
  %v2700 = vunpack.c.l.b16 %v531
  %v2701 = vunpack.c.h.b16 %v531
  %v2702 = vunpack.c.l.b16 %v532
  %v2703 = vunpack.c.h.b16 %v532
  %v2704 = vunpack.c.l.b16 %v533
  %v2705 = vunpack.c.l.b16 %v534
  %v2706 = vunpack.c.h.b16 %v534
  %v2707 = vunpack.c.l.b16 %v535
  %v2708 = vunpack.c.h.b16 %v535
  %v2709 = vunpack.c.l.b16 %v536
  %v2710 = vunpack.c.l.b16 %v537
  %v2711 = vunpack.c.h.b16 %v537
  %v2712 = vunpack.c.l.b16 %v538
  %v2713 = vunpack.c.h.b16 %v538
  %v2714 = vunpack.c.l.b16 %v539
  %v2715 = vunpack.c.l.b16 %v540
  %v2716 = vunpack.c.h.b16 %v540
  %v2717 = vunpack.c.l.b16 %v541
  %v2718 = vunpack.c.h.b16 %v541
  %v2719 = vunpack.c.l.b16 %v542
  %v2720 = vunpack.c.l.b16 %v543
  %v2721 = vunpack.c.h.b16 %v543
  %v2722 = vunpack.c.l.b16 %v544
  %v2723 = vunpack.c.h.b16 %v544
  %v2724 = vunpack.c.l.b16 %v545
  %v2725 = vunpack.c.l.b16 %v546
  %v2726 = vunpack.c.h.b16 %v546
  %v2727 = vunpack.c.l.b16 %v547
  %v2728 = vunpack.c.h.b16 %v547
  %v2729 = vunpack.c.l.b16 %v548
  %v2730 = vunpack.c.l.b16 %v549
  %v2731 = vunpack.c.h.b16 %v549
  %v2732 = vunpack.c.l.b16 %v550
  %v2733 = vunpack.c.h.b16 %v550
  %v2734 = vunpack.c.l.b16 %v551
  %v2735 = vunpack.c.l.b16 %v552
  %v2736 = vunpack.c.h.b16 %v552
  %v2737 = vunpack.c.l.b16 %v553
  %v2738 = vunpack.c.h.b16 %v553
  %v2739 = vunpack.c.l.b16 %v554
  %v2740 = vunpack.c.l.b16 %v555
  %v2741 = vunpack.c.h.b16 %v555
  %v2742 = vunpack.c.l.b16 %v556
  %v2743 = vunpack.c.h.b16 %v556
  %v2744 = vunpack.c.l.b16 %v557
  %v2745 = vunpack.c.l.b16 %v558
  %v2746 = vunpack.c.h.b16 %v558
  %v2747 = vunpack.c.l.b16 %v559
  %v2748 = vunpack.c.h.b16 %v559
  %v2749 = vunpack.c.l.b16 %v560
  %v2750 = vunpack.c.l.b16 %v561
  %v2751 = vunpack.c.h.b16 %v561
  %v2752 = vunpack.c.l.b16 %v562
  %v2753 = vunpack.c.h.b16 %v562
  %v2754 = vunpack.c.l.b16 %v563
  %v2755 = vunpack.c.l.b16 %v564
  %v2756 = vunpack.c.h.b16 %v564
  %v2757 = vunpack.c.l.b16 %v565
  %v2758 = vunpack.c.h.b16 %v565
  %v2759 = vunpack.c.l.b16 %v566
  %v2760 = vunpack.c.l.b16 %v567
  %v2761 = vunpack.c.h.b16 %v567
  %v2762 = vunpack.c.l.b16 %v568
  %v2763 = vunpack.c.h.b16 %v568
  %v2764 = vunpack.c.l.b16 %v569
  %v2765 = vunpack.c.l.b16 %v570
  %v2766 = vunpack.c.h.b16 %v570
  %v2767 = vunpack.c.l.b16 %v571
  %v2768 = vunpack.c.h.b16 %v571
  %v2769 = vunpack.c.l.b16 %v572
  %v2770 = vunpack.c.l.b16 %v573
  %v2771 = vunpack.c.h.b16 %v573
  %v2772 = vunpack.c.l.b16 %v574
  %v2773 = vunpack.c.h.b16 %v574
  %v2774 = vunpack.c.l.b16 %v575
  %v2775 = vunpack.c.l.b16 %v576
  %v2776 = vunpack.c.h.b16 %v576
  %v2777 = vunpack.c.l.b16 %v577
  %v2778 = vunpack.c.h.b16 %v577
  %v2779 = vunpack.c.l.b16 %v578
  %v2780 = vunpack.c.l.b16 %v579
  %v2781 = vunpack.c.h.b16 %v579
  %v2782 = vunpack.c.l.b16 %v580
  %v2783 = vunpack.c.h.b16 %v580
  %v2784 = vunpack.c.l.b16 %v581
  %v2785 = vunpack.c.l.b16 %v582
  %v2786 = vunpack.c.h.b16 %v582
  %v2787 = vunpack.c.l.b16 %v583
  %v2788 = vunpack.c.h.b16 %v583
  %v2789 = vunpack.c.l.b16 %v584
  %v2790 = vunpack.c.l.b16 %v585
  %v2791 = vunpack.c.h.b16 %v585
  %v2792 = vunpack.c.l.b16 %v586
  %v2793 = vunpack.c.h.b16 %v586
  %v2794 = vunpack.c.l.b16 %v587
  %v2795 = vunpack.c.l.b16 %v588
  %v2796 = vunpack.c.h.b16 %v588
  %v2797 = vunpack.c.l.b16 %v589
  %v2798 = vunpack.c.h.b16 %v589
  %v2799 = vunpack.c.l.b16 %v590
  %v2800 = vunpack.c.l.b16 %v591
  %v2801 = vunpack.c.h.b16 %v591
  %v2802 = vunpack.c.l.b16 %v592
  %v2803 = vunpack.c.h.b16 %v592
  %v2804 = vunpack.c.l.b16 %v593
  %v2805 = vunpack.c.l.b16 %v594
  %v2806 = vunpack.c.h.b16 %v594
  %v2807 = vunpack.c.l.b16 %v595
  %v2808 = vunpack.c.h.b16 %v595
  %v2809 = vunpack.c.l.b16 %v596
  %v2810 = vunpack.c.l.b16 %v597
  %v2811 = vunpack.c.h.b16 %v597
  %v2812 = vunpack.c.l.b16 %v598
  %v2813 = vunpack.c.h.b16 %v598
  %v2814 = vunpack.c.l.b16 %v599
  %v2815 = vunpack.c.l.b16 %v600
  %v2816 = vunpack.c.h.b16 %v600
  %v2817 = vunpack.c.l.b16 %v601
  %v2818 = vunpack.c.h.b16 %v601
  %v2819 = vunpack.c.l.b16 %v602
  %v2820 = vunpack.c.l.b16 %v603
  %v2821 = vunpack.c.h.b16 %v603
  %v2822 = vunpack.c.l.b16 %v604
  %v2823 = vunpack.c.h.b16 %v604
  %v2824 = vunpack.c.l.b16 %v605
  %v2825 = vunpack.c.l.b16 %v606
  %v2826 = vunpack.c.h.b16 %v606
  %v2827 = vunpack.c.l.b16 %v607
  %v2828 = vunpack.c.h.b16 %v607
  %v2829 = vunpack.c.l.b16 %v608
  %v2830 = vunpack.c.l.b16 %v609
  %v2831 = vunpack.c.h.b16 %v609
  %v2832 = vunpack.c.l.b16 %v610
  %v2833 = vunpack.c.h.b16 %v610
  %v2834 = vunpack.c.l.b16 %v611
  %v2835 = vunpack.c.l.b16 %v612
  %v2836 = vunpack.c.h.b16 %v612
  %v2837 = vunpack.c.l.b16 %v613
  %v2838 = vunpack.c.h.b16 %v613
  %v2839 = vunpack.c.l.b16 %v614
  %v2840 = vunpack.c.l.b16 %v615
  %v2841 = vunpack.c.h.b16 %v615
  %v2842 = vunpack.c.l.b16 %v616
  %v2843 = vunpack.c.h.b16 %v616
  %v2844 = vunpack.c.l.b16 %v617
  %v2845 = vunpack.c.l.b16 %v618
  %v2846 = vunpack.c.h.b16 %v618
  %v2847 = vunpack.c.l.b16 %v619
  %v2848 = vunpack.c.h.b16 %v619
  %v2849 = vunpack.c.l.b16 %v620
  %v2850 = vunpack.c.l.b16 %v621
  %v2851 = vunpack.c.h.b16 %v621
  %v2852 = vunpack.c.l.b16 %v622
  %v2853 = vunpack.c.h.b16 %v622
  %v2854 = vunpack.c.l.b16 %v623
  %v2855 = vunpack.c.l.b16 %v624
  %v2856 = vunpack.c.h.b16 %v624
  %v2857 = vunpack.c.l.b16 %v625
  %v2858 = vunpack.c.h.b16 %v625
  %v2859 = vunpack.c.l.b16 %v626
  %v2860 = vunpack.c.l.b16 %v627
  %v2861 = vunpack.c.h.b16 %v627
  %v2862 = vunpack.c.l.b16 %v628
  %v2863 = vunpack.c.h.b16 %v628
  %v2864 = vunpack.c.l.b16 %v629
  %v2865 = vunpack.c.l.b16 %v630
  %v2866 = vunpack.c.h.b16 %v630
  %v2867 = vunpack.c.l.b16 %v631
  %v2868 = vunpack.c.h.b16 %v631
  %v2869 = vunpack.c.l.b16 %v632
  %v2870 = vunpack.c.l.b16 %v633
  %v2871 = vunpack.c.h.b16 %v633
  %v2872 = vunpack.c.l.b16 %v634
  %v2873 = vunpack.c.h.b16 %v634
  %v2874 = vunpack.c.l.b16 %v635
  %v2875 = vunpack.c.l.b16 %v636
  %v2876 = vunpack.c.h.b16 %v636
  %v2877 = vunpack.c.l.b16 %v637
  %v2878 = vunpack.c.h.b16 %v637
  %v2879 = vunpack.c.l.b16 %v638
  %v2880 = vunpack.c.l.b16 %v639
  %v2881 = vunpack.c.h.b16 %v639
  %v2882 = vunpack.c.l.b16 %v640
  %v2883 = vunpack.c.h.b16 %v640
  %v2884 = vunpack.c.l.b16 %v641
  %v2885 = vunpack.c.l.b16 %v642
  %v2886 = vunpack.c.h.b16 %v642
  %v2887 = vunpack.c.l.b16 %v643
  %v2888 = vunpack.c.h.b16 %v643
  %v2889 = vunpack.c.l.b16 %v644
  %v2890 = vunpack.c.l.b16 %v645
  %v2891 = vunpack.c.h.b16 %v645
  %v2892 = vunpack.c.l.b16 %v646
  %v2893 = vunpack.c.h.b16 %v646
  %v2894 = vunpack.c.l.b16 %v647
  %v2895 = vunpack.c.l.b16 %v648
  %v2896 = vunpack.c.h.b16 %v648
  %v2897 = vunpack.c.l.b16 %v649
  %v2898 = vunpack.c.h.b16 %v649
  %v2899 = vunpack.c.l.b16 %v650
  %v2900 = vunpack.c.l.b16 %v651
  %v2901 = vunpack.c.h.b16 %v651
  %v2902 = vunpack.c.l.b16 %v652
  %v2903 = vunpack.c.h.b16 %v652
  %v2904 = vunpack.c.l.b16 %v653
  %v2905 = vunpack.c.l.b16 %v654
  %v2906 = vunpack.c.h.b16 %v654
  %v2907 = vunpack.c.l.b16 %v655
  %v2908 = vunpack.c.h.b16 %v655
  %v2909 = vunpack.c.l.b16 %v656
  %v2910 = vunpack.c.l.b16 %v657
  %v2911 = vunpack.c.h.b16 %v657
  %v2912 = vunpack.c.l.b16 %v658
  %v2913 = vunpack.c.h.b16 %v658
  %v2914 = vunpack.c.l.b16 %v659
  %v2915 = vunpack.c.l.b16 %v660
  %v2916 = vunpack.c.h.b16 %v660
  %v2917 = vunpack.c.l.b16 %v661
  %v2918 = vunpack.c.h.b16 %v661
  %v2919 = vunpack.c.l.b16 %v662
  %v2920 = vunpack.c.l.b16 %v663
  %v2921 = vunpack.c.h.b16 %v663
  %v2922 = vunpack.c.l.b16 %v664
  %v2923 = vunpack.c.h.b16 %v664
  %v2924 = vunpack.c.l.b16 %v665
  %v2925 = vunpack.c.l.b16 %v666
  %v2926 = vunpack.c.h.b16 %v666
  %v2927 = vunpack.c.l.b16 %v667
  %v2928 = vunpack.c.h.b16 %v667
  %v2929 = vunpack.c.l.b16 %v668
  %v2930 = vunpack.c.l.b16 %v669
  %v2931 = vunpack.c.h.b16 %v669
  %v2932 = vunpack.c.l.b16 %v670
  %v2933 = vunpack.c.h.b16 %v670
  %v2934 = vunpack.c.l.b16 %v671
  %v2935 = vunpack.c.l.b16 %v672
  %v2936 = vunpack.c.h.b16 %v672
  %v2937 = vunpack.c.l.b16 %v673
  %v2938 = vunpack.c.h.b16 %v673
  %v2939 = vunpack.c.l.b16 %v674
  %v2940 = vunpack.c.l.b16 %v675
  %v2941 = vunpack.c.h.b16 %v675
  %v2942 = vunpack.c.l.b16 %v676
  %v2943 = vunpack.c.h.b16 %v676
  %v2944 = vunpack.c.l.b16 %v677
  %v2945 = vunpack.c.l.b16 %v678
  %v2946 = vunpack.c.h.b16 %v678
  %v2947 = vunpack.c.l.b16 %v679
  %v2948 = vunpack.c.h.b16 %v679
  %v2949 = vunpack.c.l.b16 %v680
  %v2950 = vunpack.c.l.b16 %v681
  %v2951 = vunpack.c.h.b16 %v681
  %v2952 = vunpack.c.l.b16 %v682
  %v2953 = vunpack.c.h.b16 %v682
  %v2954 = vunpack.c.l.b16 %v683
  %v2955 = vunpack.c.l.b16 %v684
  %v2956 = vunpack.c.h.b16 %v684
  %v2957 = vunpack.c.l.b16 %v685
  %v2958 = vunpack.c.h.b16 %v685
  %v2959 = vunpack.c.l.b16 %v686
  %v2960 = vunpack.c.l.b16 %v687
  %v2961 = vunpack.c.h.b16 %v687
  %v2962 = vunpack.c.l.b16 %v688
  %v2963 = vunpack.c.h.b16 %v688
  %v2964 = vunpack.c.l.b16 %v689
  %v2965 = vunpack.c.l.b16 %v690
  %v2966 = vunpack.c.h.b16 %v690
  %v2967 = vunpack.c.l.b16 %v691
  %v2968 = vunpack.c.h.b16 %v691
  %v2969 = vunpack.c.l.b16 %v692
  %v2970 = vunpack.c.l.b16 %v693
  %v2971 = vunpack.c.h.b16 %v693
  %v2972 = vunpack.c.l.b16 %v694
  %v2973 = vunpack.c.h.b16 %v694
  %v2974 = vunpack.c.l.b16 %v695
  %v2975 = vunpack.c.l.b16 %v696
  %v2976 = vunpack.c.h.b16 %v696
  %v2977 = vunpack.c.l.b16 %v697
  %v2978 = vunpack.c.h.b16 %v697
  %v2979 = vunpack.c.l.b16 %v698
  %v2980 = vunpack.c.l.b16 %v699
  %v2981 = vunpack.c.h.b16 %v699
  %v2982 = vunpack.c.l.b16 %v700
  %v2983 = vunpack.c.h.b16 %v700
  %v2984 = vunpack.c.l.b16 %v701
  %v2985 = vunpack.c.l.b16 %v702
  %v2986 = vunpack.c.h.b16 %v702
  %v2987 = vunpack.c.l.b16 %v703
  %v2988 = vunpack.c.h.b16 %v703
  %v2989 = vunpack.c.l.b16 %v704
  %v2990 = vunpack.c.l.b16 %v705
  %v2991 = vunpack.c.h.b16 %v705
  %v2992 = vunpack.c.l.b16 %v706
  %v2993 = vunpack.c.h.b16 %v706
  %v2994 = vunpack.c.l.b16 %v707
  %v2995 = vunpack.c.l.b16 %v708
  %v2996 = vunpack.c.h.b16 %v708
  %v2997 = vunpack.c.l.b16 %v709
  %v2998 = vunpack.c.h.b16 %v709
  %v2999 = vunpack.c.l.b16 %v710
  %v3000 = vunpack.c.l.b16 %v711
  %v3001 = vunpack.c.h.b16 %v711
  %v3002 = vunpack.c.l.b16 %v712
  %v3003 = vunpack.c.h.b16 %v712
  %v3004 = vunpack.c.l.b16 %v713
  %v3005 = vunpack.c.l.b16 %v714
  %v3006 = vunpack.c.h.b16 %v714
  %v3007 = vunpack.c.l.b16 %v715
  %v3008 = vunpack.c.h.b16 %v715
  %v3009 = vunpack.c.l.b16 %v716
  %v3010 = vunpack.c.l.b16 %v717
  %v3011 = vunpack.c.h.b16 %v717
  %v3012 = vunpack.c.l.b16 %v718
  %v3013 = vunpack.c.h.b16 %v718
  %v3014 = vunpack.c.l.b16 %v719
  %v3015 = vunpack.c.l.b16 %v720
  %v3016 = vunpack.c.h.b16 %v720
  %v3017 = vunpack.c.l.b16 %v721
  %v3018 = vunpack.c.h.b16 %v721
  %v3019 = vunpack.c.l.b16 %v722
  %v3020 = vunpack.c.l.b16 %v723
  %v3021 = vunpack.c.h.b16 %v723
  %v3022 = vunpack.c.l.b16 %v724
  %v3023 = vunpack.c.h.b16 %v724
  %v3024 = vunpack.c.l.b16 %v725
  %v3025 = vunpack.c.l.b16 %v726
  %v3026 = vunpack.c.h.b16 %v726
  %v3027 = vunpack.c.l.b16 %v727
  %v3028 = vunpack.c.h.b16 %v727
  %v3029 = vunpack.c.l.b16 %v728
  %v3030 = vunpack.c.l.b16 %v729
  %v3031 = vunpack.c.h.b16 %v729
  %v3032 = vunpack.c.l.b16 %v730
  %v3033 = vunpack.c.h.b16 %v730
  %v3034 = vunpack.c.l.b16 %v731
  %v3035 = vunpack.c.l.b16 %v732
  %v3036 = vunpack.c.h.b16 %v732
  %v3037 = vunpack.c.l.b16 %v733
  %v3038 = vunpack.c.h.b16 %v733
  %v3039 = vunpack.c.l.b16 %v734
  %v3040 = vunpack.c.l.b16 %v735
  %v3041 = vunpack.c.h.b16 %v735
  %v3042 = vunpack.c.l.b16 %v736
  %v3043 = vunpack.c.h.b16 %v736
  %v3044 = vunpack.c.l.b16 %v737
  %v3045 = vunpack.c.l.b16 %v738
  %v3046 = vunpack.c.h.b16 %v738
  %v3047 = vunpack.c.l.b16 %v739
  %v3048 = vunpack.c.h.b16 %v739
  %v3049 = vunpack.c.l.b16 %v740
  %v3050 = vunpack.c.l.b16 %v741
  %v3051 = vunpack.c.h.b16 %v741
  %v3052 = vunpack.c.l.b16 %v742
  %v3053 = vunpack.c.h.b16 %v742
  %v3054 = vunpack.c.l.b16 %v743
  %v3055 = vunpack.c.l.b16 %v744
  %v3056 = vunpack.c.h.b16 %v744
  %v3057 = vunpack.c.l.b16 %v745
  %v3058 = vunpack.c.h.b16 %v745
  %v3059 = vunpack.c.l.b16 %v746
  %v3060 = vunpack.c.l.b16 %v747
  %v3061 = vunpack.c.h.b16 %v747
  %v3062 = vunpack.c.l.b16 %v748
  %v3063 = vunpack.c.h.b16 %v748
  %v3064 = vunpack.c.l.b16 %v749
  %v3065 = vunpack.c.l.b16 %v750
  %v3066 = vunpack.c.h.b16 %v750
  %v3067 = vunpack.c.l.b16 %v751
  %v3068 = vunpack.c.h.b16 %v751
  %v3069 = vunpack.c.l.b16 %v752
  %v3070 = vunpack.c.l.b16 %v753
  %v3071 = vunpack.c.h.b16 %v753
  %v3072 = vunpack.c.l.b16 %v754
  %v3073 = vunpack.c.h.b16 %v754
  %v3074 = vunpack.c.l.b16 %v755
  %v3075 = vunpack.c.l.b16 %v756
  %v3076 = vunpack.c.h.b16 %v756
  %v3077 = vunpack.c.l.b16 %v757
  %v3078 = vunpack.c.h.b16 %v757
  %v3079 = vunpack.c.l.b16 %v758
  %v3080 = vunpack.c.l.b16 %v759
  %v3081 = vunpack.c.h.b16 %v759
  %v3082 = vunpack.c.l.b16 %v760
  %v3083 = vunpack.c.h.b16 %v760
  %v3084 = vunpack.c.l.b16 %v761
  %v3085 = vunpack.c.l.b16 %v762
  %v3086 = vunpack.c.h.b16 %v762
  %v3087 = vunpack.c.l.b16 %v763
  %v3088 = vunpack.c.h.b16 %v763
  %v3089 = vunpack.c.l.b16 %v764
  %v3090 = vunpack.c.l.b16 %v765
  %v3091 = vunpack.c.h.b16 %v765
  %v3092 = vunpack.c.l.b16 %v766
  %v3093 = vunpack.c.h.b16 %v766
  %v3094 = vunpack.c.l.b16 %v767
  %v3095 = vunpack.c.l.b16 %v768
  %v3096 = vunpack.c.h.b16 %v768
  %v3097 = vunpack.c.l.b16 %v769
  %v3098 = vunpack.c.h.b16 %v769
  %v3099 = vunpack.c.l.b16 %v770
  %v3100 = vunpack.c.l.b16 %v771
  %v3101 = vunpack.c.h.b16 %v771
  %v3102 = vunpack.c.l.b16 %v772
  %v3103 = vunpack.c.h.b16 %v772
  %v3104 = vunpack.c.l.b16 %v773
  %v3105 = vunpack.c.l.b16 %v774
  %v3106 = vunpack.c.h.b16 %v774
  %v3107 = vunpack.c.l.b16 %v775
  %v3108 = vunpack.c.h.b16 %v775
  %v3109 = vunpack.c.l.b16 %v776
  %v3110 = vunpack.c.l.b16 %v777
  %v3111 = vunpack.c.h.b16 %v777
  %v3112 = vunpack.c.l.b16 %v778
  %v3113 = vunpack.c.h.b16 %v778
  %v3114 = vunpack.c.l.b16 %v779
  %v3115 = vunpack.c.l.b16 %v780
  %v3116 = vunpack.c.h.b16 %v780
  %v3117 = vunpack.c.l.b16 %v781
  %v3118 = vunpack.c.h.b16 %v781
  %v3119 = vunpack.c.l.b16 %v782
  %v3120 = vunpack.c.l.b16 %v783
  %v3121 = vunpack.c.h.b16 %v783
  %v3122 = vunpack.c.l.b16 %v784
  %v3123 = vunpack.c.h.b16 %v784
  %v3124 = vunpack.c.l.b16 %v785
  %v3125 = vunpack.c.l.b16 %v786
  %v3126 = vunpack.c.h.b16 %v786
  %v3127 = vunpack.c.l.b16 %v787
  %v3128 = vunpack.c.h.b16 %v787
  %v3129 = vunpack.c.l.b16 %v788
  %v3130 = vunpack.c.l.b16 %v789
  %v3131 = vunpack.c.h.b16 %v789
  %v3132 = vunpack.c.l.b16 %v790
  %v3133 = vunpack.c.h.b16 %v790
  %v3134 = vunpack.c.l.b16 %v791
  %v3135 = vunpack.c.l.b16 %v792
  %v3136 = vunpack.c.h.b16 %v792
  %v3137 = vunpack.c.l.b16 %v793
  %v3138 = vunpack.c.h.b16 %v793
  %v3139 = vunpack.c.l.b16 %v794
  %v3140 = vunpack.c.l.b16 %v795
  %v3141 = vunpack.c.h.b16 %v795
  %v3142 = vunpack.c.l.b16 %v796
  %v3143 = vunpack.c.h.b16 %v796
  %v3144 = vunpack.c.l.b16 %v797
  %v3145 = vunpack.c.l.b16 %v798
  %v3146 = vunpack.c.h.b16 %v798
  %v3147 = vunpack.c.l.b16 %v799
  %v3148 = vunpack.c.h.b16 %v799
  %v3149 = vunpack.c.l.b16 %v800
  %v3150 = vunpack.c.l.b16 %v801
  %v3151 = vunpack.c.h.b16 %v801
  %v3152 = vunpack.c.l.b16 %v802
  %v3153 = vunpack.c.h.b16 %v802
  %v3154 = vunpack.c.l.b16 %v803
  %v3155 = vunpack.c.l.b16 %v804
  %v3156 = vunpack.c.h.b16 %v804
  %v3157 = vunpack.c.l.b16 %v805
  %v3158 = vunpack.c.h.b16 %v805
  %v3159 = vunpack.c.l.b16 %v806
  %v3160 = vunpack.c.l.b16 %v807
  %v3161 = vunpack.c.h.b16 %v807
  %v3162 = vunpack.c.l.b16 %v808
  %v3163 = vunpack.c.h.b16 %v808
  %v3164 = vunpack.c.l.b16 %v809
  %v3165 = vunpack.c.l.b16 %v810
  %v3166 = vunpack.c.h.b16 %v810
  %v3167 = vunpack.c.l.b16 %v811
  %v3168 = vunpack.c.h.b16 %v811
  %v3169 = vunpack.c.l.b16 %v812
  %v3170 = vunpack.c.l.b16 %v813
  %v3171 = vunpack.c.h.b16 %v813
  %v3172 = vunpack.c.l.b16 %v814
  %v3173 = vunpack.c.h.b16 %v814
  %v3174 = vunpack.c.l.b16 %v815
  %v3175 = vunpack.c.l.b16 %v816
  %v3176 = vunpack.c.h.b16 %v816
  %v3177 = vunpack.c.l.b16 %v817
  %v3178 = vunpack.c.h.b16 %v817
  %v3179 = vunpack.c.l.b16 %v818
  %v3180 = vunpack.c.l.b16 %v819
  %v3181 = vunpack.c.h.b16 %v819
  %v3182 = vunpack.c.l.b16 %v820
  %v3183 = vunpack.c.h.b16 %v820
  %v3184 = vunpack.c.l.b16 %v821
  %v3185 = vunpack.c.l.b16 %v822
  %v3186 = vunpack.c.h.b16 %v822
  %v3187 = vunpack.c.l.b16 %v823
  %v3188 = vunpack.c.h.b16 %v823
  %v3189 = vunpack.c.l.b16 %v824
  %v3190 = vunpack.c.l.b16 %v825
  %v3191 = vunpack.c.h.b16 %v825
  %v3192 = vunpack.c.l.b16 %v826
  %v3193 = vunpack.c.h.b16 %v826
  %v3194 = vunpack.c.l.b16 %v827
  %v3195 = vunpack.c.l.b16 %v828
  %v3196 = vunpack.c.h.b16 %v828
  %v3197 = vunpack.c.l.b16 %v829
  %v3198 = vunpack.c.h.b16 %v829
  %v3199 = vunpack.c.l.b16 %v830
  %v3200 = vunpack.c.l.b16 %v831
  %v3201 = vunpack.c.h.b16 %v831
  %v3202 = vunpack.c.l.b16 %v832
  %v3203 = vunpack.c.h.b16 %v832
  %v3204 = vunpack.c.l.b16 %v833
  %v3205 = vunpack.c.l.b16 %v834
  %v3206 = vunpack.c.h.b16 %v834
  %v3207 = vunpack.c.l.b16 %v835
  %v3208 = vunpack.c.h.b16 %v835
  %v3209 = vunpack.c.l.b16 %v836
  %v3210 = vunpack.c.l.b16 %v837
  %v3211 = vunpack.c.h.b16 %v837
  %v3212 = vunpack.c.l.b16 %v838
  %v3213 = vunpack.c.h.b16 %v838
  %v3214 = vunpack.c.l.b16 %v839
  %v3215 = vunpack.c.l.b16 %v840
  %v3216 = vunpack.c.h.b16 %v840
  %v3217 = vunpack.c.l.b16 %v841
  %v3218 = vunpack.c.h.b16 %v841
  %v3219 = vunpack.c.l.b16 %v842
  %v3220 = vunpack.c.l.b16 %v843
  %v3221 = vunpack.c.h.b16 %v843
  %v3222 = vunpack.c.l.b16 %v844
  %v3223 = vunpack.c.h.b16 %v844
  %v3224 = vunpack.c.l.b16 %v845
  %v3225 = vunpack.c.l.b16 %v846
  %v3226 = vunpack.c.h.b16 %v846
  %v3227 = vunpack.c.l.b16 %v847
  %v3228 = vunpack.c.h.b16 %v847
  %v3229 = vunpack.c.l.b16 %v848
  %v3230 = vunpack.c.l.b16 %v849
  %v3231 = vunpack.c.h.b16 %v849
  %v3232 = vunpack.c.l.b16 %v850
  %v3233 = vunpack.c.h.b16 %v850
  %v3234 = vunpack.c.l.b16 %v851
  %v3235 = vunpack.c.l.b16 %v852
  %v3236 = vunpack.c.h.b16 %v852
  %v3237 = vunpack.c.l.b16 %v853
  %v3238 = vunpack.c.h.b16 %v853
  %v3239 = vunpack.c.l.b16 %v854
  %v3240 = vunpack.c.l.b16 %v855
  %v3241 = vunpack.c.h.b16 %v855
  %v3242 = vunpack.c.l.b16 %v856
  %v3243 = vunpack.c.h.b16 %v856
  %v3244 = vunpack.c.l.b16 %v857
  %v3245 = vunpack.c.l.b16 %v858
  %v3246 = vunpack.c.h.b16 %v858
  %v3247 = vunpack.c.l.b16 %v859
  %v3248 = vunpack.c.h.b16 %v859
  %v3249 = vunpack.c.l.b16 %v860
  %v3250 = vunpack.c.l.b16 %v861
  %v3251 = vunpack.c.h.b16 %v861
  %v3252 = vunpack.c.l.b16 %v862
  %v3253 = vunpack.c.h.b16 %v862
  %v3254 = vunpack.c.l.b16 %v863
  %v3255 = vunpack.c.l.b16 %v864
  %v3256 = vunpack.c.h.b16 %v864
  %v3257 = vunpack.c.l.b16 %v865
  %v3258 = vunpack.c.h.b16 %v865
  %v3259 = vunpack.c.l.b16 %v866
  %v3260 = vunpack.c.l.b16 %v867
  %v3261 = vunpack.c.h.b16 %v867
  %v3262 = vunpack.c.l.b16 %v868
  %v3263 = vunpack.c.h.b16 %v868
  %v3264 = vunpack.c.l.b16 %v869
  %v3265 = vunpack.c.l.b16 %v870
  %v3266 = vunpack.c.h.b16 %v870
  %v3267 = vunpack.c.l.b16 %v871
  %v3268 = vunpack.c.h.b16 %v871
  %v3269 = vunpack.c.l.b16 %v872
  %v3270 = vunpack.c.l.b16 %v873
  %v3271 = vunpack.c.h.b16 %v873
  %v3272 = vunpack.c.l.b16 %v874
  %v3273 = vunpack.c.h.b16 %v874
  %v3274 = vunpack.c.l.b16 %v875
  %v3275 = vunpack.c.l.b16 %v876
  %v3276 = vunpack.c.h.b16 %v876
  %v3277 = vunpack.c.l.b16 %v877
  %v3278 = vunpack.c.h.b16 %v877
  %v3279 = vunpack.c.l.b16 %v878
  %v3280 = vunpack.c.l.b16 %v879
  %v3281 = vunpack.c.h.b16 %v879
  %v3282 = vunpack.c.l.b16 %v880
  %v3283 = vunpack.c.h.b16 %v880
  %v3284 = vunpack.c.l.b16 %v881
  %v3285 = vunpack.c.l.b16 %v882
  %v3286 = vunpack.c.h.b16 %v882
  %v3287 = vunpack.c.l.b16 %v883
  %v3288 = vunpack.c.h.b16 %v883
  %v3289 = vunpack.c.l.b16 %v884
  %v3290 = vunpack.c.l.b16 %v885
  %v3291 = vunpack.c.h.b16 %v885
  %v3292 = vunpack.c.l.b16 %v886
  %v3293 = vunpack.c.h.b16 %v886
  %v3294 = vunpack.c.l.b16 %v887
  %v3295 = vunpack.c.l.b16 %v888
  %v3296 = vunpack.c.h.b16 %v888
  %v3297 = vunpack.c.l.b16 %v889
  %v3298 = vunpack.c.h.b16 %v889
  %v3299 = vunpack.c.l.b16 %v890
  %v3300 = vunpack.c.l.b16 %v891
  %v3301 = vunpack.c.h.b16 %v891
  %v3302 = vunpack.c.l.b16 %v892
  %v3303 = vunpack.c.h.b16 %v892
  %v3304 = vunpack.c.l.b16 %v893
  %v3305 = vunpack.c.l.b16 %v894
  %v3306 = vunpack.c.h.b16 %v894
  %v3307 = vunpack.c.l.b16 %v895
  %v3308 = vunpack.c.h.b16 %v895
  %v3309 = vunpack.c.l.b16 %v896
  %v3310 = vunpack.c.l.b16 %v897
  %v3311 = vunpack.c.h.b16 %v897
  %v3312 = vunpack.c.l.b16 %v898
  %v3313 = vunpack.c.h.b16 %v898
  %v3314 = vunpack.c.l.b16 %v899
  %v3315 = vunpack.c.l.b16 %v900
  %v3316 = vunpack.c.h.b16 %v900
  %v3317 = vunpack.c.l.b16 %v901
  %v3318 = vunpack.c.h.b16 %v901
  %v3319 = vunpack.c.l.b16 %v902
  %v3320 = vunpack.c.l.b16 %v903
  %v3321 = vunpack.c.h.b16 %v903
  %v3322 = vunpack.c.l.b16 %v904
  %v3323 = vunpack.c.h.b16 %v904
  %v3324 = vunpack.c.l.b16 %v905
  %v3325 = vunpack.c.l.b16 %v906
  %v3326 = vunpack.c.h.b16 %v906
  %v3327 = vunpack.c.l.b16 %v907
  %v3328 = vunpack.c.h.b16 %v907
  %v3329 = vunpack.c.l.b16 %v908
  %v3330 = vpack.c.b16 %v1895, %v1890
  %v3331 = vpack.c.b16 %v1896, %v1891
  %v3332 = vpack.c.b16 %v1897, %v1892
  %v3333 = vpack.c.b16 %v1898, %v1893
  %v3334 = vpack.c.b16 %v1899, %v1894
  %v3335 = vpack.c.b16 %v1905, %v1900
  %v3336 = vpack.c.b16 %v1906, %v1901
  %v3337 = vpack.c.b16 %v1907, %v1902
  %v3338 = vpack.c.b16 %v1908, %v1903
  %v3339 = vpack.c.b16 %v1909, %v1904
  %v3340 = vpack.c.b16 %v1915, %v1910
  %v3341 = vpack.c.b16 %v1916, %v1911
  %v3342 = vpack.c.b16 %v1917, %v1912
  %v3343 = vpack.c.b16 %v1918, %v1913
  %v3344 = vpack.c.b16 %v1919, %v1914
  %v3345 = vpack.c.b16 %v1925, %v1920
  %v3346 = vpack.c.b16 %v1926, %v1921
  %v3347 = vpack.c.b16 %v1927, %v1922
  %v3348 = vpack.c.b16 %v1928, %v1923
  %v3349 = vpack.c.b16 %v1929, %v1924
  %v3350 = vpack.c.b16 %v1935, %v1930
  %v3351 = vpack.c.b16 %v1936, %v1931
  %v3352 = vpack.c.b16 %v1937, %v1932
  %v3353 = vpack.c.b16 %v1938, %v1933
  %v3354 = vpack.c.b16 %v1939, %v1934
  %v3355 = vpack.c.b16 %v1945, %v1940
  %v3356 = vpack.c.b16 %v1946, %v1941
  %v3357 = vpack.c.b16 %v1947, %v1942
  %v3358 = vpack.c.b16 %v1948, %v1943
  %v3359 = vpack.c.b16 %v1949, %v1944
  %v3360 = vpack.c.b16 %v1955, %v1950
  %v3361 = vpack.c.b16 %v1956, %v1951
  %v3362 = vpack.c.b16 %v1957, %v1952
  %v3363 = vpack.c.b16 %v1958, %v1953
  %v3364 = vpack.c.b16 %v1959, %v1954
  %v3365 = vpack.c.b16 %v1965, %v1960
  %v3366 = vpack.c.b16 %v1966, %v1961
  %v3367 = vpack.c.b16 %v1967, %v1962
  %v3368 = vpack.c.b16 %v1968, %v1963
  %v3369 = vpack.c.b16 %v1969, %v1964
  %v3370 = vpack.c.b16 %v1975, %v1970
  %v3371 = vpack.c.b16 %v1976, %v1971
  %v3372 = vpack.c.b16 %v1977, %v1972
  %v3373 = vpack.c.b16 %v1978, %v1973
  %v3374 = vpack.c.b16 %v1979, %v1974
  %v3375 = vpack.c.b16 %v1985, %v1980
  %v3376 = vpack.c.b16 %v1986, %v1981
  %v3377 = vpack.c.b16 %v1987, %v1982
  %v3378 = vpack.c.b16 %v1988, %v1983
  %v3379 = vpack.c.b16 %v1989, %v1984
  %v3380 = vpack.c.b16 %v1995, %v1990
  %v3381 = vpack.c.b16 %v1996, %v1991
  %v3382 = vpack.c.b16 %v1997, %v1992
  %v3383 = vpack.c.b16 %v1998, %v1993
  %v3384 = vpack.c.b16 %v1999, %v1994
  %v3385 = vpack.c.b16 %v2005, %v2000
  %v3386 = vpack.c.b16 %v2006, %v2001
  %v3387 = vpack.c.b16 %v2007, %v2002
  %v3388 = vpack.c.b16 %v2008, %v2003
  %v3389 = vpack.c.b16 %v2009, %v2004
  %v3390 = vpack.c.b16 %v2015, %v2010
  %v3391 = vpack.c.b16 %v2016, %v2011
  %v3392 = vpack.c.b16 %v2017, %v2012
  %v3393 = vpack.c.b16 %v2018, %v2013
  %v3394 = vpack.c.b16 %v2019, %v2014
  %v3395 = vpack.c.b16 %v2025, %v2020
  %v3396 = vpack.c.b16 %v2026, %v2021
  %v3397 = vpack.c.b16 %v2027, %v2022
  %v3398 = vpack.c.b16 %v2028, %v2023
  %v3399 = vpack.c.b16 %v2029, %v2024
  %v3400 = vpack.c.b16 %v2035, %v2030
  %v3401 = vpack.c.b16 %v2036, %v2031
  %v3402 = vpack.c.b16 %v2037, %v2032
  %v3403 = vpack.c.b16 %v2038, %v2033
  %v3404 = vpack.c.b16 %v2039, %v2034
  %v3405 = vpack.c.b16 %v2045, %v2040
  %v3406 = vpack.c.b16 %v2046, %v2041
  %v3407 = vpack.c.b16 %v2047, %v2042
  %v3408 = vpack.c.b16 %v2048, %v2043
  %v3409 = vpack.c.b16 %v2049, %v2044
  %v3410 = vpack.c.b16 %v2055, %v2050
  %v3411 = vpack.c.b16 %v2056, %v2051
  %v3412 = vpack.c.b16 %v2057, %v2052
  %v3413 = vpack.c.b16 %v2058, %v2053
  %v3414 = vpack.c.b16 %v2059, %v2054
  %v3415 = vpack.c.b16 %v2065, %v2060
  %v3416 = vpack.c.b16 %v2066, %v2061
  %v3417 = vpack.c.b16 %v2067, %v2062
  %v3418 = vpack.c.b16 %v2068, %v2063
  %v3419 = vpack.c.b16 %v2069, %v2064
  %v3420 = vpack.c.b16 %v2075, %v2070
  %v3421 = vpack.c.b16 %v2076, %v2071
  %v3422 = vpack.c.b16 %v2077, %v2072
  %v3423 = vpack.c.b16 %v2078, %v2073
  %v3424 = vpack.c.b16 %v2079, %v2074
  %v3425 = vpack.c.b16 %v2085, %v2080
  %v3426 = vpack.c.b16 %v2086, %v2081
  %v3427 = vpack.c.b16 %v2087, %v2082
  %v3428 = vpack.c.b16 %v2088, %v2083
  %v3429 = vpack.c.b16 %v2089, %v2084
  %v3430 = vpack.c.b16 %v2095, %v2090
  %v3431 = vpack.c.b16 %v2096, %v2091
  %v3432 = vpack.c.b16 %v2097, %v2092
  %v3433 = vpack.c.b16 %v2098, %v2093
  %v3434 = vpack.c.b16 %v2099, %v2094
  %v3435 = vpack.c.b16 %v2105, %v2100
  %v3436 = vpack.c.b16 %v2106, %v2101
  %v3437 = vpack.c.b16 %v2107, %v2102
  %v3438 = vpack.c.b16 %v2108, %v2103
  %v3439 = vpack.c.b16 %v2109, %v2104
  %v3440 = vpack.c.b16 %v2115, %v2110
  %v3441 = vpack.c.b16 %v2116, %v2111
  %v3442 = vpack.c.b16 %v2117, %v2112
  %v3443 = vpack.c.b16 %v2118, %v2113
  %v3444 = vpack.c.b16 %v2119, %v2114
  %v3445 = vpack.c.b16 %v2125, %v2120
  %v3446 = vpack.c.b16 %v2126, %v2121
  %v3447 = vpack.c.b16 %v2127, %v2122
  %v3448 = vpack.c.b16 %v2128, %v2123
  %v3449 = vpack.c.b16 %v2129, %v2124
  %v3450 = vpack.c.b16 %v2135, %v2130
  %v3451 = vpack.c.b16 %v2136, %v2131
  %v3452 = vpack.c.b16 %v2137, %v2132
  %v3453 = vpack.c.b16 %v2138, %v2133
  %v3454 = vpack.c.b16 %v2139, %v2134
  %v3455 = vpack.c.b16 %v2145, %v2140
  %v3456 = vpack.c.b16 %v2146, %v2141
  %v3457 = vpack.c.b16 %v2147, %v2142
  %v3458 = vpack.c.b16 %v2148, %v2143
  %v3459 = vpack.c.b16 %v2149, %v2144
  %v3460 = vpack.c.b16 %v2155, %v2150
  %v3461 = vpack.c.b16 %v2156, %v2151
  %v3462 = vpack.c.b16 %v2157, %v2152
  %v3463 = vpack.c.b16 %v2158, %v2153
  %v3464 = vpack.c.b16 %v2159, %v2154
  %v3465 = vpack.c.b16 %v2165, %v2160
  %v3466 = vpack.c.b16 %v2166, %v2161
  %v3467 = vpack.c.b16 %v2167, %v2162
  %v3468 = vpack.c.b16 %v2168, %v2163
  %v3469 = vpack.c.b16 %v2169, %v2164
  %v3470 = vpack.c.b16 %v2175, %v2170
  %v3471 = vpack.c.b16 %v2176, %v2171
  %v3472 = vpack.c.b16 %v2177, %v2172
  %v3473 = vpack.c.b16 %v2178, %v2173
  %v3474 = vpack.c.b16 %v2179, %v2174
  %v3475 = vpack.c.b16 %v2185, %v2180
  %v3476 = vpack.c.b16 %v2186, %v2181
  %v3477 = vpack.c.b16 %v2187, %v2182
  %v3478 = vpack.c.b16 %v2188, %v2183
  %v3479 = vpack.c.b16 %v2189, %v2184
  %v3480 = vpack.c.b16 %v2195, %v2190
  %v3481 = vpack.c.b16 %v2196, %v2191
  %v3482 = vpack.c.b16 %v2197, %v2192
  %v3483 = vpack.c.b16 %v2198, %v2193
  %v3484 = vpack.c.b16 %v2199, %v2194
  %v3485 = vpack.c.b16 %v2205, %v2200
  %v3486 = vpack.c.b16 %v2206, %v2201
  %v3487 = vpack.c.b16 %v2207, %v2202
  %v3488 = vpack.c.b16 %v2208, %v2203
  %v3489 = vpack.c.b16 %v2209, %v2204
  %v3490 = vpack.c.b16 %v2215, %v2210
  %v3491 = vpack.c.b16 %v2216, %v2211
  %v3492 = vpack.c.b16 %v2217, %v2212
  %v3493 = vpack.c.b16 %v2218, %v2213
  %v3494 = vpack.c.b16 %v2219, %v2214
  %v3495 = vpack.c.b16 %v2225, %v2220
  %v3496 = vpack.c.b16 %v2226, %v2221
  %v3497 = vpack.c.b16 %v2227, %v2222
  %v3498 = vpack.c.b16 %v2228, %v2223
  %v3499 = vpack.c.b16 %v2229, %v2224
  %v3500 = vpack.c.b16 %v2235, %v2230
  %v3501 = vpack.c.b16 %v2236, %v2231
  %v3502 = vpack.c.b16 %v2237, %v2232
  %v3503 = vpack.c.b16 %v2238, %v2233
  %v3504 = vpack.c.b16 %v2239, %v2234
  %v3505 = vpack.c.b16 %v2245, %v2240
  %v3506 = vpack.c.b16 %v2246, %v2241
  %v3507 = vpack.c.b16 %v2247, %v2242
  %v3508 = vpack.c.b16 %v2248, %v2243
  %v3509 = vpack.c.b16 %v2249, %v2244
  %v3510 = vpack.c.b16 %v2255, %v2250
  %v3511 = vpack.c.b16 %v2256, %v2251
  %v3512 = vpack.c.b16 %v2257, %v2252
  %v3513 = vpack.c.b16 %v2258, %v2253
  %v3514 = vpack.c.b16 %v2259, %v2254
  %v3515 = vpack.c.b16 %v2265, %v2260
  %v3516 = vpack.c.b16 %v2266, %v2261
  %v3517 = vpack.c.b16 %v2267, %v2262
  %v3518 = vpack.c.b16 %v2268, %v2263
  %v3519 = vpack.c.b16 %v2269, %v2264
  %v3520 = vpack.c.b16 %v2275, %v2270
  %v3521 = vpack.c.b16 %v2276, %v2271
  %v3522 = vpack.c.b16 %v2277, %v2272
  %v3523 = vpack.c.b16 %v2278, %v2273
  %v3524 = vpack.c.b16 %v2279, %v2274
  %v3525 = vpack.c.b16 %v2285, %v2280
  %v3526 = vpack.c.b16 %v2286, %v2281
  %v3527 = vpack.c.b16 %v2287, %v2282
  %v3528 = vpack.c.b16 %v2288, %v2283
  %v3529 = vpack.c.b16 %v2289, %v2284
  %v3530 = vpack.c.b16 %v2295, %v2290
  %v3531 = vpack.c.b16 %v2296, %v2291
  %v3532 = vpack.c.b16 %v2297, %v2292
  %v3533 = vpack.c.b16 %v2298, %v2293
  %v3534 = vpack.c.b16 %v2299, %v2294
  %v3535 = vpack.c.b16 %v2305, %v2300
  %v3536 = vpack.c.b16 %v2306, %v2301
  %v3537 = vpack.c.b16 %v2307, %v2302
  %v3538 = vpack.c.b16 %v2308, %v2303
  %v3539 = vpack.c.b16 %v2309, %v2304
  %v3540 = vpack.c.b16 %v2315, %v2310
  %v3541 = vpack.c.b16 %v2316, %v2311
  %v3542 = vpack.c.b16 %v2317, %v2312
  %v3543 = vpack.c.b16 %v2318, %v2313
  %v3544 = vpack.c.b16 %v2319, %v2314
  %v3545 = vpack.c.b16 %v2325, %v2320
  %v3546 = vpack.c.b16 %v2326, %v2321
  %v3547 = vpack.c.b16 %v2327, %v2322
  %v3548 = vpack.c.b16 %v2328, %v2323
  %v3549 = vpack.c.b16 %v2329, %v2324
  %v3550 = vpack.c.b16 %v2335, %v2330
  %v3551 = vpack.c.b16 %v2336, %v2331
  %v3552 = vpack.c.b16 %v2337, %v2332
  %v3553 = vpack.c.b16 %v2338, %v2333
  %v3554 = vpack.c.b16 %v2339, %v2334
  %v3555 = vpack.c.b16 %v2345, %v2340
  %v3556 = vpack.c.b16 %v2346, %v2341
  %v3557 = vpack.c.b16 %v2347, %v2342
  %v3558 = vpack.c.b16 %v2348, %v2343
  %v3559 = vpack.c.b16 %v2349, %v2344
  %v3560 = vpack.c.b16 %v2355, %v2350
  %v3561 = vpack.c.b16 %v2356, %v2351
  %v3562 = vpack.c.b16 %v2357, %v2352
  %v3563 = vpack.c.b16 %v2358, %v2353
  %v3564 = vpack.c.b16 %v2359, %v2354
  %v3565 = vpack.c.b16 %v2365, %v2360
  %v3566 = vpack.c.b16 %v2366, %v2361
  %v3567 = vpack.c.b16 %v2367, %v2362
  %v3568 = vpack.c.b16 %v2368, %v2363
  %v3569 = vpack.c.b16 %v2369, %v2364
  %v3570 = vpack.c.b16 %v2375, %v2370
  %v3571 = vpack.c.b16 %v2376, %v2371
  %v3572 = vpack.c.b16 %v2377, %v2372
  %v3573 = vpack.c.b16 %v2378, %v2373
  %v3574 = vpack.c.b16 %v2379, %v2374
  %v3575 = vpack.c.b16 %v2385, %v2380
  %v3576 = vpack.c.b16 %v2386, %v2381
  %v3577 = vpack.c.b16 %v2387, %v2382
  %v3578 = vpack.c.b16 %v2388, %v2383
  %v3579 = vpack.c.b16 %v2389, %v2384
  %v3580 = vpack.c.b16 %v2395, %v2390
  %v3581 = vpack.c.b16 %v2396, %v2391
  %v3582 = vpack.c.b16 %v2397, %v2392
  %v3583 = vpack.c.b16 %v2398, %v2393
  %v3584 = vpack.c.b16 %v2399, %v2394
  %v3585 = vpack.c.b16 %v2405, %v2400
  %v3586 = vpack.c.b16 %v2406, %v2401
  %v3587 = vpack.c.b16 %v2407, %v2402
  %v3588 = vpack.c.b16 %v2408, %v2403
  %v3589 = vpack.c.b16 %v2409, %v2404
  %v3590 = vpack.c.b16 %v2415, %v2410
  %v3591 = vpack.c.b16 %v2416, %v2411
  %v3592 = vpack.c.b16 %v2417, %v2412
  %v3593 = vpack.c.b16 %v2418, %v2413
  %v3594 = vpack.c.b16 %v2419, %v2414
  %v3595 = vpack.c.b16 %v2425, %v2420
  %v3596 = vpack.c.b16 %v2426, %v2421
  %v3597 = vpack.c.b16 %v2427, %v2422
  %v3598 = vpack.c.b16 %v2428, %v2423
  %v3599 = vpack.c.b16 %v2429, %v2424
  %v3600 = vpack.c.b16 %v2435, %v2430
  %v3601 = vpack.c.b16 %v2436, %v2431
  %v3602 = vpack.c.b16 %v2437, %v2432
  %v3603 = vpack.c.b16 %v2438, %v2433
  %v3604 = vpack.c.b16 %v2439, %v2434
  %v3605 = vpack.c.b16 %v2445, %v2440
  %v3606 = vpack.c.b16 %v2446, %v2441
  %v3607 = vpack.c.b16 %v2447, %v2442
  %v3608 = vpack.c.b16 %v2448, %v2443
  %v3609 = vpack.c.b16 %v2449, %v2444
  %v3610 = vpack.c.b16 %v2455, %v2450
  %v3611 = vpack.c.b16 %v2456, %v2451
  %v3612 = vpack.c.b16 %v2457, %v2452
  %v3613 = vpack.c.b16 %v2458, %v2453
  %v3614 = vpack.c.b16 %v2459, %v2454
  %v3615 = vpack.c.b16 %v2465, %v2460
  %v3616 = vpack.c.b16 %v2466, %v2461
  %v3617 = vpack.c.b16 %v2467, %v2462
  %v3618 = vpack.c.b16 %v2468, %v2463
  %v3619 = vpack.c.b16 %v2469, %v2464
  %v3620 = vpack.c.b16 %v2475, %v2470
  %v3621 = vpack.c.b16 %v2476, %v2471
  %v3622 = vpack.c.b16 %v2477, %v2472
  %v3623 = vpack.c.b16 %v2478, %v2473
  %v3624 = vpack.c.b16 %v2479, %v2474
  %v3625 = vpack.c.b16 %v2485, %v2480
  %v3626 = vpack.c.b16 %v2486, %v2481
  %v3627 = vpack.c.b16 %v2487, %v2482
  %v3628 = vpack.c.b16 %v2488, %v2483
  %v3629 = vpack.c.b16 %v2489, %v2484
  %v3630 = vpack.c.b16 %v2495, %v2490
  %v3631 = vpack.c.b16 %v2496, %v2491
  %v3632 = vpack.c.b16 %v2497, %v2492
  %v3633 = vpack.c.b16 %v2498, %v2493
  %v3634 = vpack.c.b16 %v2499, %v2494
  %v3635 = vpack.c.b16 %v2505, %v2500
  %v3636 = vpack.c.b16 %v2506, %v2501
  %v3637 = vpack.c.b16 %v2507, %v2502
  %v3638 = vpack.c.b16 %v2508, %v2503
  %v3639 = vpack.c.b16 %v2509, %v2504
  %v3640 = vpack.c.b16 %v2515, %v2510
  %v3641 = vpack.c.b16 %v2516, %v2511
  %v3642 = vpack.c.b16 %v2517, %v2512
  %v3643 = vpack.c.b16 %v2518, %v2513
  %v3644 = vpack.c.b16 %v2519, %v2514
  %v3645 = vpack.c.b16 %v2525, %v2520
  %v3646 = vpack.c.b16 %v2526, %v2521
  %v3647 = vpack.c.b16 %v2527, %v2522
  %v3648 = vpack.c.b16 %v2528, %v2523
  %v3649 = vpack.c.b16 %v2529, %v2524
  %v3650 = vpack.c.b16 %v2535, %v2530
  %v3651 = vpack.c.b16 %v2536, %v2531
  %v3652 = vpack.c.b16 %v2537, %v2532
  %v3653 = vpack.c.b16 %v2538, %v2533
  %v3654 = vpack.c.b16 %v2539, %v2534
  %v3655 = vpack.c.b16 %v2545, %v2540
  %v3656 = vpack.c.b16 %v2546, %v2541
  %v3657 = vpack.c.b16 %v2547, %v2542
  %v3658 = vpack.c.b16 %v2548, %v2543
  %v3659 = vpack.c.b16 %v2549, %v2544
  %v3660 = vpack.c.b16 %v2555, %v2550
  %v3661 = vpack.c.b16 %v2556, %v2551
  %v3662 = vpack.c.b16 %v2557, %v2552
  %v3663 = vpack.c.b16 %v2558, %v2553
  %v3664 = vpack.c.b16 %v2559, %v2554
  %v3665 = vpack.c.b16 %v2565, %v2560
  %v3666 = vpack.c.b16 %v2566, %v2561
  %v3667 = vpack.c.b16 %v2567, %v2562
  %v3668 = vpack.c.b16 %v2568, %v2563
  %v3669 = vpack.c.b16 %v2569, %v2564
  %v3670 = vpack.c.b16 %v2575, %v2570
  %v3671 = vpack.c.b16 %v2576, %v2571
  %v3672 = vpack.c.b16 %v2577, %v2572
  %v3673 = vpack.c.b16 %v2578, %v2573
  %v3674 = vpack.c.b16 %v2579, %v2574
  %v3675 = vpack.c.b16 %v2585, %v2580
  %v3676 = vpack.c.b16 %v2586, %v2581
  %v3677 = vpack.c.b16 %v2587, %v2582
  %v3678 = vpack.c.b16 %v2588, %v2583
  %v3679 = vpack.c.b16 %v2589, %v2584
  %v3680 = vpack.c.b16 %v2595, %v2590
  %v3681 = vpack.c.b16 %v2596, %v2591
  %v3682 = vpack.c.b16 %v2597, %v2592
  %v3683 = vpack.c.b16 %v2598, %v2593
  %v3684 = vpack.c.b16 %v2599, %v2594
  %v3685 = vpack.c.b16 %v2605, %v2600
  %v3686 = vpack.c.b16 %v2606, %v2601
  %v3687 = vpack.c.b16 %v2607, %v2602
  %v3688 = vpack.c.b16 %v2608, %v2603
  %v3689 = vpack.c.b16 %v2609, %v2604
  %v3690 = vpack.c.b16 %v2615, %v2610
  %v3691 = vpack.c.b16 %v2616, %v2611
  %v3692 = vpack.c.b16 %v2617, %v2612
  %v3693 = vpack.c.b16 %v2618, %v2613
  %v3694 = vpack.c.b16 %v2619, %v2614
  %v3695 = vpack.c.b16 %v2625, %v2620
  %v3696 = vpack.c.b16 %v2626, %v2621
  %v3697 = vpack.c.b16 %v2627, %v2622
  %v3698 = vpack.c.b16 %v2628, %v2623
  %v3699 = vpack.c.b16 %v2629, %v2624
  %v3700 = vpack.c.b16 %v2635, %v2630
  %v3701 = vpack.c.b16 %v2636, %v2631
  %v3702 = vpack.c.b16 %v2637, %v2632
  %v3703 = vpack.c.b16 %v2638, %v2633
  %v3704 = vpack.c.b16 %v2639, %v2634
  %v3705 = vpack.c.b16 %v2645, %v2640
  %v3706 = vpack.c.b16 %v2646, %v2641
  %v3707 = vpack.c.b16 %v2647, %v2642
  %v3708 = vpack.c.b16 %v2648, %v2643
  %v3709 = vpack.c.b16 %v2649, %v2644
  %v3710 = vpack.c.b16 %v2655, %v2650
  %v3711 = vpack.c.b16 %v2656, %v2651
  %v3712 = vpack.c.b16 %v2657, %v2652
  %v3713 = vpack.c.b16 %v2658, %v2653
  %v3714 = vpack.c.b16 %v2659, %v2654
  %v3715 = vpack.c.b16 %v2665, %v2660
  %v3716 = vpack.c.b16 %v2666, %v2661
  %v3717 = vpack.c.b16 %v2667, %v2662
  %v3718 = vpack.c.b16 %v2668, %v2663
  %v3719 = vpack.c.b16 %v2669, %v2664
  %v3720 = vpack.c.b16 %v2675, %v2670
  %v3721 = vpack.c.b16 %v2676, %v2671
  %v3722 = vpack.c.b16 %v2677, %v2672
  %v3723 = vpack.c.b16 %v2678, %v2673
  %v3724 = vpack.c.b16 %v2679, %v2674
  %v3725 = vpack.c.b16 %v2685, %v2680
  %v3726 = vpack.c.b16 %v2686, %v2681
  %v3727 = vpack.c.b16 %v2687, %v2682
  %v3728 = vpack.c.b16 %v2688, %v2683
  %v3729 = vpack.c.b16 %v2689, %v2684
  %v3730 = vpack.c.b16 %v2695, %v2690
  %v3731 = vpack.c.b16 %v2696, %v2691
  %v3732 = vpack.c.b16 %v2697, %v2692
  %v3733 = vpack.c.b16 %v2698, %v2693
  %v3734 = vpack.c.b16 %v2699, %v2694
  %v3735 = vpack.c.b16 %v2705, %v2700
  %v3736 = vpack.c.b16 %v2706, %v2701
  %v3737 = vpack.c.b16 %v2707, %v2702
  %v3738 = vpack.c.b16 %v2708, %v2703
  %v3739 = vpack.c.b16 %v2709, %v2704
  %v3740 = vpack.c.b16 %v2715, %v2710
  %v3741 = vpack.c.b16 %v2716, %v2711
  %v3742 = vpack.c.b16 %v2717, %v2712
  %v3743 = vpack.c.b16 %v2718, %v2713
  %v3744 = vpack.c.b16 %v2719, %v2714
  %v3745 = vpack.c.b16 %v2725, %v2720
  %v3746 = vpack.c.b16 %v2726, %v2721
  %v3747 = vpack.c.b16 %v2727, %v2722
  %v3748 = vpack.c.b16 %v2728, %v2723
  %v3749 = vpack.c.b16 %v2729, %v2724
  %v3750 = vpack.c.b16 %v2735, %v2730
  %v3751 = vpack.c.b16 %v2736, %v2731
  %v3752 = vpack.c.b16 %v2737, %v2732
  %v3753 = vpack.c.b16 %v2738, %v2733
  %v3754 = vpack.c.b16 %v2739, %v2734
  %v3755 = vpack.c.b16 %v2745, %v2740
  %v3756 = vpack.c.b16 %v2746, %v2741
  %v3757 = vpack.c.b16 %v2747, %v2742
  %v3758 = vpack.c.b16 %v2748, %v2743
  %v3759 = vpack.c.b16 %v2749, %v2744
  %v3760 = vpack.c.b16 %v2755, %v2750
  %v3761 = vpack.c.b16 %v2756, %v2751
  %v3762 = vpack.c.b16 %v2757, %v2752
  %v3763 = vpack.c.b16 %v2758, %v2753
  %v3764 = vpack.c.b16 %v2759, %v2754
  %v3765 = vpack.c.b16 %v2765, %v2760
  %v3766 = vpack.c.b16 %v2766, %v2761
  %v3767 = vpack.c.b16 %v2767, %v2762
  %v3768 = vpack.c.b16 %v2768, %v2763
  %v3769 = vpack.c.b16 %v2769, %v2764
  %v3770 = vpack.c.b16 %v2775, %v2770
  %v3771 = vpack.c.b16 %v2776, %v2771
  %v3772 = vpack.c.b16 %v2777, %v2772
  %v3773 = vpack.c.b16 %v2778, %v2773
  %v3774 = vpack.c.b16 %v2779, %v2774
  %v3775 = vpack.c.b16 %v2785, %v2780
  %v3776 = vpack.c.b16 %v2786, %v2781
  %v3777 = vpack.c.b16 %v2787, %v2782
  %v3778 = vpack.c.b16 %v2788, %v2783
  %v3779 = vpack.c.b16 %v2789, %v2784
  %v3780 = vpack.c.b16 %v2795, %v2790
  %v3781 = vpack.c.b16 %v2796, %v2791
  %v3782 = vpack.c.b16 %v2797, %v2792
  %v3783 = vpack.c.b16 %v2798, %v2793
  %v3784 = vpack.c.b16 %v2799, %v2794
  %v3785 = vpack.c.b16 %v2805, %v2800
  %v3786 = vpack.c.b16 %v2806, %v2801
  %v3787 = vpack.c.b16 %v2807, %v2802
  %v3788 = vpack.c.b16 %v2808, %v2803
  %v3789 = vpack.c.b16 %v2809, %v2804
  %v3790 = vpack.c.b16 %v2815, %v2810
  %v3791 = vpack.c.b16 %v2816, %v2811
  %v3792 = vpack.c.b16 %v2817, %v2812
  %v3793 = vpack.c.b16 %v2818, %v2813
  %v3794 = vpack.c.b16 %v2819, %v2814
  %v3795 = vpack.c.b16 %v2825, %v2820
  %v3796 = vpack.c.b16 %v2826, %v2821
  %v3797 = vpack.c.b16 %v2827, %v2822
  %v3798 = vpack.c.b16 %v2828, %v2823
  %v3799 = vpack.c.b16 %v2829, %v2824
  %v3800 = vpack.c.b16 %v2835, %v2830
  %v3801 = vpack.c.b16 %v2836, %v2831
  %v3802 = vpack.c.b16 %v2837, %v2832
  %v3803 = vpack.c.b16 %v2838, %v2833
  %v3804 = vpack.c.b16 %v2839, %v2834
  %v3805 = vpack.c.b16 %v2845, %v2840
  %v3806 = vpack.c.b16 %v2846, %v2841
  %v3807 = vpack.c.b16 %v2847, %v2842
  %v3808 = vpack.c.b16 %v2848, %v2843
  %v3809 = vpack.c.b16 %v2849, %v2844
  %v3810 = vpack.c.b16 %v2855, %v2850
  %v3811 = vpack.c.b16 %v2856, %v2851
  %v3812 = vpack.c.b16 %v2857, %v2852
  %v3813 = vpack.c.b16 %v2858, %v2853
  %v3814 = vpack.c.b16 %v2859, %v2854
  %v3815 = vpack.c.b16 %v2865, %v2860
  %v3816 = vpack.c.b16 %v2866, %v2861
  %v3817 = vpack.c.b16 %v2867, %v2862
  %v3818 = vpack.c.b16 %v2868, %v2863
  %v3819 = vpack.c.b16 %v2869, %v2864
  %v3820 = vpack.c.b16 %v2875, %v2870
  %v3821 = vpack.c.b16 %v2876, %v2871
  %v3822 = vpack.c.b16 %v2877, %v2872
  %v3823 = vpack.c.b16 %v2878, %v2873
  %v3824 = vpack.c.b16 %v2879, %v2874
  %v3825 = vpack.c.b16 %v2885, %v2880
  %v3826 = vpack.c.b16 %v2886, %v2881
  %v3827 = vpack.c.b16 %v2887, %v2882
  %v3828 = vpack.c.b16 %v2888, %v2883
  %v3829 = vpack.c.b16 %v2889, %v2884
  %v3830 = vpack.c.b16 %v2895, %v2890
  %v3831 = vpack.c.b16 %v2896, %v2891
  %v3832 = vpack.c.b16 %v2897, %v2892
  %v3833 = vpack.c.b16 %v2898, %v2893
  %v3834 = vpack.c.b16 %v2899, %v2894
  %v3835 = vpack.c.b16 %v2905, %v2900
  %v3836 = vpack.c.b16 %v2906, %v2901
  %v3837 = vpack.c.b16 %v2907, %v2902
  %v3838 = vpack.c.b16 %v2908, %v2903
  %v3839 = vpack.c.b16 %v2909, %v2904
  %v3840 = vpack.c.b16 %v2915, %v2910
  %v3841 = vpack.c.b16 %v2916, %v2911
  %v3842 = vpack.c.b16 %v2917, %v2912
  %v3843 = vpack.c.b16 %v2918, %v2913
  %v3844 = vpack.c.b16 %v2919, %v2914
  %v3845 = vpack.c.b16 %v2925, %v2920
  %v3846 = vpack.c.b16 %v2926, %v2921
  %v3847 = vpack.c.b16 %v2927, %v2922
  %v3848 = vpack.c.b16 %v2928, %v2923
  %v3849 = vpack.c.b16 %v2929, %v2924
  %v3850 = vpack.c.b16 %v2935, %v2930
  %v3851 = vpack.c.b16 %v2936, %v2931
  %v3852 = vpack.c.b16 %v2937, %v2932
  %v3853 = vpack.c.b16 %v2938, %v2933
  %v3854 = vpack.c.b16 %v2939, %v2934
  %v3855 = vpack.c.b16 %v2945, %v2940
  %v3856 = vpack.c.b16 %v2946, %v2941
  %v3857 = vpack.c.b16 %v2947, %v2942
  %v3858 = vpack.c.b16 %v2948, %v2943
  %v3859 = vpack.c.b16 %v2949, %v2944
  %v3860 = vpack.c.b16 %v2955, %v2950
  %v3861 = vpack.c.b16 %v2956, %v2951
  %v3862 = vpack.c.b16 %v2957, %v2952
  %v3863 = vpack.c.b16 %v2958, %v2953
  %v3864 = vpack.c.b16 %v2959, %v2954
  %v3865 = vpack.c.b16 %v2965, %v2960
  %v3866 = vpack.c.b16 %v2966, %v2961
  %v3867 = vpack.c.b16 %v2967, %v2962
  %v3868 = vpack.c.b16 %v2968, %v2963
  %v3869 = vpack.c.b16 %v2969, %v2964
  %v3870 = vpack.c.b16 %v2975, %v2970
  %v3871 = vpack.c.b16 %v2976, %v2971
  %v3872 = vpack.c.b16 %v2977, %v2972
  %v3873 = vpack.c.b16 %v2978, %v2973
  %v3874 = vpack.c.b16 %v2979, %v2974
  %v3875 = vpack.c.b16 %v2985, %v2980
  %v3876 = vpack.c.b16 %v2986, %v2981
  %v3877 = vpack.c.b16 %v2987, %v2982
  %v3878 = vpack.c.b16 %v2988, %v2983
  %v3879 = vpack.c.b16 %v2989, %v2984
  %v3880 = vpack.c.b16 %v2995, %v2990
  %v3881 = vpack.c.b16 %v2996, %v2991
  %v3882 = vpack.c.b16 %v2997, %v2992
  %v3883 = vpack.c.b16 %v2998, %v2993
  %v3884 = vpack.c.b16 %v2999, %v2994
  %v3885 = vpack.c.b16 %v3005, %v3000
  %v3886 = vpack.c.b16 %v3006, %v3001
  %v3887 = vpack.c.b16 %v3007, %v3002
  %v3888 = vpack.c.b16 %v3008, %v3003
  %v3889 = vpack.c.b16 %v3009, %v3004
  %v3890 = vpack.c.b16 %v3015, %v3010
  %v3891 = vpack.c.b16 %v3016, %v3011
  %v3892 = vpack.c.b16 %v3017, %v3012
  %v3893 = vpack.c.b16 %v3018, %v3013
  %v3894 = vpack.c.b16 %v3019, %v3014
  %v3895 = vpack.c.b16 %v3025, %v3020
  %v3896 = vpack.c.b16 %v3026, %v3021
  %v3897 = vpack.c.b16 %v3027, %v3022
  %v3898 = vpack.c.b16 %v3028, %v3023
  %v3899 = vpack.c.b16 %v3029, %v3024
  %v3900 = vpack.c.b16 %v3035, %v3030
  %v3901 = vpack.c.b16 %v3036, %v3031
  %v3902 = vpack.c.b16 %v3037, %v3032
  %v3903 = vpack.c.b16 %v3038, %v3033
  %v3904 = vpack.c.b16 %v3039, %v3034
  %v3905 = vpack.c.b16 %v3045, %v3040
  %v3906 = vpack.c.b16 %v3046, %v3041
  %v3907 = vpack.c.b16 %v3047, %v3042
  %v3908 = vpack.c.b16 %v3048, %v3043
  %v3909 = vpack.c.b16 %v3049, %v3044
  %v3910 = vpack.c.b16 %v3055, %v3050
  %v3911 = vpack.c.b16 %v3056, %v3051
  %v3912 = vpack.c.b16 %v3057, %v3052
  %v3913 = vpack.c.b16 %v3058, %v3053
  %v3914 = vpack.c.b16 %v3059, %v3054
  %v3915 = vpack.c.b16 %v3065, %v3060
  %v3916 = vpack.c.b16 %v3066, %v3061
  %v3917 = vpack.c.b16 %v3067, %v3062
  %v3918 = vpack.c.b16 %v3068, %v3063
  %v3919 = vpack.c.b16 %v3069, %v3064
  %v3920 = vpack.c.b16 %v3075, %v3070
  %v3921 = vpack.c.b16 %v3076, %v3071
  %v3922 = vpack.c.b16 %v3077, %v3072
  %v3923 = vpack.c.b16 %v3078, %v3073
  %v3924 = vpack.c.b16 %v3079, %v3074
  %v3925 = vpack.c.b16 %v3085, %v3080
  %v3926 = vpack.c.b16 %v3086, %v3081
  %v3927 = vpack.c.b16 %v3087, %v3082
  %v3928 = vpack.c.b16 %v3088, %v3083
  %v3929 = vpack.c.b16 %v3089, %v3084
  %v3930 = vpack.c.b16 %v3095, %v3090
  %v3931 = vpack.c.b16 %v3096, %v3091
  %v3932 = vpack.c.b16 %v3097, %v3092
  %v3933 = vpack.c.b16 %v3098, %v3093
  %v3934 = vpack.c.b16 %v3099, %v3094
  %v3935 = vpack.c.b16 %v3105, %v3100
  %v3936 = vpack.c.b16 %v3106, %v3101
  %v3937 = vpack.c.b16 %v3107, %v3102
  %v3938 = vpack.c.b16 %v3108, %v3103
  %v3939 = vpack.c.b16 %v3109, %v3104
  %v3940 = vpack.c.b16 %v3115, %v3110
  %v3941 = vpack.c.b16 %v3116, %v3111
  %v3942 = vpack.c.b16 %v3117, %v3112
  %v3943 = vpack.c.b16 %v3118, %v3113
  %v3944 = vpack.c.b16 %v3119, %v3114
  %v3945 = vpack.c.b16 %v3125, %v3120
  %v3946 = vpack.c.b16 %v3126, %v3121
  %v3947 = vpack.c.b16 %v3127, %v3122
  %v3948 = vpack.c.b16 %v3128, %v3123
  %v3949 = vpack.c.b16 %v3129, %v3124
  %v3950 = vpack.c.b16 %v3135, %v3130
  %v3951 = vpack.c.b16 %v3136, %v3131
  %v3952 = vpack.c.b16 %v3137, %v3132
  %v3953 = vpack.c.b16 %v3138, %v3133
  %v3954 = vpack.c.b16 %v3139, %v3134
  %v3955 = vpack.c.b16 %v3145, %v3140
  %v3956 = vpack.c.b16 %v3146, %v3141
  %v3957 = vpack.c.b16 %v3147, %v3142
  %v3958 = vpack.c.b16 %v3148, %v3143
  %v3959 = vpack.c.b16 %v3149, %v3144
  %v3960 = vpack.c.b16 %v3155, %v3150
  %v3961 = vpack.c.b16 %v3156, %v3151
  %v3962 = vpack.c.b16 %v3157, %v3152
  %v3963 = vpack.c.b16 %v3158, %v3153
  %v3964 = vpack.c.b16 %v3159, %v3154
  %v3965 = vpack.c.b16 %v3165, %v3160
  %v3966 = vpack.c.b16 %v3166, %v3161
  %v3967 = vpack.c.b16 %v3167, %v3162
  %v3968 = vpack.c.b16 %v3168, %v3163
  %v3969 = vpack.c.b16 %v3169, %v3164
  %v3970 = vpack.c.b16 %v3175, %v3170
  %v3971 = vpack.c.b16 %v3176, %v3171
  %v3972 = vpack.c.b16 %v3177, %v3172
  %v3973 = vpack.c.b16 %v3178, %v3173
  %v3974 = vpack.c.b16 %v3179, %v3174
  %v3975 = vpack.c.b16 %v3185, %v3180
  %v3976 = vpack.c.b16 %v3186, %v3181
  %v3977 = vpack.c.b16 %v3187, %v3182
  %v3978 = vpack.c.b16 %v3188, %v3183
  %v3979 = vpack.c.b16 %v3189, %v3184
  %v3980 = vpack.c.b16 %v3195, %v3190
  %v3981 = vpack.c.b16 %v3196, %v3191
  %v3982 = vpack.c.b16 %v3197, %v3192
  %v3983 = vpack.c.b16 %v3198, %v3193
  %v3984 = vpack.c.b16 %v3199, %v3194
  %v3985 = vpack.c.b16 %v3205, %v3200
  %v3986 = vpack.c.b16 %v3206, %v3201
  %v3987 = vpack.c.b16 %v3207, %v3202
  %v3988 = vpack.c.b16 %v3208, %v3203
  %v3989 = vpack.c.b16 %v3209, %v3204
  %v3990 = vpack.c.b16 %v3215, %v3210
  %v3991 = vpack.c.b16 %v3216, %v3211
  %v3992 = vpack.c.b16 %v3217, %v3212
  %v3993 = vpack.c.b16 %v3218, %v3213
  %v3994 = vpack.c.b16 %v3219, %v3214
  %v3995 = vpack.c.b16 %v3225, %v3220
  %v3996 = vpack.c.b16 %v3226, %v3221
  %v3997 = vpack.c.b16 %v3227, %v3222
  %v3998 = vpack.c.b16 %v3228, %v3223
  %v3999 = vpack.c.b16 %v3229, %v3224
  %v4000 = vpack.c.b16 %v3235, %v3230
  %v4001 = vpack.c.b16 %v3236, %v3231
  %v4002 = vpack.c.b16 %v3237, %v3232
  %v4003 = vpack.c.b16 %v3238, %v3233
  %v4004 = vpack.c.b16 %v3239, %v3234
  %v4005 = vpack.c.b16 %v3245, %v3240
  %v4006 = vpack.c.b16 %v3246, %v3241
  %v4007 = vpack.c.b16 %v3247, %v3242
  %v4008 = vpack.c.b16 %v3248, %v3243
  %v4009 = vpack.c.b16 %v3249, %v3244
  %v4010 = vpack.c.b16 %v3255, %v3250
  %v4011 = vpack.c.b16 %v3256, %v3251
  %v4012 = vpack.c.b16 %v3257, %v3252
  %v4013 = vpack.c.b16 %v3258, %v3253
  %v4014 = vpack.c.b16 %v3259, %v3254
  %v4015 = vpack.c.b16 %v3265, %v3260
  %v4016 = vpack.c.b16 %v3266, %v3261
  %v4017 = vpack.c.b16 %v3267, %v3262
  %v4018 = vpack.c.b16 %v3268, %v3263
  %v4019 = vpack.c.b16 %v3269, %v3264
  %v4020 = vpack.c.b16 %v3275, %v3270
  %v4021 = vpack.c.b16 %v3276, %v3271
  %v4022 = vpack.c.b16 %v3277, %v3272
  %v4023 = vpack.c.b16 %v3278, %v3273
  %v4024 = vpack.c.b16 %v3279, %v3274
  %v4025 = vpack.c.b16 %v3285, %v3280
  %v4026 = vpack.c.b16 %v3286, %v3281
  %v4027 = vpack.c.b16 %v3287, %v3282
  %v4028 = vpack.c.b16 %v3288, %v3283
  %v4029 = vpack.c.b16 %v3289, %v3284
  %v4030 = vpack.c.b16 %v3295, %v3290
  %v4031 = vpack.c.b16 %v3296, %v3291
  %v4032 = vpack.c.b16 %v3297, %v3292
  %v4033 = vpack.c.b16 %v3298, %v3293
  %v4034 = vpack.c.b16 %v3299, %v3294
  %v4035 = vpack.c.b16 %v3305, %v3300
  %v4036 = vpack.c.b16 %v3306, %v3301
  %v4037 = vpack.c.b16 %v3307, %v3302
  %v4038 = vpack.c.b16 %v3308, %v3303
  %v4039 = vpack.c.b16 %v3309, %v3304
  %v4040 = vpack.c.b16 %v3315, %v3310
  %v4041 = vpack.c.b16 %v3316, %v3311
  %v4042 = vpack.c.b16 %v3317, %v3312
  %v4043 = vpack.c.b16 %v3318, %v3313
  %v4044 = vpack.c.b16 %v3319, %v3314
  %v4045 = vpack.c.b16 %v3325, %v3320
  %v4046 = vpack.c.b16 %v3326, %v3321
  %v4047 = vpack.c.b16 %v3327, %v3322
  %v4048 = vpack.c.b16 %v3328, %v3323
  %v4049 = vpack.c.b16 %v3329, %v3324
  %4770 = vmatprep.subr.bf16.mxu0 %v3366
  %4771 = vmatpush1.bf16.msra.mxu0 %v3365
  %4772 = vmatprep.subr.bf16.mxu0 %v3361
  %4773 = vmatpush1.bf16.msra.mxu0 %v3360
  %4774 = vmatprep.subr.bf16.mxu0 %v3356
  %4775 = vmatpush1.bf16.msra.mxu0 %v3355
  %4776 = vmatprep.subr.bf16.mxu0 %v3351
  %4777 = vmatpush1.bf16.msra.mxu0 %v3350
  %4778 = vmatprep.subr.bf16.mxu0 %v3346
  %4779 = vmatpush1.bf16.msra.mxu0 %v3345
  %4780 = vmatprep.subr.bf16.mxu0 %v3341
  %4781 = vmatpush1.bf16.msra.mxu0 %v3340
  %4782 = vmatprep.subr.bf16.mxu0 %v3336
  %4783 = vmatpush1.bf16.msra.mxu0 %v3335
  %4784 = vmatprep.subr.bf16.mxu0 %v3331
  %4785 = vmatpush1.bf16.msra.mxu0 %v3330
  %4786 = vmatprep.subr.bf16.mxu0 %v3406
  %4787 = vmatpush2.bf16.msra.mxu0 %v3405
  %4788 = vmatprep.subr.bf16.mxu0 %v3401
  %4789 = vmatpush2.bf16.msra.mxu0 %v3400
  %4790 = vmatprep.subr.bf16.mxu0 %v3396
  %4791 = vmatpush2.bf16.msra.mxu0 %v3395
  %4792 = vmatprep.subr.bf16.mxu0 %v3391
  %4793 = vmatpush2.bf16.msra.mxu0 %v3390
  %4794 = vmatprep.subr.bf16.mxu0 %v3386
  %4795 = vmatpush2.bf16.msra.mxu0 %v3385
  %4796 = vmatprep.subr.bf16.mxu0 %v3381
  %4797 = vmatpush2.bf16.msra.mxu0 %v3380
  %4798 = vmatprep.subr.bf16.mxu0 %v3376
  %4799 = vmatpush2.bf16.msra.mxu0 %v3375
  %4800 = vmatprep.subr.bf16.mxu0 %v3371
  %4801 = vmatpush2.bf16.msra.mxu0 %v3370
  %4802 = vmatprep.mubr.bf16.mxu0 %v991
  %4803 = vmatmul.mubr.bf16.gmra.mxu0 %v990
  %v4804 = vpop.f32.mrf.mxu0
  %v4805 = vadd.f32 %v914, %v4804
  %v4806 = vpop.f32.mrf.mxu0
  %v4807 = vadd.f32 %v918, %v4806
  %v4808 = vpop.f32.mrf.mxu0
  %v4809 = vadd.f32 %v914, %v4808
  %v4810 = vpop.f32.mrf.mxu0
  %v4811 = vadd.f32 %v918, %v4810
  %4812 = vdwg.mxu0
  %4813 = vmatprep.subr.bf16.mxu0 %v3446
  %4814 = vmatpush1.bf16.msra.mxu0 %v3445
  %4815 = vmatprep.subr.bf16.mxu0 %v3441
  %4816 = vmatpush1.bf16.msra.mxu0 %v3440
  %4817 = vmatprep.subr.bf16.mxu0 %v3436
  %4818 = vmatpush1.bf16.msra.mxu0 %v3435
  %4819 = vmatprep.subr.bf16.mxu0 %v3431
  %4820 = vmatpush1.bf16.msra.mxu0 %v3430
  %4821 = vmatprep.subr.bf16.mxu0 %v3426
  %4822 = vmatpush1.bf16.msra.mxu0 %v3425
  %4823 = vmatprep.subr.bf16.mxu0 %v3421
  %4824 = vmatpush1.bf16.msra.mxu0 %v3420
  %4825 = vmatprep.subr.bf16.mxu0 %v3416
  %4826 = vmatpush1.bf16.msra.mxu0 %v3415
  %4827 = vmatprep.subr.bf16.mxu0 %v3411
  %4828 = vmatpush1.bf16.msra.mxu0 %v3410
  %4829 = vmatprep.subr.bf16.mxu0 %v3486
  %4830 = vmatpush2.bf16.msra.mxu0 %v3485
  %4831 = vmatprep.subr.bf16.mxu0 %v3481
  %4832 = vmatpush2.bf16.msra.mxu0 %v3480
  %4833 = vmatprep.subr.bf16.mxu0 %v3476
  %4834 = vmatpush2.bf16.msra.mxu0 %v3475
  %4835 = vmatprep.subr.bf16.mxu0 %v3471
  %4836 = vmatpush2.bf16.msra.mxu0 %v3470
  %4837 = vmatprep.subr.bf16.mxu0 %v3466
  %4838 = vmatpush2.bf16.msra.mxu0 %v3465
  %4839 = vmatprep.subr.bf16.mxu0 %v3461
  %4840 = vmatpush2.bf16.msra.mxu0 %v3460
  %4841 = vmatprep.subr.bf16.mxu0 %v3456
  %4842 = vmatpush2.bf16.msra.mxu0 %v3455
  %4843 = vmatprep.subr.bf16.mxu0 %v3451
  %4844 = vmatpush2.bf16.msra.mxu0 %v3450
  %4845 = vmatprep.mubr.bf16.mxu0 %v993
  %4846 = vmatmul.mubr.bf16.gmra.mxu0 %v992
  %v4847 = vpop.f32.mrf.mxu0
  %v4848 = vadd.f32 %v4805, %v4847
  %v4849 = vpop.f32.mrf.mxu0
  %v4850 = vadd.f32 %v4807, %v4849
  %v4851 = vpop.f32.mrf.mxu0
  %v4852 = vadd.f32 %v4809, %v4851
  %v4853 = vpop.f32.mrf.mxu0
  %v4854 = vadd.f32 %v4811, %v4853
  %4855 = vdwg.mxu0
  %4856 = vmatprep.subr.bf16.mxu0 %v3526
  %4857 = vmatpush1.bf16.msra.mxu0 %v3525
  %4858 = vmatprep.subr.bf16.mxu0 %v3521
  %4859 = vmatpush1.bf16.msra.mxu0 %v3520
  %4860 = vmatprep.subr.bf16.mxu0 %v3516
  %4861 = vmatpush1.bf16.msra.mxu0 %v3515
  %4862 = vmatprep.subr.bf16.mxu0 %v3511
  %4863 = vmatpush1.bf16.msra.mxu0 %v3510
  %4864 = vmatprep.subr.bf16.mxu0 %v3506
  %4865 = vmatpush1.bf16.msra.mxu0 %v3505
  %4866 = vmatprep.subr.bf16.mxu0 %v3501
  %4867 = vmatpush1.bf16.msra.mxu0 %v3500
  %4868 = vmatprep.subr.bf16.mxu0 %v3496
  %4869 = vmatpush1.bf16.msra.mxu0 %v3495
  %4870 = vmatprep.subr.bf16.mxu0 %v3491
  %4871 = vmatpush1.bf16.msra.mxu0 %v3490
  %4872 = vmatprep.subr.bf16.mxu0 %v3566
  %4873 = vmatpush2.bf16.msra.mxu0 %v3565
  %4874 = vmatprep.subr.bf16.mxu0 %v3561
  %4875 = vmatpush2.bf16.msra.mxu0 %v3560
  %4876 = vmatprep.subr.bf16.mxu0 %v3556
  %4877 = vmatpush2.bf16.msra.mxu0 %v3555
  %4878 = vmatprep.subr.bf16.mxu0 %v3551
  %4879 = vmatpush2.bf16.msra.mxu0 %v3550
  %4880 = vmatprep.subr.bf16.mxu0 %v3546
  %4881 = vmatpush2.bf16.msra.mxu0 %v3545
  %4882 = vmatprep.subr.bf16.mxu0 %v3541
  %4883 = vmatpush2.bf16.msra.mxu0 %v3540
  %4884 = vmatprep.subr.bf16.mxu0 %v3536
  %4885 = vmatpush2.bf16.msra.mxu0 %v3535
  %4886 = vmatprep.subr.bf16.mxu0 %v3531
  %4887 = vmatpush2.bf16.msra.mxu0 %v3530
  %4888 = vmatprep.mubr.bf16.mxu0 %v995
  %4889 = vmatmul.mubr.bf16.gmra.mxu0 %v994
  %v4890 = vpop.f32.mrf.mxu0
  %v4891 = vadd.f32 %v4848, %v4890
  %v4892 = vpop.f32.mrf.mxu0
  %v4893 = vadd.f32 %v4850, %v4892
  %v4894 = vpop.f32.mrf.mxu0
  %v4895 = vadd.f32 %v4852, %v4894
  %v4896 = vpop.f32.mrf.mxu0
  %v4897 = vadd.f32 %v4854, %v4896
  %4898 = vdwg.mxu0
  %4899 = vmatprep.subr.bf16.mxu0 %v3606
  %4900 = vmatpush1.bf16.msra.mxu0 %v3605
  %4901 = vmatprep.subr.bf16.mxu0 %v3601
  %4902 = vmatpush1.bf16.msra.mxu0 %v3600
  %4903 = vmatprep.subr.bf16.mxu0 %v3596
  %4904 = vmatpush1.bf16.msra.mxu0 %v3595
  %4905 = vmatprep.subr.bf16.mxu0 %v3591
  %4906 = vmatpush1.bf16.msra.mxu0 %v3590
  %4907 = vmatprep.subr.bf16.mxu0 %v3586
  %4908 = vmatpush1.bf16.msra.mxu0 %v3585
  %4909 = vmatprep.subr.bf16.mxu0 %v3581
  %4910 = vmatpush1.bf16.msra.mxu0 %v3580
  %4911 = vmatprep.subr.bf16.mxu0 %v3576
  %4912 = vmatpush1.bf16.msra.mxu0 %v3575
  %4913 = vmatprep.subr.bf16.mxu0 %v3571
  %4914 = vmatpush1.bf16.msra.mxu0 %v3570
  %4915 = vmatprep.subr.bf16.mxu0 %v3646
  %4916 = vmatpush2.bf16.msra.mxu0 %v3645
  %4917 = vmatprep.subr.bf16.mxu0 %v3641
  %4918 = vmatpush2.bf16.msra.mxu0 %v3640
  %4919 = vmatprep.subr.bf16.mxu0 %v3636
  %4920 = vmatpush2.bf16.msra.mxu0 %v3635
  %4921 = vmatprep.subr.bf16.mxu0 %v3631
  %4922 = vmatpush2.bf16.msra.mxu0 %v3630
  %4923 = vmatprep.subr.bf16.mxu0 %v3626
  %4924 = vmatpush2.bf16.msra.mxu0 %v3625
  %4925 = vmatprep.subr.bf16.mxu0 %v3621
  %4926 = vmatpush2.bf16.msra.mxu0 %v3620
  %4927 = vmatprep.subr.bf16.mxu0 %v3616
  %4928 = vmatpush2.bf16.msra.mxu0 %v3615
  %4929 = vmatprep.subr.bf16.mxu0 %v3611
  %4930 = vmatpush2.bf16.msra.mxu0 %v3610
  %4931 = vmatprep.mubr.bf16.mxu0 %v997
  %4932 = vmatmul.mubr.bf16.gmra.mxu0 %v996
  %v4933 = vpop.f32.mrf.mxu0
  %v4934 = vadd.f32 %v4891, %v4933
  %v4935 = vpop.f32.mrf.mxu0
  %v4936 = vadd.f32 %v4893, %v4935
  %v4937 = vpop.f32.mrf.mxu0
  %v4938 = vadd.f32 %v4895, %v4937
  %v4939 = vpop.f32.mrf.mxu0
  %v4940 = vadd.f32 %v4897, %v4939
  %4941 = vdwg.mxu0
  %4942 = vmatprep.subr.bf16.mxu0 %v3686
  %4943 = vmatpush1.bf16.msra.mxu0 %v3685
  %4944 = vmatprep.subr.bf16.mxu0 %v3681
  %4945 = vmatpush1.bf16.msra.mxu0 %v3680
  %4946 = vmatprep.subr.bf16.mxu0 %v3676
  %4947 = vmatpush1.bf16.msra.mxu0 %v3675
  %4948 = vmatprep.subr.bf16.mxu0 %v3671
  %4949 = vmatpush1.bf16.msra.mxu0 %v3670
  %4950 = vmatprep.subr.bf16.mxu0 %v3666
  %4951 = vmatpush1.bf16.msra.mxu0 %v3665
  %4952 = vmatprep.subr.bf16.mxu0 %v3661
  %4953 = vmatpush1.bf16.msra.mxu0 %v3660
  %4954 = vmatprep.subr.bf16.mxu0 %v3656
  %4955 = vmatpush1.bf16.msra.mxu0 %v3655
  %4956 = vmatprep.subr.bf16.mxu0 %v3651
  %4957 = vmatpush1.bf16.msra.mxu0 %v3650
  %4958 = vmatprep.subr.bf16.mxu0 %v3726
  %4959 = vmatpush2.bf16.msra.mxu0 %v3725
  %4960 = vmatprep.subr.bf16.mxu0 %v3721
  %4961 = vmatpush2.bf16.msra.mxu0 %v3720
  %4962 = vmatprep.subr.bf16.mxu0 %v3716
  %4963 = vmatpush2.bf16.msra.mxu0 %v3715
  %4964 = vmatprep.subr.bf16.mxu0 %v3711
  %4965 = vmatpush2.bf16.msra.mxu0 %v3710
  %4966 = vmatprep.subr.bf16.mxu0 %v3706
  %4967 = vmatpush2.bf16.msra.mxu0 %v3705
  %4968 = vmatprep.subr.bf16.mxu0 %v3701
  %4969 = vmatpush2.bf16.msra.mxu0 %v3700
  %4970 = vmatprep.subr.bf16.mxu0 %v3696
  %4971 = vmatpush2.bf16.msra.mxu0 %v3695
  %4972 = vmatprep.subr.bf16.mxu0 %v3691
  %4973 = vmatpush2.bf16.msra.mxu0 %v3690
  %4974 = vmatprep.mubr.bf16.mxu0 %v999
  %4975 = vmatmul.mubr.bf16.gmra.mxu0 %v998
  %v4976 = vpop.f32.mrf.mxu0
  %v4977 = vadd.f32 %v4934, %v4976
  %v4978 = vpop.f32.mrf.mxu0
  %v4979 = vadd.f32 %v4936, %v4978
  %v4980 = vpop.f32.mrf.mxu0
  %v4981 = vadd.f32 %v4938, %v4980
  %v4982 = vpop.f32.mrf.mxu0
  %v4983 = vadd.f32 %v4940, %v4982
  %4984 = vdwg.mxu0
  %4985 = vmatprep.subr.bf16.mxu0 %v3766
  %4986 = vmatpush1.bf16.msra.mxu0 %v3765
  %4987 = vmatprep.subr.bf16.mxu0 %v3761
  %4988 = vmatpush1.bf16.msra.mxu0 %v3760
  %4989 = vmatprep.subr.bf16.mxu0 %v3756
  %4990 = vmatpush1.bf16.msra.mxu0 %v3755
  %4991 = vmatprep.subr.bf16.mxu0 %v3751
  %4992 = vmatpush1.bf16.msra.mxu0 %v3750
  %4993 = vmatprep.subr.bf16.mxu0 %v3746
  %4994 = vmatpush1.bf16.msra.mxu0 %v3745
  %4995 = vmatprep.subr.bf16.mxu0 %v3741
  %4996 = vmatpush1.bf16.msra.mxu0 %v3740
  %4997 = vmatprep.subr.bf16.mxu0 %v3736
  %4998 = vmatpush1.bf16.msra.mxu0 %v3735
  %4999 = vmatprep.subr.bf16.mxu0 %v3731
  %5000 = vmatpush1.bf16.msra.mxu0 %v3730
  %5001 = vmatprep.subr.bf16.mxu0 %v3806
  %5002 = vmatpush2.bf16.msra.mxu0 %v3805
  %5003 = vmatprep.subr.bf16.mxu0 %v3801
  %5004 = vmatpush2.bf16.msra.mxu0 %v3800
  %5005 = vmatprep.subr.bf16.mxu0 %v3796
  %5006 = vmatpush2.bf16.msra.mxu0 %v3795
  %5007 = vmatprep.subr.bf16.mxu0 %v3791
  %5008 = vmatpush2.bf16.msra.mxu0 %v3790
  %5009 = vmatprep.subr.bf16.mxu0 %v3786
  %5010 = vmatpush2.bf16.msra.mxu0 %v3785
  %5011 = vmatprep.subr.bf16.mxu0 %v3781
  %5012 = vmatpush2.bf16.msra.mxu0 %v3780
  %5013 = vmatprep.subr.bf16.mxu0 %v3776
  %5014 = vmatpush2.bf16.msra.mxu0 %v3775
  %5015 = vmatprep.subr.bf16.mxu0 %v3771
  %5016 = vmatpush2.bf16.msra.mxu0 %v3770
  %5017 = vmatprep.mubr.bf16.mxu0 %v1001
  %5018 = vmatmul.mubr.bf16.gmra.mxu0 %v1000
  %v5019 = vpop.f32.mrf.mxu0
  %v5020 = vadd.f32 %v4977, %v5019
  %v5021 = vpop.f32.mrf.mxu0
  %v5022 = vadd.f32 %v4979, %v5021
  %v5023 = vpop.f32.mrf.mxu0
  %v5024 = vadd.f32 %v4981, %v5023
  %v5025 = vpop.f32.mrf.mxu0
  %v5026 = vadd.f32 %v4983, %v5025
  %5027 = vdwg.mxu0
  %5028 = vmatprep.subr.bf16.mxu0 %v3846
  %5029 = vmatpush1.bf16.msra.mxu0 %v3845
  %5030 = vmatprep.subr.bf16.mxu0 %v3841
  %5031 = vmatpush1.bf16.msra.mxu0 %v3840
  %5032 = vmatprep.subr.bf16.mxu0 %v3836
  %5033 = vmatpush1.bf16.msra.mxu0 %v3835
  %5034 = vmatprep.subr.bf16.mxu0 %v3831
  %5035 = vmatpush1.bf16.msra.mxu0 %v3830
  %5036 = vmatprep.subr.bf16.mxu0 %v3826
  %5037 = vmatpush1.bf16.msra.mxu0 %v3825
  %5038 = vmatprep.subr.bf16.mxu0 %v3821
  %5039 = vmatpush1.bf16.msra.mxu0 %v3820
  %5040 = vmatprep.subr.bf16.mxu0 %v3816
  %5041 = vmatpush1.bf16.msra.mxu0 %v3815
  %5042 = vmatprep.subr.bf16.mxu0 %v3811
  %5043 = vmatpush1.bf16.msra.mxu0 %v3810
  %5044 = vmatprep.subr.bf16.mxu0 %v3886
  %5045 = vmatpush2.bf16.msra.mxu0 %v3885
  %5046 = vmatprep.subr.bf16.mxu0 %v3881
  %5047 = vmatpush2.bf16.msra.mxu0 %v3880
  %5048 = vmatprep.subr.bf16.mxu0 %v3876
  %5049 = vmatpush2.bf16.msra.mxu0 %v3875
  %5050 = vmatprep.subr.bf16.mxu0 %v3871
  %5051 = vmatpush2.bf16.msra.mxu0 %v3870
  %5052 = vmatprep.subr.bf16.mxu0 %v3866
  %5053 = vmatpush2.bf16.msra.mxu0 %v3865
  %5054 = vmatprep.subr.bf16.mxu0 %v3861
  %5055 = vmatpush2.bf16.msra.mxu0 %v3860
  %5056 = vmatprep.subr.bf16.mxu0 %v3856
  %5057 = vmatpush2.bf16.msra.mxu0 %v3855
  %5058 = vmatprep.subr.bf16.mxu0 %v3851
  %5059 = vmatpush2.bf16.msra.mxu0 %v3850
  %5060 = vmatprep.mubr.bf16.mxu0 %v1003
  %5061 = vmatmul.mubr.bf16.gmra.mxu0 %v1002
  %v5062 = vpop.f32.mrf.mxu0
  %v5063 = vadd.f32 %v5020, %v5062
  %v5064 = vpop.f32.mrf.mxu0
  %v5065 = vadd.f32 %v5022, %v5064
  %v5066 = vpop.f32.mrf.mxu0
  %v5067 = vadd.f32 %v5024, %v5066
  %v5068 = vpop.f32.mrf.mxu0
  %v5069 = vadd.f32 %v5026, %v5068
  %5070 = vdwg.mxu0
  %5071 = vmatprep.subr.bf16.mxu0 %v3926
  %5072 = vmatpush1.bf16.msra.mxu0 %v3925
  %5073 = vmatprep.subr.bf16.mxu0 %v3921
  %5074 = vmatpush1.bf16.msra.mxu0 %v3920
  %5075 = vmatprep.subr.bf16.mxu0 %v3916
  %5076 = vmatpush1.bf16.msra.mxu0 %v3915
  %5077 = vmatprep.subr.bf16.mxu0 %v3911
  %5078 = vmatpush1.bf16.msra.mxu0 %v3910
  %5079 = vmatprep.subr.bf16.mxu0 %v3906
  %5080 = vmatpush1.bf16.msra.mxu0 %v3905
  %5081 = vmatprep.subr.bf16.mxu0 %v3901
  %5082 = vmatpush1.bf16.msra.mxu0 %v3900
  %5083 = vmatprep.subr.bf16.mxu0 %v3896
  %5084 = vmatpush1.bf16.msra.mxu0 %v3895
  %5085 = vmatprep.subr.bf16.mxu0 %v3891
  %5086 = vmatpush1.bf16.msra.mxu0 %v3890
  %5087 = vmatprep.subr.bf16.mxu0 %v3966
  %5088 = vmatpush2.bf16.msra.mxu0 %v3965
  %5089 = vmatprep.subr.bf16.mxu0 %v3961
  %5090 = vmatpush2.bf16.msra.mxu0 %v3960
  %5091 = vmatprep.subr.bf16.mxu0 %v3956
  %5092 = vmatpush2.bf16.msra.mxu0 %v3955
  %5093 = vmatprep.subr.bf16.mxu0 %v3951
  %5094 = vmatpush2.bf16.msra.mxu0 %v3950
  %5095 = vmatprep.subr.bf16.mxu0 %v3946
  %5096 = vmatpush2.bf16.msra.mxu0 %v3945
  %5097 = vmatprep.subr.bf16.mxu0 %v3941
  %5098 = vmatpush2.bf16.msra.mxu0 %v3940
  %5099 = vmatprep.subr.bf16.mxu0 %v3936
  %5100 = vmatpush2.bf16.msra.mxu0 %v3935
  %5101 = vmatprep.subr.bf16.mxu0 %v3931
  %5102 = vmatpush2.bf16.msra.mxu0 %v3930
  %5103 = vmatprep.mubr.bf16.mxu0 %v1005
  %5104 = vmatmul.mubr.bf16.gmra.mxu0 %v1004
  %v5105 = vpop.f32.mrf.mxu0
  %v5106 = vadd.f32 %v5063, %v5105
  %v5107 = vpop.f32.mrf.mxu0
  %v5108 = vadd.f32 %v5065, %v5107
  %v5109 = vpop.f32.mrf.mxu0
  %v5110 = vadd.f32 %v5067, %v5109
  %v5111 = vpop.f32.mrf.mxu0
  %v5112 = vadd.f32 %v5069, %v5111
  %5113 = vdwg.mxu0
  %5114 = vmatprep.subr.bf16.mxu0 %v4006
  %5115 = vmatpush1.bf16.msra.mxu0 %v4005
  %5116 = vmatprep.subr.bf16.mxu0 %v4001
  %5117 = vmatpush1.bf16.msra.mxu0 %v4000
  %5118 = vmatprep.subr.bf16.mxu0 %v3996
  %5119 = vmatpush1.bf16.msra.mxu0 %v3995
  %5120 = vmatprep.subr.bf16.mxu0 %v3991
  %5121 = vmatpush1.bf16.msra.mxu0 %v3990
  %5122 = vmatprep.subr.bf16.mxu0 %v3986
  %5123 = vmatpush1.bf16.msra.mxu0 %v3985
  %5124 = vmatprep.subr.bf16.mxu0 %v3981
  %5125 = vmatpush1.bf16.msra.mxu0 %v3980
  %5126 = vmatprep.subr.bf16.mxu0 %v3976
  %5127 = vmatpush1.bf16.msra.mxu0 %v3975
  %5128 = vmatprep.subr.bf16.mxu0 %v3971
  %5129 = vmatpush1.bf16.msra.mxu0 %v3970
  %5130 = vmatprep.subr.bf16.mxu0 %v4046
  %5131 = vmatpush2.bf16.msra.mxu0 %v4045
  %5132 = vmatprep.subr.bf16.mxu0 %v4041
  %5133 = vmatpush2.bf16.msra.mxu0 %v4040
  %5134 = vmatprep.subr.bf16.mxu0 %v4036
  %5135 = vmatpush2.bf16.msra.mxu0 %v4035
  %5136 = vmatprep.subr.bf16.mxu0 %v4031
  %5137 = vmatpush2.bf16.msra.mxu0 %v4030
  %5138 = vmatprep.subr.bf16.mxu0 %v4026
  %5139 = vmatpush2.bf16.msra.mxu0 %v4025
  %5140 = vmatprep.subr.bf16.mxu0 %v4021
  %5141 = vmatpush2.bf16.msra.mxu0 %v4020
  %5142 = vmatprep.subr.bf16.mxu0 %v4016
  %5143 = vmatpush2.bf16.msra.mxu0 %v4015
  %5144 = vmatprep.subr.bf16.mxu0 %v4011
  %5145 = vmatpush2.bf16.msra.mxu0 %v4010
  %5146 = vmatprep.mubr.bf16.mxu0 %v1007
  %5147 = vmatmul.mubr.bf16.gmra.mxu0 %v1006
  %v5148 = vpop.f32.mrf.mxu0
  %v5149 = vadd.f32 %v5106, %v5148
  %v5150 = vpop.f32.mrf.mxu0
  %v5151 = vadd.f32 %v5108, %v5150
  %v5152 = vpop.f32.mrf.mxu0
  %v5153 = vadd.f32 %v5110, %v5152
  %v5154 = vpop.f32.mrf.mxu0
  %v5155 = vadd.f32 %v5112, %v5154
  %5156 = vdwg.mxu0
  %5157 = vmatprep.subr.bf16.mxu0 %v3368
  %5158 = vmatpush1.bf16.msra.mxu0 %v3367
  %5159 = vmatprep.subr.bf16.mxu0 %v3363
  %5160 = vmatpush1.bf16.msra.mxu0 %v3362
  %5161 = vmatprep.subr.bf16.mxu0 %v3358
  %5162 = vmatpush1.bf16.msra.mxu0 %v3357
  %5163 = vmatprep.subr.bf16.mxu0 %v3353
  %5164 = vmatpush1.bf16.msra.mxu0 %v3352
  %5165 = vmatprep.subr.bf16.mxu0 %v3348
  %5166 = vmatpush1.bf16.msra.mxu0 %v3347
  %5167 = vmatprep.subr.bf16.mxu0 %v3343
  %5168 = vmatpush1.bf16.msra.mxu0 %v3342
  %5169 = vmatprep.subr.bf16.mxu0 %v3338
  %5170 = vmatpush1.bf16.msra.mxu0 %v3337
  %5171 = vmatprep.subr.bf16.mxu0 %v3333
  %5172 = vmatpush1.bf16.msra.mxu0 %v3332
  %5173 = vmatprep.subr.bf16.mxu0 %v3408
  %5174 = vmatpush2.bf16.msra.mxu0 %v3407
  %5175 = vmatprep.subr.bf16.mxu0 %v3403
  %5176 = vmatpush2.bf16.msra.mxu0 %v3402
  %5177 = vmatprep.subr.bf16.mxu0 %v3398
  %5178 = vmatpush2.bf16.msra.mxu0 %v3397
  %5179 = vmatprep.subr.bf16.mxu0 %v3393
  %5180 = vmatpush2.bf16.msra.mxu0 %v3392
  %5181 = vmatprep.subr.bf16.mxu0 %v3388
  %5182 = vmatpush2.bf16.msra.mxu0 %v3387
  %5183 = vmatprep.subr.bf16.mxu0 %v3383
  %5184 = vmatpush2.bf16.msra.mxu0 %v3382
  %5185 = vmatprep.subr.bf16.mxu0 %v3378
  %5186 = vmatpush2.bf16.msra.mxu0 %v3377
  %5187 = vmatprep.subr.bf16.mxu0 %v3373
  %5188 = vmatpush2.bf16.msra.mxu0 %v3372
  %5189 = vmatprep.mubr.bf16.mxu0 %v991
  %5190 = vmatmul.mubr.bf16.gmra.mxu0 %v990
  %v5191 = vpop.f32.mrf.mxu0
  %v5192 = vadd.f32 %v922, %v5191
  %v5193 = vpop.f32.mrf.mxu0
  %v5194 = vadd.f32 %v926, %v5193
  %v5195 = vpop.f32.mrf.mxu0
  %v5196 = vadd.f32 %v922, %v5195
  %v5197 = vpop.f32.mrf.mxu0
  %v5198 = vadd.f32 %v926, %v5197
  %5199 = vdwg.mxu0
  %5200 = vmatprep.subr.bf16.mxu0 %v3448
  %5201 = vmatpush1.bf16.msra.mxu0 %v3447
  %5202 = vmatprep.subr.bf16.mxu0 %v3443
  %5203 = vmatpush1.bf16.msra.mxu0 %v3442
  %5204 = vmatprep.subr.bf16.mxu0 %v3438
  %5205 = vmatpush1.bf16.msra.mxu0 %v3437
  %5206 = vmatprep.subr.bf16.mxu0 %v3433
  %5207 = vmatpush1.bf16.msra.mxu0 %v3432
  %5208 = vmatprep.subr.bf16.mxu0 %v3428
  %5209 = vmatpush1.bf16.msra.mxu0 %v3427
  %5210 = vmatprep.subr.bf16.mxu0 %v3423
  %5211 = vmatpush1.bf16.msra.mxu0 %v3422
  %5212 = vmatprep.subr.bf16.mxu0 %v3418
  %5213 = vmatpush1.bf16.msra.mxu0 %v3417
  %5214 = vmatprep.subr.bf16.mxu0 %v3413
  %5215 = vmatpush1.bf16.msra.mxu0 %v3412
  %5216 = vmatprep.subr.bf16.mxu0 %v3488
  %5217 = vmatpush2.bf16.msra.mxu0 %v3487
  %5218 = vmatprep.subr.bf16.mxu0 %v3483
  %5219 = vmatpush2.bf16.msra.mxu0 %v3482
  %5220 = vmatprep.subr.bf16.mxu0 %v3478
  %5221 = vmatpush2.bf16.msra.mxu0 %v3477
  %5222 = vmatprep.subr.bf16.mxu0 %v3473
  %5223 = vmatpush2.bf16.msra.mxu0 %v3472
  %5224 = vmatprep.subr.bf16.mxu0 %v3468
  %5225 = vmatpush2.bf16.msra.mxu0 %v3467
  %5226 = vmatprep.subr.bf16.mxu0 %v3463
  %5227 = vmatpush2.bf16.msra.mxu0 %v3462
  %5228 = vmatprep.subr.bf16.mxu0 %v3458
  %5229 = vmatpush2.bf16.msra.mxu0 %v3457
  %5230 = vmatprep.subr.bf16.mxu0 %v3453
  %5231 = vmatpush2.bf16.msra.mxu0 %v3452
  %5232 = vmatprep.mubr.bf16.mxu0 %v993
  %5233 = vmatmul.mubr.bf16.gmra.mxu0 %v992
  %v5234 = vpop.f32.mrf.mxu0
  %v5235 = vadd.f32 %v5192, %v5234
  %v5236 = vpop.f32.mrf.mxu0
  %v5237 = vadd.f32 %v5194, %v5236
  %v5238 = vpop.f32.mrf.mxu0
  %v5239 = vadd.f32 %v5196, %v5238
  %v5240 = vpop.f32.mrf.mxu0
  %v5241 = vadd.f32 %v5198, %v5240
  %5242 = vdwg.mxu0
  %5243 = vmatprep.subr.bf16.mxu0 %v3528
  %5244 = vmatpush1.bf16.msra.mxu0 %v3527
  %5245 = vmatprep.subr.bf16.mxu0 %v3523
  %5246 = vmatpush1.bf16.msra.mxu0 %v3522
  %5247 = vmatprep.subr.bf16.mxu0 %v3518
  %5248 = vmatpush1.bf16.msra.mxu0 %v3517
  %5249 = vmatprep.subr.bf16.mxu0 %v3513
  %5250 = vmatpush1.bf16.msra.mxu0 %v3512
  %5251 = vmatprep.subr.bf16.mxu0 %v3508
  %5252 = vmatpush1.bf16.msra.mxu0 %v3507
  %5253 = vmatprep.subr.bf16.mxu0 %v3503
  %5254 = vmatpush1.bf16.msra.mxu0 %v3502
  %5255 = vmatprep.subr.bf16.mxu0 %v3498
  %5256 = vmatpush1.bf16.msra.mxu0 %v3497
  %5257 = vmatprep.subr.bf16.mxu0 %v3493
  %5258 = vmatpush1.bf16.msra.mxu0 %v3492
  %5259 = vmatprep.subr.bf16.mxu0 %v3568
  %5260 = vmatpush2.bf16.msra.mxu0 %v3567
  %5261 = vmatprep.subr.bf16.mxu0 %v3563
  %5262 = vmatpush2.bf16.msra.mxu0 %v3562
  %5263 = vmatprep.subr.bf16.mxu0 %v3558
  %5264 = vmatpush2.bf16.msra.mxu0 %v3557
  %5265 = vmatprep.subr.bf16.mxu0 %v3553
  %5266 = vmatpush2.bf16.msra.mxu0 %v3552
  %5267 = vmatprep.subr.bf16.mxu0 %v3548
  %5268 = vmatpush2.bf16.msra.mxu0 %v3547
  %5269 = vmatprep.subr.bf16.mxu0 %v3543
  %5270 = vmatpush2.bf16.msra.mxu0 %v3542
  %5271 = vmatprep.subr.bf16.mxu0 %v3538
  %5272 = vmatpush2.bf16.msra.mxu0 %v3537
  %5273 = vmatprep.subr.bf16.mxu0 %v3533
  %5274 = vmatpush2.bf16.msra.mxu0 %v3532
  %5275 = vmatprep.mubr.bf16.mxu0 %v995
  %5276 = vmatmul.mubr.bf16.gmra.mxu0 %v994
  %v5277 = vpop.f32.mrf.mxu0
  %v5278 = vadd.f32 %v5235, %v5277
  %v5279 = vpop.f32.mrf.mxu0
  %v5280 = vadd.f32 %v5237, %v5279
  %v5281 = vpop.f32.mrf.mxu0
  %v5282 = vadd.f32 %v5239, %v5281
  %v5283 = vpop.f32.mrf.mxu0
  %v5284 = vadd.f32 %v5241, %v5283
  %5285 = vdwg.mxu0
  %5286 = vmatprep.subr.bf16.mxu0 %v3608
  %5287 = vmatpush1.bf16.msra.mxu0 %v3607
  %5288 = vmatprep.subr.bf16.mxu0 %v3603
  %5289 = vmatpush1.bf16.msra.mxu0 %v3602
  %5290 = vmatprep.subr.bf16.mxu0 %v3598
  %5291 = vmatpush1.bf16.msra.mxu0 %v3597
  %5292 = vmatprep.subr.bf16.mxu0 %v3593
  %5293 = vmatpush1.bf16.msra.mxu0 %v3592
  %5294 = vmatprep.subr.bf16.mxu0 %v3588
  %5295 = vmatpush1.bf16.msra.mxu0 %v3587
  %5296 = vmatprep.subr.bf16.mxu0 %v3583
  %5297 = vmatpush1.bf16.msra.mxu0 %v3582
  %5298 = vmatprep.subr.bf16.mxu0 %v3578
  %5299 = vmatpush1.bf16.msra.mxu0 %v3577
  %5300 = vmatprep.subr.bf16.mxu0 %v3573
  %5301 = vmatpush1.bf16.msra.mxu0 %v3572
  %5302 = vmatprep.subr.bf16.mxu0 %v3648
  %5303 = vmatpush2.bf16.msra.mxu0 %v3647
  %5304 = vmatprep.subr.bf16.mxu0 %v3643
  %5305 = vmatpush2.bf16.msra.mxu0 %v3642
  %5306 = vmatprep.subr.bf16.mxu0 %v3638
  %5307 = vmatpush2.bf16.msra.mxu0 %v3637
  %5308 = vmatprep.subr.bf16.mxu0 %v3633
  %5309 = vmatpush2.bf16.msra.mxu0 %v3632
  %5310 = vmatprep.subr.bf16.mxu0 %v3628
  %5311 = vmatpush2.bf16.msra.mxu0 %v3627
  %5312 = vmatprep.subr.bf16.mxu0 %v3623
  %5313 = vmatpush2.bf16.msra.mxu0 %v3622
  %5314 = vmatprep.subr.bf16.mxu0 %v3618
  %5315 = vmatpush2.bf16.msra.mxu0 %v3617
  %5316 = vmatprep.subr.bf16.mxu0 %v3613
  %5317 = vmatpush2.bf16.msra.mxu0 %v3612
  %5318 = vmatprep.mubr.bf16.mxu0 %v997
  %5319 = vmatmul.mubr.bf16.gmra.mxu0 %v996
  %v5320 = vpop.f32.mrf.mxu0
  %v5321 = vadd.f32 %v5278, %v5320
  %v5322 = vpop.f32.mrf.mxu0
  %v5323 = vadd.f32 %v5280, %v5322
  %v5324 = vpop.f32.mrf.mxu0
  %v5325 = vadd.f32 %v5282, %v5324
  %v5326 = vpop.f32.mrf.mxu0
  %v5327 = vadd.f32 %v5284, %v5326
  %5328 = vdwg.mxu0
  %5329 = vmatprep.subr.bf16.mxu0 %v3688
  %5330 = vmatpush1.bf16.msra.mxu0 %v3687
  %5331 = vmatprep.subr.bf16.mxu0 %v3683
  %5332 = vmatpush1.bf16.msra.mxu0 %v3682
  %5333 = vmatprep.subr.bf16.mxu0 %v3678
  %5334 = vmatpush1.bf16.msra.mxu0 %v3677
  %5335 = vmatprep.subr.bf16.mxu0 %v3673
  %5336 = vmatpush1.bf16.msra.mxu0 %v3672
  %5337 = vmatprep.subr.bf16.mxu0 %v3668
  %5338 = vmatpush1.bf16.msra.mxu0 %v3667
  %5339 = vmatprep.subr.bf16.mxu0 %v3663
  %5340 = vmatpush1.bf16.msra.mxu0 %v3662
  %5341 = vmatprep.subr.bf16.mxu0 %v3658
  %5342 = vmatpush1.bf16.msra.mxu0 %v3657
  %5343 = vmatprep.subr.bf16.mxu0 %v3653
  %5344 = vmatpush1.bf16.msra.mxu0 %v3652
  %5345 = vmatprep.subr.bf16.mxu0 %v3728
  %5346 = vmatpush2.bf16.msra.mxu0 %v3727
  %5347 = vmatprep.subr.bf16.mxu0 %v3723
  %5348 = vmatpush2.bf16.msra.mxu0 %v3722
  %5349 = vmatprep.subr.bf16.mxu0 %v3718
  %5350 = vmatpush2.bf16.msra.mxu0 %v3717
  %5351 = vmatprep.subr.bf16.mxu0 %v3713
  %5352 = vmatpush2.bf16.msra.mxu0 %v3712
  %5353 = vmatprep.subr.bf16.mxu0 %v3708
  %5354 = vmatpush2.bf16.msra.mxu0 %v3707
  %5355 = vmatprep.subr.bf16.mxu0 %v3703
  %5356 = vmatpush2.bf16.msra.mxu0 %v3702
  %5357 = vmatprep.subr.bf16.mxu0 %v3698
  %5358 = vmatpush2.bf16.msra.mxu0 %v3697
  %5359 = vmatprep.subr.bf16.mxu0 %v3693
  %5360 = vmatpush2.bf16.msra.mxu0 %v3692
  %5361 = vmatprep.mubr.bf16.mxu0 %v999
  %5362 = vmatmul.mubr.bf16.gmra.mxu0 %v998
  %v5363 = vpop.f32.mrf.mxu0
  %v5364 = vadd.f32 %v5321, %v5363
  %v5365 = vpop.f32.mrf.mxu0
  %v5366 = vadd.f32 %v5323, %v5365
  %v5367 = vpop.f32.mrf.mxu0
  %v5368 = vadd.f32 %v5325, %v5367
  %v5369 = vpop.f32.mrf.mxu0
  %v5370 = vadd.f32 %v5327, %v5369
  %5371 = vdwg.mxu0
  %5372 = vmatprep.subr.bf16.mxu0 %v3768
  %5373 = vmatpush1.bf16.msra.mxu0 %v3767
  %5374 = vmatprep.subr.bf16.mxu0 %v3763
  %5375 = vmatpush1.bf16.msra.mxu0 %v3762
  %5376 = vmatprep.subr.bf16.mxu0 %v3758
  %5377 = vmatpush1.bf16.msra.mxu0 %v3757
  %5378 = vmatprep.subr.bf16.mxu0 %v3753
  %5379 = vmatpush1.bf16.msra.mxu0 %v3752
  %5380 = vmatprep.subr.bf16.mxu0 %v3748
  %5381 = vmatpush1.bf16.msra.mxu0 %v3747
  %5382 = vmatprep.subr.bf16.mxu0 %v3743
  %5383 = vmatpush1.bf16.msra.mxu0 %v3742
  %5384 = vmatprep.subr.bf16.mxu0 %v3738
  %5385 = vmatpush1.bf16.msra.mxu0 %v3737
  %5386 = vmatprep.subr.bf16.mxu0 %v3733
  %5387 = vmatpush1.bf16.msra.mxu0 %v3732
  %5388 = vmatprep.subr.bf16.mxu0 %v3808
  %5389 = vmatpush2.bf16.msra.mxu0 %v3807
  %5390 = vmatprep.subr.bf16.mxu0 %v3803
  %5391 = vmatpush2.bf16.msra.mxu0 %v3802
  %5392 = vmatprep.subr.bf16.mxu0 %v3798
  %5393 = vmatpush2.bf16.msra.mxu0 %v3797
  %5394 = vmatprep.subr.bf16.mxu0 %v3793
  %5395 = vmatpush2.bf16.msra.mxu0 %v3792
  %5396 = vmatprep.subr.bf16.mxu0 %v3788
  %5397 = vmatpush2.bf16.msra.mxu0 %v3787
  %5398 = vmatprep.subr.bf16.mxu0 %v3783
  %5399 = vmatpush2.bf16.msra.mxu0 %v3782
  %5400 = vmatprep.subr.bf16.mxu0 %v3778
  %5401 = vmatpush2.bf16.msra.mxu0 %v3777
  %5402 = vmatprep.subr.bf16.mxu0 %v3773
  %5403 = vmatpush2.bf16.msra.mxu0 %v3772
  %5404 = vmatprep.mubr.bf16.mxu0 %v1001
  %5405 = vmatmul.mubr.bf16.gmra.mxu0 %v1000
  %v5406 = vpop.f32.mrf.mxu0
  %v5407 = vadd.f32 %v5364, %v5406
  %v5408 = vpop.f32.mrf.mxu0
  %v5409 = vadd.f32 %v5366, %v5408
  %v5410 = vpop.f32.mrf.mxu0
  %v5411 = vadd.f32 %v5368, %v5410
  %v5412 = vpop.f32.mrf.mxu0
  %v5413 = vadd.f32 %v5370, %v5412
  %5414 = vdwg.mxu0
  %5415 = vmatprep.subr.bf16.mxu0 %v3848
  %5416 = vmatpush1.bf16.msra.mxu0 %v3847
  %5417 = vmatprep.subr.bf16.mxu0 %v3843
  %5418 = vmatpush1.bf16.msra.mxu0 %v3842
  %5419 = vmatprep.subr.bf16.mxu0 %v3838
  %5420 = vmatpush1.bf16.msra.mxu0 %v3837
  %5421 = vmatprep.subr.bf16.mxu0 %v3833
  %5422 = vmatpush1.bf16.msra.mxu0 %v3832
  %5423 = vmatprep.subr.bf16.mxu0 %v3828
  %5424 = vmatpush1.bf16.msra.mxu0 %v3827
  %5425 = vmatprep.subr.bf16.mxu0 %v3823
  %5426 = vmatpush1.bf16.msra.mxu0 %v3822
  %5427 = vmatprep.subr.bf16.mxu0 %v3818
  %5428 = vmatpush1.bf16.msra.mxu0 %v3817
  %5429 = vmatprep.subr.bf16.mxu0 %v3813
  %5430 = vmatpush1.bf16.msra.mxu0 %v3812
  %5431 = vmatprep.subr.bf16.mxu0 %v3888
  %5432 = vmatpush2.bf16.msra.mxu0 %v3887
  %5433 = vmatprep.subr.bf16.mxu0 %v3883
  %5434 = vmatpush2.bf16.msra.mxu0 %v3882
  %5435 = vmatprep.subr.bf16.mxu0 %v3878
  %5436 = vmatpush2.bf16.msra.mxu0 %v3877
  %5437 = vmatprep.subr.bf16.mxu0 %v3873
  %5438 = vmatpush2.bf16.msra.mxu0 %v3872
  %5439 = vmatprep.subr.bf16.mxu0 %v3868
  %5440 = vmatpush2.bf16.msra.mxu0 %v3867
  %5441 = vmatprep.subr.bf16.mxu0 %v3863
  %5442 = vmatpush2.bf16.msra.mxu0 %v3862
  %5443 = vmatprep.subr.bf16.mxu0 %v3858
  %5444 = vmatpush2.bf16.msra.mxu0 %v3857
  %5445 = vmatprep.subr.bf16.mxu0 %v3853
  %5446 = vmatpush2.bf16.msra.mxu0 %v3852
  %5447 = vmatprep.mubr.bf16.mxu0 %v1003
  %5448 = vmatmul.mubr.bf16.gmra.mxu0 %v1002
  %v5449 = vpop.f32.mrf.mxu0
  %v5450 = vadd.f32 %v5407, %v5449
  %v5451 = vpop.f32.mrf.mxu0
  %v5452 = vadd.f32 %v5409, %v5451
  %v5453 = vpop.f32.mrf.mxu0
  %v5454 = vadd.f32 %v5411, %v5453
  %v5455 = vpop.f32.mrf.mxu0
  %v5456 = vadd.f32 %v5413, %v5455
  %5457 = vdwg.mxu0
  %5458 = vmatprep.subr.bf16.mxu0 %v3928
  %5459 = vmatpush1.bf16.msra.mxu0 %v3927
  %5460 = vmatprep.subr.bf16.mxu0 %v3923
  %5461 = vmatpush1.bf16.msra.mxu0 %v3922
  %5462 = vmatprep.subr.bf16.mxu0 %v3918
  %5463 = vmatpush1.bf16.msra.mxu0 %v3917
  %5464 = vmatprep.subr.bf16.mxu0 %v3913
  %5465 = vmatpush1.bf16.msra.mxu0 %v3912
  %5466 = vmatprep.subr.bf16.mxu0 %v3908
  %5467 = vmatpush1.bf16.msra.mxu0 %v3907
  %5468 = vmatprep.subr.bf16.mxu0 %v3903
  %5469 = vmatpush1.bf16.msra.mxu0 %v3902
  %5470 = vmatprep.subr.bf16.mxu0 %v3898
  %5471 = vmatpush1.bf16.msra.mxu0 %v3897
  %5472 = vmatprep.subr.bf16.mxu0 %v3893
  %5473 = vmatpush1.bf16.msra.mxu0 %v3892
  %5474 = vmatprep.subr.bf16.mxu0 %v3968
  %5475 = vmatpush2.bf16.msra.mxu0 %v3967
  %5476 = vmatprep.subr.bf16.mxu0 %v3963
  %5477 = vmatpush2.bf16.msra.mxu0 %v3962
  %5478 = vmatprep.subr.bf16.mxu0 %v3958
  %5479 = vmatpush2.bf16.msra.mxu0 %v3957
  %5480 = vmatprep.subr.bf16.mxu0 %v3953
  %5481 = vmatpush2.bf16.msra.mxu0 %v3952
  %5482 = vmatprep.subr.bf16.mxu0 %v3948
  %5483 = vmatpush2.bf16.msra.mxu0 %v3947
  %5484 = vmatprep.subr.bf16.mxu0 %v3943
  %5485 = vmatpush2.bf16.msra.mxu0 %v3942
  %5486 = vmatprep.subr.bf16.mxu0 %v3938
  %5487 = vmatpush2.bf16.msra.mxu0 %v3937
  %5488 = vmatprep.subr.bf16.mxu0 %v3933
  %5489 = vmatpush2.bf16.msra.mxu0 %v3932
  %5490 = vmatprep.mubr.bf16.mxu0 %v1005
  %5491 = vmatmul.mubr.bf16.gmra.mxu0 %v1004
  %v5492 = vpop.f32.mrf.mxu0
  %v5493 = vadd.f32 %v5450, %v5492
  %v5494 = vpop.f32.mrf.mxu0
  %v5495 = vadd.f32 %v5452, %v5494
  %v5496 = vpop.f32.mrf.mxu0
  %v5497 = vadd.f32 %v5454, %v5496
  %v5498 = vpop.f32.mrf.mxu0
  %v5499 = vadd.f32 %v5456, %v5498
  %5500 = vdwg.mxu0
  %5501 = vmatprep.subr.bf16.mxu0 %v4008
  %5502 = vmatpush1.bf16.msra.mxu0 %v4007
  %5503 = vmatprep.subr.bf16.mxu0 %v4003
  %5504 = vmatpush1.bf16.msra.mxu0 %v4002
  %5505 = vmatprep.subr.bf16.mxu0 %v3998
  %5506 = vmatpush1.bf16.msra.mxu0 %v3997
  %5507 = vmatprep.subr.bf16.mxu0 %v3993
  %5508 = vmatpush1.bf16.msra.mxu0 %v3992
  %5509 = vmatprep.subr.bf16.mxu0 %v3988
  %5510 = vmatpush1.bf16.msra.mxu0 %v3987
  %5511 = vmatprep.subr.bf16.mxu0 %v3983
  %5512 = vmatpush1.bf16.msra.mxu0 %v3982
  %5513 = vmatprep.subr.bf16.mxu0 %v3978
  %5514 = vmatpush1.bf16.msra.mxu0 %v3977
  %5515 = vmatprep.subr.bf16.mxu0 %v3973
  %5516 = vmatpush1.bf16.msra.mxu0 %v3972
  %5517 = vmatprep.subr.bf16.mxu0 %v4048
  %5518 = vmatpush2.bf16.msra.mxu0 %v4047
  %5519 = vmatprep.subr.bf16.mxu0 %v4043
  %5520 = vmatpush2.bf16.msra.mxu0 %v4042
  %5521 = vmatprep.subr.bf16.mxu0 %v4038
  %5522 = vmatpush2.bf16.msra.mxu0 %v4037
  %5523 = vmatprep.subr.bf16.mxu0 %v4033
  %5524 = vmatpush2.bf16.msra.mxu0 %v4032
  %5525 = vmatprep.subr.bf16.mxu0 %v4028
  %5526 = vmatpush2.bf16.msra.mxu0 %v4027
  %5527 = vmatprep.subr.bf16.mxu0 %v4023
  %5528 = vmatpush2.bf16.msra.mxu0 %v4022
  %5529 = vmatprep.subr.bf16.mxu0 %v4018
  %5530 = vmatpush2.bf16.msra.mxu0 %v4017
  %5531 = vmatprep.subr.bf16.mxu0 %v4013
  %5532 = vmatpush2.bf16.msra.mxu0 %v4012
  %5533 = vmatprep.mubr.bf16.mxu0 %v1007
  %5534 = vmatmul.mubr.bf16.gmra.mxu0 %v1006
  %v5535 = vpop.f32.mrf.mxu0
  %v5536 = vadd.f32 %v5493, %v5535
  %v5537 = vpop.f32.mrf.mxu0
  %v5538 = vadd.f32 %v5495, %v5537
  %v5539 = vpop.f32.mrf.mxu0
  %v5540 = vadd.f32 %v5497, %v5539
  %v5541 = vpop.f32.mrf.mxu0
  %v5542 = vadd.f32 %v5499, %v5541
  %5543 = vdwg.mxu0
  %5544 = vmatprep.subr.bf16.mxu0 0
  %5545 = vmatpush1.bf16.msra.mxu0 %v3369
  %5546 = vmatprep.subr.bf16.mxu0 0
  %5547 = vmatpush1.bf16.msra.mxu0 %v3364
  %5548 = vmatprep.subr.bf16.mxu0 0
  %5549 = vmatpush1.bf16.msra.mxu0 %v3359
  %5550 = vmatprep.subr.bf16.mxu0 0
  %5551 = vmatpush1.bf16.msra.mxu0 %v3354
  %5552 = vmatprep.subr.bf16.mxu0 0
  %5553 = vmatpush1.bf16.msra.mxu0 %v3349
  %5554 = vmatprep.subr.bf16.mxu0 0
  %5555 = vmatpush1.bf16.msra.mxu0 %v3344
  %5556 = vmatprep.subr.bf16.mxu0 0
  %5557 = vmatpush1.bf16.msra.mxu0 %v3339
  %5558 = vmatprep.subr.bf16.mxu0 0
  %5559 = vmatpush1.bf16.msra.mxu0 %v3334
  %5560 = vmatprep.subr.bf16.mxu0 0
  %5561 = vmatpush2.bf16.msra.mxu0 %v3409
  %5562 = vmatprep.subr.bf16.mxu0 0
  %5563 = vmatpush2.bf16.msra.mxu0 %v3404
  %5564 = vmatprep.subr.bf16.mxu0 0
  %5565 = vmatpush2.bf16.msra.mxu0 %v3399
  %5566 = vmatprep.subr.bf16.mxu0 0
  %5567 = vmatpush2.bf16.msra.mxu0 %v3394
  %5568 = vmatprep.subr.bf16.mxu0 0
  %5569 = vmatpush2.bf16.msra.mxu0 %v3389
  %5570 = vmatprep.subr.bf16.mxu0 0
  %5571 = vmatpush2.bf16.msra.mxu0 %v3384
  %5572 = vmatprep.subr.bf16.mxu0 0
  %5573 = vmatpush2.bf16.msra.mxu0 %v3379
  %5574 = vmatprep.subr.bf16.mxu0 0
  %5575 = vmatpush2.bf16.msra.mxu0 %v3374
  %5576 = vmatprep.mubr.bf16.mxu0 %v991
  %5577 = vmatmul.mubr.bf16.gmra.mxu0 %v990
  %v5578 = vpop.f32.mrf.mxu0
  %v5579 = vadd.f32 %v930, %v5578
  %v5580 = vpop.f32.mrf.mxu0
  %v5581 = vpop.f32.mrf.mxu0
  %v5582 = vadd.f32 %v930, %v5581
  %v5583 = vpop.f32.mrf.mxu0
  %5584 = vdwg.mxu0
  %5585 = vmatprep.subr.bf16.mxu0 0
  %5586 = vmatpush1.bf16.msra.mxu0 %v3449
  %5587 = vmatprep.subr.bf16.mxu0 0
  %5588 = vmatpush1.bf16.msra.mxu0 %v3444
  %5589 = vmatprep.subr.bf16.mxu0 0
  %5590 = vmatpush1.bf16.msra.mxu0 %v3439
  %5591 = vmatprep.subr.bf16.mxu0 0
  %5592 = vmatpush1.bf16.msra.mxu0 %v3434
  %5593 = vmatprep.subr.bf16.mxu0 0
  %5594 = vmatpush1.bf16.msra.mxu0 %v3429
  %5595 = vmatprep.subr.bf16.mxu0 0
  %5596 = vmatpush1.bf16.msra.mxu0 %v3424
  %5597 = vmatprep.subr.bf16.mxu0 0
  %5598 = vmatpush1.bf16.msra.mxu0 %v3419
  %5599 = vmatprep.subr.bf16.mxu0 0
  %5600 = vmatpush1.bf16.msra.mxu0 %v3414
  %5601 = vmatprep.subr.bf16.mxu0 0
  %5602 = vmatpush2.bf16.msra.mxu0 %v3489
  %5603 = vmatprep.subr.bf16.mxu0 0
  %5604 = vmatpush2.bf16.msra.mxu0 %v3484
  %5605 = vmatprep.subr.bf16.mxu0 0
  %5606 = vmatpush2.bf16.msra.mxu0 %v3479
  %5607 = vmatprep.subr.bf16.mxu0 0
  %5608 = vmatpush2.bf16.msra.mxu0 %v3474
  %5609 = vmatprep.subr.bf16.mxu0 0
  %5610 = vmatpush2.bf16.msra.mxu0 %v3469
  %5611 = vmatprep.subr.bf16.mxu0 0
  %5612 = vmatpush2.bf16.msra.mxu0 %v3464
  %5613 = vmatprep.subr.bf16.mxu0 0
  %5614 = vmatpush2.bf16.msra.mxu0 %v3459
  %5615 = vmatprep.subr.bf16.mxu0 0
  %5616 = vmatpush2.bf16.msra.mxu0 %v3454
  %5617 = vmatprep.mubr.bf16.mxu0 %v993
  %5618 = vmatmul.mubr.bf16.gmra.mxu0 %v992
  %v5619 = vpop.f32.mrf.mxu0
  %v5620 = vadd.f32 %v5579, %v5619
  %v5621 = vpop.f32.mrf.mxu0
  %v5622 = vpop.f32.mrf.mxu0
  %v5623 = vadd.f32 %v5582, %v5622
  %v5624 = vpop.f32.mrf.mxu0
  %5625 = vdwg.mxu0
  %5626 = vmatprep.subr.bf16.mxu0 0
  %5627 = vmatpush1.bf16.msra.mxu0 %v3529
  %5628 = vmatprep.subr.bf16.mxu0 0
  %5629 = vmatpush1.bf16.msra.mxu0 %v3524
  %5630 = vmatprep.subr.bf16.mxu0 0
  %5631 = vmatpush1.bf16.msra.mxu0 %v3519
  %5632 = vmatprep.subr.bf16.mxu0 0
  %5633 = vmatpush1.bf16.msra.mxu0 %v3514
  %5634 = vmatprep.subr.bf16.mxu0 0
  %5635 = vmatpush1.bf16.msra.mxu0 %v3509
  %5636 = vmatprep.subr.bf16.mxu0 0
  %5637 = vmatpush1.bf16.msra.mxu0 %v3504
  %5638 = vmatprep.subr.bf16.mxu0 0
  %5639 = vmatpush1.bf16.msra.mxu0 %v3499
  %5640 = vmatprep.subr.bf16.mxu0 0
  %5641 = vmatpush1.bf16.msra.mxu0 %v3494
  %5642 = vmatprep.subr.bf16.mxu0 0
  %5643 = vmatpush2.bf16.msra.mxu0 %v3569
  %5644 = vmatprep.subr.bf16.mxu0 0
  %5645 = vmatpush2.bf16.msra.mxu0 %v3564
  %5646 = vmatprep.subr.bf16.mxu0 0
  %5647 = vmatpush2.bf16.msra.mxu0 %v3559
  %5648 = vmatprep.subr.bf16.mxu0 0
  %5649 = vmatpush2.bf16.msra.mxu0 %v3554
  %5650 = vmatprep.subr.bf16.mxu0 0
  %5651 = vmatpush2.bf16.msra.mxu0 %v3549
  %5652 = vmatprep.subr.bf16.mxu0 0
  %5653 = vmatpush2.bf16.msra.mxu0 %v3544
  %5654 = vmatprep.subr.bf16.mxu0 0
  %5655 = vmatpush2.bf16.msra.mxu0 %v3539
  %5656 = vmatprep.subr.bf16.mxu0 0
  %5657 = vmatpush2.bf16.msra.mxu0 %v3534
  %5658 = vmatprep.mubr.bf16.mxu0 %v995
  %5659 = vmatmul.mubr.bf16.gmra.mxu0 %v994
  %v5660 = vpop.f32.mrf.mxu0
  %v5661 = vadd.f32 %v5620, %v5660
  %v5662 = vpop.f32.mrf.mxu0
  %v5663 = vpop.f32.mrf.mxu0
  %v5664 = vadd.f32 %v5623, %v5663
  %v5665 = vpop.f32.mrf.mxu0
  %5666 = vdwg.mxu0
  %5667 = vmatprep.subr.bf16.mxu0 0
  %5668 = vmatpush1.bf16.msra.mxu0 %v3609
  %5669 = vmatprep.subr.bf16.mxu0 0
  %5670 = vmatpush1.bf16.msra.mxu0 %v3604
  %5671 = vmatprep.subr.bf16.mxu0 0
  %5672 = vmatpush1.bf16.msra.mxu0 %v3599
  %5673 = vmatprep.subr.bf16.mxu0 0
  %5674 = vmatpush1.bf16.msra.mxu0 %v3594
  %5675 = vmatprep.subr.bf16.mxu0 0
  %5676 = vmatpush1.bf16.msra.mxu0 %v3589
  %5677 = vmatprep.subr.bf16.mxu0 0
  %5678 = vmatpush1.bf16.msra.mxu0 %v3584
  %5679 = vmatprep.subr.bf16.mxu0 0
  %5680 = vmatpush1.bf16.msra.mxu0 %v3579
  %5681 = vmatprep.subr.bf16.mxu0 0
  %5682 = vmatpush1.bf16.msra.mxu0 %v3574
  %5683 = vmatprep.subr.bf16.mxu0 0
  %5684 = vmatpush2.bf16.msra.mxu0 %v3649
  %5685 = vmatprep.subr.bf16.mxu0 0
  %5686 = vmatpush2.bf16.msra.mxu0 %v3644
  %5687 = vmatprep.subr.bf16.mxu0 0
  %5688 = vmatpush2.bf16.msra.mxu0 %v3639
  %5689 = vmatprep.subr.bf16.mxu0 0
  %5690 = vmatpush2.bf16.msra.mxu0 %v3634
  %5691 = vmatprep.subr.bf16.mxu0 0
  %5692 = vmatpush2.bf16.msra.mxu0 %v3629
  %5693 = vmatprep.subr.bf16.mxu0 0
  %5694 = vmatpush2.bf16.msra.mxu0 %v3624
  %5695 = vmatprep.subr.bf16.mxu0 0
  %5696 = vmatpush2.bf16.msra.mxu0 %v3619
  %5697 = vmatprep.subr.bf16.mxu0 0
  %5698 = vmatpush2.bf16.msra.mxu0 %v3614
  %5699 = vmatprep.mubr.bf16.mxu0 %v997
  %5700 = vmatmul.mubr.bf16.gmra.mxu0 %v996
  %v5701 = vpop.f32.mrf.mxu0
  %v5702 = vadd.f32 %v5661, %v5701
  %v5703 = vpop.f32.mrf.mxu0
  %v5704 = vpop.f32.mrf.mxu0
  %v5705 = vadd.f32 %v5664, %v5704
  %v5706 = vpop.f32.mrf.mxu0
  %5707 = vdwg.mxu0
  %5708 = vmatprep.subr.bf16.mxu0 0
  %5709 = vmatpush1.bf16.msra.mxu0 %v3689
  %5710 = vmatprep.subr.bf16.mxu0 0
  %5711 = vmatpush1.bf16.msra.mxu0 %v3684
  %5712 = vmatprep.subr.bf16.mxu0 0
  %5713 = vmatpush1.bf16.msra.mxu0 %v3679
  %5714 = vmatprep.subr.bf16.mxu0 0
  %5715 = vmatpush1.bf16.msra.mxu0 %v3674
  %5716 = vmatprep.subr.bf16.mxu0 0
  %5717 = vmatpush1.bf16.msra.mxu0 %v3669
  %5718 = vmatprep.subr.bf16.mxu0 0
  %5719 = vmatpush1.bf16.msra.mxu0 %v3664
  %5720 = vmatprep.subr.bf16.mxu0 0
  %5721 = vmatpush1.bf16.msra.mxu0 %v3659
  %5722 = vmatprep.subr.bf16.mxu0 0
  %5723 = vmatpush1.bf16.msra.mxu0 %v3654
  %5724 = vmatprep.subr.bf16.mxu0 0
  %5725 = vmatpush2.bf16.msra.mxu0 %v3729
  %5726 = vmatprep.subr.bf16.mxu0 0
  %5727 = vmatpush2.bf16.msra.mxu0 %v3724
  %5728 = vmatprep.subr.bf16.mxu0 0
  %5729 = vmatpush2.bf16.msra.mxu0 %v3719
  %5730 = vmatprep.subr.bf16.mxu0 0
  %5731 = vmatpush2.bf16.msra.mxu0 %v3714
  %5732 = vmatprep.subr.bf16.mxu0 0
  %5733 = vmatpush2.bf16.msra.mxu0 %v3709
  %5734 = vmatprep.subr.bf16.mxu0 0
  %5735 = vmatpush2.bf16.msra.mxu0 %v3704
  %5736 = vmatprep.subr.bf16.mxu0 0
  %5737 = vmatpush2.bf16.msra.mxu0 %v3699
  %5738 = vmatprep.subr.bf16.mxu0 0
  %5739 = vmatpush2.bf16.msra.mxu0 %v3694
  %5740 = vmatprep.mubr.bf16.mxu0 %v999
  %5741 = vmatmul.mubr.bf16.gmra.mxu0 %v998
  %v5742 = vpop.f32.mrf.mxu0
  %v5743 = vadd.f32 %v5702, %v5742
  %v5744 = vpop.f32.mrf.mxu0
  %v5745 = vpop.f32.mrf.mxu0
  %v5746 = vadd.f32 %v5705, %v5745
  %v5747 = vpop.f32.mrf.mxu0
  %5748 = vdwg.mxu0
  %5749 = vmatprep.subr.bf16.mxu0 0
  %5750 = vmatpush1.bf16.msra.mxu0 %v3769
  %5751 = vmatprep.subr.bf16.mxu0 0
  %5752 = vmatpush1.bf16.msra.mxu0 %v3764
  %5753 = vmatprep.subr.bf16.mxu0 0
  %5754 = vmatpush1.bf16.msra.mxu0 %v3759
  %5755 = vmatprep.subr.bf16.mxu0 0
  %5756 = vmatpush1.bf16.msra.mxu0 %v3754
  %5757 = vmatprep.subr.bf16.mxu0 0
  %5758 = vmatpush1.bf16.msra.mxu0 %v3749
  %5759 = vmatprep.subr.bf16.mxu0 0
  %5760 = vmatpush1.bf16.msra.mxu0 %v3744
  %5761 = vmatprep.subr.bf16.mxu0 0
  %5762 = vmatpush1.bf16.msra.mxu0 %v3739
  %5763 = vmatprep.subr.bf16.mxu0 0
  %5764 = vmatpush1.bf16.msra.mxu0 %v3734
  %5765 = vmatprep.subr.bf16.mxu0 0
  %5766 = vmatpush2.bf16.msra.mxu0 %v3809
  %5767 = vmatprep.subr.bf16.mxu0 0
  %5768 = vmatpush2.bf16.msra.mxu0 %v3804
  %5769 = vmatprep.subr.bf16.mxu0 0
  %5770 = vmatpush2.bf16.msra.mxu0 %v3799
  %5771 = vmatprep.subr.bf16.mxu0 0
  %5772 = vmatpush2.bf16.msra.mxu0 %v3794
  %5773 = vmatprep.subr.bf16.mxu0 0
  %5774 = vmatpush2.bf16.msra.mxu0 %v3789
  %5775 = vmatprep.subr.bf16.mxu0 0
  %5776 = vmatpush2.bf16.msra.mxu0 %v3784
  %5777 = vmatprep.subr.bf16.mxu0 0
  %5778 = vmatpush2.bf16.msra.mxu0 %v3779
  %5779 = vmatprep.subr.bf16.mxu0 0
  %5780 = vmatpush2.bf16.msra.mxu0 %v3774
  %5781 = vmatprep.mubr.bf16.mxu0 %v1001
  %5782 = vmatmul.mubr.bf16.gmra.mxu0 %v1000
  %v5783 = vpop.f32.mrf.mxu0
  %v5784 = vadd.f32 %v5743, %v5783
  %v5785 = vpop.f32.mrf.mxu0
  %v5786 = vpop.f32.mrf.mxu0
  %v5787 = vadd.f32 %v5746, %v5786
  %v5788 = vpop.f32.mrf.mxu0
  %5789 = vdwg.mxu0
  %5790 = vmatprep.subr.bf16.mxu0 0
  %5791 = vmatpush1.bf16.msra.mxu0 %v3849
  %5792 = vmatprep.subr.bf16.mxu0 0
  %5793 = vmatpush1.bf16.msra.mxu0 %v3844
  %5794 = vmatprep.subr.bf16.mxu0 0
  %5795 = vmatpush1.bf16.msra.mxu0 %v3839
  %5796 = vmatprep.subr.bf16.mxu0 0
  %5797 = vmatpush1.bf16.msra.mxu0 %v3834
  %5798 = vmatprep.subr.bf16.mxu0 0
  %5799 = vmatpush1.bf16.msra.mxu0 %v3829
  %5800 = vmatprep.subr.bf16.mxu0 0
  %5801 = vmatpush1.bf16.msra.mxu0 %v3824
  %5802 = vmatprep.subr.bf16.mxu0 0
  %5803 = vmatpush1.bf16.msra.mxu0 %v3819
  %5804 = vmatprep.subr.bf16.mxu0 0
  %5805 = vmatpush1.bf16.msra.mxu0 %v3814
  %5806 = vmatprep.subr.bf16.mxu0 0
  %5807 = vmatpush2.bf16.msra.mxu0 %v3889
  %5808 = vmatprep.subr.bf16.mxu0 0
  %5809 = vmatpush2.bf16.msra.mxu0 %v3884
  %5810 = vmatprep.subr.bf16.mxu0 0
  %5811 = vmatpush2.bf16.msra.mxu0 %v3879
  %5812 = vmatprep.subr.bf16.mxu0 0
  %5813 = vmatpush2.bf16.msra.mxu0 %v3874
  %5814 = vmatprep.subr.bf16.mxu0 0
  %5815 = vmatpush2.bf16.msra.mxu0 %v3869
  %5816 = vmatprep.subr.bf16.mxu0 0
  %5817 = vmatpush2.bf16.msra.mxu0 %v3864
  %5818 = vmatprep.subr.bf16.mxu0 0
  %5819 = vmatpush2.bf16.msra.mxu0 %v3859
  %5820 = vmatprep.subr.bf16.mxu0 0
  %5821 = vmatpush2.bf16.msra.mxu0 %v3854
  %5822 = vmatprep.mubr.bf16.mxu0 %v1003
  %5823 = vmatmul.mubr.bf16.gmra.mxu0 %v1002
  %v5824 = vpop.f32.mrf.mxu0
  %v5825 = vadd.f32 %v5784, %v5824
  %v5826 = vpop.f32.mrf.mxu0
  %v5827 = vpop.f32.mrf.mxu0
  %v5828 = vadd.f32 %v5787, %v5827
  %v5829 = vpop.f32.mrf.mxu0
  %5830 = vdwg.mxu0
  %5831 = vmatprep.subr.bf16.mxu0 0
  %5832 = vmatpush1.bf16.msra.mxu0 %v3929
  %5833 = vmatprep.subr.bf16.mxu0 0
  %5834 = vmatpush1.bf16.msra.mxu0 %v3924
  %5835 = vmatprep.subr.bf16.mxu0 0
  %5836 = vmatpush1.bf16.msra.mxu0 %v3919
  %5837 = vmatprep.subr.bf16.mxu0 0
  %5838 = vmatpush1.bf16.msra.mxu0 %v3914
  %5839 = vmatprep.subr.bf16.mxu0 0
  %5840 = vmatpush1.bf16.msra.mxu0 %v3909
  %5841 = vmatprep.subr.bf16.mxu0 0
  %5842 = vmatpush1.bf16.msra.mxu0 %v3904
  %5843 = vmatprep.subr.bf16.mxu0 0
  %5844 = vmatpush1.bf16.msra.mxu0 %v3899
  %5845 = vmatprep.subr.bf16.mxu0 0
  %5846 = vmatpush1.bf16.msra.mxu0 %v3894
  %5847 = vmatprep.subr.bf16.mxu0 0
  %5848 = vmatpush2.bf16.msra.mxu0 %v3969
  %5849 = vmatprep.subr.bf16.mxu0 0
  %5850 = vmatpush2.bf16.msra.mxu0 %v3964
  %5851 = vmatprep.subr.bf16.mxu0 0
  %5852 = vmatpush2.bf16.msra.mxu0 %v3959
  %5853 = vmatprep.subr.bf16.mxu0 0
  %5854 = vmatpush2.bf16.msra.mxu0 %v3954
  %5855 = vmatprep.subr.bf16.mxu0 0
  %5856 = vmatpush2.bf16.msra.mxu0 %v3949
  %5857 = vmatprep.subr.bf16.mxu0 0
  %5858 = vmatpush2.bf16.msra.mxu0 %v3944
  %5859 = vmatprep.subr.bf16.mxu0 0
  %5860 = vmatpush2.bf16.msra.mxu0 %v3939
  %5861 = vmatprep.subr.bf16.mxu0 0
  %5862 = vmatpush2.bf16.msra.mxu0 %v3934
  %5863 = vmatprep.mubr.bf16.mxu0 %v1005
  %5864 = vmatmul.mubr.bf16.gmra.mxu0 %v1004
  %v5865 = vpop.f32.mrf.mxu0
  %v5866 = vadd.f32 %v5825, %v5865
  %v5867 = vpop.f32.mrf.mxu0
  %v5868 = vpop.f32.mrf.mxu0
  %v5869 = vadd.f32 %v5828, %v5868
  %v5870 = vpop.f32.mrf.mxu0
  %5871 = vdwg.mxu0
  %5872 = vmatprep.subr.bf16.mxu0 0
  %5873 = vmatpush1.bf16.msra.mxu0 %v4009
  %5874 = vmatprep.subr.bf16.mxu0 0
  %5875 = vmatpush1.bf16.msra.mxu0 %v4004
  %5876 = vmatprep.subr.bf16.mxu0 0
  %5877 = vmatpush1.bf16.msra.mxu0 %v3999
  %5878 = vmatprep.subr.bf16.mxu0 0
  %5879 = vmatpush1.bf16.msra.mxu0 %v3994
  %5880 = vmatprep.subr.bf16.mxu0 0
  %5881 = vmatpush1.bf16.msra.mxu0 %v3989
  %5882 = vmatprep.subr.bf16.mxu0 0
  %5883 = vmatpush1.bf16.msra.mxu0 %v3984
  %5884 = vmatprep.subr.bf16.mxu0 0
  %5885 = vmatpush1.bf16.msra.mxu0 %v3979
  %5886 = vmatprep.subr.bf16.mxu0 0
  %5887 = vmatpush1.bf16.msra.mxu0 %v3974
  %5888 = vmatprep.subr.bf16.mxu0 0
  %5889 = vmatpush2.bf16.msra.mxu0 %v4049
  %5890 = vmatprep.subr.bf16.mxu0 0
  %5891 = vmatpush2.bf16.msra.mxu0 %v4044
  %5892 = vmatprep.subr.bf16.mxu0 0
  %5893 = vmatpush2.bf16.msra.mxu0 %v4039
  %5894 = vmatprep.subr.bf16.mxu0 0
  %5895 = vmatpush2.bf16.msra.mxu0 %v4034
  %5896 = vmatprep.subr.bf16.mxu0 0
  %5897 = vmatpush2.bf16.msra.mxu0 %v4029
  %5898 = vmatprep.subr.bf16.mxu0 0
  %5899 = vmatpush2.bf16.msra.mxu0 %v4024
  %5900 = vmatprep.subr.bf16.mxu0 0
  %5901 = vmatpush2.bf16.msra.mxu0 %v4019
  %5902 = vmatprep.subr.bf16.mxu0 0
  %5903 = vmatpush2.bf16.msra.mxu0 %v4014
  %5904 = vmatprep.mubr.bf16.mxu0 %v1007
  %5905 = vmatmul.mubr.bf16.gmra.mxu0 %v1006
  %v5906 = vpop.f32.mrf.mxu0
  %v5907 = vadd.f32 %v5866, %v5906
  %v5908 = vpop.f32.mrf.mxu0
  %v5909 = vpop.f32.mrf.mxu0
  %v5910 = vadd.f32 %v5869, %v5909
  %v5911 = vpop.f32.mrf.mxu0
  %5912 = vdwg.mxu0
  %v5913 = vpack.c.bf16 %v5153, %v5149
  %v5914 = vpack.c.bf16 %v5155, %v5151
  %v5915 = vpack.c.bf16 %v5540, %v5536
  %v5916 = vpack.c.bf16 %v5542, %v5538
  %v5917 = vpack.c.bf16 %v5910, %v5907
  %v5918 = vld [vmem:[%s3] sm:$0xf]
  %v5919 = vld [vmem:[%s3 + $0x4] sm:$0xf]
  %v5920 = vld [vmem:[%s3 + $0x8] sm:$0xf]
  %v5921 = vld [vmem:[%s3 + $0xc] sm:$0xf]
  %v5922 = vld [vmem:[%s3 + $0x10] sm:$0xf]
  %v5923 = vld [vmem:[%s3 + $0x14] sm:$0xf]
  %v5924 = vld [vmem:[%s3 + $0x18] sm:$0xf]
  %v5925 = vld [vmem:[%s3 + $0x1c] sm:$0xf]
  %v5926 = vld [vmem:[%s3 + $0x20] sm:$0xf]
  %v5927 = vld [vmem:[%s3 + $0x24] sm:$0xf]
  %v5928 = vld [vmem:[%s3 + $0x28] sm:$0xf]
  %v5929 = vld [vmem:[%s3 + $0x2c] sm:$0xf]
  %v5930 = vld [vmem:[%s3 + $0x30] sm:$0xf]
  %v5931 = vld [vmem:[%s3 + $0x34] sm:$0xf]
  %v5932 = vld [vmem:[%s3 + $0x38] sm:$0xf]
  %v5933 = vld [vmem:[%s3 + $0x3c] sm:$0xf]
  %v5934 = vld [vmem:[%s3 + $0x40] sm:$0xf]
  %v5935 = vld [vmem:[%s3 + $0x44] sm:$0xf]
  %v5936 = vld [vmem:[%s3 + $0x48] sm:$0xf]
  %v5937 = vld [vmem:[%s3 + $0x4c] sm:$0xf]
  %v5938 = vld [vmem:[%s3 + $0x50] sm:$0xf]
  %v5939 = vld [vmem:[%s3 + $0x54] sm:$0xf]
  %v5940 = vld [vmem:[%s3 + $0x58] sm:$0xf]
  %v5941 = vld [vmem:[%s3 + $0x5c] sm:$0xf]
  %v5942 = vld [vmem:[%s3 + $0x60] sm:$0xf]
  %v5943 = vld [vmem:[%s3 + $0x64] sm:$0xf]
  %v5944 = vld [vmem:[%s3 + $0x68] sm:$0xf]
  %v5945 = vld [vmem:[%s3 + $0x6c] sm:$0xf]
  %v5946 = vld [vmem:[%s3 + $0x70] sm:$0xf]
  %v5947 = vld [vmem:[%s3 + $0x74] sm:$0xf]
  %v5948 = vld [vmem:[%s3 + $0x78] sm:$0xf]
  %v5949 = vld [vmem:[%s3 + $0x7c] sm:$0xf]
  %v5950 = vld [vmem:[%s3 + $0x80] sm:$0xf]
  %v5951 = vld [vmem:[%s3 + $0x84] sm:$0xf]
  %v5952 = vld [vmem:[%s3 + $0x88] sm:$0xf]
  %v5953 = vld [vmem:[%s3 + $0x8c] sm:$0xf]
  %v5954 = vld [vmem:[%s3 + $0x90] sm:$0xf]
  %v5955 = vld [vmem:[%s3 + $0x94] sm:$0xf]
  %v5956 = vld [vmem:[%s3 + $0x98] sm:$0xf]
  %v5957 = vld [vmem:[%s3 + $0x9c] sm:$0xf]
  %v5958 = vld [vmem:[%s3 + $0xa0] sm:$0xf]
  %v5959 = vld [vmem:[%s3 + $0xa4] sm:$0xf]
  %v5960 = vld [vmem:[%s3 + $0xa8] sm:$0xf]
  %v5961 = vld [vmem:[%s3 + $0xac] sm:$0xf]
  %v5962 = vld [vmem:[%s3 + $0xb0] sm:$0xf]
  %v5963 = vld [vmem:[%s3 + $0xb4] sm:$0xf]
  %v5964 = vld [vmem:[%s3 + $0xb8] sm:$0xf]
  %v5965 = vld [vmem:[%s3 + $0xbc] sm:$0xf]
  %v5966 = vld [vmem:[%s3 + $0xc0] sm:$0xf]
  %v5967 = vld [vmem:[%s3 + $0xc4] sm:$0xf]
  %v5968 = vld [vmem:[%s3 + $0xc8] sm:$0xf]
  %v5969 = vld [vmem:[%s3 + $0xcc] sm:$0xf]
  %v5970 = vld [vmem:[%s3 + $0xd0] sm:$0xf]
  %v5971 = vld [vmem:[%s3 + $0xd4] sm:$0xf]
  %v5972 = vld [vmem:[%s3 + $0xd8] sm:$0xf]
  %v5973 = vld [vmem:[%s3 + $0xdc] sm:$0xf]
  %v5974 = vld [vmem:[%s3 + $0xe0] sm:$0xf]
  %v5975 = vld [vmem:[%s3 + $0xe4] sm:$0xf]
  %v5976 = vld [vmem:[%s3 + $0xe8] sm:$0xf]
  %v5977 = vld [vmem:[%s3 + $0xec] sm:$0xf]
  %v5978 = vld [vmem:[%s3 + $0xf0] sm:$0xf]
  %v5979 = vld [vmem:[%s3 + $0xf4] sm:$0xf]
  %v5980 = vld [vmem:[%s3 + $0xf8] sm:$0xf]
  %v5981 = vld [vmem:[%s3 + $0xfc] sm:$0xf]
  %v5982 = vld [vmem:[%s3 + $0x100] sm:$0xf]
  %v5983 = vld [vmem:[%s3 + $0x104] sm:$0xf]
  %v5984 = vld [vmem:[%s3 + $0x108] sm:$0xf]
  %v5985 = vld [vmem:[%s3 + $0x10c] sm:$0xf]
  %v5986 = vld [vmem:[%s3 + $0x110] sm:$0xf]
  %v5987 = vld [vmem:[%s3 + $0x114] sm:$0xf]
  %v5988 = vld [vmem:[%s3 + $0x118] sm:$0xf]
  %v5989 = vld [vmem:[%s3 + $0x11c] sm:$0xf]
  %v5990 = vld [vmem:[%s3 + $0x120] sm:$0xf]
  %v5991 = vld [vmem:[%s3 + $0x124] sm:$0xf]
  %v5992 = vld [vmem:[%s3 + $0x128] sm:$0xf]
  %v5993 = vld [vmem:[%s4] sm:$0x1]
  %v5995 = vlaneseq
  %v5996 = vshrl.u32 %v5995, 7
  %v5997 = vsub.s32 0, %v5996
  %v5998 = vrot.slane %v5993, %v5997
  %v6075 = vunpack.c.l.b16 %v5918
  %v6076 = vunpack.c.l.b16 %v5919
  %v6077 = vunpack.c.l.b16 %v5920
  %v6078 = vunpack.c.l.b16 %v5921
  %v6079 = vunpack.c.l.b16 %v5922
  %v6080 = vunpack.c.l.b16 %v5923
  %v6081 = vunpack.c.l.b16 %v5924
  %v6082 = vunpack.c.l.b16 %v5925
  %v6083 = vunpack.c.l.b16 %v5926
  %v6084 = vunpack.c.l.b16 %v5927
  %v6085 = vunpack.c.l.b16 %v5928
  %v6086 = vunpack.c.l.b16 %v5929
  %v6087 = vunpack.c.l.b16 %v5930
  %v6088 = vunpack.c.l.b16 %v5931
  %v6089 = vunpack.c.l.b16 %v5932
  %v6090 = vunpack.c.l.b16 %v5933
  %v6091 = vunpack.c.l.b16 %v5934
  %v6092 = vunpack.c.l.b16 %v5935
  %v6093 = vunpack.c.l.b16 %v5936
  %v6094 = vunpack.c.l.b16 %v5937
  %v6095 = vunpack.c.l.b16 %v5938
  %v6096 = vunpack.c.l.b16 %v5939
  %v6097 = vunpack.c.l.b16 %v5940
  %v6098 = vunpack.c.l.b16 %v5941
  %v6099 = vunpack.c.l.b16 %v5942
  %v6100 = vunpack.c.l.b16 %v5943
  %v6101 = vunpack.c.l.b16 %v5944
  %v6102 = vunpack.c.l.b16 %v5945
  %v6103 = vunpack.c.l.b16 %v5946
  %v6104 = vunpack.c.l.b16 %v5947
  %v6105 = vunpack.c.l.b16 %v5948
  %v6106 = vunpack.c.l.b16 %v5949
  %v6107 = vunpack.c.l.b16 %v5950
  %v6108 = vunpack.c.l.b16 %v5951
  %v6109 = vunpack.c.l.b16 %v5952
  %v6110 = vunpack.c.l.b16 %v5953
  %v6111 = vunpack.c.l.b16 %v5954
  %v6112 = vunpack.c.l.b16 %v5955
  %v6113 = vunpack.c.l.b16 %v5956
  %v6114 = vunpack.c.l.b16 %v5957
  %v6115 = vunpack.c.l.b16 %v5958
  %v6116 = vunpack.c.l.b16 %v5959
  %v6117 = vunpack.c.l.b16 %v5960
  %v6118 = vunpack.c.l.b16 %v5961
  %v6119 = vunpack.c.l.b16 %v5962
  %v6120 = vunpack.c.l.b16 %v5963
  %v6121 = vunpack.c.l.b16 %v5964
  %v6122 = vunpack.c.l.b16 %v5965
  %v6123 = vunpack.c.l.b16 %v5966
  %v6124 = vunpack.c.l.b16 %v5967
  %v6125 = vunpack.c.l.b16 %v5968
  %v6126 = vunpack.c.l.b16 %v5969
  %v6127 = vunpack.c.l.b16 %v5970
  %v6128 = vunpack.c.l.b16 %v5971
  %v6129 = vunpack.c.l.b16 %v5972
  %v6130 = vunpack.c.l.b16 %v5973
  %v6131 = vunpack.c.l.b16 %v5974
  %v6132 = vunpack.c.l.b16 %v5975
  %v6133 = vunpack.c.l.b16 %v5976
  %v6134 = vunpack.c.l.b16 %v5977
  %v6135 = vunpack.c.l.b16 %v5978
  %v6136 = vunpack.c.l.b16 %v5979
  %v6137 = vunpack.c.l.b16 %v5980
  %v6138 = vunpack.c.l.b16 %v5981
  %v6139 = vunpack.c.l.b16 %v5982
  %v6140 = vunpack.c.l.b16 %v5983
  %v6141 = vunpack.c.l.b16 %v5984
  %v6142 = vunpack.c.l.b16 %v5985
  %v6143 = vunpack.c.l.b16 %v5986
  %v6144 = vunpack.c.l.b16 %v5987
  %v6145 = vunpack.c.l.b16 %v5988
  %v6146 = vunpack.c.l.b16 %v5989
  %v6147 = vunpack.c.l.b16 %v5990
  %v6148 = vunpack.c.l.b16 %v5991
  %v6149 = vunpack.c.l.b16 %v5992
  %v6150 = vpack.c.b16 %v6076, %v6075
  %v6151 = vpack.c.b16 %v6078, %v6077
  %v6152 = vpack.c.b16 %v6080, %v6079
  %v6153 = vpack.c.b16 %v6082, %v6081
  %v6154 = vpack.c.b16 %v6084, %v6083
  %v6155 = vpack.c.b16 %v6086, %v6085
  %v6156 = vpack.c.b16 %v6088, %v6087
  %v6157 = vpack.c.b16 %v6090, %v6089
  %v6158 = vpack.c.b16 %v6092, %v6091
  %v6159 = vpack.c.b16 %v6094, %v6093
  %v6160 = vpack.c.b16 %v6096, %v6095
  %v6161 = vpack.c.b16 %v6098, %v6097
  %v6162 = vpack.c.b16 %v6100, %v6099
  %v6163 = vpack.c.b16 %v6102, %v6101
  %v6164 = vpack.c.b16 %v6104, %v6103
  %v6165 = vpack.c.b16 %v6106, %v6105
  %v6166 = vpack.c.b16 %v6108, %v6107
  %v6167 = vpack.c.b16 %v6110, %v6109
  %v6168 = vpack.c.b16 %v6112, %v6111
  %v6169 = vpack.c.b16 %v6114, %v6113
  %v6170 = vpack.c.b16 %v6116, %v6115
  %v6171 = vpack.c.b16 %v6118, %v6117
  %v6172 = vpack.c.b16 %v6120, %v6119
  %v6173 = vpack.c.b16 %v6122, %v6121
  %v6174 = vpack.c.b16 %v6124, %v6123
  %v6175 = vpack.c.b16 %v6126, %v6125
  %v6176 = vpack.c.b16 %v6128, %v6127
  %v6177 = vpack.c.b16 %v6130, %v6129
  %v6178 = vpack.c.b16 %v6132, %v6131
  %v6179 = vpack.c.b16 %v6134, %v6133
  %v6180 = vpack.c.b16 %v6136, %v6135
  %v6181 = vpack.c.b16 %v6138, %v6137
  %v6182 = vpack.c.b16 %v6140, %v6139
  %v6183 = vpack.c.b16 %v6142, %v6141
  %v6184 = vpack.c.b16 %v6144, %v6143
  %v6185 = vpack.c.b16 %v6146, %v6145
  %v6186 = vpack.c.b16 %v6148, %v6147
  %v6187 = vpack.c.b16 %v6149, %v6149
  %vm6225 = vcmask 719872
  %v6227 = vsel %vm6225, %v5917, 0
  %vm6229 = vcmask 1043456
  %v6231 = vsel %vm6229, %v6187, 0
  %6233 = vmatprep.subr.bf16.mxu0 0
  %6234 = vmatpush1.bf16.msra.mxu0 %v6157
  %6235 = vmatprep.subr.bf16.mxu0 0
  %6236 = vmatpush1.bf16.msra.mxu0 %v6156
  %6237 = vmatprep.subr.bf16.mxu0 0
  %6238 = vmatpush1.bf16.msra.mxu0 %v6155
  %6239 = vmatprep.subr.bf16.mxu0 0
  %6240 = vmatpush1.bf16.msra.mxu0 %v6154
  %6241 = vmatprep.subr.bf16.mxu0 0
  %6242 = vmatpush1.bf16.msra.mxu0 %v6153
  %6243 = vmatprep.subr.bf16.mxu0 0
  %6244 = vmatpush1.bf16.msra.mxu0 %v6152
  %6245 = vmatprep.subr.bf16.mxu0 0
  %6246 = vmatpush1.bf16.msra.mxu0 %v6151
  %6247 = vmatprep.subr.bf16.mxu0 0
  %6248 = vmatpush1.bf16.msra.mxu0 %v6150
  %6249 = vmatprep.subr.bf16.mxu0 0
  %6250 = vmatpush2.bf16.msra.mxu0 %v6165
  %6251 = vmatprep.subr.bf16.mxu0 0
  %6252 = vmatpush2.bf16.msra.mxu0 %v6164
  %6253 = vmatprep.subr.bf16.mxu0 0
  %6254 = vmatpush2.bf16.msra.mxu0 %v6163
  %6255 = vmatprep.subr.bf16.mxu0 0
  %6256 = vmatpush2.bf16.msra.mxu0 %v6162
  %6257 = vmatprep.subr.bf16.mxu0 0
  %6258 = vmatpush2.bf16.msra.mxu0 %v6161
  %6259 = vmatprep.subr.bf16.mxu0 0
  %6260 = vmatpush2.bf16.msra.mxu0 %v6160
  %6261 = vmatprep.subr.bf16.mxu0 0
  %6262 = vmatpush2.bf16.msra.mxu0 %v6159
  %6263 = vmatprep.subr.bf16.mxu0 0
  %6264 = vmatpush2.bf16.msra.mxu0 %v6158
  %6265 = vmatprep.mubr.bf16.mxu0 %v5914
  %6266 = vmatmul.mubr.bf16.gmra.mxu0 %v5913
  %v6267 = vpop.f32.mrf.mxu0
  %v6268 = vadd.f32 %v5998, %v6267
  %v6269 = vpop.f32.mrf.mxu0
  %v6270 = vpop.f32.mrf.mxu0
  %v6271 = vadd.f32 %v5998, %v6270
  %v6272 = vpop.f32.mrf.mxu0
  %6273 = vdwg.mxu0
  %6274 = vmatprep.subr.bf16.mxu0 0
  %6275 = vmatpush1.bf16.msra.mxu0 %v6173
  %6276 = vmatprep.subr.bf16.mxu0 0
  %6277 = vmatpush1.bf16.msra.mxu0 %v6172
  %6278 = vmatprep.subr.bf16.mxu0 0
  %6279 = vmatpush1.bf16.msra.mxu0 %v6171
  %6280 = vmatprep.subr.bf16.mxu0 0
  %6281 = vmatpush1.bf16.msra.mxu0 %v6170
  %6282 = vmatprep.subr.bf16.mxu0 0
  %6283 = vmatpush1.bf16.msra.mxu0 %v6169
  %6284 = vmatprep.subr.bf16.mxu0 0
  %6285 = vmatpush1.bf16.msra.mxu0 %v6168
  %6286 = vmatprep.subr.bf16.mxu0 0
  %6287 = vmatpush1.bf16.msra.mxu0 %v6167
  %6288 = vmatprep.subr.bf16.mxu0 0
  %6289 = vmatpush1.bf16.msra.mxu0 %v6166
  %6290 = vmatprep.subr.bf16.mxu0 0
  %6291 = vmatpush2.bf16.msra.mxu0 %v6181
  %6292 = vmatprep.subr.bf16.mxu0 0
  %6293 = vmatpush2.bf16.msra.mxu0 %v6180
  %6294 = vmatprep.subr.bf16.mxu0 0
  %6295 = vmatpush2.bf16.msra.mxu0 %v6179
  %6296 = vmatprep.subr.bf16.mxu0 0
  %6297 = vmatpush2.bf16.msra.mxu0 %v6178
  %6298 = vmatprep.subr.bf16.mxu0 0
  %6299 = vmatpush2.bf16.msra.mxu0 %v6177
  %6300 = vmatprep.subr.bf16.mxu0 0
  %6301 = vmatpush2.bf16.msra.mxu0 %v6176
  %6302 = vmatprep.subr.bf16.mxu0 0
  %6303 = vmatpush2.bf16.msra.mxu0 %v6175
  %6304 = vmatprep.subr.bf16.mxu0 0
  %6305 = vmatpush2.bf16.msra.mxu0 %v6174
  %6306 = vmatprep.mubr.bf16.mxu0 %v5916
  %6307 = vmatmul.mubr.bf16.gmra.mxu0 %v5915
  %v6308 = vpop.f32.mrf.mxu0
  %v6309 = vadd.f32 %v6268, %v6308
  %v6310 = vpop.f32.mrf.mxu0
  %v6311 = vpop.f32.mrf.mxu0
  %v6312 = vadd.f32 %v6271, %v6311
  %v6313 = vpop.f32.mrf.mxu0
  %6314 = vdwg.mxu0
  %6315 = vmatprep.subr.bf16.mxu0 0
  %6316 = vmatpush1.bf16.msra.mxu0 0
  %6317 = vmatprep.subr.bf16.mxu0 0
  %6318 = vmatpush1.bf16.msra.mxu0 0
  %6319 = vmatprep.subr.bf16.mxu0 0
  %6320 = vmatpush1.bf16.msra.mxu0 %v6231
  %6321 = vmatprep.subr.bf16.mxu0 0
  %6322 = vmatpush1.bf16.msra.mxu0 %v6186
  %6323 = vmatprep.subr.bf16.mxu0 0
  %6324 = vmatpush1.bf16.msra.mxu0 %v6185
  %6325 = vmatprep.subr.bf16.mxu0 0
  %6326 = vmatpush1.bf16.msra.mxu0 %v6184
  %6327 = vmatprep.subr.bf16.mxu0 0
  %6328 = vmatpush1.bf16.msra.mxu0 %v6183
  %6329 = vmatprep.subr.bf16.mxu0 0
  %6330 = vmatpush1.bf16.msra.mxu0 %v6182
  %6331 = vmatprep.subr.bf16.mxu0 0
  %6332 = vmatpush2.bf16.msra.mxu0 0
  %6333 = vmatprep.subr.bf16.mxu0 0
  %6334 = vmatpush2.bf16.msra.mxu0 0
  %6335 = vmatprep.subr.bf16.mxu0 0
  %6336 = vmatpush2.bf16.msra.mxu0 0
  %6337 = vmatprep.subr.bf16.mxu0 0
  %6338 = vmatpush2.bf16.msra.mxu0 0
  %6339 = vmatprep.subr.bf16.mxu0 0
  %6340 = vmatpush2.bf16.msra.mxu0 0
  %6341 = vmatprep.subr.bf16.mxu0 0
  %6342 = vmatpush2.bf16.msra.mxu0 0
  %6343 = vmatprep.subr.bf16.mxu0 0
  %6344 = vmatpush2.bf16.msra.mxu0 0
  %6345 = vmatprep.subr.bf16.mxu0 0
  %6346 = vmatpush2.bf16.msra.mxu0 0
  %6347 = vmatprep.mubr.bf16.mxu0 0
  %6348 = vmatmul.mubr.bf16.gmra.mxu0 %v6227
  %v6349 = vpop.f32.mrf.mxu0
  %v6350 = vadd.f32 %v6309, %v6349
  %v6351 = vpop.f32.mrf.mxu0
  %v6352 = vpop.f32.mrf.mxu0
  %v6353 = vadd.f32 %v6312, %v6352
  %v6354 = vpop.f32.mrf.mxu0
  %6355 = vdwg.mxu0
  %v6356 = vpack.c.bf16 %v6353, %v6350
  %v6357 = vld [vmem:[%s5] sm:$0xf]
  %v6358 = vld [vmem:[%s5 + $0x4] sm:$0xf]
  %v6359 = vld [vmem:[%s5 + $0x8] sm:$0xf]
  %v6360 = vld [vmem:[%s5 + $0xc] sm:$0xf]
  %v6361 = vld [vmem:[%s5 + $0x10] sm:$0xf]
  %v6362 = vld [vmem:[%s5 + $0x14] sm:$0xf]
  %v6363 = vld [vmem:[%s5 + $0x18] sm:$0xf]
  %v6364 = vld [vmem:[%s5 + $0x1c] sm:$0xf]
  %v6365 = vld [vmem:[%s5 + $0x20] sm:$0xf]
  %v6366 = vld [vmem:[%s5 + $0x24] sm:$0xf]
  %v6367 = vld [vmem:[%s5 + $0x28] sm:$0xf]
  %v6368 = vld [vmem:[%s5 + $0x2c] sm:$0xf]
  %v6369 = vld [vmem:[%s5 + $0x30] sm:$0xf]
  %v6370 = vld [vmem:[%s5 + $0x34] sm:$0xf]
  %v6371 = vld [vmem:[%s5 + $0x38] sm:$0xf]
  %v6372 = vld [vmem:[%s5 + $0x3c] sm:$0xf]
  %v6373 = vld [vmem:[%s6] sm:$0x1]
  %v6375 = vlaneseq
  %v6376 = vshrl.u32 %v6375, 7
  %v6377 = vsub.s32 0, %v6376
  %v6378 = vrot.slane %v6373, %v6377
  %v6396 = vunpack.c.l.b16 %v6357
  %v6397 = vunpack.c.l.b16 %v6358
  %v6398 = vunpack.c.l.b16 %v6359
  %v6399 = vunpack.c.l.b16 %v6360
  %v6400 = vunpack.c.l.b16 %v6361
  %v6401 = vunpack.c.l.b16 %v6362
  %v6402 = vunpack.c.l.b16 %v6363
  %v6403 = vunpack.c.l.b16 %v6364
  %v6404 = vunpack.c.l.b16 %v6365
  %v6405 = vunpack.c.l.b16 %v6366
  %v6406 = vunpack.c.l.b16 %v6367
  %v6407 = vunpack.c.l.b16 %v6368
  %v6408 = vunpack.c.l.b16 %v6369
  %v6409 = vunpack.c.l.b16 %v6370
  %v6410 = vunpack.c.l.b16 %v6371
  %v6411 = vunpack.c.l.b16 %v6372
  %v6412 = vpack.c.b16 %v6397, %v6396
  %v6413 = vpack.c.b16 %v6399, %v6398
  %v6414 = vpack.c.b16 %v6401, %v6400
  %v6415 = vpack.c.b16 %v6403, %v6402
  %v6416 = vpack.c.b16 %v6405, %v6404
  %v6417 = vpack.c.b16 %v6407, %v6406
  %v6418 = vpack.c.b16 %v6409, %v6408
  %v6419 = vpack.c.b16 %v6411, %v6410
  %6428 = vmatprep.subr.bf16.mxu0 0
  %6429 = vmatpush1.bf16.msra.mxu0 %v6419
  %6430 = vmatprep.subr.bf16.mxu0 0
  %6431 = vmatpush1.bf16.msra.mxu0 %v6418
  %6432 = vmatprep.subr.bf16.mxu0 0
  %6433 = vmatpush1.bf16.msra.mxu0 %v6417
  %6434 = vmatprep.subr.bf16.mxu0 0
  %6435 = vmatpush1.bf16.msra.mxu0 %v6416
  %6436 = vmatprep.subr.bf16.mxu0 0
  %6437 = vmatpush1.bf16.msra.mxu0 %v6415
  %6438 = vmatprep.subr.bf16.mxu0 0
  %6439 = vmatpush1.bf16.msra.mxu0 %v6414
  %6440 = vmatprep.subr.bf16.mxu0 0
  %6441 = vmatpush1.bf16.msra.mxu0 %v6413
  %6442 = vmatprep.subr.bf16.mxu0 0
  %6443 = vmatpush1.bf16.msra.mxu0 %v6412
  %6444 = vmatprep.subr.bf16.mxu0 0
  %6445 = vmatpush2.bf16.msra.mxu0 0
  %6446 = vmatprep.subr.bf16.mxu0 0
  %6447 = vmatpush2.bf16.msra.mxu0 0
  %6448 = vmatprep.subr.bf16.mxu0 0
  %6449 = vmatpush2.bf16.msra.mxu0 0
  %6450 = vmatprep.subr.bf16.mxu0 0
  %6451 = vmatpush2.bf16.msra.mxu0 0
  %6452 = vmatprep.subr.bf16.mxu0 0
  %6453 = vmatpush2.bf16.msra.mxu0 0
  %6454 = vmatprep.subr.bf16.mxu0 0
  %6455 = vmatpush2.bf16.msra.mxu0 0
  %6456 = vmatprep.subr.bf16.mxu0 0
  %6457 = vmatpush2.bf16.msra.mxu0 0
  %6458 = vmatprep.subr.bf16.mxu0 0
  %6459 = vmatpush2.bf16.msra.mxu0 0
  %6460 = vmatprep.mubr.bf16.mxu0 0
  %6461 = vmatmul.mubr.bf16.gmra.mxu0 %v6356
  %v6462 = vpop.f32.mrf.mxu0
  %v6463 = vadd.f32 %v6378, %v6462
  %v6464 = vpop.f32.mrf.mxu0
  %v6465 = vpop.f32.mrf.mxu0
  %v6466 = vadd.f32 %v6378, %v6465
  %v6467 = vpop.f32.mrf.mxu0
  %6468 = vdwg.mxu0
  %6469 = vst [vmem:[%s7] sm:$0xff] %v6463
  %6470 = vst [vmem:[%s7 + $0x8] sm:$0xff] %v6466
  // Predicated region
  $region30: #{fashion_cnn_forward.5} parent=0 // pred_check
    _
  $region31: #{fashion_cnn_forward.5} parent=0 // pred_check_branch
    %6472 = sbr.rel (0) target = $region33
  $region32: #{fashion_cnn_forward.5} parent=0 // pred_region
    _
  $region33: #{fashion_cnn_forward.5} parent=0 // pred_fallthru
    _
  // Predicated region
  $region34: #{fashion_cnn_forward.5} parent=0 // pred_check
    _
  $region35: #{fashion_cnn_forward.5} parent=0 // pred_check_branch
    %6474 = sbr.rel (0) target = $region37
  $region36: #{fashion_cnn_forward.5} parent=0 // pred_region
    _
  $region37: #{fashion_cnn_forward.5} parent=0 // pred_fallthru
    _

</llo_original>
